<compile_context>
chip_gen: v6e
topology: v6e:2x2x1
jax: 0.10.0
libtpu: 0.0.40
codegen_flags: <defaults>
</compile_context>

<pallas_src>
import jax
import jax.numpy as jnp
from jax import lax
from jax.experimental import pallas as pl
from jax.experimental.pallas import tpu as pltpu

KMAX = 5           # largest branch kernel size
PAD = KMAX // 2    # shared spatial padding (max half-kernel among branches)


def inception_kernel(x_ref, wt_ref, b_ref, o_ref):
    # x_ref : (NB, Hp, Wp, Cin)       pre-padded NHWC input block
    # wt_ref: (Ctot, KMAX*KMAX*Cin)   packed, pre-transposed branch weights
    # b_ref : (Ctot, 1)               packed biases
    # o_ref : (NB, Ctot, H*W)         lane-dense output (NCHW via a free reshape)
    NB, Hp, Wp, Cin = x_ref.shape
    HW = o_ref.shape[2]
    H, W = Hp - 2 * PAD, Wp - 2 * PAD

    # im2col: one (NB*H*W, 25*Cin) patch matrix covering every tap of every branch.
    rows = []
    for n in range(NB):
        taps = []
        for i in range(KMAX):
            for j in range(KMAX):
                patch = x_ref[n, i:i + H, j:j + W, :]       # (H, W, Cin)
                taps.append(patch.reshape(H * W, Cin))
        rows.append(jnp.concatenate(taps, axis=-1))         # (H*W, 25*Cin)
    patches = jnp.concatenate(rows, axis=0)                  # (NB*H*W, 25*Cin)

    # Single MXU matmul for all branches: (Ctot, K) x (NB*HW, K)^T -> (Ctot, NB*HW).
    # The rhs transpose is expressed via dot_general dimension numbers (flash-attn
    # q @ k.T pattern), so no relayout is materialized and the result comes out
    # channel-major already.
    acc = lax.dot_general(
        wt_ref[...], patches,
        dimension_numbers=(((1,), (1,)), ((), ())),
        preferred_element_type=jnp.float32)
    acc = jnp.maximum(acc + b_ref[...], 0.0)                  # bias + ReLU, once

    for n in range(NB):
        o_ref[n, :, :] = acc[:, n * HW:(n + 1) * HW].astype(o_ref.dtype)


@jax.jit
def inception_forward(x_nchw, w0, b0, w1, b1, w2, b2):
    N, Cin, H, W = x_nchw.shape
    C0, C1, C2 = w0.shape[2], w1.shape[2], w2.shape[2]
    Ctot = C0 + C1 + C2
    K2 = KMAX * KMAX

    # --- Pack all branch weights onto one shared 5x5 tap grid (zero-pad small kernels).
    def place(W5, w, k, c_off, c_sz):
        off = PAD - k // 2
        wk = w.reshape(k, k, Cin, c_sz).astype(jnp.float32)
        return W5.at[off:off + k, off:off + k, :, c_off:c_off + c_sz].set(wk)

    W5 = jnp.zeros((KMAX, KMAX, Cin, Ctot), dtype=jnp.float32)
    W5 = place(W5, w0, 1, 0, C0)
    W5 = place(W5, w1, 3, C0, C1)
    W5 = place(W5, w2, 5, C0 + C1, C2)
    wt = W5.reshape(K2 * Cin, Ctot).T                         # (Ctot, 25*Cin)
    bias = jnp.concatenate([b0, b1, b2], axis=-1).reshape(Ctot, 1).astype(jnp.float32)

    # --- Input: NCHW -> NHWC once, pad spatially by the largest half-kernel.
    x = jnp.transpose(x_nchw, (0, 2, 3, 1))
    xp = jnp.pad(x, ((0, 0), (PAD, PAD), (PAD, PAD), (0, 0)))
    Hp, Wp = H + 2 * PAD, W + 2 * PAD

    # --- Batch blocking: several images per grid step (amortizes the ~0.35us per-step
    # pipeline overhead and grows the matmul N dim); batch stays the outer "parallel"
    # grid axis so v7x megacore can still shard it when N is larger.
    NB = max(d for d in range(1, min(N, 8) + 1) if N % d == 0)

    out = pl.pallas_call(
        inception_kernel,
        out_shape=jax.ShapeDtypeStruct((N, Ctot, H * W), x_nchw.dtype),
        grid=(N // NB,),
        in_specs=[
            pl.BlockSpec((NB, Hp, Wp, Cin), lambda n: (n, 0, 0, 0)),
            # packed weights / bias: a single constant block for every grid step
            pl.BlockSpec((Ctot, K2 * Cin), lambda n: (0, 0)),
            pl.BlockSpec((Ctot, 1), lambda n: (0, 0)),
        ],
        out_specs=pl.BlockSpec((NB, Ctot, H * W), lambda n: (n, 0, 0)),
        compiler_params=pltpu.CompilerParams(
            dimension_semantics=("parallel",)),
    )(xp, wt, bias)

    # Output is already channel-major (N, Ctot, H*W): NCHW via a free reshape.
    return out.reshape(N, Ctot, H, W)


def _ref_branch(x_nhwc, w, b, k, pad):
    """Pure-JAX reference: cross-correlation conv (== PyTorch Conv2d) + bias + ReLU."""
    Cin = x_nhwc.shape[-1]
    cout = w.shape[2]
    w_hwio = w.reshape(k, k, Cin, cout)
    y = lax.conv_general_dilated(
        x_nhwc, w_hwio, window_strides=(1, 1),
        padding=[(pad, pad), (pad, pad)],
        dimension_numbers=("NHWC", "HWIO", "NHWC"))
    return jnp.maximum(y + b.reshape(1, 1, 1, -1), 0.0)


def _reference(x_nchw, w0, b0, w1, b1, w2, b2):
    x = jnp.transpose(x_nchw, (0, 2, 3, 1))
    y0 = _ref_branch(x, w0, b0, 1, 0)
    y1 = _ref_branch(x, w1, b1, 3, 1)
    y2 = _ref_branch(x, w2, b2, 5, 2)
    y = jnp.concatenate([y0, y1, y2], axis=-1)
    return jnp.transpose(y, (0, 3, 1, 2))


if __name__ == "__main__":
    key = jax.random.PRNGKey(0)
    N, Cin, H, W = 2, 4, 16, 16
    C0, C1, C2 = 8, 8, 8

    ks = jax.random.split(key, 7)
    x = jax.random.normal(ks[0], (N, Cin, H, W), dtype=jnp.float32)
    # weights stored as (k*k, Cin, Cout); biases as (1, Cout)
    w0 = jax.random.normal(ks[1], (1 * 1, Cin, C0), dtype=jnp.float32) * 0.3
    w1 = jax.random.normal(ks[2], (3 * 3, Cin, C1), dtype=jnp.float32) * 0.1
    w2 = jax.random.normal(ks[3], (5 * 5, Cin, C2), dtype=jnp.float32) * 0.05
    b0 = jax.random.normal(ks[4], (1, C0), dtype=jnp.float32) * 0.1
    b1 = jax.random.normal(ks[5], (1, C1), dtype=jnp.float32) * 0.1
    b2 = jax.random.normal(ks[6], (1, C2), dtype=jnp.float32) * 0.1

    out = inception_forward(x, w0, b0, w1, b1, w2, b2)
    out = jax.block_until_ready(out)

    ref = _reference(x, w0, b0, w1, b1, w2, b2)
    assert out.shape == (N, C0 + C1 + C2, H, W), out.shape
    err = float(jnp.abs(out - ref).max())
    assert jnp.allclose(out, ref, atol=1e-4, rtol=1e-4), err

    print("KERNEL_OK")
</pallas_src>

<mosaic_0001>
module attributes {stable_mosaic.version = 11 : i64} {
  func.func @inception_kernel(%arg0: i32, %arg1: memref<2x20x20x4xf32, #tpu.memory_space<vmem>>, %arg2: memref<24x100xf32, #tpu.memory_space<vmem>>, %arg3: memref<24x1xf32, #tpu.memory_space<vmem>>, %arg4: memref<2x24x256xf32, #tpu.memory_space<vmem>>) attributes {dimension_semantics = [#tpu.dimension_semantics<parallel>], iteration_bounds = array<i64: 1>, scalar_prefetch = 0 : i64, scratch_operands = 0 : i64, tpu.core_type = #tpu.core_type<tc>, window_params = [{transform_indices = @transform_0, window_bounds = array<i64: 2, 20, 20, 4>}, {pipeline_mode = #tpu.pipeline_mode<synchronous>, transform_indices = @transform_1, window_bounds = array<i64: 24, 100>}, {pipeline_mode = #tpu.pipeline_mode<synchronous>, transform_indices = @transform_2, window_bounds = array<i64: 24, 1>}, {transform_indices = @transform_3, window_bounds = array<i64: 2, 24, 256>}]} {
    %c0 = arith.constant 0 : index
    %c0_0 = arith.constant 0 : index
    %c0_1 = arith.constant 0 : index
    %c0_2 = arith.constant 0 : index
    %0 = vector.load %arg1[%c0, %c0_0, %c0_1, %c0_2] : memref<2x20x20x4xf32, #tpu.memory_space<vmem>>, vector<1x16x16x4xf32>
    %1 = vector.shape_cast %0 : vector<1x16x16x4xf32> to vector<16x16x4xf32>
    %2 = vector.shape_cast %1 : vector<16x16x4xf32> to vector<256x4xf32>
    %c0_3 = arith.constant 0 : index
    %c0_4 = arith.constant 0 : index
    %c1 = arith.constant 1 : index
    %c0_5 = arith.constant 0 : index
    %3 = vector.load %arg1[%c0_3, %c0_4, %c1, %c0_5] : memref<2x20x20x4xf32, #tpu.memory_space<vmem>>, vector<1x16x16x4xf32>
    %4 = vector.shape_cast %3 : vector<1x16x16x4xf32> to vector<16x16x4xf32>
    %5 = vector.shape_cast %4 : vector<16x16x4xf32> to vector<256x4xf32>
    %c0_6 = arith.constant 0 : index
    %c0_7 = arith.constant 0 : index
    %c2 = arith.constant 2 : index
    %c0_8 = arith.constant 0 : index
    %6 = vector.load %arg1[%c0_6, %c0_7, %c2, %c0_8] : memref<2x20x20x4xf32, #tpu.memory_space<vmem>>, vector<1x16x16x4xf32>
    %7 = vector.shape_cast %6 : vector<1x16x16x4xf32> to vector<16x16x4xf32>
    %8 = vector.shape_cast %7 : vector<16x16x4xf32> to vector<256x4xf32>
    %c0_9 = arith.constant 0 : index
    %c0_10 = arith.constant 0 : index
    %c3 = arith.constant 3 : index
    %c0_11 = arith.constant 0 : index
    %9 = vector.load %arg1[%c0_9, %c0_10, %c3, %c0_11] : memref<2x20x20x4xf32, #tpu.memory_space<vmem>>, vector<1x16x16x4xf32>
    %10 = vector.shape_cast %9 : vector<1x16x16x4xf32> to vector<16x16x4xf32>
    %11 = vector.shape_cast %10 : vector<16x16x4xf32> to vector<256x4xf32>
    %c0_12 = arith.constant 0 : index
    %c0_13 = arith.constant 0 : index
    %c4 = arith.constant 4 : index
    %c0_14 = arith.constant 0 : index
    %12 = vector.load %arg1[%c0_12, %c0_13, %c4, %c0_14] : memref<2x20x20x4xf32, #tpu.memory_space<vmem>>, vector<1x16x16x4xf32>
    %13 = vector.shape_cast %12 : vector<1x16x16x4xf32> to vector<16x16x4xf32>
    %14 = vector.shape_cast %13 : vector<16x16x4xf32> to vector<256x4xf32>
    %c0_15 = arith.constant 0 : index
    %c1_16 = arith.constant 1 : index
    %c0_17 = arith.constant 0 : index
    %c0_18 = arith.constant 0 : index
    %15 = vector.load %arg1[%c0_15, %c1_16, %c0_17, %c0_18] : memref<2x20x20x4xf32, #tpu.memory_space<vmem>>, vector<1x16x16x4xf32>
    %16 = vector.shape_cast %15 : vector<1x16x16x4xf32> to vector<16x16x4xf32>
    %17 = vector.shape_cast %16 : vector<16x16x4xf32> to vector<256x4xf32>
    %c0_19 = arith.constant 0 : index
    %c1_20 = arith.constant 1 : index
    %c1_21 = arith.constant 1 : index
    %c0_22 = arith.constant 0 : index
    %18 = vector.load %arg1[%c0_19, %c1_20, %c1_21, %c0_22] : memref<2x20x20x4xf32, #tpu.memory_space<vmem>>, vector<1x16x16x4xf32>
    %19 = vector.shape_cast %18 : vector<1x16x16x4xf32> to vector<16x16x4xf32>
    %20 = vector.shape_cast %19 : vector<16x16x4xf32> to vector<256x4xf32>
    %c0_23 = arith.constant 0 : index
    %c1_24 = arith.constant 1 : index
    %c2_25 = arith.constant 2 : index
    %c0_26 = arith.constant 0 : index
    %21 = vector.load %arg1[%c0_23, %c1_24, %c2_25, %c0_26] : memref<2x20x20x4xf32, #tpu.memory_space<vmem>>, vector<1x16x16x4xf32>
    %22 = vector.shape_cast %21 : vector<1x16x16x4xf32> to vector<16x16x4xf32>
    %23 = vector.shape_cast %22 : vector<16x16x4xf32> to vector<256x4xf32>
    %c0_27 = arith.constant 0 : index
    %c1_28 = arith.constant 1 : index
    %c3_29 = arith.constant 3 : index
    %c0_30 = arith.constant 0 : index
    %24 = vector.load %arg1[%c0_27, %c1_28, %c3_29, %c0_30] : memref<2x20x20x4xf32, #tpu.memory_space<vmem>>, vector<1x16x16x4xf32>
    %25 = vector.shape_cast %24 : vector<1x16x16x4xf32> to vector<16x16x4xf32>
    %26 = vector.shape_cast %25 : vector<16x16x4xf32> to vector<256x4xf32>
    %c0_31 = arith.constant 0 : index
    %c1_32 = arith.constant 1 : index
    %c4_33 = arith.constant 4 : index
    %c0_34 = arith.constant 0 : index
    %27 = vector.load %arg1[%c0_31, %c1_32, %c4_33, %c0_34] : memref<2x20x20x4xf32, #tpu.memory_space<vmem>>, vector<1x16x16x4xf32>
    %28 = vector.shape_cast %27 : vector<1x16x16x4xf32> to vector<16x16x4xf32>
    %29 = vector.shape_cast %28 : vector<16x16x4xf32> to vector<256x4xf32>
    %c0_35 = arith.constant 0 : index
    %c2_36 = arith.constant 2 : index
    %c0_37 = arith.constant 0 : index
    %c0_38 = arith.constant 0 : index
    %30 = vector.load %arg1[%c0_35, %c2_36, %c0_37, %c0_38] : memref<2x20x20x4xf32, #tpu.memory_space<vmem>>, vector<1x16x16x4xf32>
    %31 = vector.shape_cast %30 : vector<1x16x16x4xf32> to vector<16x16x4xf32>
    %32 = vector.shape_cast %31 : vector<16x16x4xf32> to vector<256x4xf32>
    %c0_39 = arith.constant 0 : index
    %c2_40 = arith.constant 2 : index
    %c1_41 = arith.constant 1 : index
    %c0_42 = arith.constant 0 : index
    %33 = vector.load %arg1[%c0_39, %c2_40, %c1_41, %c0_42] : memref<2x20x20x4xf32, #tpu.memory_space<vmem>>, vector<1x16x16x4xf32>
    %34 = vector.shape_cast %33 : vector<1x16x16x4xf32> to vector<16x16x4xf32>
    %35 = vector.shape_cast %34 : vector<16x16x4xf32> to vector<256x4xf32>
    %c0_43 = arith.constant 0 : index
    %c2_44 = arith.constant 2 : index
    %c2_45 = arith.constant 2 : index
    %c0_46 = arith.constant 0 : index
    %36 = vector.load %arg1[%c0_43, %c2_44, %c2_45, %c0_46] : memref<2x20x20x4xf32, #tpu.memory_space<vmem>>, vector<1x16x16x4xf32>
    %37 = vector.shape_cast %36 : vector<1x16x16x4xf32> to vector<16x16x4xf32>
    %38 = vector.shape_cast %37 : vector<16x16x4xf32> to vector<256x4xf32>
    %c0_47 = arith.constant 0 : index
    %c2_48 = arith.constant 2 : index
    %c3_49 = arith.constant 3 : index
    %c0_50 = arith.constant 0 : index
    %39 = vector.load %arg1[%c0_47, %c2_48, %c3_49, %c0_50] : memref<2x20x20x4xf32, #tpu.memory_space<vmem>>, vector<1x16x16x4xf32>
    %40 = vector.shape_cast %39 : vector<1x16x16x4xf32> to vector<16x16x4xf32>
    %41 = vector.shape_cast %40 : vector<16x16x4xf32> to vector<256x4xf32>
    %c0_51 = arith.constant 0 : index
    %c2_52 = arith.constant 2 : index
    %c4_53 = arith.constant 4 : index
    %c0_54 = arith.constant 0 : index
    %42 = vector.load %arg1[%c0_51, %c2_52, %c4_53, %c0_54] : memref<2x20x20x4xf32, #tpu.memory_space<vmem>>, vector<1x16x16x4xf32>
    %43 = vector.shape_cast %42 : vector<1x16x16x4xf32> to vector<16x16x4xf32>
    %44 = vector.shape_cast %43 : vector<16x16x4xf32> to vector<256x4xf32>
    %c0_55 = arith.constant 0 : index
    %c3_56 = arith.constant 3 : index
    %c0_57 = arith.constant 0 : index
    %c0_58 = arith.constant 0 : index
    %45 = vector.load %arg1[%c0_55, %c3_56, %c0_57, %c0_58] : memref<2x20x20x4xf32, #tpu.memory_space<vmem>>, vector<1x16x16x4xf32>
    %46 = vector.shape_cast %45 : vector<1x16x16x4xf32> to vector<16x16x4xf32>
    %47 = vector.shape_cast %46 : vector<16x16x4xf32> to vector<256x4xf32>
    %c0_59 = arith.constant 0 : index
    %c3_60 = arith.constant 3 : index
    %c1_61 = arith.constant 1 : index
    %c0_62 = arith.constant 0 : index
    %48 = vector.load %arg1[%c0_59, %c3_60, %c1_61, %c0_62] : memref<2x20x20x4xf32, #tpu.memory_space<vmem>>, vector<1x16x16x4xf32>
    %49 = vector.shape_cast %48 : vector<1x16x16x4xf32> to vector<16x16x4xf32>
    %50 = vector.shape_cast %49 : vector<16x16x4xf32> to vector<256x4xf32>
    %c0_63 = arith.constant 0 : index
    %c3_64 = arith.constant 3 : index
    %c2_65 = arith.constant 2 : index
    %c0_66 = arith.constant 0 : index
    %51 = vector.load %arg1[%c0_63, %c3_64, %c2_65, %c0_66] : memref<2x20x20x4xf32, #tpu.memory_space<vmem>>, vector<1x16x16x4xf32>
    %52 = vector.shape_cast %51 : vector<1x16x16x4xf32> to vector<16x16x4xf32>
    %53 = vector.shape_cast %52 : vector<16x16x4xf32> to vector<256x4xf32>
    %c0_67 = arith.constant 0 : index
    %c3_68 = arith.constant 3 : index
    %c3_69 = arith.constant 3 : index
    %c0_70 = arith.constant 0 : index
    %54 = vector.load %arg1[%c0_67, %c3_68, %c3_69, %c0_70] : memref<2x20x20x4xf32, #tpu.memory_space<vmem>>, vector<1x16x16x4xf32>
    %55 = vector.shape_cast %54 : vector<1x16x16x4xf32> to vector<16x16x4xf32>
    %56 = vector.shape_cast %55 : vector<16x16x4xf32> to vector<256x4xf32>
    %c0_71 = arith.constant 0 : index
    %c3_72 = arith.constant 3 : index
    %c4_73 = arith.constant 4 : index
    %c0_74 = arith.constant 0 : index
    %57 = vector.load %arg1[%c0_71, %c3_72, %c4_73, %c0_74] : memref<2x20x20x4xf32, #tpu.memory_space<vmem>>, vector<1x16x16x4xf32>
    %58 = vector.shape_cast %57 : vector<1x16x16x4xf32> to vector<16x16x4xf32>
    %59 = vector.shape_cast %58 : vector<16x16x4xf32> to vector<256x4xf32>
    %c0_75 = arith.constant 0 : index
    %c4_76 = arith.constant 4 : index
    %c0_77 = arith.constant 0 : index
    %c0_78 = arith.constant 0 : index
    %60 = vector.load %arg1[%c0_75, %c4_76, %c0_77, %c0_78] : memref<2x20x20x4xf32, #tpu.memory_space<vmem>>, vector<1x16x16x4xf32>
    %61 = vector.shape_cast %60 : vector<1x16x16x4xf32> to vector<16x16x4xf32>
    %62 = vector.shape_cast %61 : vector<16x16x4xf32> to vector<256x4xf32>
    %c0_79 = arith.constant 0 : index
    %c4_80 = arith.constant 4 : index
    %c1_81 = arith.constant 1 : index
    %c0_82 = arith.constant 0 : index
    %63 = vector.load %arg1[%c0_79, %c4_80, %c1_81, %c0_82] : memref<2x20x20x4xf32, #tpu.memory_space<vmem>>, vector<1x16x16x4xf32>
    %64 = vector.shape_cast %63 : vector<1x16x16x4xf32> to vector<16x16x4xf32>
    %65 = vector.shape_cast %64 : vector<16x16x4xf32> to vector<256x4xf32>
    %c0_83 = arith.constant 0 : index
    %c4_84 = arith.constant 4 : index
    %c2_85 = arith.constant 2 : index
    %c0_86 = arith.constant 0 : index
    %66 = vector.load %arg1[%c0_83, %c4_84, %c2_85, %c0_86] : memref<2x20x20x4xf32, #tpu.memory_space<vmem>>, vector<1x16x16x4xf32>
    %67 = vector.shape_cast %66 : vector<1x16x16x4xf32> to vector<16x16x4xf32>
    %68 = vector.shape_cast %67 : vector<16x16x4xf32> to vector<256x4xf32>
    %c0_87 = arith.constant 0 : index
    %c4_88 = arith.constant 4 : index
    %c3_89 = arith.constant 3 : index
    %c0_90 = arith.constant 0 : index
    %69 = vector.load %arg1[%c0_87, %c4_88, %c3_89, %c0_90] : memref<2x20x20x4xf32, #tpu.memory_space<vmem>>, vector<1x16x16x4xf32>
    %70 = vector.shape_cast %69 : vector<1x16x16x4xf32> to vector<16x16x4xf32>
    %71 = vector.shape_cast %70 : vector<16x16x4xf32> to vector<256x4xf32>
    %c0_91 = arith.constant 0 : index
    %c4_92 = arith.constant 4 : index
    %c4_93 = arith.constant 4 : index
    %c0_94 = arith.constant 0 : index
    %72 = vector.load %arg1[%c0_91, %c4_92, %c4_93, %c0_94] : memref<2x20x20x4xf32, #tpu.memory_space<vmem>>, vector<1x16x16x4xf32>
    %73 = vector.shape_cast %72 : vector<1x16x16x4xf32> to vector<16x16x4xf32>
    %74 = vector.shape_cast %73 : vector<16x16x4xf32> to vector<256x4xf32>
    %75 = tpu.concatenate %2, %5, %8, %11, %14, %17, %20, %23, %26, %29, %32, %35, %38, %41, %44, %47 in 1 : vector<256x4xf32>, vector<256x4xf32>, vector<256x4xf32>, vector<256x4xf32>, vector<256x4xf32>, vector<256x4xf32>, vector<256x4xf32>, vector<256x4xf32>, vector<256x4xf32>, vector<256x4xf32>, vector<256x4xf32>, vector<256x4xf32>, vector<256x4xf32>, vector<256x4xf32>, vector<256x4xf32>, vector<256x4xf32> -> vector<256x64xf32>
    %76 = tpu.concatenate %50, %53, %56, %59, %62, %65, %68, %71, %74 in 1 : vector<256x4xf32>, vector<256x4xf32>, vector<256x4xf32>, vector<256x4xf32>, vector<256x4xf32>, vector<256x4xf32>, vector<256x4xf32>, vector<256x4xf32>, vector<256x4xf32> -> vector<256x36xf32>
    %77 = tpu.concatenate %75, %76 in 1 : vector<256x64xf32>, vector<256x36xf32> -> vector<256x100xf32>
    %c1_95 = arith.constant 1 : index
    %c0_96 = arith.constant 0 : index
    %c0_97 = arith.constant 0 : index
    %c0_98 = arith.constant 0 : index
    %78 = vector.load %arg1[%c1_95, %c0_96, %c0_97, %c0_98] : memref<2x20x20x4xf32, #tpu.memory_space<vmem>>, vector<1x16x16x4xf32>
    %79 = vector.shape_cast %78 : vector<1x16x16x4xf32> to vector<16x16x4xf32>
    %80 = vector.shape_cast %79 : vector<16x16x4xf32> to vector<256x4xf32>
    %c1_99 = arith.constant 1 : index
    %c0_100 = arith.constant 0 : index
    %c1_101 = arith.constant 1 : index
    %c0_102 = arith.constant 0 : index
    %81 = vector.load %arg1[%c1_99, %c0_100, %c1_101, %c0_102] : memref<2x20x20x4xf32, #tpu.memory_space<vmem>>, vector<1x16x16x4xf32>
    %82 = vector.shape_cast %81 : vector<1x16x16x4xf32> to vector<16x16x4xf32>
    %83 = vector.shape_cast %82 : vector<16x16x4xf32> to vector<256x4xf32>
    %c1_103 = arith.constant 1 : index
    %c0_104 = arith.constant 0 : index
    %c2_105 = arith.constant 2 : index
    %c0_106 = arith.constant 0 : index
    %84 = vector.load %arg1[%c1_103, %c0_104, %c2_105, %c0_106] : memref<2x20x20x4xf32, #tpu.memory_space<vmem>>, vector<1x16x16x4xf32>
    %85 = vector.shape_cast %84 : vector<1x16x16x4xf32> to vector<16x16x4xf32>
    %86 = vector.shape_cast %85 : vector<16x16x4xf32> to vector<256x4xf32>
    %c1_107 = arith.constant 1 : index
    %c0_108 = arith.constant 0 : index
    %c3_109 = arith.constant 3 : index
    %c0_110 = arith.constant 0 : index
    %87 = vector.load %arg1[%c1_107, %c0_108, %c3_109, %c0_110] : memref<2x20x20x4xf32, #tpu.memory_space<vmem>>, vector<1x16x16x4xf32>
    %88 = vector.shape_cast %87 : vector<1x16x16x4xf32> to vector<16x16x4xf32>
    %89 = vector.shape_cast %88 : vector<16x16x4xf32> to vector<256x4xf32>
    %c1_111 = arith.constant 1 : index
    %c0_112 = arith.constant 0 : index
    %c4_113 = arith.constant 4 : index
    %c0_114 = arith.constant 0 : index
    %90 = vector.load %arg1[%c1_111, %c0_112, %c4_113, %c0_114] : memref<2x20x20x4xf32, #tpu.memory_space<vmem>>, vector<1x16x16x4xf32>
    %91 = vector.shape_cast %90 : vector<1x16x16x4xf32> to vector<16x16x4xf32>
    %92 = vector.shape_cast %91 : vector<16x16x4xf32> to vector<256x4xf32>
    %c1_115 = arith.constant 1 : index
    %c1_116 = arith.constant 1 : index
    %c0_117 = arith.constant 0 : index
    %c0_118 = arith.constant 0 : index
    %93 = vector.load %arg1[%c1_115, %c1_116, %c0_117, %c0_118] : memref<2x20x20x4xf32, #tpu.memory_space<vmem>>, vector<1x16x16x4xf32>
    %94 = vector.shape_cast %93 : vector<1x16x16x4xf32> to vector<16x16x4xf32>
    %95 = vector.shape_cast %94 : vector<16x16x4xf32> to vector<256x4xf32>
    %c1_119 = arith.constant 1 : index
    %c1_120 = arith.constant 1 : index
    %c1_121 = arith.constant 1 : index
    %c0_122 = arith.constant 0 : index
    %96 = vector.load %arg1[%c1_119, %c1_120, %c1_121, %c0_122] : memref<2x20x20x4xf32, #tpu.memory_space<vmem>>, vector<1x16x16x4xf32>
    %97 = vector.shape_cast %96 : vector<1x16x16x4xf32> to vector<16x16x4xf32>
    %98 = vector.shape_cast %97 : vector<16x16x4xf32> to vector<256x4xf32>
    %c1_123 = arith.constant 1 : index
    %c1_124 = arith.constant 1 : index
    %c2_125 = arith.constant 2 : index
    %c0_126 = arith.constant 0 : index
    %99 = vector.load %arg1[%c1_123, %c1_124, %c2_125, %c0_126] : memref<2x20x20x4xf32, #tpu.memory_space<vmem>>, vector<1x16x16x4xf32>
    %100 = vector.shape_cast %99 : vector<1x16x16x4xf32> to vector<16x16x4xf32>
    %101 = vector.shape_cast %100 : vector<16x16x4xf32> to vector<256x4xf32>
    %c1_127 = arith.constant 1 : index
    %c1_128 = arith.constant 1 : index
    %c3_129 = arith.constant 3 : index
    %c0_130 = arith.constant 0 : index
    %102 = vector.load %arg1[%c1_127, %c1_128, %c3_129, %c0_130] : memref<2x20x20x4xf32, #tpu.memory_space<vmem>>, vector<1x16x16x4xf32>
    %103 = vector.shape_cast %102 : vector<1x16x16x4xf32> to vector<16x16x4xf32>
    %104 = vector.shape_cast %103 : vector<16x16x4xf32> to vector<256x4xf32>
    %c1_131 = arith.constant 1 : index
    %c1_132 = arith.constant 1 : index
    %c4_133 = arith.constant 4 : index
    %c0_134 = arith.constant 0 : index
    %105 = vector.load %arg1[%c1_131, %c1_132, %c4_133, %c0_134] : memref<2x20x20x4xf32, #tpu.memory_space<vmem>>, vector<1x16x16x4xf32>
    %106 = vector.shape_cast %105 : vector<1x16x16x4xf32> to vector<16x16x4xf32>
    %107 = vector.shape_cast %106 : vector<16x16x4xf32> to vector<256x4xf32>
    %c1_135 = arith.constant 1 : index
    %c2_136 = arith.constant 2 : index
    %c0_137 = arith.constant 0 : index
    %c0_138 = arith.constant 0 : index
    %108 = vector.load %arg1[%c1_135, %c2_136, %c0_137, %c0_138] : memref<2x20x20x4xf32, #tpu.memory_space<vmem>>, vector<1x16x16x4xf32>
    %109 = vector.shape_cast %108 : vector<1x16x16x4xf32> to vector<16x16x4xf32>
    %110 = vector.shape_cast %109 : vector<16x16x4xf32> to vector<256x4xf32>
    %c1_139 = arith.constant 1 : index
    %c2_140 = arith.constant 2 : index
    %c1_141 = arith.constant 1 : index
    %c0_142 = arith.constant 0 : index
    %111 = vector.load %arg1[%c1_139, %c2_140, %c1_141, %c0_142] : memref<2x20x20x4xf32, #tpu.memory_space<vmem>>, vector<1x16x16x4xf32>
    %112 = vector.shape_cast %111 : vector<1x16x16x4xf32> to vector<16x16x4xf32>
    %113 = vector.shape_cast %112 : vector<16x16x4xf32> to vector<256x4xf32>
    %c1_143 = arith.constant 1 : index
    %c2_144 = arith.constant 2 : index
    %c2_145 = arith.constant 2 : index
    %c0_146 = arith.constant 0 : index
    %114 = vector.load %arg1[%c1_143, %c2_144, %c2_145, %c0_146] : memref<2x20x20x4xf32, #tpu.memory_space<vmem>>, vector<1x16x16x4xf32>
    %115 = vector.shape_cast %114 : vector<1x16x16x4xf32> to vector<16x16x4xf32>
    %116 = vector.shape_cast %115 : vector<16x16x4xf32> to vector<256x4xf32>
    %c1_147 = arith.constant 1 : index
    %c2_148 = arith.constant 2 : index
    %c3_149 = arith.constant 3 : index
    %c0_150 = arith.constant 0 : index
    %117 = vector.load %arg1[%c1_147, %c2_148, %c3_149, %c0_150] : memref<2x20x20x4xf32, #tpu.memory_space<vmem>>, vector<1x16x16x4xf32>
    %118 = vector.shape_cast %117 : vector<1x16x16x4xf32> to vector<16x16x4xf32>
    %119 = vector.shape_cast %118 : vector<16x16x4xf32> to vector<256x4xf32>
    %c1_151 = arith.constant 1 : index
    %c2_152 = arith.constant 2 : index
    %c4_153 = arith.constant 4 : index
    %c0_154 = arith.constant 0 : index
    %120 = vector.load %arg1[%c1_151, %c2_152, %c4_153, %c0_154] : memref<2x20x20x4xf32, #tpu.memory_space<vmem>>, vector<1x16x16x4xf32>
    %121 = vector.shape_cast %120 : vector<1x16x16x4xf32> to vector<16x16x4xf32>
    %122 = vector.shape_cast %121 : vector<16x16x4xf32> to vector<256x4xf32>
    %c1_155 = arith.constant 1 : index
    %c3_156 = arith.constant 3 : index
    %c0_157 = arith.constant 0 : index
    %c0_158 = arith.constant 0 : index
    %123 = vector.load %arg1[%c1_155, %c3_156, %c0_157, %c0_158] : memref<2x20x20x4xf32, #tpu.memory_space<vmem>>, vector<1x16x16x4xf32>
    %124 = vector.shape_cast %123 : vector<1x16x16x4xf32> to vector<16x16x4xf32>
    %125 = vector.shape_cast %124 : vector<16x16x4xf32> to vector<256x4xf32>
    %c1_159 = arith.constant 1 : index
    %c3_160 = arith.constant 3 : index
    %c1_161 = arith.constant 1 : index
    %c0_162 = arith.constant 0 : index
    %126 = vector.load %arg1[%c1_159, %c3_160, %c1_161, %c0_162] : memref<2x20x20x4xf32, #tpu.memory_space<vmem>>, vector<1x16x16x4xf32>
    %127 = vector.shape_cast %126 : vector<1x16x16x4xf32> to vector<16x16x4xf32>
    %128 = vector.shape_cast %127 : vector<16x16x4xf32> to vector<256x4xf32>
    %c1_163 = arith.constant 1 : index
    %c3_164 = arith.constant 3 : index
    %c2_165 = arith.constant 2 : index
    %c0_166 = arith.constant 0 : index
    %129 = vector.load %arg1[%c1_163, %c3_164, %c2_165, %c0_166] : memref<2x20x20x4xf32, #tpu.memory_space<vmem>>, vector<1x16x16x4xf32>
    %130 = vector.shape_cast %129 : vector<1x16x16x4xf32> to vector<16x16x4xf32>
    %131 = vector.shape_cast %130 : vector<16x16x4xf32> to vector<256x4xf32>
    %c1_167 = arith.constant 1 : index
    %c3_168 = arith.constant 3 : index
    %c3_169 = arith.constant 3 : index
    %c0_170 = arith.constant 0 : index
    %132 = vector.load %arg1[%c1_167, %c3_168, %c3_169, %c0_170] : memref<2x20x20x4xf32, #tpu.memory_space<vmem>>, vector<1x16x16x4xf32>
    %133 = vector.shape_cast %132 : vector<1x16x16x4xf32> to vector<16x16x4xf32>
    %134 = vector.shape_cast %133 : vector<16x16x4xf32> to vector<256x4xf32>
    %c1_171 = arith.constant 1 : index
    %c3_172 = arith.constant 3 : index
    %c4_173 = arith.constant 4 : index
    %c0_174 = arith.constant 0 : index
    %135 = vector.load %arg1[%c1_171, %c3_172, %c4_173, %c0_174] : memref<2x20x20x4xf32, #tpu.memory_space<vmem>>, vector<1x16x16x4xf32>
    %136 = vector.shape_cast %135 : vector<1x16x16x4xf32> to vector<16x16x4xf32>
    %137 = vector.shape_cast %136 : vector<16x16x4xf32> to vector<256x4xf32>
    %c1_175 = arith.constant 1 : index
    %c4_176 = arith.constant 4 : index
    %c0_177 = arith.constant 0 : index
    %c0_178 = arith.constant 0 : index
    %138 = vector.load %arg1[%c1_175, %c4_176, %c0_177, %c0_178] : memref<2x20x20x4xf32, #tpu.memory_space<vmem>>, vector<1x16x16x4xf32>
    %139 = vector.shape_cast %138 : vector<1x16x16x4xf32> to vector<16x16x4xf32>
    %140 = vector.shape_cast %139 : vector<16x16x4xf32> to vector<256x4xf32>
    %c1_179 = arith.constant 1 : index
    %c4_180 = arith.constant 4 : index
    %c1_181 = arith.constant 1 : index
    %c0_182 = arith.constant 0 : index
    %141 = vector.load %arg1[%c1_179, %c4_180, %c1_181, %c0_182] : memref<2x20x20x4xf32, #tpu.memory_space<vmem>>, vector<1x16x16x4xf32>
    %142 = vector.shape_cast %141 : vector<1x16x16x4xf32> to vector<16x16x4xf32>
    %143 = vector.shape_cast %142 : vector<16x16x4xf32> to vector<256x4xf32>
    %c1_183 = arith.constant 1 : index
    %c4_184 = arith.constant 4 : index
    %c2_185 = arith.constant 2 : index
    %c0_186 = arith.constant 0 : index
    %144 = vector.load %arg1[%c1_183, %c4_184, %c2_185, %c0_186] : memref<2x20x20x4xf32, #tpu.memory_space<vmem>>, vector<1x16x16x4xf32>
    %145 = vector.shape_cast %144 : vector<1x16x16x4xf32> to vector<16x16x4xf32>
    %146 = vector.shape_cast %145 : vector<16x16x4xf32> to vector<256x4xf32>
    %c1_187 = arith.constant 1 : index
    %c4_188 = arith.constant 4 : index
    %c3_189 = arith.constant 3 : index
    %c0_190 = arith.constant 0 : index
    %147 = vector.load %arg1[%c1_187, %c4_188, %c3_189, %c0_190] : memref<2x20x20x4xf32, #tpu.memory_space<vmem>>, vector<1x16x16x4xf32>
    %148 = vector.shape_cast %147 : vector<1x16x16x4xf32> to vector<16x16x4xf32>
    %149 = vector.shape_cast %148 : vector<16x16x4xf32> to vector<256x4xf32>
    %c1_191 = arith.constant 1 : index
    %c4_192 = arith.constant 4 : index
    %c4_193 = arith.constant 4 : index
    %c0_194 = arith.constant 0 : index
    %150 = vector.load %arg1[%c1_191, %c4_192, %c4_193, %c0_194] : memref<2x20x20x4xf32, #tpu.memory_space<vmem>>, vector<1x16x16x4xf32>
    %151 = vector.shape_cast %150 : vector<1x16x16x4xf32> to vector<16x16x4xf32>
    %152 = vector.shape_cast %151 : vector<16x16x4xf32> to vector<256x4xf32>
    %153 = tpu.concatenate %80, %83, %86, %89, %92, %95, %98, %101, %104, %107, %110, %113, %116, %119, %122, %125 in 1 : vector<256x4xf32>, vector<256x4xf32>, vector<256x4xf32>, vector<256x4xf32>, vector<256x4xf32>, vector<256x4xf32>, vector<256x4xf32>, vector<256x4xf32>, vector<256x4xf32>, vector<256x4xf32>, vector<256x4xf32>, vector<256x4xf32>, vector<256x4xf32>, vector<256x4xf32>, vector<256x4xf32>, vector<256x4xf32> -> vector<256x64xf32>
    %154 = tpu.concatenate %128, %131, %134, %137, %140, %143, %146, %149, %152 in 1 : vector<256x4xf32>, vector<256x4xf32>, vector<256x4xf32>, vector<256x4xf32>, vector<256x4xf32>, vector<256x4xf32>, vector<256x4xf32>, vector<256x4xf32>, vector<256x4xf32> -> vector<256x36xf32>
    %155 = tpu.concatenate %153, %154 in 1 : vector<256x64xf32>, vector<256x36xf32> -> vector<256x100xf32>
    %156 = tpu.concatenate %77, %155 in 0 : vector<256x100xf32>, vector<256x100xf32> -> vector<512x100xf32>
    %c0_195 = arith.constant 0 : index
    %c0_196 = arith.constant 0 : index
    %157 = vector.load %arg2[%c0_195, %c0_196] : memref<24x100xf32, #tpu.memory_space<vmem>>, vector<24x100xf32>
    %cst = arith.constant dense<0.000000e+00> : vector<24x512xf32>
    %158 = tpu.matmul %157, %156, %cst {dimension_numbers = #tpu.dot_dimension_numbers<[1], [1], [0], [0], [0, 0, 1, 0], [], []>} : vector<24x100xf32>, vector<512x100xf32>, vector<24x512xf32> -> vector<24x512xf32>
    %c0_197 = arith.constant 0 : index
    %c0_198 = arith.constant 0 : index
    %159 = vector.load %arg3[%c0_197, %c0_198] : memref<24x1xf32, #tpu.memory_space<vmem>>, vector<24x1xf32>
    %160 = vector.broadcast %159 : vector<24x1xf32> to vector<24x512xf32>
    %161 = arith.addf %158, %160 : vector<24x512xf32>
    %cst_199 = arith.constant 0.000000e+00 : f32
    %162 = vector.broadcast %cst_199 : f32 to vector<24x512xf32>
    %163 = arith.maximumf %161, %162 : vector<24x512xf32>
    %164 = vector.extract_strided_slice %163 {offsets = [0, 0], sizes = [24, 256], strides = [1, 1]} : vector<24x512xf32> to vector<24x256xf32>
    %c0_200 = arith.constant 0 : index
    %c0_201 = arith.constant 0 : index
    %c0_202 = arith.constant 0 : index
    %165 = vector.load %arg4[%c0_200, %c0_201, %c0_202] : memref<2x24x256xf32, #tpu.memory_space<vmem>>, vector<1x24x256xf32>
    %166 = vector.shape_cast %165 : vector<1x24x256xf32> to vector<24x256xf32>
    %167 = vector.shape_cast %164 : vector<24x256xf32> to vector<1x24x256xf32>
    tpu.vector_store %arg4[%c0_200, %c0_201, %c0_202], %167 {strides = array<i32>} : memref<2x24x256xf32, #tpu.memory_space<vmem>>, vector<1x24x256xf32>,
    %168 = vector.extract_strided_slice %163 {offsets = [0, 256], sizes = [24, 256], strides = [1, 1]} : vector<24x512xf32> to vector<24x256xf32>
    %c1_203 = arith.constant 1 : index
    %c0_204 = arith.constant 0 : index
    %c0_205 = arith.constant 0 : index
    %169 = vector.load %arg4[%c1_203, %c0_204, %c0_205] : memref<2x24x256xf32, #tpu.memory_space<vmem>>, vector<1x24x256xf32>
    %170 = vector.shape_cast %169 : vector<1x24x256xf32> to vector<24x256xf32>
    %171 = vector.shape_cast %168 : vector<24x256xf32> to vector<1x24x256xf32>
    tpu.vector_store %arg4[%c1_203, %c0_204, %c0_205], %171 {strides = array<i32>} : memref<2x24x256xf32, #tpu.memory_space<vmem>>, vector<1x24x256xf32>,
    return
  }
  func.func @transform_0(%arg0: i32) -> (i32, i32, i32, i32) {
    %c0_i32 = arith.constant 0 : i32
    %c0_i32_0 = arith.constant 0 : i32
    %c0_i32_1 = arith.constant 0 : i32
    %c0_i32_2 = arith.constant 0 : i32
    return %arg0, %c0_i32, %c0_i32_0, %c0_i32_1 : i32, i32, i32, i32
  }
  func.func @transform_1(%arg0: i32) -> (i32, i32) {
    %c0_i32 = arith.constant 0 : i32
    %c0_i32_0 = arith.constant 0 : i32
    %c0_i32_1 = arith.constant 0 : i32
    return %c0_i32, %c0_i32_0 : i32, i32
  }
  func.func @transform_2(%arg0: i32) -> (i32, i32) {
    %c0_i32 = arith.constant 0 : i32
    %c0_i32_0 = arith.constant 0 : i32
    %c0_i32_1 = arith.constant 0 : i32
    return %c0_i32, %c0_i32_0 : i32, i32
  }
  func.func @transform_3(%arg0: i32) -> (i32, i32, i32) {
    %c0_i32 = arith.constant 0 : i32
    %c0_i32_0 = arith.constant 0 : i32
    %c0_i32_1 = arith.constant 0 : i32
    return %arg0, %c0_i32, %c0_i32_0 : i32, i32, i32
  }
}

</mosaic_0001>

<llo_original>
// kernel: inception_forward.1
$region0: #{inception_forward.1}
  #allocation0 [shape = 'u32[]', space=smem, size = 0x4, offset = 0x4, fixed_abs, tag = 'smem constant byte address 0x4 - core index']
  #allocation1 [shape = 'u32[144,128]{1,0:T(1,128)}', space=vmem, size = 0x12000, scoped, tag = 'internal scratch']
  %s0 = inlined_call_operand.vmem [shape: f32[2,20,20,4], index: 0, kind: input, shape index: {}]
  %s1 = inlined_call_operand.vmem [shape: f32[24,100], index: 1, kind: input, shape index: {}]
  %s2 = inlined_call_operand.vmem [shape: f32[24,1], index: 2, kind: input, shape index: {}]
  %s3 = inlined_call_operand.vmem [shape: f32[2,24,256], index: 3, kind: output, shape index: {}]
  %s4 = sld [smem:[#allocation0]]
  $region22: #{inception_forward.1} parent=0
    _
  %s6 = ssub.s32 1, %s4
  %s7 = scalar_select 0, %s6, %s4
  // Predicated region
  $region2: #{inception_forward.1} parent=0 // pred_check
    _
  $region3: #{inception_forward.1} parent=0 // pred_check_branch
    %9 = sbr.rel (0) target = $region5
  $region4: #{inception_forward.1} parent=0 // pred_region
    _
  $region5: #{inception_forward.1} parent=0 // pred_fallthru
    _
  // Predicated region
  $region6: #{inception_forward.1} parent=0 // pred_check
    _
  $region7: #{inception_forward.1} parent=0 // pred_check_branch
    %11 = sbr.rel (0) target = $region9
  $region8: #{inception_forward.1} parent=0 // pred_region
    _
  $region9: #{inception_forward.1} parent=0 // pred_fallthru
    _
  // Predicated region
  $region10: #{inception_forward.1} parent=0 // pred_check
    _
  $region11: #{inception_forward.1} parent=0 // pred_check_branch
    %13 = sbr.rel (0) target = $region13
  $region12: #{inception_forward.1} parent=0 // pred_region
    _
  $region13: #{inception_forward.1} parent=0 // pred_fallthru
    _
  %v14 = vld [vmem:[%s0] sm:$0xff]
  %v15 = vld [vmem:[%s0 + $0x8] sm:$0xff]
  %v16 = vld [vmem:[%s0 + $0x18] sm:$0xff]
  %v17 = vld [vmem:[%s0 + $0x20] sm:$0xff]
  %v18 = vld [vmem:[%s0 + $0x30] sm:$0xff]
  %v19 = vld [vmem:[%s0 + $0x38] sm:$0xff]
  %v20 = vld [vmem:[%s0 + $0x48] sm:$0xff]
  %v21 = vld [vmem:[%s0 + $0x50] sm:$0xff]
  %v22 = vld [vmem:[%s0 + $0x60] sm:$0xff]
  %v23 = vld [vmem:[%s0 + $0x68] sm:$0xff]
  %v24 = vld [vmem:[%s0 + $0x78] sm:$0xff]
  %v25 = vld [vmem:[%s0 + $0x80] sm:$0xff]
  %v26 = vld [vmem:[%s0 + $0x90] sm:$0xff]
  %v27 = vld [vmem:[%s0 + $0x98] sm:$0xff]
  %v28 = vld [vmem:[%s0 + $0xa8] sm:$0xff]
  %v29 = vld [vmem:[%s0 + $0xb0] sm:$0xff]
  %v30 = vld [vmem:[%s0 + $0xc0] sm:$0xff]
  %v31 = vld [vmem:[%s0 + $0xc8] sm:$0xff]
  %v32 = vld [vmem:[%s0 + $0xd8] sm:$0xff]
  %v33 = vld [vmem:[%s0 + $0xe0] sm:$0xff]
  %v34 = vld [vmem:[%s0 + $0xf0] sm:$0xff]
  %v35 = vld [vmem:[%s0 + $0xf8] sm:$0xff]
  %v36 = vld [vmem:[%s0 + $0x108] sm:$0xff]
  %v37 = vld [vmem:[%s0 + $0x110] sm:$0xff]
  %v38 = vld [vmem:[%s0 + $0x120] sm:$0xff]
  %v39 = vld [vmem:[%s0 + $0x128] sm:$0xff]
  %v40 = vld [vmem:[%s0 + $0x138] sm:$0xff]
  %v41 = vld [vmem:[%s0 + $0x140] sm:$0xff]
  %v42 = vld [vmem:[%s0 + $0x150] sm:$0xff]
  %v43 = vld [vmem:[%s0 + $0x158] sm:$0xff]
  %v44 = vld [vmem:[%s0 + $0x168] sm:$0xff]
  %v45 = vld [vmem:[%s0 + $0x170] sm:$0xff]
  %v46 = vld [vmem:[%s0 + $0x1] sm:$0xff]
  %v47 = vld [vmem:[%s0 + $0x9] sm:$0xff]
  %v48 = vld [vmem:[%s0 + $0x19] sm:$0xff]
  %v49 = vld [vmem:[%s0 + $0x21] sm:$0xff]
  %v50 = vld [vmem:[%s0 + $0x31] sm:$0xff]
  %v51 = vld [vmem:[%s0 + $0x39] sm:$0xff]
  %v52 = vld [vmem:[%s0 + $0x49] sm:$0xff]
  %v53 = vld [vmem:[%s0 + $0x51] sm:$0xff]
  %v54 = vld [vmem:[%s0 + $0x61] sm:$0xff]
  %v55 = vld [vmem:[%s0 + $0x69] sm:$0xff]
  %v56 = vld [vmem:[%s0 + $0x79] sm:$0xff]
  %v57 = vld [vmem:[%s0 + $0x81] sm:$0xff]
  %v58 = vld [vmem:[%s0 + $0x91] sm:$0xff]
  %v59 = vld [vmem:[%s0 + $0x99] sm:$0xff]
  %v60 = vld [vmem:[%s0 + $0xa9] sm:$0xff]
  %v61 = vld [vmem:[%s0 + $0xb1] sm:$0xff]
  %v62 = vld [vmem:[%s0 + $0xc1] sm:$0xff]
  %v63 = vld [vmem:[%s0 + $0xc9] sm:$0xff]
  %v64 = vld [vmem:[%s0 + $0xd9] sm:$0xff]
  %v65 = vld [vmem:[%s0 + $0xe1] sm:$0xff]
  %v66 = vld [vmem:[%s0 + $0xf1] sm:$0xff]
  %v67 = vld [vmem:[%s0 + $0xf9] sm:$0xff]
  %v68 = vld [vmem:[%s0 + $0x109] sm:$0xff]
  %v69 = vld [vmem:[%s0 + $0x111] sm:$0xff]
  %v70 = vld [vmem:[%s0 + $0x121] sm:$0xff]
  %v71 = vld [vmem:[%s0 + $0x129] sm:$0xff]
  %v72 = vld [vmem:[%s0 + $0x139] sm:$0xff]
  %v73 = vld [vmem:[%s0 + $0x141] sm:$0xff]
  %v74 = vld [vmem:[%s0 + $0x151] sm:$0xff]
  %v75 = vld [vmem:[%s0 + $0x159] sm:$0xff]
  %v76 = vld [vmem:[%s0 + $0x169] sm:$0xff]
  %v77 = vld [vmem:[%s0 + $0x171] sm:$0xff]
  %v78 = vld [vmem:[%s0 + $0x2] sm:$0xff]
  %v79 = vld [vmem:[%s0 + $0xa] sm:$0xff]
  %v80 = vld [vmem:[%s0 + $0x1a] sm:$0xff]
  %v81 = vld [vmem:[%s0 + $0x22] sm:$0xff]
  %v82 = vld [vmem:[%s0 + $0x32] sm:$0xff]
  %v83 = vld [vmem:[%s0 + $0x3a] sm:$0xff]
  %v84 = vld [vmem:[%s0 + $0x4a] sm:$0xff]
  %v85 = vld [vmem:[%s0 + $0x52] sm:$0xff]
  %v86 = vld [vmem:[%s0 + $0x62] sm:$0xff]
  %v87 = vld [vmem:[%s0 + $0x6a] sm:$0xff]
  %v88 = vld [vmem:[%s0 + $0x7a] sm:$0xff]
  %v89 = vld [vmem:[%s0 + $0x82] sm:$0xff]
  %v90 = vld [vmem:[%s0 + $0x92] sm:$0xff]
  %v91 = vld [vmem:[%s0 + $0x9a] sm:$0xff]
  %v92 = vld [vmem:[%s0 + $0xaa] sm:$0xff]
  %v93 = vld [vmem:[%s0 + $0xb2] sm:$0xff]
  %v94 = vld [vmem:[%s0 + $0xc2] sm:$0xff]
  %v95 = vld [vmem:[%s0 + $0xca] sm:$0xff]
  %v96 = vld [vmem:[%s0 + $0xda] sm:$0xff]
  %v97 = vld [vmem:[%s0 + $0xe2] sm:$0xff]
  %v98 = vld [vmem:[%s0 + $0xf2] sm:$0xff]
  %v99 = vld [vmem:[%s0 + $0xfa] sm:$0xff]
  %v100 = vld [vmem:[%s0 + $0x10a] sm:$0xff]
  %v101 = vld [vmem:[%s0 + $0x112] sm:$0xff]
  %v102 = vld [vmem:[%s0 + $0x122] sm:$0xff]
  %v103 = vld [vmem:[%s0 + $0x12a] sm:$0xff]
  %v104 = vld [vmem:[%s0 + $0x13a] sm:$0xff]
  %v105 = vld [vmem:[%s0 + $0x142] sm:$0xff]
  %v106 = vld [vmem:[%s0 + $0x152] sm:$0xff]
  %v107 = vld [vmem:[%s0 + $0x15a] sm:$0xff]
  %v108 = vld [vmem:[%s0 + $0x16a] sm:$0xff]
  %v109 = vld [vmem:[%s0 + $0x172] sm:$0xff]
  %v110 = vld [vmem:[%s0 + $0x3] sm:$0xff]
  %v111 = vld [vmem:[%s0 + $0xb] sm:$0xff]
  %v112 = vld [vmem:[%s0 + $0x1b] sm:$0xff]
  %v113 = vld [vmem:[%s0 + $0x23] sm:$0xff]
  %v114 = vld [vmem:[%s0 + $0x33] sm:$0xff]
  %v115 = vld [vmem:[%s0 + $0x3b] sm:$0xff]
  %v116 = vld [vmem:[%s0 + $0x4b] sm:$0xff]
  %v117 = vld [vmem:[%s0 + $0x53] sm:$0xff]
  %v118 = vld [vmem:[%s0 + $0x63] sm:$0xff]
  %v119 = vld [vmem:[%s0 + $0x6b] sm:$0xff]
  %v120 = vld [vmem:[%s0 + $0x7b] sm:$0xff]
  %v121 = vld [vmem:[%s0 + $0x83] sm:$0xff]
  %v122 = vld [vmem:[%s0 + $0x93] sm:$0xff]
  %v123 = vld [vmem:[%s0 + $0x9b] sm:$0xff]
  %v124 = vld [vmem:[%s0 + $0xab] sm:$0xff]
  %v125 = vld [vmem:[%s0 + $0xb3] sm:$0xff]
  %v126 = vld [vmem:[%s0 + $0xc3] sm:$0xff]
  %v127 = vld [vmem:[%s0 + $0xcb] sm:$0xff]
  %v128 = vld [vmem:[%s0 + $0xdb] sm:$0xff]
  %v129 = vld [vmem:[%s0 + $0xe3] sm:$0xff]
  %v130 = vld [vmem:[%s0 + $0xf3] sm:$0xff]
  %v131 = vld [vmem:[%s0 + $0xfb] sm:$0xff]
  %v132 = vld [vmem:[%s0 + $0x10b] sm:$0xff]
  %v133 = vld [vmem:[%s0 + $0x113] sm:$0xff]
  %v134 = vld [vmem:[%s0 + $0x123] sm:$0xff]
  %v135 = vld [vmem:[%s0 + $0x12b] sm:$0xff]
  %v136 = vld [vmem:[%s0 + $0x13b] sm:$0xff]
  %v137 = vld [vmem:[%s0 + $0x143] sm:$0xff]
  %v138 = vld [vmem:[%s0 + $0x153] sm:$0xff]
  %v139 = vld [vmem:[%s0 + $0x15b] sm:$0xff]
  %v140 = vld [vmem:[%s0 + $0x16b] sm:$0xff]
  %v141 = vld [vmem:[%s0 + $0x173] sm:$0xff]
  %v142 = vld [vmem:[%s0 + $0x4] sm:$0xff]
  %v143 = vld [vmem:[%s0 + $0xc] sm:$0xff]
  %v144 = vld [vmem:[%s0 + $0x1c] sm:$0xff]
  %v145 = vld [vmem:[%s0 + $0x24] sm:$0xff]
  %v146 = vld [vmem:[%s0 + $0x34] sm:$0xff]
  %v147 = vld [vmem:[%s0 + $0x3c] sm:$0xff]
  %v148 = vld [vmem:[%s0 + $0x4c] sm:$0xff]
  %v149 = vld [vmem:[%s0 + $0x54] sm:$0xff]
  %v150 = vld [vmem:[%s0 + $0x64] sm:$0xff]
  %v151 = vld [vmem:[%s0 + $0x6c] sm:$0xff]
  %v152 = vld [vmem:[%s0 + $0x7c] sm:$0xff]
  %v153 = vld [vmem:[%s0 + $0x84] sm:$0xff]
  %v154 = vld [vmem:[%s0 + $0x94] sm:$0xff]
  %v155 = vld [vmem:[%s0 + $0x9c] sm:$0xff]
  %v156 = vld [vmem:[%s0 + $0xac] sm:$0xff]
  %v157 = vld [vmem:[%s0 + $0xb4] sm:$0xff]
  %v158 = vld [vmem:[%s0 + $0xc4] sm:$0xff]
  %v159 = vld [vmem:[%s0 + $0xcc] sm:$0xff]
  %v160 = vld [vmem:[%s0 + $0xdc] sm:$0xff]
  %v161 = vld [vmem:[%s0 + $0xe4] sm:$0xff]
  %v162 = vld [vmem:[%s0 + $0xf4] sm:$0xff]
  %v163 = vld [vmem:[%s0 + $0xfc] sm:$0xff]
  %v164 = vld [vmem:[%s0 + $0x10c] sm:$0xff]
  %v165 = vld [vmem:[%s0 + $0x114] sm:$0xff]
  %v166 = vld [vmem:[%s0 + $0x124] sm:$0xff]
  %v167 = vld [vmem:[%s0 + $0x12c] sm:$0xff]
  %v168 = vld [vmem:[%s0 + $0x13c] sm:$0xff]
  %v169 = vld [vmem:[%s0 + $0x144] sm:$0xff]
  %v170 = vld [vmem:[%s0 + $0x154] sm:$0xff]
  %v171 = vld [vmem:[%s0 + $0x15c] sm:$0xff]
  %v172 = vld [vmem:[%s0 + $0x16c] sm:$0xff]
  %v173 = vld [vmem:[%s0 + $0x174] sm:$0xff]
  %s174 = scalar_lea.vmem %s0, 24
  %v175 = vld [vmem:[%s174] sm:$0xff]
  %v176 = vld [vmem:[%s174 + $0x8] sm:$0xff]
  %v177 = vld [vmem:[%s174 + $0x18] sm:$0xff]
  %v178 = vld [vmem:[%s174 + $0x20] sm:$0xff]
  %v179 = vld [vmem:[%s174 + $0x30] sm:$0xff]
  %v180 = vld [vmem:[%s174 + $0x38] sm:$0xff]
  %v181 = vld [vmem:[%s174 + $0x48] sm:$0xff]
  %v182 = vld [vmem:[%s174 + $0x50] sm:$0xff]
  %v183 = vld [vmem:[%s174 + $0x60] sm:$0xff]
  %v184 = vld [vmem:[%s174 + $0x68] sm:$0xff]
  %v185 = vld [vmem:[%s174 + $0x78] sm:$0xff]
  %v186 = vld [vmem:[%s174 + $0x80] sm:$0xff]
  %v187 = vld [vmem:[%s174 + $0x90] sm:$0xff]
  %v188 = vld [vmem:[%s174 + $0x98] sm:$0xff]
  %v189 = vld [vmem:[%s174 + $0xa8] sm:$0xff]
  %v190 = vld [vmem:[%s174 + $0xb0] sm:$0xff]
  %v191 = vld [vmem:[%s174 + $0xc0] sm:$0xff]
  %v192 = vld [vmem:[%s174 + $0xc8] sm:$0xff]
  %v193 = vld [vmem:[%s174 + $0xd8] sm:$0xff]
  %v194 = vld [vmem:[%s174 + $0xe0] sm:$0xff]
  %v195 = vld [vmem:[%s174 + $0xf0] sm:$0xff]
  %v196 = vld [vmem:[%s174 + $0xf8] sm:$0xff]
  %v197 = vld [vmem:[%s174 + $0x108] sm:$0xff]
  %v198 = vld [vmem:[%s174 + $0x110] sm:$0xff]
  %v199 = vld [vmem:[%s174 + $0x120] sm:$0xff]
  %v200 = vld [vmem:[%s174 + $0x128] sm:$0xff]
  %v201 = vld [vmem:[%s174 + $0x138] sm:$0xff]
  %v202 = vld [vmem:[%s174 + $0x140] sm:$0xff]
  %v203 = vld [vmem:[%s174 + $0x150] sm:$0xff]
  %v204 = vld [vmem:[%s174 + $0x158] sm:$0xff]
  %v205 = vld [vmem:[%s174 + $0x168] sm:$0xff]
  %v206 = vld [vmem:[%s174 + $0x170] sm:$0xff]
  %v207 = vld [vmem:[%s174 + $0x1] sm:$0xff]
  %v208 = vld [vmem:[%s174 + $0x9] sm:$0xff]
  %v209 = vld [vmem:[%s174 + $0x19] sm:$0xff]
  %v210 = vld [vmem:[%s174 + $0x21] sm:$0xff]
  %v211 = vld [vmem:[%s174 + $0x31] sm:$0xff]
  %v212 = vld [vmem:[%s174 + $0x39] sm:$0xff]
  %v213 = vld [vmem:[%s174 + $0x49] sm:$0xff]
  %v214 = vld [vmem:[%s174 + $0x51] sm:$0xff]
  %v215 = vld [vmem:[%s174 + $0x61] sm:$0xff]
  %v216 = vld [vmem:[%s174 + $0x69] sm:$0xff]
  %v217 = vld [vmem:[%s174 + $0x79] sm:$0xff]
  %v218 = vld [vmem:[%s174 + $0x81] sm:$0xff]
  %v219 = vld [vmem:[%s174 + $0x91] sm:$0xff]
  %v220 = vld [vmem:[%s174 + $0x99] sm:$0xff]
  %v221 = vld [vmem:[%s174 + $0xa9] sm:$0xff]
  %v222 = vld [vmem:[%s174 + $0xb1] sm:$0xff]
  %v223 = vld [vmem:[%s174 + $0xc1] sm:$0xff]
  %v224 = vld [vmem:[%s174 + $0xc9] sm:$0xff]
  %v225 = vld [vmem:[%s174 + $0xd9] sm:$0xff]
  %v226 = vld [vmem:[%s174 + $0xe1] sm:$0xff]
  %v227 = vld [vmem:[%s174 + $0xf1] sm:$0xff]
  %v228 = vld [vmem:[%s174 + $0xf9] sm:$0xff]
  %v229 = vld [vmem:[%s174 + $0x109] sm:$0xff]
  %v230 = vld [vmem:[%s174 + $0x111] sm:$0xff]
  %v231 = vld [vmem:[%s174 + $0x121] sm:$0xff]
  %v232 = vld [vmem:[%s174 + $0x129] sm:$0xff]
  %v233 = vld [vmem:[%s174 + $0x139] sm:$0xff]
  %v234 = vld [vmem:[%s174 + $0x141] sm:$0xff]
  %v235 = vld [vmem:[%s174 + $0x151] sm:$0xff]
  %v236 = vld [vmem:[%s174 + $0x159] sm:$0xff]
  %v237 = vld [vmem:[%s174 + $0x169] sm:$0xff]
  %v238 = vld [vmem:[%s174 + $0x171] sm:$0xff]
  %v239 = vld [vmem:[%s174 + $0x2] sm:$0xff]
  %v240 = vld [vmem:[%s174 + $0xa] sm:$0xff]
  %v241 = vld [vmem:[%s174 + $0x1a] sm:$0xff]
  %v242 = vld [vmem:[%s174 + $0x22] sm:$0xff]
  %v243 = vld [vmem:[%s174 + $0x32] sm:$0xff]
  %v244 = vld [vmem:[%s174 + $0x3a] sm:$0xff]
  %v245 = vld [vmem:[%s174 + $0x4a] sm:$0xff]
  %v246 = vld [vmem:[%s174 + $0x52] sm:$0xff]
  %v247 = vld [vmem:[%s174 + $0x62] sm:$0xff]
  %v248 = vld [vmem:[%s174 + $0x6a] sm:$0xff]
  %v249 = vld [vmem:[%s174 + $0x7a] sm:$0xff]
  %v250 = vld [vmem:[%s174 + $0x82] sm:$0xff]
  %v251 = vld [vmem:[%s174 + $0x92] sm:$0xff]
  %v252 = vld [vmem:[%s174 + $0x9a] sm:$0xff]
  %v253 = vld [vmem:[%s174 + $0xaa] sm:$0xff]
  %v254 = vld [vmem:[%s174 + $0xb2] sm:$0xff]
  %v255 = vld [vmem:[%s174 + $0xc2] sm:$0xff]
  %v256 = vld [vmem:[%s174 + $0xca] sm:$0xff]
  %v257 = vld [vmem:[%s174 + $0xda] sm:$0xff]
  %v258 = vld [vmem:[%s174 + $0xe2] sm:$0xff]
  %v259 = vld [vmem:[%s174 + $0xf2] sm:$0xff]
  %v260 = vld [vmem:[%s174 + $0xfa] sm:$0xff]
  %v261 = vld [vmem:[%s174 + $0x10a] sm:$0xff]
  %v262 = vld [vmem:[%s174 + $0x112] sm:$0xff]
  %v263 = vld [vmem:[%s174 + $0x122] sm:$0xff]
  %v264 = vld [vmem:[%s174 + $0x12a] sm:$0xff]
  %v265 = vld [vmem:[%s174 + $0x13a] sm:$0xff]
  %v266 = vld [vmem:[%s174 + $0x142] sm:$0xff]
  %v267 = vld [vmem:[%s174 + $0x152] sm:$0xff]
  %v268 = vld [vmem:[%s174 + $0x15a] sm:$0xff]
  %v269 = vld [vmem:[%s174 + $0x16a] sm:$0xff]
  %v270 = vld [vmem:[%s174 + $0x172] sm:$0xff]
  %v271 = vld [vmem:[%s174 + $0x3] sm:$0xff]
  %v272 = vld [vmem:[%s174 + $0xb] sm:$0xff]
  %v273 = vld [vmem:[%s174 + $0x1b] sm:$0xff]
  %v274 = vld [vmem:[%s174 + $0x23] sm:$0xff]
  %v275 = vld [vmem:[%s174 + $0x33] sm:$0xff]
  %v276 = vld [vmem:[%s174 + $0x3b] sm:$0xff]
  %v277 = vld [vmem:[%s174 + $0x4b] sm:$0xff]
  %v278 = vld [vmem:[%s174 + $0x53] sm:$0xff]
  %v279 = vld [vmem:[%s174 + $0x63] sm:$0xff]
  %v280 = vld [vmem:[%s174 + $0x6b] sm:$0xff]
  %v281 = vld [vmem:[%s174 + $0x7b] sm:$0xff]
  %v282 = vld [vmem:[%s174 + $0x83] sm:$0xff]
  %v283 = vld [vmem:[%s174 + $0x93] sm:$0xff]
  %v284 = vld [vmem:[%s174 + $0x9b] sm:$0xff]
  %v285 = vld [vmem:[%s174 + $0xab] sm:$0xff]
  %v286 = vld [vmem:[%s174 + $0xb3] sm:$0xff]
  %v287 = vld [vmem:[%s174 + $0xc3] sm:$0xff]
  %v288 = vld [vmem:[%s174 + $0xcb] sm:$0xff]
  %v289 = vld [vmem:[%s174 + $0xdb] sm:$0xff]
  %v290 = vld [vmem:[%s174 + $0xe3] sm:$0xff]
  %v291 = vld [vmem:[%s174 + $0xf3] sm:$0xff]
  %v292 = vld [vmem:[%s174 + $0xfb] sm:$0xff]
  %v293 = vld [vmem:[%s174 + $0x10b] sm:$0xff]
  %v294 = vld [vmem:[%s174 + $0x113] sm:$0xff]
  %v295 = vld [vmem:[%s174 + $0x123] sm:$0xff]
  %v296 = vld [vmem:[%s174 + $0x12b] sm:$0xff]
  %v297 = vld [vmem:[%s174 + $0x13b] sm:$0xff]
  %v298 = vld [vmem:[%s174 + $0x143] sm:$0xff]
  %v299 = vld [vmem:[%s174 + $0x153] sm:$0xff]
  %v300 = vld [vmem:[%s174 + $0x15b] sm:$0xff]
  %v301 = vld [vmem:[%s174 + $0x16b] sm:$0xff]
  %v302 = vld [vmem:[%s174 + $0x173] sm:$0xff]
  %v303 = vld [vmem:[%s174 + $0x4] sm:$0xff]
  %v304 = vld [vmem:[%s174 + $0xc] sm:$0xff]
  %v305 = vld [vmem:[%s174 + $0x1c] sm:$0xff]
  %v306 = vld [vmem:[%s174 + $0x24] sm:$0xff]
  %v307 = vld [vmem:[%s174 + $0x34] sm:$0xff]
  %v308 = vld [vmem:[%s174 + $0x3c] sm:$0xff]
  %v309 = vld [vmem:[%s174 + $0x4c] sm:$0xff]
  %v310 = vld [vmem:[%s174 + $0x54] sm:$0xff]
  %v311 = vld [vmem:[%s174 + $0x64] sm:$0xff]
  %v312 = vld [vmem:[%s174 + $0x6c] sm:$0xff]
  %v313 = vld [vmem:[%s174 + $0x7c] sm:$0xff]
  %v314 = vld [vmem:[%s174 + $0x84] sm:$0xff]
  %v315 = vld [vmem:[%s174 + $0x94] sm:$0xff]
  %v316 = vld [vmem:[%s174 + $0x9c] sm:$0xff]
  %v317 = vld [vmem:[%s174 + $0xac] sm:$0xff]
  %v318 = vld [vmem:[%s174 + $0xb4] sm:$0xff]
  %v319 = vld [vmem:[%s174 + $0xc4] sm:$0xff]
  %v320 = vld [vmem:[%s174 + $0xcc] sm:$0xff]
  %v321 = vld [vmem:[%s174 + $0xdc] sm:$0xff]
  %v322 = vld [vmem:[%s174 + $0xe4] sm:$0xff]
  %v323 = vld [vmem:[%s174 + $0xf4] sm:$0xff]
  %v324 = vld [vmem:[%s174 + $0xfc] sm:$0xff]
  %v325 = vld [vmem:[%s174 + $0x10c] sm:$0xff]
  %v326 = vld [vmem:[%s174 + $0x114] sm:$0xff]
  %v327 = vld [vmem:[%s174 + $0x124] sm:$0xff]
  %v328 = vld [vmem:[%s174 + $0x12c] sm:$0xff]
  %v329 = vld [vmem:[%s174 + $0x13c] sm:$0xff]
  %v330 = vld [vmem:[%s174 + $0x144] sm:$0xff]
  %v331 = vld [vmem:[%s174 + $0x154] sm:$0xff]
  %v332 = vld [vmem:[%s174 + $0x15c] sm:$0xff]
  %v333 = vld [vmem:[%s174 + $0x16c] sm:$0xff]
  %v334 = vld [vmem:[%s174 + $0x174] sm:$0xff]
  %s335 = scalar_lea.vmem %s0, 48
  %v336 = vld [vmem:[%s335] sm:$0xff]
  %v337 = vld [vmem:[%s335 + $0x8] sm:$0xff]
  %v338 = vld [vmem:[%s335 + $0x18] sm:$0xff]
  %v339 = vld [vmem:[%s335 + $0x20] sm:$0xff]
  %v340 = vld [vmem:[%s335 + $0x30] sm:$0xff]
  %v341 = vld [vmem:[%s335 + $0x38] sm:$0xff]
  %v342 = vld [vmem:[%s335 + $0x48] sm:$0xff]
  %v343 = vld [vmem:[%s335 + $0x50] sm:$0xff]
  %v344 = vld [vmem:[%s335 + $0x60] sm:$0xff]
  %v345 = vld [vmem:[%s335 + $0x68] sm:$0xff]
  %v346 = vld [vmem:[%s335 + $0x78] sm:$0xff]
  %v347 = vld [vmem:[%s335 + $0x80] sm:$0xff]
  %v348 = vld [vmem:[%s335 + $0x90] sm:$0xff]
  %v349 = vld [vmem:[%s335 + $0x98] sm:$0xff]
  %v350 = vld [vmem:[%s335 + $0xa8] sm:$0xff]
  %v351 = vld [vmem:[%s335 + $0xb0] sm:$0xff]
  %v352 = vld [vmem:[%s335 + $0xc0] sm:$0xff]
  %v353 = vld [vmem:[%s335 + $0xc8] sm:$0xff]
  %v354 = vld [vmem:[%s335 + $0xd8] sm:$0xff]
  %v355 = vld [vmem:[%s335 + $0xe0] sm:$0xff]
  %v356 = vld [vmem:[%s335 + $0xf0] sm:$0xff]
  %v357 = vld [vmem:[%s335 + $0xf8] sm:$0xff]
  %v358 = vld [vmem:[%s335 + $0x108] sm:$0xff]
  %v359 = vld [vmem:[%s335 + $0x110] sm:$0xff]
  %v360 = vld [vmem:[%s335 + $0x120] sm:$0xff]
  %v361 = vld [vmem:[%s335 + $0x128] sm:$0xff]
  %v362 = vld [vmem:[%s335 + $0x138] sm:$0xff]
  %v363 = vld [vmem:[%s335 + $0x140] sm:$0xff]
  %v364 = vld [vmem:[%s335 + $0x150] sm:$0xff]
  %v365 = vld [vmem:[%s335 + $0x158] sm:$0xff]
  %v366 = vld [vmem:[%s335 + $0x168] sm:$0xff]
  %v367 = vld [vmem:[%s335 + $0x170] sm:$0xff]
  %v368 = vld [vmem:[%s335 + $0x1] sm:$0xff]
  %v369 = vld [vmem:[%s335 + $0x9] sm:$0xff]
  %v370 = vld [vmem:[%s335 + $0x19] sm:$0xff]
  %v371 = vld [vmem:[%s335 + $0x21] sm:$0xff]
  %v372 = vld [vmem:[%s335 + $0x31] sm:$0xff]
  %v373 = vld [vmem:[%s335 + $0x39] sm:$0xff]
  %v374 = vld [vmem:[%s335 + $0x49] sm:$0xff]
  %v375 = vld [vmem:[%s335 + $0x51] sm:$0xff]
  %v376 = vld [vmem:[%s335 + $0x61] sm:$0xff]
  %v377 = vld [vmem:[%s335 + $0x69] sm:$0xff]
  %v378 = vld [vmem:[%s335 + $0x79] sm:$0xff]
  %v379 = vld [vmem:[%s335 + $0x81] sm:$0xff]
  %v380 = vld [vmem:[%s335 + $0x91] sm:$0xff]
  %v381 = vld [vmem:[%s335 + $0x99] sm:$0xff]
  %v382 = vld [vmem:[%s335 + $0xa9] sm:$0xff]
  %v383 = vld [vmem:[%s335 + $0xb1] sm:$0xff]
  %v384 = vld [vmem:[%s335 + $0xc1] sm:$0xff]
  %v385 = vld [vmem:[%s335 + $0xc9] sm:$0xff]
  %v386 = vld [vmem:[%s335 + $0xd9] sm:$0xff]
  %v387 = vld [vmem:[%s335 + $0xe1] sm:$0xff]
  %v388 = vld [vmem:[%s335 + $0xf1] sm:$0xff]
  %v389 = vld [vmem:[%s335 + $0xf9] sm:$0xff]
  %v390 = vld [vmem:[%s335 + $0x109] sm:$0xff]
  %v391 = vld [vmem:[%s335 + $0x111] sm:$0xff]
  %v392 = vld [vmem:[%s335 + $0x121] sm:$0xff]
  %v393 = vld [vmem:[%s335 + $0x129] sm:$0xff]
  %v394 = vld [vmem:[%s335 + $0x139] sm:$0xff]
  %v395 = vld [vmem:[%s335 + $0x141] sm:$0xff]
  %v396 = vld [vmem:[%s335 + $0x151] sm:$0xff]
  %v397 = vld [vmem:[%s335 + $0x159] sm:$0xff]
  %v398 = vld [vmem:[%s335 + $0x169] sm:$0xff]
  %v399 = vld [vmem:[%s335 + $0x171] sm:$0xff]
  %v400 = vld [vmem:[%s335 + $0x2] sm:$0xff]
  %v401 = vld [vmem:[%s335 + $0xa] sm:$0xff]
  %v402 = vld [vmem:[%s335 + $0x1a] sm:$0xff]
  %v403 = vld [vmem:[%s335 + $0x22] sm:$0xff]
  %v404 = vld [vmem:[%s335 + $0x32] sm:$0xff]
  %v405 = vld [vmem:[%s335 + $0x3a] sm:$0xff]
  %v406 = vld [vmem:[%s335 + $0x4a] sm:$0xff]
  %v407 = vld [vmem:[%s335 + $0x52] sm:$0xff]
  %v408 = vld [vmem:[%s335 + $0x62] sm:$0xff]
  %v409 = vld [vmem:[%s335 + $0x6a] sm:$0xff]
  %v410 = vld [vmem:[%s335 + $0x7a] sm:$0xff]
  %v411 = vld [vmem:[%s335 + $0x82] sm:$0xff]
  %v412 = vld [vmem:[%s335 + $0x92] sm:$0xff]
  %v413 = vld [vmem:[%s335 + $0x9a] sm:$0xff]
  %v414 = vld [vmem:[%s335 + $0xaa] sm:$0xff]
  %v415 = vld [vmem:[%s335 + $0xb2] sm:$0xff]
  %v416 = vld [vmem:[%s335 + $0xc2] sm:$0xff]
  %v417 = vld [vmem:[%s335 + $0xca] sm:$0xff]
  %v418 = vld [vmem:[%s335 + $0xda] sm:$0xff]
  %v419 = vld [vmem:[%s335 + $0xe2] sm:$0xff]
  %v420 = vld [vmem:[%s335 + $0xf2] sm:$0xff]
  %v421 = vld [vmem:[%s335 + $0xfa] sm:$0xff]
  %v422 = vld [vmem:[%s335 + $0x10a] sm:$0xff]
  %v423 = vld [vmem:[%s335 + $0x112] sm:$0xff]
  %v424 = vld [vmem:[%s335 + $0x122] sm:$0xff]
  %v425 = vld [vmem:[%s335 + $0x12a] sm:$0xff]
  %v426 = vld [vmem:[%s335 + $0x13a] sm:$0xff]
  %v427 = vld [vmem:[%s335 + $0x142] sm:$0xff]
  %v428 = vld [vmem:[%s335 + $0x152] sm:$0xff]
  %v429 = vld [vmem:[%s335 + $0x15a] sm:$0xff]
  %v430 = vld [vmem:[%s335 + $0x16a] sm:$0xff]
  %v431 = vld [vmem:[%s335 + $0x172] sm:$0xff]
  %v432 = vld [vmem:[%s335 + $0x3] sm:$0xff]
  %v433 = vld [vmem:[%s335 + $0xb] sm:$0xff]
  %v434 = vld [vmem:[%s335 + $0x1b] sm:$0xff]
  %v435 = vld [vmem:[%s335 + $0x23] sm:$0xff]
  %v436 = vld [vmem:[%s335 + $0x33] sm:$0xff]
  %v437 = vld [vmem:[%s335 + $0x3b] sm:$0xff]
  %v438 = vld [vmem:[%s335 + $0x4b] sm:$0xff]
  %v439 = vld [vmem:[%s335 + $0x53] sm:$0xff]
  %v440 = vld [vmem:[%s335 + $0x63] sm:$0xff]
  %v441 = vld [vmem:[%s335 + $0x6b] sm:$0xff]
  %v442 = vld [vmem:[%s335 + $0x7b] sm:$0xff]
  %v443 = vld [vmem:[%s335 + $0x83] sm:$0xff]
  %v444 = vld [vmem:[%s335 + $0x93] sm:$0xff]
  %v445 = vld [vmem:[%s335 + $0x9b] sm:$0xff]
  %v446 = vld [vmem:[%s335 + $0xab] sm:$0xff]
  %v447 = vld [vmem:[%s335 + $0xb3] sm:$0xff]
  %v448 = vld [vmem:[%s335 + $0xc3] sm:$0xff]
  %v449 = vld [vmem:[%s335 + $0xcb] sm:$0xff]
  %v450 = vld [vmem:[%s335 + $0xdb] sm:$0xff]
  %v451 = vld [vmem:[%s335 + $0xe3] sm:$0xff]
  %v452 = vld [vmem:[%s335 + $0xf3] sm:$0xff]
  %v453 = vld [vmem:[%s335 + $0xfb] sm:$0xff]
  %v454 = vld [vmem:[%s335 + $0x10b] sm:$0xff]
  %v455 = vld [vmem:[%s335 + $0x113] sm:$0xff]
  %v456 = vld [vmem:[%s335 + $0x123] sm:$0xff]
  %v457 = vld [vmem:[%s335 + $0x12b] sm:$0xff]
  %v458 = vld [vmem:[%s335 + $0x13b] sm:$0xff]
  %v459 = vld [vmem:[%s335 + $0x143] sm:$0xff]
  %v460 = vld [vmem:[%s335 + $0x153] sm:$0xff]
  %v461 = vld [vmem:[%s335 + $0x15b] sm:$0xff]
  %v462 = vld [vmem:[%s335 + $0x16b] sm:$0xff]
  %v463 = vld [vmem:[%s335 + $0x173] sm:$0xff]
  %v464 = vld [vmem:[%s335 + $0x4] sm:$0xff]
  %v465 = vld [vmem:[%s335 + $0xc] sm:$0xff]
  %v466 = vld [vmem:[%s335 + $0x1c] sm:$0xff]
  %v467 = vld [vmem:[%s335 + $0x24] sm:$0xff]
  %v468 = vld [vmem:[%s335 + $0x34] sm:$0xff]
  %v469 = vld [vmem:[%s335 + $0x3c] sm:$0xff]
  %v470 = vld [vmem:[%s335 + $0x4c] sm:$0xff]
  %v471 = vld [vmem:[%s335 + $0x54] sm:$0xff]
  %v472 = vld [vmem:[%s335 + $0x64] sm:$0xff]
  %v473 = vld [vmem:[%s335 + $0x6c] sm:$0xff]
  %v474 = vld [vmem:[%s335 + $0x7c] sm:$0xff]
  %v475 = vld [vmem:[%s335 + $0x84] sm:$0xff]
  %v476 = vld [vmem:[%s335 + $0x94] sm:$0xff]
  %v477 = vld [vmem:[%s335 + $0x9c] sm:$0xff]
  %v478 = vld [vmem:[%s335 + $0xac] sm:$0xff]
  %v479 = vld [vmem:[%s335 + $0xb4] sm:$0xff]
  %v480 = vld [vmem:[%s335 + $0xc4] sm:$0xff]
  %v481 = vld [vmem:[%s335 + $0xcc] sm:$0xff]
  %v482 = vld [vmem:[%s335 + $0xdc] sm:$0xff]
  %v483 = vld [vmem:[%s335 + $0xe4] sm:$0xff]
  %v484 = vld [vmem:[%s335 + $0xf4] sm:$0xff]
  %v485 = vld [vmem:[%s335 + $0xfc] sm:$0xff]
  %v486 = vld [vmem:[%s335 + $0x10c] sm:$0xff]
  %v487 = vld [vmem:[%s335 + $0x114] sm:$0xff]
  %v488 = vld [vmem:[%s335 + $0x124] sm:$0xff]
  %v489 = vld [vmem:[%s335 + $0x12c] sm:$0xff]
  %v490 = vld [vmem:[%s335 + $0x13c] sm:$0xff]
  %v491 = vld [vmem:[%s335 + $0x144] sm:$0xff]
  %v492 = vld [vmem:[%s335 + $0x154] sm:$0xff]
  %v493 = vld [vmem:[%s335 + $0x15c] sm:$0xff]
  %v494 = vld [vmem:[%s335 + $0x16c] sm:$0xff]
  %v495 = vld [vmem:[%s335 + $0x174] sm:$0xff]
  %s496 = scalar_lea.vmem %s0, 72
  %v497 = vld [vmem:[%s496] sm:$0xff]
  %v498 = vld [vmem:[%s496 + $0x8] sm:$0xff]
  %v499 = vld [vmem:[%s496 + $0x18] sm:$0xff]
  %v500 = vld [vmem:[%s496 + $0x20] sm:$0xff]
  %v501 = vld [vmem:[%s496 + $0x30] sm:$0xff]
  %v502 = vld [vmem:[%s496 + $0x38] sm:$0xff]
  %v503 = vld [vmem:[%s496 + $0x48] sm:$0xff]
  %v504 = vld [vmem:[%s496 + $0x50] sm:$0xff]
  %v505 = vld [vmem:[%s496 + $0x60] sm:$0xff]
  %v506 = vld [vmem:[%s496 + $0x68] sm:$0xff]
  %v507 = vld [vmem:[%s496 + $0x78] sm:$0xff]
  %v508 = vld [vmem:[%s496 + $0x80] sm:$0xff]
  %v509 = vld [vmem:[%s496 + $0x90] sm:$0xff]
  %v510 = vld [vmem:[%s496 + $0x98] sm:$0xff]
  %v511 = vld [vmem:[%s496 + $0xa8] sm:$0xff]
  %v512 = vld [vmem:[%s496 + $0xb0] sm:$0xff]
  %v513 = vld [vmem:[%s496 + $0xc0] sm:$0xff]
  %v514 = vld [vmem:[%s496 + $0xc8] sm:$0xff]
  %v515 = vld [vmem:[%s496 + $0xd8] sm:$0xff]
  %v516 = vld [vmem:[%s496 + $0xe0] sm:$0xff]
  %v517 = vld [vmem:[%s496 + $0xf0] sm:$0xff]
  %v518 = vld [vmem:[%s496 + $0xf8] sm:$0xff]
  %v519 = vld [vmem:[%s496 + $0x108] sm:$0xff]
  %v520 = vld [vmem:[%s496 + $0x110] sm:$0xff]
  %v521 = vld [vmem:[%s496 + $0x120] sm:$0xff]
  %v522 = vld [vmem:[%s496 + $0x128] sm:$0xff]
  %v523 = vld [vmem:[%s496 + $0x138] sm:$0xff]
  %v524 = vld [vmem:[%s496 + $0x140] sm:$0xff]
  %v525 = vld [vmem:[%s496 + $0x150] sm:$0xff]
  %v526 = vld [vmem:[%s496 + $0x158] sm:$0xff]
  %v527 = vld [vmem:[%s496 + $0x168] sm:$0xff]
  %v528 = vld [vmem:[%s496 + $0x170] sm:$0xff]
  %v529 = vld [vmem:[%s496 + $0x1] sm:$0xff]
  %v530 = vld [vmem:[%s496 + $0x9] sm:$0xff]
  %v531 = vld [vmem:[%s496 + $0x19] sm:$0xff]
  %v532 = vld [vmem:[%s496 + $0x21] sm:$0xff]
  %v533 = vld [vmem:[%s496 + $0x31] sm:$0xff]
  %v534 = vld [vmem:[%s496 + $0x39] sm:$0xff]
  %v535 = vld [vmem:[%s496 + $0x49] sm:$0xff]
  %v536 = vld [vmem:[%s496 + $0x51] sm:$0xff]
  %v537 = vld [vmem:[%s496 + $0x61] sm:$0xff]
  %v538 = vld [vmem:[%s496 + $0x69] sm:$0xff]
  %v539 = vld [vmem:[%s496 + $0x79] sm:$0xff]
  %v540 = vld [vmem:[%s496 + $0x81] sm:$0xff]
  %v541 = vld [vmem:[%s496 + $0x91] sm:$0xff]
  %v542 = vld [vmem:[%s496 + $0x99] sm:$0xff]
  %v543 = vld [vmem:[%s496 + $0xa9] sm:$0xff]
  %v544 = vld [vmem:[%s496 + $0xb1] sm:$0xff]
  %v545 = vld [vmem:[%s496 + $0xc1] sm:$0xff]
  %v546 = vld [vmem:[%s496 + $0xc9] sm:$0xff]
  %v547 = vld [vmem:[%s496 + $0xd9] sm:$0xff]
  %v548 = vld [vmem:[%s496 + $0xe1] sm:$0xff]
  %v549 = vld [vmem:[%s496 + $0xf1] sm:$0xff]
  %v550 = vld [vmem:[%s496 + $0xf9] sm:$0xff]
  %v551 = vld [vmem:[%s496 + $0x109] sm:$0xff]
  %v552 = vld [vmem:[%s496 + $0x111] sm:$0xff]
  %v553 = vld [vmem:[%s496 + $0x121] sm:$0xff]
  %v554 = vld [vmem:[%s496 + $0x129] sm:$0xff]
  %v555 = vld [vmem:[%s496 + $0x139] sm:$0xff]
  %v556 = vld [vmem:[%s496 + $0x141] sm:$0xff]
  %v557 = vld [vmem:[%s496 + $0x151] sm:$0xff]
  %v558 = vld [vmem:[%s496 + $0x159] sm:$0xff]
  %v559 = vld [vmem:[%s496 + $0x169] sm:$0xff]
  %v560 = vld [vmem:[%s496 + $0x171] sm:$0xff]
  %v561 = vld [vmem:[%s496 + $0x2] sm:$0xff]
  %v562 = vld [vmem:[%s496 + $0xa] sm:$0xff]
  %v563 = vld [vmem:[%s496 + $0x1a] sm:$0xff]
  %v564 = vld [vmem:[%s496 + $0x22] sm:$0xff]
  %v565 = vld [vmem:[%s496 + $0x32] sm:$0xff]
  %v566 = vld [vmem:[%s496 + $0x3a] sm:$0xff]
  %v567 = vld [vmem:[%s496 + $0x4a] sm:$0xff]
  %v568 = vld [vmem:[%s496 + $0x52] sm:$0xff]
  %v569 = vld [vmem:[%s496 + $0x62] sm:$0xff]
  %v570 = vld [vmem:[%s496 + $0x6a] sm:$0xff]
  %v571 = vld [vmem:[%s496 + $0x7a] sm:$0xff]
  %v572 = vld [vmem:[%s496 + $0x82] sm:$0xff]
  %v573 = vld [vmem:[%s496 + $0x92] sm:$0xff]
  %v574 = vld [vmem:[%s496 + $0x9a] sm:$0xff]
  %v575 = vld [vmem:[%s496 + $0xaa] sm:$0xff]
  %v576 = vld [vmem:[%s496 + $0xb2] sm:$0xff]
  %v577 = vld [vmem:[%s496 + $0xc2] sm:$0xff]
  %v578 = vld [vmem:[%s496 + $0xca] sm:$0xff]
  %v579 = vld [vmem:[%s496 + $0xda] sm:$0xff]
  %v580 = vld [vmem:[%s496 + $0xe2] sm:$0xff]
  %v581 = vld [vmem:[%s496 + $0xf2] sm:$0xff]
  %v582 = vld [vmem:[%s496 + $0xfa] sm:$0xff]
  %v583 = vld [vmem:[%s496 + $0x10a] sm:$0xff]
  %v584 = vld [vmem:[%s496 + $0x112] sm:$0xff]
  %v585 = vld [vmem:[%s496 + $0x122] sm:$0xff]
  %v586 = vld [vmem:[%s496 + $0x12a] sm:$0xff]
  %v587 = vld [vmem:[%s496 + $0x13a] sm:$0xff]
  %v588 = vld [vmem:[%s496 + $0x142] sm:$0xff]
  %v589 = vld [vmem:[%s496 + $0x152] sm:$0xff]
  %v590 = vld [vmem:[%s496 + $0x15a] sm:$0xff]
  %v591 = vld [vmem:[%s496 + $0x16a] sm:$0xff]
  %v592 = vld [vmem:[%s496 + $0x172] sm:$0xff]
  %v593 = vld [vmem:[%s496 + $0x3] sm:$0xff]
  %v594 = vld [vmem:[%s496 + $0xb] sm:$0xff]
  %v595 = vld [vmem:[%s496 + $0x1b] sm:$0xff]
  %v596 = vld [vmem:[%s496 + $0x23] sm:$0xff]
  %v597 = vld [vmem:[%s496 + $0x33] sm:$0xff]
  %v598 = vld [vmem:[%s496 + $0x3b] sm:$0xff]
  %v599 = vld [vmem:[%s496 + $0x4b] sm:$0xff]
  %v600 = vld [vmem:[%s496 + $0x53] sm:$0xff]
  %v601 = vld [vmem:[%s496 + $0x63] sm:$0xff]
  %v602 = vld [vmem:[%s496 + $0x6b] sm:$0xff]
  %v603 = vld [vmem:[%s496 + $0x7b] sm:$0xff]
  %v604 = vld [vmem:[%s496 + $0x83] sm:$0xff]
  %v605 = vld [vmem:[%s496 + $0x93] sm:$0xff]
  %v606 = vld [vmem:[%s496 + $0x9b] sm:$0xff]
  %v607 = vld [vmem:[%s496 + $0xab] sm:$0xff]
  %v608 = vld [vmem:[%s496 + $0xb3] sm:$0xff]
  %v609 = vld [vmem:[%s496 + $0xc3] sm:$0xff]
  %v610 = vld [vmem:[%s496 + $0xcb] sm:$0xff]
  %v611 = vld [vmem:[%s496 + $0xdb] sm:$0xff]
  %v612 = vld [vmem:[%s496 + $0xe3] sm:$0xff]
  %v613 = vld [vmem:[%s496 + $0xf3] sm:$0xff]
  %v614 = vld [vmem:[%s496 + $0xfb] sm:$0xff]
  %v615 = vld [vmem:[%s496 + $0x10b] sm:$0xff]
  %v616 = vld [vmem:[%s496 + $0x113] sm:$0xff]
  %v617 = vld [vmem:[%s496 + $0x123] sm:$0xff]
  %v618 = vld [vmem:[%s496 + $0x12b] sm:$0xff]
  %v619 = vld [vmem:[%s496 + $0x13b] sm:$0xff]
  %v620 = vld [vmem:[%s496 + $0x143] sm:$0xff]
  %v621 = vld [vmem:[%s496 + $0x153] sm:$0xff]
  %v622 = vld [vmem:[%s496 + $0x15b] sm:$0xff]
  %v623 = vld [vmem:[%s496 + $0x16b] sm:$0xff]
  %v624 = vld [vmem:[%s496 + $0x173] sm:$0xff]
  %v625 = vld [vmem:[%s496 + $0x4] sm:$0xff]
  %v626 = vld [vmem:[%s496 + $0xc] sm:$0xff]
  %v627 = vld [vmem:[%s496 + $0x1c] sm:$0xff]
  %v628 = vld [vmem:[%s496 + $0x24] sm:$0xff]
  %v629 = vld [vmem:[%s496 + $0x34] sm:$0xff]
  %v630 = vld [vmem:[%s496 + $0x3c] sm:$0xff]
  %v631 = vld [vmem:[%s496 + $0x4c] sm:$0xff]
  %v632 = vld [vmem:[%s496 + $0x54] sm:$0xff]
  %v633 = vld [vmem:[%s496 + $0x64] sm:$0xff]
  %v634 = vld [vmem:[%s496 + $0x6c] sm:$0xff]
  %v635 = vld [vmem:[%s496 + $0x7c] sm:$0xff]
  %v636 = vld [vmem:[%s496 + $0x84] sm:$0xff]
  %v637 = vld [vmem:[%s496 + $0x94] sm:$0xff]
  %v638 = vld [vmem:[%s496 + $0x9c] sm:$0xff]
  %v639 = vld [vmem:[%s496 + $0xac] sm:$0xff]
  %v640 = vld [vmem:[%s496 + $0xb4] sm:$0xff]
  %v641 = vld [vmem:[%s496 + $0xc4] sm:$0xff]
  %v642 = vld [vmem:[%s496 + $0xcc] sm:$0xff]
  %v643 = vld [vmem:[%s496 + $0xdc] sm:$0xff]
  %v644 = vld [vmem:[%s496 + $0xe4] sm:$0xff]
  %v645 = vld [vmem:[%s496 + $0xf4] sm:$0xff]
  %v646 = vld [vmem:[%s496 + $0xfc] sm:$0xff]
  %v647 = vld [vmem:[%s496 + $0x10c] sm:$0xff]
  %v648 = vld [vmem:[%s496 + $0x114] sm:$0xff]
  %v649 = vld [vmem:[%s496 + $0x124] sm:$0xff]
  %v650 = vld [vmem:[%s496 + $0x12c] sm:$0xff]
  %v651 = vld [vmem:[%s496 + $0x13c] sm:$0xff]
  %v652 = vld [vmem:[%s496 + $0x144] sm:$0xff]
  %v653 = vld [vmem:[%s496 + $0x154] sm:$0xff]
  %v654 = vld [vmem:[%s496 + $0x15c] sm:$0xff]
  %v655 = vld [vmem:[%s496 + $0x16c] sm:$0xff]
  %v656 = vld [vmem:[%s496 + $0x174] sm:$0xff]
  %s657 = scalar_lea.vmem %s0, 96
  %v658 = vld [vmem:[%s657] sm:$0xff]
  %v659 = vld [vmem:[%s657 + $0x8] sm:$0xff]
  %v660 = vld [vmem:[%s657 + $0x18] sm:$0xff]
  %v661 = vld [vmem:[%s657 + $0x20] sm:$0xff]
  %v662 = vld [vmem:[%s657 + $0x30] sm:$0xff]
  %v663 = vld [vmem:[%s657 + $0x38] sm:$0xff]
  %v664 = vld [vmem:[%s657 + $0x48] sm:$0xff]
  %v665 = vld [vmem:[%s657 + $0x50] sm:$0xff]
  %v666 = vld [vmem:[%s657 + $0x60] sm:$0xff]
  %v667 = vld [vmem:[%s657 + $0x68] sm:$0xff]
  %v668 = vld [vmem:[%s657 + $0x78] sm:$0xff]
  %v669 = vld [vmem:[%s657 + $0x80] sm:$0xff]
  %v670 = vld [vmem:[%s657 + $0x90] sm:$0xff]
  %v671 = vld [vmem:[%s657 + $0x98] sm:$0xff]
  %v672 = vld [vmem:[%s657 + $0xa8] sm:$0xff]
  %v673 = vld [vmem:[%s657 + $0xb0] sm:$0xff]
  %v674 = vld [vmem:[%s657 + $0xc0] sm:$0xff]
  %v675 = vld [vmem:[%s657 + $0xc8] sm:$0xff]
  %v676 = vld [vmem:[%s657 + $0xd8] sm:$0xff]
  %v677 = vld [vmem:[%s657 + $0xe0] sm:$0xff]
  %v678 = vld [vmem:[%s657 + $0xf0] sm:$0xff]
  %v679 = vld [vmem:[%s657 + $0xf8] sm:$0xff]
  %v680 = vld [vmem:[%s657 + $0x108] sm:$0xff]
  %v681 = vld [vmem:[%s657 + $0x110] sm:$0xff]
  %v682 = vld [vmem:[%s657 + $0x120] sm:$0xff]
  %v683 = vld [vmem:[%s657 + $0x128] sm:$0xff]
  %v684 = vld [vmem:[%s657 + $0x138] sm:$0xff]
  %v685 = vld [vmem:[%s657 + $0x140] sm:$0xff]
  %v686 = vld [vmem:[%s657 + $0x150] sm:$0xff]
  %v687 = vld [vmem:[%s657 + $0x158] sm:$0xff]
  %v688 = vld [vmem:[%s657 + $0x168] sm:$0xff]
  %v689 = vld [vmem:[%s657 + $0x170] sm:$0xff]
  %v690 = vld [vmem:[%s657 + $0x1] sm:$0xff]
  %v691 = vld [vmem:[%s657 + $0x9] sm:$0xff]
  %v692 = vld [vmem:[%s657 + $0x19] sm:$0xff]
  %v693 = vld [vmem:[%s657 + $0x21] sm:$0xff]
  %v694 = vld [vmem:[%s657 + $0x31] sm:$0xff]
  %v695 = vld [vmem:[%s657 + $0x39] sm:$0xff]
  %v696 = vld [vmem:[%s657 + $0x49] sm:$0xff]
  %v697 = vld [vmem:[%s657 + $0x51] sm:$0xff]
  %v698 = vld [vmem:[%s657 + $0x61] sm:$0xff]
  %v699 = vld [vmem:[%s657 + $0x69] sm:$0xff]
  %v700 = vld [vmem:[%s657 + $0x79] sm:$0xff]
  %v701 = vld [vmem:[%s657 + $0x81] sm:$0xff]
  %v702 = vld [vmem:[%s657 + $0x91] sm:$0xff]
  %v703 = vld [vmem:[%s657 + $0x99] sm:$0xff]
  %v704 = vld [vmem:[%s657 + $0xa9] sm:$0xff]
  %v705 = vld [vmem:[%s657 + $0xb1] sm:$0xff]
  %v706 = vld [vmem:[%s657 + $0xc1] sm:$0xff]
  %v707 = vld [vmem:[%s657 + $0xc9] sm:$0xff]
  %v708 = vld [vmem:[%s657 + $0xd9] sm:$0xff]
  %v709 = vld [vmem:[%s657 + $0xe1] sm:$0xff]
  %v710 = vld [vmem:[%s657 + $0xf1] sm:$0xff]
  %v711 = vld [vmem:[%s657 + $0xf9] sm:$0xff]
  %v712 = vld [vmem:[%s657 + $0x109] sm:$0xff]
  %v713 = vld [vmem:[%s657 + $0x111] sm:$0xff]
  %v714 = vld [vmem:[%s657 + $0x121] sm:$0xff]
  %v715 = vld [vmem:[%s657 + $0x129] sm:$0xff]
  %v716 = vld [vmem:[%s657 + $0x139] sm:$0xff]
  %v717 = vld [vmem:[%s657 + $0x141] sm:$0xff]
  %v718 = vld [vmem:[%s657 + $0x151] sm:$0xff]
  %v719 = vld [vmem:[%s657 + $0x159] sm:$0xff]
  %v720 = vld [vmem:[%s657 + $0x169] sm:$0xff]
  %v721 = vld [vmem:[%s657 + $0x171] sm:$0xff]
  %v722 = vld [vmem:[%s657 + $0x2] sm:$0xff]
  %v723 = vld [vmem:[%s657 + $0xa] sm:$0xff]
  %v724 = vld [vmem:[%s657 + $0x1a] sm:$0xff]
  %v725 = vld [vmem:[%s657 + $0x22] sm:$0xff]
  %v726 = vld [vmem:[%s657 + $0x32] sm:$0xff]
  %v727 = vld [vmem:[%s657 + $0x3a] sm:$0xff]
  %v728 = vld [vmem:[%s657 + $0x4a] sm:$0xff]
  %v729 = vld [vmem:[%s657 + $0x52] sm:$0xff]
  %v730 = vld [vmem:[%s657 + $0x62] sm:$0xff]
  %v731 = vld [vmem:[%s657 + $0x6a] sm:$0xff]
  %v732 = vld [vmem:[%s657 + $0x7a] sm:$0xff]
  %v733 = vld [vmem:[%s657 + $0x82] sm:$0xff]
  %v734 = vld [vmem:[%s657 + $0x92] sm:$0xff]
  %v735 = vld [vmem:[%s657 + $0x9a] sm:$0xff]
  %v736 = vld [vmem:[%s657 + $0xaa] sm:$0xff]
  %v737 = vld [vmem:[%s657 + $0xb2] sm:$0xff]
  %v738 = vld [vmem:[%s657 + $0xc2] sm:$0xff]
  %v739 = vld [vmem:[%s657 + $0xca] sm:$0xff]
  %v740 = vld [vmem:[%s657 + $0xda] sm:$0xff]
  %v741 = vld [vmem:[%s657 + $0xe2] sm:$0xff]
  %v742 = vld [vmem:[%s657 + $0xf2] sm:$0xff]
  %v743 = vld [vmem:[%s657 + $0xfa] sm:$0xff]
  %v744 = vld [vmem:[%s657 + $0x10a] sm:$0xff]
  %v745 = vld [vmem:[%s657 + $0x112] sm:$0xff]
  %v746 = vld [vmem:[%s657 + $0x122] sm:$0xff]
  %v747 = vld [vmem:[%s657 + $0x12a] sm:$0xff]
  %v748 = vld [vmem:[%s657 + $0x13a] sm:$0xff]
  %v749 = vld [vmem:[%s657 + $0x142] sm:$0xff]
  %v750 = vld [vmem:[%s657 + $0x152] sm:$0xff]
  %v751 = vld [vmem:[%s657 + $0x15a] sm:$0xff]
  %v752 = vld [vmem:[%s657 + $0x16a] sm:$0xff]
  %v753 = vld [vmem:[%s657 + $0x172] sm:$0xff]
  %v754 = vld [vmem:[%s657 + $0x3] sm:$0xff]
  %v755 = vld [vmem:[%s657 + $0xb] sm:$0xff]
  %v756 = vld [vmem:[%s657 + $0x1b] sm:$0xff]
  %v757 = vld [vmem:[%s657 + $0x23] sm:$0xff]
  %v758 = vld [vmem:[%s657 + $0x33] sm:$0xff]
  %v759 = vld [vmem:[%s657 + $0x3b] sm:$0xff]
  %v760 = vld [vmem:[%s657 + $0x4b] sm:$0xff]
  %v761 = vld [vmem:[%s657 + $0x53] sm:$0xff]
  %v762 = vld [vmem:[%s657 + $0x63] sm:$0xff]
  %v763 = vld [vmem:[%s657 + $0x6b] sm:$0xff]
  %v764 = vld [vmem:[%s657 + $0x7b] sm:$0xff]
  %v765 = vld [vmem:[%s657 + $0x83] sm:$0xff]
  %v766 = vld [vmem:[%s657 + $0x93] sm:$0xff]
  %v767 = vld [vmem:[%s657 + $0x9b] sm:$0xff]
  %v768 = vld [vmem:[%s657 + $0xab] sm:$0xff]
  %v769 = vld [vmem:[%s657 + $0xb3] sm:$0xff]
  %v770 = vld [vmem:[%s657 + $0xc3] sm:$0xff]
  %v771 = vld [vmem:[%s657 + $0xcb] sm:$0xff]
  %v772 = vld [vmem:[%s657 + $0xdb] sm:$0xff]
  %v773 = vld [vmem:[%s657 + $0xe3] sm:$0xff]
  %v774 = vld [vmem:[%s657 + $0xf3] sm:$0xff]
  %v775 = vld [vmem:[%s657 + $0xfb] sm:$0xff]
  %v776 = vld [vmem:[%s657 + $0x10b] sm:$0xff]
  %v777 = vld [vmem:[%s657 + $0x113] sm:$0xff]
  %v778 = vld [vmem:[%s657 + $0x123] sm:$0xff]
  %v779 = vld [vmem:[%s657 + $0x12b] sm:$0xff]
  %v780 = vld [vmem:[%s657 + $0x13b] sm:$0xff]
  %v781 = vld [vmem:[%s657 + $0x143] sm:$0xff]
  %v782 = vld [vmem:[%s657 + $0x153] sm:$0xff]
  %v783 = vld [vmem:[%s657 + $0x15b] sm:$0xff]
  %v784 = vld [vmem:[%s657 + $0x16b] sm:$0xff]
  %v785 = vld [vmem:[%s657 + $0x173] sm:$0xff]
  %v786 = vld [vmem:[%s657 + $0x4] sm:$0xff]
  %v787 = vld [vmem:[%s657 + $0xc] sm:$0xff]
  %v788 = vld [vmem:[%s657 + $0x1c] sm:$0xff]
  %v789 = vld [vmem:[%s657 + $0x24] sm:$0xff]
  %v790 = vld [vmem:[%s657 + $0x34] sm:$0xff]
  %v791 = vld [vmem:[%s657 + $0x3c] sm:$0xff]
  %v792 = vld [vmem:[%s657 + $0x4c] sm:$0xff]
  %v793 = vld [vmem:[%s657 + $0x54] sm:$0xff]
  %v794 = vld [vmem:[%s657 + $0x64] sm:$0xff]
  %v795 = vld [vmem:[%s657 + $0x6c] sm:$0xff]
  %v796 = vld [vmem:[%s657 + $0x7c] sm:$0xff]
  %v797 = vld [vmem:[%s657 + $0x84] sm:$0xff]
  %v798 = vld [vmem:[%s657 + $0x94] sm:$0xff]
  %v799 = vld [vmem:[%s657 + $0x9c] sm:$0xff]
  %v800 = vld [vmem:[%s657 + $0xac] sm:$0xff]
  %v801 = vld [vmem:[%s657 + $0xb4] sm:$0xff]
  %v802 = vld [vmem:[%s657 + $0xc4] sm:$0xff]
  %v803 = vld [vmem:[%s657 + $0xcc] sm:$0xff]
  %v804 = vld [vmem:[%s657 + $0xdc] sm:$0xff]
  %v805 = vld [vmem:[%s657 + $0xe4] sm:$0xff]
  %v806 = vld [vmem:[%s657 + $0xf4] sm:$0xff]
  %v807 = vld [vmem:[%s657 + $0xfc] sm:$0xff]
  %v808 = vld [vmem:[%s657 + $0x10c] sm:$0xff]
  %v809 = vld [vmem:[%s657 + $0x114] sm:$0xff]
  %v810 = vld [vmem:[%s657 + $0x124] sm:$0xff]
  %v811 = vld [vmem:[%s657 + $0x12c] sm:$0xff]
  %v812 = vld [vmem:[%s657 + $0x13c] sm:$0xff]
  %v813 = vld [vmem:[%s657 + $0x144] sm:$0xff]
  %v814 = vld [vmem:[%s657 + $0x154] sm:$0xff]
  %v815 = vld [vmem:[%s657 + $0x15c] sm:$0xff]
  %v816 = vld [vmem:[%s657 + $0x16c] sm:$0xff]
  %v817 = vld [vmem:[%s657 + $0x174] sm:$0xff]
  %850 = vrot.lane.b32.xlu0 %v46, 4
  %v851 = vpop.permute.xlu0 %850
  %852 = vrot.lane.b32.xlu0 %v47, 4
  %v853 = vpop.permute.xlu0 %852
  %854 = vrot.lane.b32.xlu0 %v48, 4
  %v855 = vpop.permute.xlu0 %854
  %856 = vrot.lane.b32.xlu0 %v49, 4
  %v857 = vpop.permute.xlu0 %856
  %858 = vrot.lane.b32.xlu0 %v50, 4
  %v859 = vpop.permute.xlu0 %858
  %860 = vrot.lane.b32.xlu0 %v51, 4
  %v861 = vpop.permute.xlu0 %860
  %862 = vrot.lane.b32.xlu0 %v52, 4
  %v863 = vpop.permute.xlu0 %862
  %864 = vrot.lane.b32.xlu0 %v53, 4
  %v865 = vpop.permute.xlu0 %864
  %866 = vrot.lane.b32.xlu0 %v54, 4
  %v867 = vpop.permute.xlu0 %866
  %868 = vrot.lane.b32.xlu0 %v55, 4
  %v869 = vpop.permute.xlu0 %868
  %870 = vrot.lane.b32.xlu0 %v56, 4
  %v871 = vpop.permute.xlu0 %870
  %872 = vrot.lane.b32.xlu0 %v57, 4
  %v873 = vpop.permute.xlu0 %872
  %874 = vrot.lane.b32.xlu0 %v58, 4
  %v875 = vpop.permute.xlu0 %874
  %876 = vrot.lane.b32.xlu0 %v59, 4
  %v877 = vpop.permute.xlu0 %876
  %878 = vrot.lane.b32.xlu0 %v60, 4
  %v879 = vpop.permute.xlu0 %878
  %880 = vrot.lane.b32.xlu0 %v61, 4
  %v881 = vpop.permute.xlu0 %880
  %882 = vrot.lane.b32.xlu0 %v62, 4
  %v883 = vpop.permute.xlu0 %882
  %884 = vrot.lane.b32.xlu0 %v63, 4
  %v885 = vpop.permute.xlu0 %884
  %886 = vrot.lane.b32.xlu0 %v64, 4
  %v887 = vpop.permute.xlu0 %886
  %888 = vrot.lane.b32.xlu0 %v65, 4
  %v889 = vpop.permute.xlu0 %888
  %890 = vrot.lane.b32.xlu0 %v66, 4
  %v891 = vpop.permute.xlu0 %890
  %892 = vrot.lane.b32.xlu0 %v67, 4
  %v893 = vpop.permute.xlu0 %892
  %894 = vrot.lane.b32.xlu0 %v68, 4
  %v895 = vpop.permute.xlu0 %894
  %896 = vrot.lane.b32.xlu0 %v69, 4
  %v897 = vpop.permute.xlu0 %896
  %898 = vrot.lane.b32.xlu0 %v70, 4
  %v899 = vpop.permute.xlu0 %898
  %900 = vrot.lane.b32.xlu0 %v71, 4
  %v901 = vpop.permute.xlu0 %900
  %902 = vrot.lane.b32.xlu0 %v72, 4
  %v903 = vpop.permute.xlu0 %902
  %904 = vrot.lane.b32.xlu0 %v73, 4
  %v905 = vpop.permute.xlu0 %904
  %906 = vrot.lane.b32.xlu0 %v74, 4
  %v907 = vpop.permute.xlu0 %906
  %908 = vrot.lane.b32.xlu0 %v75, 4
  %v909 = vpop.permute.xlu0 %908
  %910 = vrot.lane.b32.xlu0 %v76, 4
  %v911 = vpop.permute.xlu0 %910
  %912 = vrot.lane.b32.xlu0 %v77, 4
  %v913 = vpop.permute.xlu0 %912
  %978 = vrot.lane.b32.xlu0 %v78, 8
  %v979 = vpop.permute.xlu0 %978
  %980 = vrot.lane.b32.xlu0 %v79, 8
  %v981 = vpop.permute.xlu0 %980
  %982 = vrot.lane.b32.xlu0 %v80, 8
  %v983 = vpop.permute.xlu0 %982
  %984 = vrot.lane.b32.xlu0 %v81, 8
  %v985 = vpop.permute.xlu0 %984
  %986 = vrot.lane.b32.xlu0 %v82, 8
  %v987 = vpop.permute.xlu0 %986
  %988 = vrot.lane.b32.xlu0 %v83, 8
  %v989 = vpop.permute.xlu0 %988
  %990 = vrot.lane.b32.xlu0 %v84, 8
  %v991 = vpop.permute.xlu0 %990
  %992 = vrot.lane.b32.xlu0 %v85, 8
  %v993 = vpop.permute.xlu0 %992
  %994 = vrot.lane.b32.xlu0 %v86, 8
  %v995 = vpop.permute.xlu0 %994
  %996 = vrot.lane.b32.xlu0 %v87, 8
  %v997 = vpop.permute.xlu0 %996
  %998 = vrot.lane.b32.xlu0 %v88, 8
  %v999 = vpop.permute.xlu0 %998
  %1000 = vrot.lane.b32.xlu0 %v89, 8
  %v1001 = vpop.permute.xlu0 %1000
  %1002 = vrot.lane.b32.xlu0 %v90, 8
  %v1003 = vpop.permute.xlu0 %1002
  %1004 = vrot.lane.b32.xlu0 %v91, 8
  %v1005 = vpop.permute.xlu0 %1004
  %1006 = vrot.lane.b32.xlu0 %v92, 8
  %v1007 = vpop.permute.xlu0 %1006
  %1008 = vrot.lane.b32.xlu0 %v93, 8
  %v1009 = vpop.permute.xlu0 %1008
  %1010 = vrot.lane.b32.xlu0 %v94, 8
  %v1011 = vpop.permute.xlu0 %1010
  %1012 = vrot.lane.b32.xlu0 %v95, 8
  %v1013 = vpop.permute.xlu0 %1012
  %1014 = vrot.lane.b32.xlu0 %v96, 8
  %v1015 = vpop.permute.xlu0 %1014
  %1016 = vrot.lane.b32.xlu0 %v97, 8
  %v1017 = vpop.permute.xlu0 %1016
  %1018 = vrot.lane.b32.xlu0 %v98, 8
  %v1019 = vpop.permute.xlu0 %1018
  %1020 = vrot.lane.b32.xlu0 %v99, 8
  %v1021 = vpop.permute.xlu0 %1020
  %1022 = vrot.lane.b32.xlu0 %v100, 8
  %v1023 = vpop.permute.xlu0 %1022
  %1024 = vrot.lane.b32.xlu0 %v101, 8
  %v1025 = vpop.permute.xlu0 %1024
  %1026 = vrot.lane.b32.xlu0 %v102, 8
  %v1027 = vpop.permute.xlu0 %1026
  %1028 = vrot.lane.b32.xlu0 %v103, 8
  %v1029 = vpop.permute.xlu0 %1028
  %1030 = vrot.lane.b32.xlu0 %v104, 8
  %v1031 = vpop.permute.xlu0 %1030
  %1032 = vrot.lane.b32.xlu0 %v105, 8
  %v1033 = vpop.permute.xlu0 %1032
  %1034 = vrot.lane.b32.xlu0 %v106, 8
  %v1035 = vpop.permute.xlu0 %1034
  %1036 = vrot.lane.b32.xlu0 %v107, 8
  %v1037 = vpop.permute.xlu0 %1036
  %1038 = vrot.lane.b32.xlu0 %v108, 8
  %v1039 = vpop.permute.xlu0 %1038
  %1040 = vrot.lane.b32.xlu0 %v109, 8
  %v1041 = vpop.permute.xlu0 %1040
  %1106 = vrot.lane.b32.xlu0 %v110, 12
  %v1107 = vpop.permute.xlu0 %1106
  %1108 = vrot.lane.b32.xlu0 %v111, 12
  %v1109 = vpop.permute.xlu0 %1108
  %1110 = vrot.lane.b32.xlu0 %v112, 12
  %v1111 = vpop.permute.xlu0 %1110
  %1112 = vrot.lane.b32.xlu0 %v113, 12
  %v1113 = vpop.permute.xlu0 %1112
  %1114 = vrot.lane.b32.xlu0 %v114, 12
  %v1115 = vpop.permute.xlu0 %1114
  %1116 = vrot.lane.b32.xlu0 %v115, 12
  %v1117 = vpop.permute.xlu0 %1116
  %1118 = vrot.lane.b32.xlu0 %v116, 12
  %v1119 = vpop.permute.xlu0 %1118
  %1120 = vrot.lane.b32.xlu0 %v117, 12
  %v1121 = vpop.permute.xlu0 %1120
  %1122 = vrot.lane.b32.xlu0 %v118, 12
  %v1123 = vpop.permute.xlu0 %1122
  %1124 = vrot.lane.b32.xlu0 %v119, 12
  %v1125 = vpop.permute.xlu0 %1124
  %1126 = vrot.lane.b32.xlu0 %v120, 12
  %v1127 = vpop.permute.xlu0 %1126
  %1128 = vrot.lane.b32.xlu0 %v121, 12
  %v1129 = vpop.permute.xlu0 %1128
  %1130 = vrot.lane.b32.xlu0 %v122, 12
  %v1131 = vpop.permute.xlu0 %1130
  %1132 = vrot.lane.b32.xlu0 %v123, 12
  %v1133 = vpop.permute.xlu0 %1132
  %1134 = vrot.lane.b32.xlu0 %v124, 12
  %v1135 = vpop.permute.xlu0 %1134
  %1136 = vrot.lane.b32.xlu0 %v125, 12
  %v1137 = vpop.permute.xlu0 %1136
  %1138 = vrot.lane.b32.xlu0 %v126, 12
  %v1139 = vpop.permute.xlu0 %1138
  %1140 = vrot.lane.b32.xlu0 %v127, 12
  %v1141 = vpop.permute.xlu0 %1140
  %1142 = vrot.lane.b32.xlu0 %v128, 12
  %v1143 = vpop.permute.xlu0 %1142
  %1144 = vrot.lane.b32.xlu0 %v129, 12
  %v1145 = vpop.permute.xlu0 %1144
  %1146 = vrot.lane.b32.xlu0 %v130, 12
  %v1147 = vpop.permute.xlu0 %1146
  %1148 = vrot.lane.b32.xlu0 %v131, 12
  %v1149 = vpop.permute.xlu0 %1148
  %1150 = vrot.lane.b32.xlu0 %v132, 12
  %v1151 = vpop.permute.xlu0 %1150
  %1152 = vrot.lane.b32.xlu0 %v133, 12
  %v1153 = vpop.permute.xlu0 %1152
  %1154 = vrot.lane.b32.xlu0 %v134, 12
  %v1155 = vpop.permute.xlu0 %1154
  %1156 = vrot.lane.b32.xlu0 %v135, 12
  %v1157 = vpop.permute.xlu0 %1156
  %1158 = vrot.lane.b32.xlu0 %v136, 12
  %v1159 = vpop.permute.xlu0 %1158
  %1160 = vrot.lane.b32.xlu0 %v137, 12
  %v1161 = vpop.permute.xlu0 %1160
  %1162 = vrot.lane.b32.xlu0 %v138, 12
  %v1163 = vpop.permute.xlu0 %1162
  %1164 = vrot.lane.b32.xlu0 %v139, 12
  %v1165 = vpop.permute.xlu0 %1164
  %1166 = vrot.lane.b32.xlu0 %v140, 12
  %v1167 = vpop.permute.xlu0 %1166
  %1168 = vrot.lane.b32.xlu0 %v141, 12
  %v1169 = vpop.permute.xlu0 %1168
  %1234 = vrot.lane.b32.xlu0 %v142, 16
  %v1235 = vpop.permute.xlu0 %1234
  %1236 = vrot.lane.b32.xlu0 %v143, 16
  %v1237 = vpop.permute.xlu0 %1236
  %1238 = vrot.lane.b32.xlu0 %v144, 16
  %v1239 = vpop.permute.xlu0 %1238
  %1240 = vrot.lane.b32.xlu0 %v145, 16
  %v1241 = vpop.permute.xlu0 %1240
  %1242 = vrot.lane.b32.xlu0 %v146, 16
  %v1243 = vpop.permute.xlu0 %1242
  %1244 = vrot.lane.b32.xlu0 %v147, 16
  %v1245 = vpop.permute.xlu0 %1244
  %1246 = vrot.lane.b32.xlu0 %v148, 16
  %v1247 = vpop.permute.xlu0 %1246
  %1248 = vrot.lane.b32.xlu0 %v149, 16
  %v1249 = vpop.permute.xlu0 %1248
  %1250 = vrot.lane.b32.xlu0 %v150, 16
  %v1251 = vpop.permute.xlu0 %1250
  %1252 = vrot.lane.b32.xlu0 %v151, 16
  %v1253 = vpop.permute.xlu0 %1252
  %1254 = vrot.lane.b32.xlu0 %v152, 16
  %v1255 = vpop.permute.xlu0 %1254
  %1256 = vrot.lane.b32.xlu0 %v153, 16
  %v1257 = vpop.permute.xlu0 %1256
  %1258 = vrot.lane.b32.xlu0 %v154, 16
  %v1259 = vpop.permute.xlu0 %1258
  %1260 = vrot.lane.b32.xlu0 %v155, 16
  %v1261 = vpop.permute.xlu0 %1260
  %1262 = vrot.lane.b32.xlu0 %v156, 16
  %v1263 = vpop.permute.xlu0 %1262
  %1264 = vrot.lane.b32.xlu0 %v157, 16
  %v1265 = vpop.permute.xlu0 %1264
  %1266 = vrot.lane.b32.xlu0 %v158, 16
  %v1267 = vpop.permute.xlu0 %1266
  %1268 = vrot.lane.b32.xlu0 %v159, 16
  %v1269 = vpop.permute.xlu0 %1268
  %1270 = vrot.lane.b32.xlu0 %v160, 16
  %v1271 = vpop.permute.xlu0 %1270
  %1272 = vrot.lane.b32.xlu0 %v161, 16
  %v1273 = vpop.permute.xlu0 %1272
  %1274 = vrot.lane.b32.xlu0 %v162, 16
  %v1275 = vpop.permute.xlu0 %1274
  %1276 = vrot.lane.b32.xlu0 %v163, 16
  %v1277 = vpop.permute.xlu0 %1276
  %1278 = vrot.lane.b32.xlu0 %v164, 16
  %v1279 = vpop.permute.xlu0 %1278
  %1280 = vrot.lane.b32.xlu0 %v165, 16
  %v1281 = vpop.permute.xlu0 %1280
  %1282 = vrot.lane.b32.xlu0 %v166, 16
  %v1283 = vpop.permute.xlu0 %1282
  %1284 = vrot.lane.b32.xlu0 %v167, 16
  %v1285 = vpop.permute.xlu0 %1284
  %1286 = vrot.lane.b32.xlu0 %v168, 16
  %v1287 = vpop.permute.xlu0 %1286
  %1288 = vrot.lane.b32.xlu0 %v169, 16
  %v1289 = vpop.permute.xlu0 %1288
  %1290 = vrot.lane.b32.xlu0 %v170, 16
  %v1291 = vpop.permute.xlu0 %1290
  %1292 = vrot.lane.b32.xlu0 %v171, 16
  %v1293 = vpop.permute.xlu0 %1292
  %1294 = vrot.lane.b32.xlu0 %v172, 16
  %v1295 = vpop.permute.xlu0 %1294
  %1296 = vrot.lane.b32.xlu0 %v173, 16
  %v1297 = vpop.permute.xlu0 %1296
  %1362 = vrot.lane.b32.xlu0 %v175, 20
  %v1363 = vpop.permute.xlu0 %1362
  %1364 = vrot.lane.b32.xlu0 %v176, 20
  %v1365 = vpop.permute.xlu0 %1364
  %1366 = vrot.lane.b32.xlu0 %v177, 20
  %v1367 = vpop.permute.xlu0 %1366
  %1368 = vrot.lane.b32.xlu0 %v178, 20
  %v1369 = vpop.permute.xlu0 %1368
  %1370 = vrot.lane.b32.xlu0 %v179, 20
  %v1371 = vpop.permute.xlu0 %1370
  %1372 = vrot.lane.b32.xlu0 %v180, 20
  %v1373 = vpop.permute.xlu0 %1372
  %1374 = vrot.lane.b32.xlu0 %v181, 20
  %v1375 = vpop.permute.xlu0 %1374
  %1376 = vrot.lane.b32.xlu0 %v182, 20
  %v1377 = vpop.permute.xlu0 %1376
  %1378 = vrot.lane.b32.xlu0 %v183, 20
  %v1379 = vpop.permute.xlu0 %1378
  %1380 = vrot.lane.b32.xlu0 %v184, 20
  %v1381 = vpop.permute.xlu0 %1380
  %1382 = vrot.lane.b32.xlu0 %v185, 20
  %v1383 = vpop.permute.xlu0 %1382
  %1384 = vrot.lane.b32.xlu0 %v186, 20
  %v1385 = vpop.permute.xlu0 %1384
  %1386 = vrot.lane.b32.xlu0 %v187, 20
  %v1387 = vpop.permute.xlu0 %1386
  %1388 = vrot.lane.b32.xlu0 %v188, 20
  %v1389 = vpop.permute.xlu0 %1388
  %1390 = vrot.lane.b32.xlu0 %v189, 20
  %v1391 = vpop.permute.xlu0 %1390
  %1392 = vrot.lane.b32.xlu0 %v190, 20
  %v1393 = vpop.permute.xlu0 %1392
  %1394 = vrot.lane.b32.xlu0 %v191, 20
  %v1395 = vpop.permute.xlu0 %1394
  %1396 = vrot.lane.b32.xlu0 %v192, 20
  %v1397 = vpop.permute.xlu0 %1396
  %1398 = vrot.lane.b32.xlu0 %v193, 20
  %v1399 = vpop.permute.xlu0 %1398
  %1400 = vrot.lane.b32.xlu0 %v194, 20
  %v1401 = vpop.permute.xlu0 %1400
  %1402 = vrot.lane.b32.xlu0 %v195, 20
  %v1403 = vpop.permute.xlu0 %1402
  %1404 = vrot.lane.b32.xlu0 %v196, 20
  %v1405 = vpop.permute.xlu0 %1404
  %1406 = vrot.lane.b32.xlu0 %v197, 20
  %v1407 = vpop.permute.xlu0 %1406
  %1408 = vrot.lane.b32.xlu0 %v198, 20
  %v1409 = vpop.permute.xlu0 %1408
  %1410 = vrot.lane.b32.xlu0 %v199, 20
  %v1411 = vpop.permute.xlu0 %1410
  %1412 = vrot.lane.b32.xlu0 %v200, 20
  %v1413 = vpop.permute.xlu0 %1412
  %1414 = vrot.lane.b32.xlu0 %v201, 20
  %v1415 = vpop.permute.xlu0 %1414
  %1416 = vrot.lane.b32.xlu0 %v202, 20
  %v1417 = vpop.permute.xlu0 %1416
  %1418 = vrot.lane.b32.xlu0 %v203, 20
  %v1419 = vpop.permute.xlu0 %1418
  %1420 = vrot.lane.b32.xlu0 %v204, 20
  %v1421 = vpop.permute.xlu0 %1420
  %1422 = vrot.lane.b32.xlu0 %v205, 20
  %v1423 = vpop.permute.xlu0 %1422
  %1424 = vrot.lane.b32.xlu0 %v206, 20
  %v1425 = vpop.permute.xlu0 %1424
  %1490 = vrot.lane.b32.xlu0 %v207, 24
  %v1491 = vpop.permute.xlu0 %1490
  %1492 = vrot.lane.b32.xlu0 %v208, 24
  %v1493 = vpop.permute.xlu0 %1492
  %1494 = vrot.lane.b32.xlu0 %v209, 24
  %v1495 = vpop.permute.xlu0 %1494
  %1496 = vrot.lane.b32.xlu0 %v210, 24
  %v1497 = vpop.permute.xlu0 %1496
  %1498 = vrot.lane.b32.xlu0 %v211, 24
  %v1499 = vpop.permute.xlu0 %1498
  %1500 = vrot.lane.b32.xlu0 %v212, 24
  %v1501 = vpop.permute.xlu0 %1500
  %1502 = vrot.lane.b32.xlu0 %v213, 24
  %v1503 = vpop.permute.xlu0 %1502
  %1504 = vrot.lane.b32.xlu0 %v214, 24
  %v1505 = vpop.permute.xlu0 %1504
  %1506 = vrot.lane.b32.xlu0 %v215, 24
  %v1507 = vpop.permute.xlu0 %1506
  %1508 = vrot.lane.b32.xlu0 %v216, 24
  %v1509 = vpop.permute.xlu0 %1508
  %1510 = vrot.lane.b32.xlu0 %v217, 24
  %v1511 = vpop.permute.xlu0 %1510
  %1512 = vrot.lane.b32.xlu0 %v218, 24
  %v1513 = vpop.permute.xlu0 %1512
  %1514 = vrot.lane.b32.xlu0 %v219, 24
  %v1515 = vpop.permute.xlu0 %1514
  %1516 = vrot.lane.b32.xlu0 %v220, 24
  %v1517 = vpop.permute.xlu0 %1516
  %1518 = vrot.lane.b32.xlu0 %v221, 24
  %v1519 = vpop.permute.xlu0 %1518
  %1520 = vrot.lane.b32.xlu0 %v222, 24
  %v1521 = vpop.permute.xlu0 %1520
  %1522 = vrot.lane.b32.xlu0 %v223, 24
  %v1523 = vpop.permute.xlu0 %1522
  %1524 = vrot.lane.b32.xlu0 %v224, 24
  %v1525 = vpop.permute.xlu0 %1524
  %1526 = vrot.lane.b32.xlu0 %v225, 24
  %v1527 = vpop.permute.xlu0 %1526
  %1528 = vrot.lane.b32.xlu0 %v226, 24
  %v1529 = vpop.permute.xlu0 %1528
  %1530 = vrot.lane.b32.xlu0 %v227, 24
  %v1531 = vpop.permute.xlu0 %1530
  %1532 = vrot.lane.b32.xlu0 %v228, 24
  %v1533 = vpop.permute.xlu0 %1532
  %1534 = vrot.lane.b32.xlu0 %v229, 24
  %v1535 = vpop.permute.xlu0 %1534
  %1536 = vrot.lane.b32.xlu0 %v230, 24
  %v1537 = vpop.permute.xlu0 %1536
  %1538 = vrot.lane.b32.xlu0 %v231, 24
  %v1539 = vpop.permute.xlu0 %1538
  %1540 = vrot.lane.b32.xlu0 %v232, 24
  %v1541 = vpop.permute.xlu0 %1540
  %1542 = vrot.lane.b32.xlu0 %v233, 24
  %v1543 = vpop.permute.xlu0 %1542
  %1544 = vrot.lane.b32.xlu0 %v234, 24
  %v1545 = vpop.permute.xlu0 %1544
  %1546 = vrot.lane.b32.xlu0 %v235, 24
  %v1547 = vpop.permute.xlu0 %1546
  %1548 = vrot.lane.b32.xlu0 %v236, 24
  %v1549 = vpop.permute.xlu0 %1548
  %1550 = vrot.lane.b32.xlu0 %v237, 24
  %v1551 = vpop.permute.xlu0 %1550
  %1552 = vrot.lane.b32.xlu0 %v238, 24
  %v1553 = vpop.permute.xlu0 %1552
  %1618 = vrot.lane.b32.xlu0 %v239, 28
  %v1619 = vpop.permute.xlu0 %1618
  %1620 = vrot.lane.b32.xlu0 %v240, 28
  %v1621 = vpop.permute.xlu0 %1620
  %1622 = vrot.lane.b32.xlu0 %v241, 28
  %v1623 = vpop.permute.xlu0 %1622
  %1624 = vrot.lane.b32.xlu0 %v242, 28
  %v1625 = vpop.permute.xlu0 %1624
  %1626 = vrot.lane.b32.xlu0 %v243, 28
  %v1627 = vpop.permute.xlu0 %1626
  %1628 = vrot.lane.b32.xlu0 %v244, 28
  %v1629 = vpop.permute.xlu0 %1628
  %1630 = vrot.lane.b32.xlu0 %v245, 28
  %v1631 = vpop.permute.xlu0 %1630
  %1632 = vrot.lane.b32.xlu0 %v246, 28
  %v1633 = vpop.permute.xlu0 %1632
  %1634 = vrot.lane.b32.xlu0 %v247, 28
  %v1635 = vpop.permute.xlu0 %1634
  %1636 = vrot.lane.b32.xlu0 %v248, 28
  %v1637 = vpop.permute.xlu0 %1636
  %1638 = vrot.lane.b32.xlu0 %v249, 28
  %v1639 = vpop.permute.xlu0 %1638
  %1640 = vrot.lane.b32.xlu0 %v250, 28
  %v1641 = vpop.permute.xlu0 %1640
  %1642 = vrot.lane.b32.xlu0 %v251, 28
  %v1643 = vpop.permute.xlu0 %1642
  %1644 = vrot.lane.b32.xlu0 %v252, 28
  %v1645 = vpop.permute.xlu0 %1644
  %1646 = vrot.lane.b32.xlu0 %v253, 28
  %v1647 = vpop.permute.xlu0 %1646
  %1648 = vrot.lane.b32.xlu0 %v254, 28
  %v1649 = vpop.permute.xlu0 %1648
  %1650 = vrot.lane.b32.xlu0 %v255, 28
  %v1651 = vpop.permute.xlu0 %1650
  %1652 = vrot.lane.b32.xlu0 %v256, 28
  %v1653 = vpop.permute.xlu0 %1652
  %1654 = vrot.lane.b32.xlu0 %v257, 28
  %v1655 = vpop.permute.xlu0 %1654
  %1656 = vrot.lane.b32.xlu0 %v258, 28
  %v1657 = vpop.permute.xlu0 %1656
  %1658 = vrot.lane.b32.xlu0 %v259, 28
  %v1659 = vpop.permute.xlu0 %1658
  %1660 = vrot.lane.b32.xlu0 %v260, 28
  %v1661 = vpop.permute.xlu0 %1660
  %1662 = vrot.lane.b32.xlu0 %v261, 28
  %v1663 = vpop.permute.xlu0 %1662
  %1664 = vrot.lane.b32.xlu0 %v262, 28
  %v1665 = vpop.permute.xlu0 %1664
  %1666 = vrot.lane.b32.xlu0 %v263, 28
  %v1667 = vpop.permute.xlu0 %1666
  %1668 = vrot.lane.b32.xlu0 %v264, 28
  %v1669 = vpop.permute.xlu0 %1668
  %1670 = vrot.lane.b32.xlu0 %v265, 28
  %v1671 = vpop.permute.xlu0 %1670
  %1672 = vrot.lane.b32.xlu0 %v266, 28
  %v1673 = vpop.permute.xlu0 %1672
  %1674 = vrot.lane.b32.xlu0 %v267, 28
  %v1675 = vpop.permute.xlu0 %1674
  %1676 = vrot.lane.b32.xlu0 %v268, 28
  %v1677 = vpop.permute.xlu0 %1676
  %1678 = vrot.lane.b32.xlu0 %v269, 28
  %v1679 = vpop.permute.xlu0 %1678
  %1680 = vrot.lane.b32.xlu0 %v270, 28
  %v1681 = vpop.permute.xlu0 %1680
  %1746 = vrot.lane.b32.xlu0 %v271, 32
  %v1747 = vpop.permute.xlu0 %1746
  %1748 = vrot.lane.b32.xlu0 %v272, 32
  %v1749 = vpop.permute.xlu0 %1748
  %1750 = vrot.lane.b32.xlu0 %v273, 32
  %v1751 = vpop.permute.xlu0 %1750
  %1752 = vrot.lane.b32.xlu0 %v274, 32
  %v1753 = vpop.permute.xlu0 %1752
  %1754 = vrot.lane.b32.xlu0 %v275, 32
  %v1755 = vpop.permute.xlu0 %1754
  %1756 = vrot.lane.b32.xlu0 %v276, 32
  %v1757 = vpop.permute.xlu0 %1756
  %1758 = vrot.lane.b32.xlu0 %v277, 32
  %v1759 = vpop.permute.xlu0 %1758
  %1760 = vrot.lane.b32.xlu0 %v278, 32
  %v1761 = vpop.permute.xlu0 %1760
  %1762 = vrot.lane.b32.xlu0 %v279, 32
  %v1763 = vpop.permute.xlu0 %1762
  %1764 = vrot.lane.b32.xlu0 %v280, 32
  %v1765 = vpop.permute.xlu0 %1764
  %1766 = vrot.lane.b32.xlu0 %v281, 32
  %v1767 = vpop.permute.xlu0 %1766
  %1768 = vrot.lane.b32.xlu0 %v282, 32
  %v1769 = vpop.permute.xlu0 %1768
  %1770 = vrot.lane.b32.xlu0 %v283, 32
  %v1771 = vpop.permute.xlu0 %1770
  %1772 = vrot.lane.b32.xlu0 %v284, 32
  %v1773 = vpop.permute.xlu0 %1772
  %1774 = vrot.lane.b32.xlu0 %v285, 32
  %v1775 = vpop.permute.xlu0 %1774
  %1776 = vrot.lane.b32.xlu0 %v286, 32
  %v1777 = vpop.permute.xlu0 %1776
  %1778 = vrot.lane.b32.xlu0 %v287, 32
  %v1779 = vpop.permute.xlu0 %1778
  %1780 = vrot.lane.b32.xlu0 %v288, 32
  %v1781 = vpop.permute.xlu0 %1780
  %1782 = vrot.lane.b32.xlu0 %v289, 32
  %v1783 = vpop.permute.xlu0 %1782
  %1784 = vrot.lane.b32.xlu0 %v290, 32
  %v1785 = vpop.permute.xlu0 %1784
  %1786 = vrot.lane.b32.xlu0 %v291, 32
  %v1787 = vpop.permute.xlu0 %1786
  %1788 = vrot.lane.b32.xlu0 %v292, 32
  %v1789 = vpop.permute.xlu0 %1788
  %1790 = vrot.lane.b32.xlu0 %v293, 32
  %v1791 = vpop.permute.xlu0 %1790
  %1792 = vrot.lane.b32.xlu0 %v294, 32
  %v1793 = vpop.permute.xlu0 %1792
  %1794 = vrot.lane.b32.xlu0 %v295, 32
  %v1795 = vpop.permute.xlu0 %1794
  %1796 = vrot.lane.b32.xlu0 %v296, 32
  %v1797 = vpop.permute.xlu0 %1796
  %1798 = vrot.lane.b32.xlu0 %v297, 32
  %v1799 = vpop.permute.xlu0 %1798
  %1800 = vrot.lane.b32.xlu0 %v298, 32
  %v1801 = vpop.permute.xlu0 %1800
  %1802 = vrot.lane.b32.xlu0 %v299, 32
  %v1803 = vpop.permute.xlu0 %1802
  %1804 = vrot.lane.b32.xlu0 %v300, 32
  %v1805 = vpop.permute.xlu0 %1804
  %1806 = vrot.lane.b32.xlu0 %v301, 32
  %v1807 = vpop.permute.xlu0 %1806
  %1808 = vrot.lane.b32.xlu0 %v302, 32
  %v1809 = vpop.permute.xlu0 %1808
  %1874 = vrot.lane.b32.xlu0 %v303, 36
  %v1875 = vpop.permute.xlu0 %1874
  %1876 = vrot.lane.b32.xlu0 %v304, 36
  %v1877 = vpop.permute.xlu0 %1876
  %1878 = vrot.lane.b32.xlu0 %v305, 36
  %v1879 = vpop.permute.xlu0 %1878
  %1880 = vrot.lane.b32.xlu0 %v306, 36
  %v1881 = vpop.permute.xlu0 %1880
  %1882 = vrot.lane.b32.xlu0 %v307, 36
  %v1883 = vpop.permute.xlu0 %1882
  %1884 = vrot.lane.b32.xlu0 %v308, 36
  %v1885 = vpop.permute.xlu0 %1884
  %1886 = vrot.lane.b32.xlu0 %v309, 36
  %v1887 = vpop.permute.xlu0 %1886
  %1888 = vrot.lane.b32.xlu0 %v310, 36
  %v1889 = vpop.permute.xlu0 %1888
  %1890 = vrot.lane.b32.xlu0 %v311, 36
  %v1891 = vpop.permute.xlu0 %1890
  %1892 = vrot.lane.b32.xlu0 %v312, 36
  %v1893 = vpop.permute.xlu0 %1892
  %1894 = vrot.lane.b32.xlu0 %v313, 36
  %v1895 = vpop.permute.xlu0 %1894
  %1896 = vrot.lane.b32.xlu0 %v314, 36
  %v1897 = vpop.permute.xlu0 %1896
  %1898 = vrot.lane.b32.xlu0 %v315, 36
  %v1899 = vpop.permute.xlu0 %1898
  %1900 = vrot.lane.b32.xlu0 %v316, 36
  %v1901 = vpop.permute.xlu0 %1900
  %1902 = vrot.lane.b32.xlu0 %v317, 36
  %v1903 = vpop.permute.xlu0 %1902
  %1904 = vrot.lane.b32.xlu0 %v318, 36
  %v1905 = vpop.permute.xlu0 %1904
  %1906 = vrot.lane.b32.xlu0 %v319, 36
  %v1907 = vpop.permute.xlu0 %1906
  %1908 = vrot.lane.b32.xlu0 %v320, 36
  %v1909 = vpop.permute.xlu0 %1908
  %1910 = vrot.lane.b32.xlu0 %v321, 36
  %v1911 = vpop.permute.xlu0 %1910
  %1912 = vrot.lane.b32.xlu0 %v322, 36
  %v1913 = vpop.permute.xlu0 %1912
  %1914 = vrot.lane.b32.xlu0 %v323, 36
  %v1915 = vpop.permute.xlu0 %1914
  %1916 = vrot.lane.b32.xlu0 %v324, 36
  %v1917 = vpop.permute.xlu0 %1916
  %1918 = vrot.lane.b32.xlu0 %v325, 36
  %v1919 = vpop.permute.xlu0 %1918
  %1920 = vrot.lane.b32.xlu0 %v326, 36
  %v1921 = vpop.permute.xlu0 %1920
  %1922 = vrot.lane.b32.xlu0 %v327, 36
  %v1923 = vpop.permute.xlu0 %1922
  %1924 = vrot.lane.b32.xlu0 %v328, 36
  %v1925 = vpop.permute.xlu0 %1924
  %1926 = vrot.lane.b32.xlu0 %v329, 36
  %v1927 = vpop.permute.xlu0 %1926
  %1928 = vrot.lane.b32.xlu0 %v330, 36
  %v1929 = vpop.permute.xlu0 %1928
  %1930 = vrot.lane.b32.xlu0 %v331, 36
  %v1931 = vpop.permute.xlu0 %1930
  %1932 = vrot.lane.b32.xlu0 %v332, 36
  %v1933 = vpop.permute.xlu0 %1932
  %1934 = vrot.lane.b32.xlu0 %v333, 36
  %v1935 = vpop.permute.xlu0 %1934
  %1936 = vrot.lane.b32.xlu0 %v334, 36
  %v1937 = vpop.permute.xlu0 %1936
  %2002 = vrot.lane.b32.xlu0 %v336, 40
  %v2003 = vpop.permute.xlu0 %2002
  %2004 = vrot.lane.b32.xlu0 %v337, 40
  %v2005 = vpop.permute.xlu0 %2004
  %2006 = vrot.lane.b32.xlu0 %v338, 40
  %v2007 = vpop.permute.xlu0 %2006
  %2008 = vrot.lane.b32.xlu0 %v339, 40
  %v2009 = vpop.permute.xlu0 %2008
  %2010 = vrot.lane.b32.xlu0 %v340, 40
  %v2011 = vpop.permute.xlu0 %2010
  %2012 = vrot.lane.b32.xlu0 %v341, 40
  %v2013 = vpop.permute.xlu0 %2012
  %2014 = vrot.lane.b32.xlu0 %v342, 40
  %v2015 = vpop.permute.xlu0 %2014
  %2016 = vrot.lane.b32.xlu0 %v343, 40
  %v2017 = vpop.permute.xlu0 %2016
  %2018 = vrot.lane.b32.xlu0 %v344, 40
  %v2019 = vpop.permute.xlu0 %2018
  %2020 = vrot.lane.b32.xlu0 %v345, 40
  %v2021 = vpop.permute.xlu0 %2020
  %2022 = vrot.lane.b32.xlu0 %v346, 40
  %v2023 = vpop.permute.xlu0 %2022
  %2024 = vrot.lane.b32.xlu0 %v347, 40
  %v2025 = vpop.permute.xlu0 %2024
  %2026 = vrot.lane.b32.xlu0 %v348, 40
  %v2027 = vpop.permute.xlu0 %2026
  %2028 = vrot.lane.b32.xlu0 %v349, 40
  %v2029 = vpop.permute.xlu0 %2028
  %2030 = vrot.lane.b32.xlu0 %v350, 40
  %v2031 = vpop.permute.xlu0 %2030
  %2032 = vrot.lane.b32.xlu0 %v351, 40
  %v2033 = vpop.permute.xlu0 %2032
  %2034 = vrot.lane.b32.xlu0 %v352, 40
  %v2035 = vpop.permute.xlu0 %2034
  %2036 = vrot.lane.b32.xlu0 %v353, 40
  %v2037 = vpop.permute.xlu0 %2036
  %2038 = vrot.lane.b32.xlu0 %v354, 40
  %v2039 = vpop.permute.xlu0 %2038
  %2040 = vrot.lane.b32.xlu0 %v355, 40
  %v2041 = vpop.permute.xlu0 %2040
  %2042 = vrot.lane.b32.xlu0 %v356, 40
  %v2043 = vpop.permute.xlu0 %2042
  %2044 = vrot.lane.b32.xlu0 %v357, 40
  %v2045 = vpop.permute.xlu0 %2044
  %2046 = vrot.lane.b32.xlu0 %v358, 40
  %v2047 = vpop.permute.xlu0 %2046
  %2048 = vrot.lane.b32.xlu0 %v359, 40
  %v2049 = vpop.permute.xlu0 %2048
  %2050 = vrot.lane.b32.xlu0 %v360, 40
  %v2051 = vpop.permute.xlu0 %2050
  %2052 = vrot.lane.b32.xlu0 %v361, 40
  %v2053 = vpop.permute.xlu0 %2052
  %2054 = vrot.lane.b32.xlu0 %v362, 40
  %v2055 = vpop.permute.xlu0 %2054
  %2056 = vrot.lane.b32.xlu0 %v363, 40
  %v2057 = vpop.permute.xlu0 %2056
  %2058 = vrot.lane.b32.xlu0 %v364, 40
  %v2059 = vpop.permute.xlu0 %2058
  %2060 = vrot.lane.b32.xlu0 %v365, 40
  %v2061 = vpop.permute.xlu0 %2060
  %2062 = vrot.lane.b32.xlu0 %v366, 40
  %v2063 = vpop.permute.xlu0 %2062
  %2064 = vrot.lane.b32.xlu0 %v367, 40
  %v2065 = vpop.permute.xlu0 %2064
  %2130 = vrot.lane.b32.xlu0 %v368, 44
  %v2131 = vpop.permute.xlu0 %2130
  %2132 = vrot.lane.b32.xlu0 %v369, 44
  %v2133 = vpop.permute.xlu0 %2132
  %2134 = vrot.lane.b32.xlu0 %v370, 44
  %v2135 = vpop.permute.xlu0 %2134
  %2136 = vrot.lane.b32.xlu0 %v371, 44
  %v2137 = vpop.permute.xlu0 %2136
  %2138 = vrot.lane.b32.xlu0 %v372, 44
  %v2139 = vpop.permute.xlu0 %2138
  %2140 = vrot.lane.b32.xlu0 %v373, 44
  %v2141 = vpop.permute.xlu0 %2140
  %2142 = vrot.lane.b32.xlu0 %v374, 44
  %v2143 = vpop.permute.xlu0 %2142
  %2144 = vrot.lane.b32.xlu0 %v375, 44
  %v2145 = vpop.permute.xlu0 %2144
  %2146 = vrot.lane.b32.xlu0 %v376, 44
  %v2147 = vpop.permute.xlu0 %2146
  %2148 = vrot.lane.b32.xlu0 %v377, 44
  %v2149 = vpop.permute.xlu0 %2148
  %2150 = vrot.lane.b32.xlu0 %v378, 44
  %v2151 = vpop.permute.xlu0 %2150
  %2152 = vrot.lane.b32.xlu0 %v379, 44
  %v2153 = vpop.permute.xlu0 %2152
  %2154 = vrot.lane.b32.xlu0 %v380, 44
  %v2155 = vpop.permute.xlu0 %2154
  %2156 = vrot.lane.b32.xlu0 %v381, 44
  %v2157 = vpop.permute.xlu0 %2156
  %2158 = vrot.lane.b32.xlu0 %v382, 44
  %v2159 = vpop.permute.xlu0 %2158
  %2160 = vrot.lane.b32.xlu0 %v383, 44
  %v2161 = vpop.permute.xlu0 %2160
  %2162 = vrot.lane.b32.xlu0 %v384, 44
  %v2163 = vpop.permute.xlu0 %2162
  %2164 = vrot.lane.b32.xlu0 %v385, 44
  %v2165 = vpop.permute.xlu0 %2164
  %2166 = vrot.lane.b32.xlu0 %v386, 44
  %v2167 = vpop.permute.xlu0 %2166
  %2168 = vrot.lane.b32.xlu0 %v387, 44
  %v2169 = vpop.permute.xlu0 %2168
  %2170 = vrot.lane.b32.xlu0 %v388, 44
  %v2171 = vpop.permute.xlu0 %2170
  %2172 = vrot.lane.b32.xlu0 %v389, 44
  %v2173 = vpop.permute.xlu0 %2172
  %2174 = vrot.lane.b32.xlu0 %v390, 44
  %v2175 = vpop.permute.xlu0 %2174
  %2176 = vrot.lane.b32.xlu0 %v391, 44
  %v2177 = vpop.permute.xlu0 %2176
  %2178 = vrot.lane.b32.xlu0 %v392, 44
  %v2179 = vpop.permute.xlu0 %2178
  %2180 = vrot.lane.b32.xlu0 %v393, 44
  %v2181 = vpop.permute.xlu0 %2180
  %2182 = vrot.lane.b32.xlu0 %v394, 44
  %v2183 = vpop.permute.xlu0 %2182
  %2184 = vrot.lane.b32.xlu0 %v395, 44
  %v2185 = vpop.permute.xlu0 %2184
  %2186 = vrot.lane.b32.xlu0 %v396, 44
  %v2187 = vpop.permute.xlu0 %2186
  %2188 = vrot.lane.b32.xlu0 %v397, 44
  %v2189 = vpop.permute.xlu0 %2188
  %2190 = vrot.lane.b32.xlu0 %v398, 44
  %v2191 = vpop.permute.xlu0 %2190
  %2192 = vrot.lane.b32.xlu0 %v399, 44
  %v2193 = vpop.permute.xlu0 %2192
  %2258 = vrot.lane.b32.xlu0 %v400, 48
  %v2259 = vpop.permute.xlu0 %2258
  %2260 = vrot.lane.b32.xlu0 %v401, 48
  %v2261 = vpop.permute.xlu0 %2260
  %2262 = vrot.lane.b32.xlu0 %v402, 48
  %v2263 = vpop.permute.xlu0 %2262
  %2264 = vrot.lane.b32.xlu0 %v403, 48
  %v2265 = vpop.permute.xlu0 %2264
  %2266 = vrot.lane.b32.xlu0 %v404, 48
  %v2267 = vpop.permute.xlu0 %2266
  %2268 = vrot.lane.b32.xlu0 %v405, 48
  %v2269 = vpop.permute.xlu0 %2268
  %2270 = vrot.lane.b32.xlu0 %v406, 48
  %v2271 = vpop.permute.xlu0 %2270
  %2272 = vrot.lane.b32.xlu0 %v407, 48
  %v2273 = vpop.permute.xlu0 %2272
  %2274 = vrot.lane.b32.xlu0 %v408, 48
  %v2275 = vpop.permute.xlu0 %2274
  %2276 = vrot.lane.b32.xlu0 %v409, 48
  %v2277 = vpop.permute.xlu0 %2276
  %2278 = vrot.lane.b32.xlu0 %v410, 48
  %v2279 = vpop.permute.xlu0 %2278
  %2280 = vrot.lane.b32.xlu0 %v411, 48
  %v2281 = vpop.permute.xlu0 %2280
  %2282 = vrot.lane.b32.xlu0 %v412, 48
  %v2283 = vpop.permute.xlu0 %2282
  %2284 = vrot.lane.b32.xlu0 %v413, 48
  %v2285 = vpop.permute.xlu0 %2284
  %2286 = vrot.lane.b32.xlu0 %v414, 48
  %v2287 = vpop.permute.xlu0 %2286
  %2288 = vrot.lane.b32.xlu0 %v415, 48
  %v2289 = vpop.permute.xlu0 %2288
  %2290 = vrot.lane.b32.xlu0 %v416, 48
  %v2291 = vpop.permute.xlu0 %2290
  %2292 = vrot.lane.b32.xlu0 %v417, 48
  %v2293 = vpop.permute.xlu0 %2292
  %2294 = vrot.lane.b32.xlu0 %v418, 48
  %v2295 = vpop.permute.xlu0 %2294
  %2296 = vrot.lane.b32.xlu0 %v419, 48
  %v2297 = vpop.permute.xlu0 %2296
  %2298 = vrot.lane.b32.xlu0 %v420, 48
  %v2299 = vpop.permute.xlu0 %2298
  %2300 = vrot.lane.b32.xlu0 %v421, 48
  %v2301 = vpop.permute.xlu0 %2300
  %2302 = vrot.lane.b32.xlu0 %v422, 48
  %v2303 = vpop.permute.xlu0 %2302
  %2304 = vrot.lane.b32.xlu0 %v423, 48
  %v2305 = vpop.permute.xlu0 %2304
  %2306 = vrot.lane.b32.xlu0 %v424, 48
  %v2307 = vpop.permute.xlu0 %2306
  %2308 = vrot.lane.b32.xlu0 %v425, 48
  %v2309 = vpop.permute.xlu0 %2308
  %2310 = vrot.lane.b32.xlu0 %v426, 48
  %v2311 = vpop.permute.xlu0 %2310
  %2312 = vrot.lane.b32.xlu0 %v427, 48
  %v2313 = vpop.permute.xlu0 %2312
  %2314 = vrot.lane.b32.xlu0 %v428, 48
  %v2315 = vpop.permute.xlu0 %2314
  %2316 = vrot.lane.b32.xlu0 %v429, 48
  %v2317 = vpop.permute.xlu0 %2316
  %2318 = vrot.lane.b32.xlu0 %v430, 48
  %v2319 = vpop.permute.xlu0 %2318
  %2320 = vrot.lane.b32.xlu0 %v431, 48
  %v2321 = vpop.permute.xlu0 %2320
  %2386 = vrot.lane.b32.xlu0 %v432, 52
  %v2387 = vpop.permute.xlu0 %2386
  %2388 = vrot.lane.b32.xlu0 %v433, 52
  %v2389 = vpop.permute.xlu0 %2388
  %2390 = vrot.lane.b32.xlu0 %v434, 52
  %v2391 = vpop.permute.xlu0 %2390
  %2392 = vrot.lane.b32.xlu0 %v435, 52
  %v2393 = vpop.permute.xlu0 %2392
  %2394 = vrot.lane.b32.xlu0 %v436, 52
  %v2395 = vpop.permute.xlu0 %2394
  %2396 = vrot.lane.b32.xlu0 %v437, 52
  %v2397 = vpop.permute.xlu0 %2396
  %2398 = vrot.lane.b32.xlu0 %v438, 52
  %v2399 = vpop.permute.xlu0 %2398
  %2400 = vrot.lane.b32.xlu0 %v439, 52
  %v2401 = vpop.permute.xlu0 %2400
  %2402 = vrot.lane.b32.xlu0 %v440, 52
  %v2403 = vpop.permute.xlu0 %2402
  %2404 = vrot.lane.b32.xlu0 %v441, 52
  %v2405 = vpop.permute.xlu0 %2404
  %2406 = vrot.lane.b32.xlu0 %v442, 52
  %v2407 = vpop.permute.xlu0 %2406
  %2408 = vrot.lane.b32.xlu0 %v443, 52
  %v2409 = vpop.permute.xlu0 %2408
  %2410 = vrot.lane.b32.xlu0 %v444, 52
  %v2411 = vpop.permute.xlu0 %2410
  %2412 = vrot.lane.b32.xlu0 %v445, 52
  %v2413 = vpop.permute.xlu0 %2412
  %2414 = vrot.lane.b32.xlu0 %v446, 52
  %v2415 = vpop.permute.xlu0 %2414
  %2416 = vrot.lane.b32.xlu0 %v447, 52
  %v2417 = vpop.permute.xlu0 %2416
  %2418 = vrot.lane.b32.xlu0 %v448, 52
  %v2419 = vpop.permute.xlu0 %2418
  %2420 = vrot.lane.b32.xlu0 %v449, 52
  %v2421 = vpop.permute.xlu0 %2420
  %2422 = vrot.lane.b32.xlu0 %v450, 52
  %v2423 = vpop.permute.xlu0 %2422
  %2424 = vrot.lane.b32.xlu0 %v451, 52
  %v2425 = vpop.permute.xlu0 %2424
  %2426 = vrot.lane.b32.xlu0 %v452, 52
  %v2427 = vpop.permute.xlu0 %2426
  %2428 = vrot.lane.b32.xlu0 %v453, 52
  %v2429 = vpop.permute.xlu0 %2428
  %2430 = vrot.lane.b32.xlu0 %v454, 52
  %v2431 = vpop.permute.xlu0 %2430
  %2432 = vrot.lane.b32.xlu0 %v455, 52
  %v2433 = vpop.permute.xlu0 %2432
  %2434 = vrot.lane.b32.xlu0 %v456, 52
  %v2435 = vpop.permute.xlu0 %2434
  %2436 = vrot.lane.b32.xlu0 %v457, 52
  %v2437 = vpop.permute.xlu0 %2436
  %2438 = vrot.lane.b32.xlu0 %v458, 52
  %v2439 = vpop.permute.xlu0 %2438
  %2440 = vrot.lane.b32.xlu0 %v459, 52
  %v2441 = vpop.permute.xlu0 %2440
  %2442 = vrot.lane.b32.xlu0 %v460, 52
  %v2443 = vpop.permute.xlu0 %2442
  %2444 = vrot.lane.b32.xlu0 %v461, 52
  %v2445 = vpop.permute.xlu0 %2444
  %2446 = vrot.lane.b32.xlu0 %v462, 52
  %v2447 = vpop.permute.xlu0 %2446
  %2448 = vrot.lane.b32.xlu0 %v463, 52
  %v2449 = vpop.permute.xlu0 %2448
  %2514 = vrot.lane.b32.xlu0 %v464, 56
  %v2515 = vpop.permute.xlu0 %2514
  %2516 = vrot.lane.b32.xlu0 %v465, 56
  %v2517 = vpop.permute.xlu0 %2516
  %2518 = vrot.lane.b32.xlu0 %v466, 56
  %v2519 = vpop.permute.xlu0 %2518
  %2520 = vrot.lane.b32.xlu0 %v467, 56
  %v2521 = vpop.permute.xlu0 %2520
  %2522 = vrot.lane.b32.xlu0 %v468, 56
  %v2523 = vpop.permute.xlu0 %2522
  %2524 = vrot.lane.b32.xlu0 %v469, 56
  %v2525 = vpop.permute.xlu0 %2524
  %2526 = vrot.lane.b32.xlu0 %v470, 56
  %v2527 = vpop.permute.xlu0 %2526
  %2528 = vrot.lane.b32.xlu0 %v471, 56
  %v2529 = vpop.permute.xlu0 %2528
  %2530 = vrot.lane.b32.xlu0 %v472, 56
  %v2531 = vpop.permute.xlu0 %2530
  %2532 = vrot.lane.b32.xlu0 %v473, 56
  %v2533 = vpop.permute.xlu0 %2532
  %2534 = vrot.lane.b32.xlu0 %v474, 56
  %v2535 = vpop.permute.xlu0 %2534
  %2536 = vrot.lane.b32.xlu0 %v475, 56
  %v2537 = vpop.permute.xlu0 %2536
  %2538 = vrot.lane.b32.xlu0 %v476, 56
  %v2539 = vpop.permute.xlu0 %2538
  %2540 = vrot.lane.b32.xlu0 %v477, 56
  %v2541 = vpop.permute.xlu0 %2540
  %2542 = vrot.lane.b32.xlu0 %v478, 56
  %v2543 = vpop.permute.xlu0 %2542
  %2544 = vrot.lane.b32.xlu0 %v479, 56
  %v2545 = vpop.permute.xlu0 %2544
  %2546 = vrot.lane.b32.xlu0 %v480, 56
  %v2547 = vpop.permute.xlu0 %2546
  %2548 = vrot.lane.b32.xlu0 %v481, 56
  %v2549 = vpop.permute.xlu0 %2548
  %2550 = vrot.lane.b32.xlu0 %v482, 56
  %v2551 = vpop.permute.xlu0 %2550
  %2552 = vrot.lane.b32.xlu0 %v483, 56
  %v2553 = vpop.permute.xlu0 %2552
  %2554 = vrot.lane.b32.xlu0 %v484, 56
  %v2555 = vpop.permute.xlu0 %2554
  %2556 = vrot.lane.b32.xlu0 %v485, 56
  %v2557 = vpop.permute.xlu0 %2556
  %2558 = vrot.lane.b32.xlu0 %v486, 56
  %v2559 = vpop.permute.xlu0 %2558
  %2560 = vrot.lane.b32.xlu0 %v487, 56
  %v2561 = vpop.permute.xlu0 %2560
  %2562 = vrot.lane.b32.xlu0 %v488, 56
  %v2563 = vpop.permute.xlu0 %2562
  %2564 = vrot.lane.b32.xlu0 %v489, 56
  %v2565 = vpop.permute.xlu0 %2564
  %2566 = vrot.lane.b32.xlu0 %v490, 56
  %v2567 = vpop.permute.xlu0 %2566
  %2568 = vrot.lane.b32.xlu0 %v491, 56
  %v2569 = vpop.permute.xlu0 %2568
  %2570 = vrot.lane.b32.xlu0 %v492, 56
  %v2571 = vpop.permute.xlu0 %2570
  %2572 = vrot.lane.b32.xlu0 %v493, 56
  %v2573 = vpop.permute.xlu0 %2572
  %2574 = vrot.lane.b32.xlu0 %v494, 56
  %v2575 = vpop.permute.xlu0 %2574
  %2576 = vrot.lane.b32.xlu0 %v495, 56
  %v2577 = vpop.permute.xlu0 %2576
  %2642 = vrot.lane.b32.xlu0 %v497, 60
  %v2643 = vpop.permute.xlu0 %2642
  %2644 = vrot.lane.b32.xlu0 %v498, 60
  %v2645 = vpop.permute.xlu0 %2644
  %2646 = vrot.lane.b32.xlu0 %v499, 60
  %v2647 = vpop.permute.xlu0 %2646
  %2648 = vrot.lane.b32.xlu0 %v500, 60
  %v2649 = vpop.permute.xlu0 %2648
  %2650 = vrot.lane.b32.xlu0 %v501, 60
  %v2651 = vpop.permute.xlu0 %2650
  %2652 = vrot.lane.b32.xlu0 %v502, 60
  %v2653 = vpop.permute.xlu0 %2652
  %2654 = vrot.lane.b32.xlu0 %v503, 60
  %v2655 = vpop.permute.xlu0 %2654
  %2656 = vrot.lane.b32.xlu0 %v504, 60
  %v2657 = vpop.permute.xlu0 %2656
  %2658 = vrot.lane.b32.xlu0 %v505, 60
  %v2659 = vpop.permute.xlu0 %2658
  %2660 = vrot.lane.b32.xlu0 %v506, 60
  %v2661 = vpop.permute.xlu0 %2660
  %2662 = vrot.lane.b32.xlu0 %v507, 60
  %v2663 = vpop.permute.xlu0 %2662
  %2664 = vrot.lane.b32.xlu0 %v508, 60
  %v2665 = vpop.permute.xlu0 %2664
  %2666 = vrot.lane.b32.xlu0 %v509, 60
  %v2667 = vpop.permute.xlu0 %2666
  %2668 = vrot.lane.b32.xlu0 %v510, 60
  %v2669 = vpop.permute.xlu0 %2668
  %2670 = vrot.lane.b32.xlu0 %v511, 60
  %v2671 = vpop.permute.xlu0 %2670
  %2672 = vrot.lane.b32.xlu0 %v512, 60
  %v2673 = vpop.permute.xlu0 %2672
  %2674 = vrot.lane.b32.xlu0 %v513, 60
  %v2675 = vpop.permute.xlu0 %2674
  %2676 = vrot.lane.b32.xlu0 %v514, 60
  %v2677 = vpop.permute.xlu0 %2676
  %2678 = vrot.lane.b32.xlu0 %v515, 60
  %v2679 = vpop.permute.xlu0 %2678
  %2680 = vrot.lane.b32.xlu0 %v516, 60
  %v2681 = vpop.permute.xlu0 %2680
  %2682 = vrot.lane.b32.xlu0 %v517, 60
  %v2683 = vpop.permute.xlu0 %2682
  %2684 = vrot.lane.b32.xlu0 %v518, 60
  %v2685 = vpop.permute.xlu0 %2684
  %2686 = vrot.lane.b32.xlu0 %v519, 60
  %v2687 = vpop.permute.xlu0 %2686
  %2688 = vrot.lane.b32.xlu0 %v520, 60
  %v2689 = vpop.permute.xlu0 %2688
  %2690 = vrot.lane.b32.xlu0 %v521, 60
  %v2691 = vpop.permute.xlu0 %2690
  %2692 = vrot.lane.b32.xlu0 %v522, 60
  %v2693 = vpop.permute.xlu0 %2692
  %2694 = vrot.lane.b32.xlu0 %v523, 60
  %v2695 = vpop.permute.xlu0 %2694
  %2696 = vrot.lane.b32.xlu0 %v524, 60
  %v2697 = vpop.permute.xlu0 %2696
  %2698 = vrot.lane.b32.xlu0 %v525, 60
  %v2699 = vpop.permute.xlu0 %2698
  %2700 = vrot.lane.b32.xlu0 %v526, 60
  %v2701 = vpop.permute.xlu0 %2700
  %2702 = vrot.lane.b32.xlu0 %v527, 60
  %v2703 = vpop.permute.xlu0 %2702
  %2704 = vrot.lane.b32.xlu0 %v528, 60
  %v2705 = vpop.permute.xlu0 %2704
  %vm2738 = vcmask 31744
  %v2739 = vsel %vm2738, %v14, %v851
  %v2740 = vsel %vm2738, %v15, %v853
  %v2741 = vsel %vm2738, %v16, %v855
  %v2742 = vsel %vm2738, %v17, %v857
  %v2743 = vsel %vm2738, %v18, %v859
  %v2744 = vsel %vm2738, %v19, %v861
  %v2745 = vsel %vm2738, %v20, %v863
  %v2746 = vsel %vm2738, %v21, %v865
  %v2747 = vsel %vm2738, %v22, %v867
  %v2748 = vsel %vm2738, %v23, %v869
  %v2749 = vsel %vm2738, %v24, %v871
  %v2750 = vsel %vm2738, %v25, %v873
  %v2751 = vsel %vm2738, %v26, %v875
  %v2752 = vsel %vm2738, %v27, %v877
  %v2753 = vsel %vm2738, %v28, %v879
  %v2754 = vsel %vm2738, %v29, %v881
  %v2755 = vsel %vm2738, %v30, %v883
  %v2756 = vsel %vm2738, %v31, %v885
  %v2757 = vsel %vm2738, %v32, %v887
  %v2758 = vsel %vm2738, %v33, %v889
  %v2759 = vsel %vm2738, %v34, %v891
  %v2760 = vsel %vm2738, %v35, %v893
  %v2761 = vsel %vm2738, %v36, %v895
  %v2762 = vsel %vm2738, %v37, %v897
  %v2763 = vsel %vm2738, %v38, %v899
  %v2764 = vsel %vm2738, %v39, %v901
  %v2765 = vsel %vm2738, %v40, %v903
  %v2766 = vsel %vm2738, %v41, %v905
  %v2767 = vsel %vm2738, %v42, %v907
  %v2768 = vsel %vm2738, %v43, %v909
  %v2769 = vsel %vm2738, %v44, %v911
  %v2770 = vsel %vm2738, %v45, %v913
  %vm2771 = vcmask 64512
  %v2772 = vsel %vm2771, %v2739, %v979
  %v2773 = vsel %vm2771, %v2740, %v981
  %v2774 = vsel %vm2771, %v2741, %v983
  %v2775 = vsel %vm2771, %v2742, %v985
  %v2776 = vsel %vm2771, %v2743, %v987
  %v2777 = vsel %vm2771, %v2744, %v989
  %v2778 = vsel %vm2771, %v2745, %v991
  %v2779 = vsel %vm2771, %v2746, %v993
  %v2780 = vsel %vm2771, %v2747, %v995
  %v2781 = vsel %vm2771, %v2748, %v997
  %v2782 = vsel %vm2771, %v2749, %v999
  %v2783 = vsel %vm2771, %v2750, %v1001
  %v2784 = vsel %vm2771, %v2751, %v1003
  %v2785 = vsel %vm2771, %v2752, %v1005
  %v2786 = vsel %vm2771, %v2753, %v1007
  %v2787 = vsel %vm2771, %v2754, %v1009
  %v2788 = vsel %vm2771, %v2755, %v1011
  %v2789 = vsel %vm2771, %v2756, %v1013
  %v2790 = vsel %vm2771, %v2757, %v1015
  %v2791 = vsel %vm2771, %v2758, %v1017
  %v2792 = vsel %vm2771, %v2759, %v1019
  %v2793 = vsel %vm2771, %v2760, %v1021
  %v2794 = vsel %vm2771, %v2761, %v1023
  %v2795 = vsel %vm2771, %v2762, %v1025
  %v2796 = vsel %vm2771, %v2763, %v1027
  %v2797 = vsel %vm2771, %v2764, %v1029
  %v2798 = vsel %vm2771, %v2765, %v1031
  %v2799 = vsel %vm2771, %v2766, %v1033
  %v2800 = vsel %vm2771, %v2767, %v1035
  %v2801 = vsel %vm2771, %v2768, %v1037
  %v2802 = vsel %vm2771, %v2769, %v1039
  %v2803 = vsel %vm2771, %v2770, %v1041
  %vm2804 = vcmask 97280
  %v2805 = vsel %vm2804, %v2772, %v1107
  %v2806 = vsel %vm2804, %v2773, %v1109
  %v2807 = vsel %vm2804, %v2774, %v1111
  %v2808 = vsel %vm2804, %v2775, %v1113
  %v2809 = vsel %vm2804, %v2776, %v1115
  %v2810 = vsel %vm2804, %v2777, %v1117
  %v2811 = vsel %vm2804, %v2778, %v1119
  %v2812 = vsel %vm2804, %v2779, %v1121
  %v2813 = vsel %vm2804, %v2780, %v1123
  %v2814 = vsel %vm2804, %v2781, %v1125
  %v2815 = vsel %vm2804, %v2782, %v1127
  %v2816 = vsel %vm2804, %v2783, %v1129
  %v2817 = vsel %vm2804, %v2784, %v1131
  %v2818 = vsel %vm2804, %v2785, %v1133
  %v2819 = vsel %vm2804, %v2786, %v1135
  %v2820 = vsel %vm2804, %v2787, %v1137
  %v2821 = vsel %vm2804, %v2788, %v1139
  %v2822 = vsel %vm2804, %v2789, %v1141
  %v2823 = vsel %vm2804, %v2790, %v1143
  %v2824 = vsel %vm2804, %v2791, %v1145
  %v2825 = vsel %vm2804, %v2792, %v1147
  %v2826 = vsel %vm2804, %v2793, %v1149
  %v2827 = vsel %vm2804, %v2794, %v1151
  %v2828 = vsel %vm2804, %v2795, %v1153
  %v2829 = vsel %vm2804, %v2796, %v1155
  %v2830 = vsel %vm2804, %v2797, %v1157
  %v2831 = vsel %vm2804, %v2798, %v1159
  %v2832 = vsel %vm2804, %v2799, %v1161
  %v2833 = vsel %vm2804, %v2800, %v1163
  %v2834 = vsel %vm2804, %v2801, %v1165
  %v2835 = vsel %vm2804, %v2802, %v1167
  %v2836 = vsel %vm2804, %v2803, %v1169
  %vm2837 = vcmask 130048
  %v2838 = vsel %vm2837, %v2805, %v1235
  %v2839 = vsel %vm2837, %v2806, %v1237
  %v2840 = vsel %vm2837, %v2807, %v1239
  %v2841 = vsel %vm2837, %v2808, %v1241
  %v2842 = vsel %vm2837, %v2809, %v1243
  %v2843 = vsel %vm2837, %v2810, %v1245
  %v2844 = vsel %vm2837, %v2811, %v1247
  %v2845 = vsel %vm2837, %v2812, %v1249
  %v2846 = vsel %vm2837, %v2813, %v1251
  %v2847 = vsel %vm2837, %v2814, %v1253
  %v2848 = vsel %vm2837, %v2815, %v1255
  %v2849 = vsel %vm2837, %v2816, %v1257
  %v2850 = vsel %vm2837, %v2817, %v1259
  %v2851 = vsel %vm2837, %v2818, %v1261
  %v2852 = vsel %vm2837, %v2819, %v1263
  %v2853 = vsel %vm2837, %v2820, %v1265
  %v2854 = vsel %vm2837, %v2821, %v1267
  %v2855 = vsel %vm2837, %v2822, %v1269
  %v2856 = vsel %vm2837, %v2823, %v1271
  %v2857 = vsel %vm2837, %v2824, %v1273
  %v2858 = vsel %vm2837, %v2825, %v1275
  %v2859 = vsel %vm2837, %v2826, %v1277
  %v2860 = vsel %vm2837, %v2827, %v1279
  %v2861 = vsel %vm2837, %v2828, %v1281
  %v2862 = vsel %vm2837, %v2829, %v1283
  %v2863 = vsel %vm2837, %v2830, %v1285
  %v2864 = vsel %vm2837, %v2831, %v1287
  %v2865 = vsel %vm2837, %v2832, %v1289
  %v2866 = vsel %vm2837, %v2833, %v1291
  %v2867 = vsel %vm2837, %v2834, %v1293
  %v2868 = vsel %vm2837, %v2835, %v1295
  %v2869 = vsel %vm2837, %v2836, %v1297
  %vm2870 = vcmask 162816
  %v2871 = vsel %vm2870, %v2838, %v1363
  %v2872 = vsel %vm2870, %v2839, %v1365
  %v2873 = vsel %vm2870, %v2840, %v1367
  %v2874 = vsel %vm2870, %v2841, %v1369
  %v2875 = vsel %vm2870, %v2842, %v1371
  %v2876 = vsel %vm2870, %v2843, %v1373
  %v2877 = vsel %vm2870, %v2844, %v1375
  %v2878 = vsel %vm2870, %v2845, %v1377
  %v2879 = vsel %vm2870, %v2846, %v1379
  %v2880 = vsel %vm2870, %v2847, %v1381
  %v2881 = vsel %vm2870, %v2848, %v1383
  %v2882 = vsel %vm2870, %v2849, %v1385
  %v2883 = vsel %vm2870, %v2850, %v1387
  %v2884 = vsel %vm2870, %v2851, %v1389
  %v2885 = vsel %vm2870, %v2852, %v1391
  %v2886 = vsel %vm2870, %v2853, %v1393
  %v2887 = vsel %vm2870, %v2854, %v1395
  %v2888 = vsel %vm2870, %v2855, %v1397
  %v2889 = vsel %vm2870, %v2856, %v1399
  %v2890 = vsel %vm2870, %v2857, %v1401
  %v2891 = vsel %vm2870, %v2858, %v1403
  %v2892 = vsel %vm2870, %v2859, %v1405
  %v2893 = vsel %vm2870, %v2860, %v1407
  %v2894 = vsel %vm2870, %v2861, %v1409
  %v2895 = vsel %vm2870, %v2862, %v1411
  %v2896 = vsel %vm2870, %v2863, %v1413
  %v2897 = vsel %vm2870, %v2864, %v1415
  %v2898 = vsel %vm2870, %v2865, %v1417
  %v2899 = vsel %vm2870, %v2866, %v1419
  %v2900 = vsel %vm2870, %v2867, %v1421
  %v2901 = vsel %vm2870, %v2868, %v1423
  %v2902 = vsel %vm2870, %v2869, %v1425
  %vm2903 = vcmask 195584
  %v2904 = vsel %vm2903, %v2871, %v1491
  %v2905 = vsel %vm2903, %v2872, %v1493
  %v2906 = vsel %vm2903, %v2873, %v1495
  %v2907 = vsel %vm2903, %v2874, %v1497
  %v2908 = vsel %vm2903, %v2875, %v1499
  %v2909 = vsel %vm2903, %v2876, %v1501
  %v2910 = vsel %vm2903, %v2877, %v1503
  %v2911 = vsel %vm2903, %v2878, %v1505
  %v2912 = vsel %vm2903, %v2879, %v1507
  %v2913 = vsel %vm2903, %v2880, %v1509
  %v2914 = vsel %vm2903, %v2881, %v1511
  %v2915 = vsel %vm2903, %v2882, %v1513
  %v2916 = vsel %vm2903, %v2883, %v1515
  %v2917 = vsel %vm2903, %v2884, %v1517
  %v2918 = vsel %vm2903, %v2885, %v1519
  %v2919 = vsel %vm2903, %v2886, %v1521
  %v2920 = vsel %vm2903, %v2887, %v1523
  %v2921 = vsel %vm2903, %v2888, %v1525
  %v2922 = vsel %vm2903, %v2889, %v1527
  %v2923 = vsel %vm2903, %v2890, %v1529
  %v2924 = vsel %vm2903, %v2891, %v1531
  %v2925 = vsel %vm2903, %v2892, %v1533
  %v2926 = vsel %vm2903, %v2893, %v1535
  %v2927 = vsel %vm2903, %v2894, %v1537
  %v2928 = vsel %vm2903, %v2895, %v1539
  %v2929 = vsel %vm2903, %v2896, %v1541
  %v2930 = vsel %vm2903, %v2897, %v1543
  %v2931 = vsel %vm2903, %v2898, %v1545
  %v2932 = vsel %vm2903, %v2899, %v1547
  %v2933 = vsel %vm2903, %v2900, %v1549
  %v2934 = vsel %vm2903, %v2901, %v1551
  %v2935 = vsel %vm2903, %v2902, %v1553
  %vm2936 = vcmask 228352
  %v2937 = vsel %vm2936, %v2904, %v1619
  %v2938 = vsel %vm2936, %v2905, %v1621
  %v2939 = vsel %vm2936, %v2906, %v1623
  %v2940 = vsel %vm2936, %v2907, %v1625
  %v2941 = vsel %vm2936, %v2908, %v1627
  %v2942 = vsel %vm2936, %v2909, %v1629
  %v2943 = vsel %vm2936, %v2910, %v1631
  %v2944 = vsel %vm2936, %v2911, %v1633
  %v2945 = vsel %vm2936, %v2912, %v1635
  %v2946 = vsel %vm2936, %v2913, %v1637
  %v2947 = vsel %vm2936, %v2914, %v1639
  %v2948 = vsel %vm2936, %v2915, %v1641
  %v2949 = vsel %vm2936, %v2916, %v1643
  %v2950 = vsel %vm2936, %v2917, %v1645
  %v2951 = vsel %vm2936, %v2918, %v1647
  %v2952 = vsel %vm2936, %v2919, %v1649
  %v2953 = vsel %vm2936, %v2920, %v1651
  %v2954 = vsel %vm2936, %v2921, %v1653
  %v2955 = vsel %vm2936, %v2922, %v1655
  %v2956 = vsel %vm2936, %v2923, %v1657
  %v2957 = vsel %vm2936, %v2924, %v1659
  %v2958 = vsel %vm2936, %v2925, %v1661
  %v2959 = vsel %vm2936, %v2926, %v1663
  %v2960 = vsel %vm2936, %v2927, %v1665
  %v2961 = vsel %vm2936, %v2928, %v1667
  %v2962 = vsel %vm2936, %v2929, %v1669
  %v2963 = vsel %vm2936, %v2930, %v1671
  %v2964 = vsel %vm2936, %v2931, %v1673
  %v2965 = vsel %vm2936, %v2932, %v1675
  %v2966 = vsel %vm2936, %v2933, %v1677
  %v2967 = vsel %vm2936, %v2934, %v1679
  %v2968 = vsel %vm2936, %v2935, %v1681
  %vm2969 = vcmask 261120
  %v2970 = vsel %vm2969, %v2937, %v1747
  %v2971 = vsel %vm2969, %v2938, %v1749
  %v2972 = vsel %vm2969, %v2939, %v1751
  %v2973 = vsel %vm2969, %v2940, %v1753
  %v2974 = vsel %vm2969, %v2941, %v1755
  %v2975 = vsel %vm2969, %v2942, %v1757
  %v2976 = vsel %vm2969, %v2943, %v1759
  %v2977 = vsel %vm2969, %v2944, %v1761
  %v2978 = vsel %vm2969, %v2945, %v1763
  %v2979 = vsel %vm2969, %v2946, %v1765
  %v2980 = vsel %vm2969, %v2947, %v1767
  %v2981 = vsel %vm2969, %v2948, %v1769
  %v2982 = vsel %vm2969, %v2949, %v1771
  %v2983 = vsel %vm2969, %v2950, %v1773
  %v2984 = vsel %vm2969, %v2951, %v1775
  %v2985 = vsel %vm2969, %v2952, %v1777
  %v2986 = vsel %vm2969, %v2953, %v1779
  %v2987 = vsel %vm2969, %v2954, %v1781
  %v2988 = vsel %vm2969, %v2955, %v1783
  %v2989 = vsel %vm2969, %v2956, %v1785
  %v2990 = vsel %vm2969, %v2957, %v1787
  %v2991 = vsel %vm2969, %v2958, %v1789
  %v2992 = vsel %vm2969, %v2959, %v1791
  %v2993 = vsel %vm2969, %v2960, %v1793
  %v2994 = vsel %vm2969, %v2961, %v1795
  %v2995 = vsel %vm2969, %v2962, %v1797
  %v2996 = vsel %vm2969, %v2963, %v1799
  %v2997 = vsel %vm2969, %v2964, %v1801
  %v2998 = vsel %vm2969, %v2965, %v1803
  %v2999 = vsel %vm2969, %v2966, %v1805
  %v3000 = vsel %vm2969, %v2967, %v1807
  %v3001 = vsel %vm2969, %v2968, %v1809
  %vm3002 = vcmask 293888
  %v3003 = vsel %vm3002, %v2970, %v1875
  %v3004 = vsel %vm3002, %v2971, %v1877
  %v3005 = vsel %vm3002, %v2972, %v1879
  %v3006 = vsel %vm3002, %v2973, %v1881
  %v3007 = vsel %vm3002, %v2974, %v1883
  %v3008 = vsel %vm3002, %v2975, %v1885
  %v3009 = vsel %vm3002, %v2976, %v1887
  %v3010 = vsel %vm3002, %v2977, %v1889
  %v3011 = vsel %vm3002, %v2978, %v1891
  %v3012 = vsel %vm3002, %v2979, %v1893
  %v3013 = vsel %vm3002, %v2980, %v1895
  %v3014 = vsel %vm3002, %v2981, %v1897
  %v3015 = vsel %vm3002, %v2982, %v1899
  %v3016 = vsel %vm3002, %v2983, %v1901
  %v3017 = vsel %vm3002, %v2984, %v1903
  %v3018 = vsel %vm3002, %v2985, %v1905
  %v3019 = vsel %vm3002, %v2986, %v1907
  %v3020 = vsel %vm3002, %v2987, %v1909
  %v3021 = vsel %vm3002, %v2988, %v1911
  %v3022 = vsel %vm3002, %v2989, %v1913
  %v3023 = vsel %vm3002, %v2990, %v1915
  %v3024 = vsel %vm3002, %v2991, %v1917
  %v3025 = vsel %vm3002, %v2992, %v1919
  %v3026 = vsel %vm3002, %v2993, %v1921
  %v3027 = vsel %vm3002, %v2994, %v1923
  %v3028 = vsel %vm3002, %v2995, %v1925
  %v3029 = vsel %vm3002, %v2996, %v1927
  %v3030 = vsel %vm3002, %v2997, %v1929
  %v3031 = vsel %vm3002, %v2998, %v1931
  %v3032 = vsel %vm3002, %v2999, %v1933
  %v3033 = vsel %vm3002, %v3000, %v1935
  %v3034 = vsel %vm3002, %v3001, %v1937
  %vm3035 = vcmask 326656
  %v3036 = vsel %vm3035, %v3003, %v2003
  %v3037 = vsel %vm3035, %v3004, %v2005
  %v3038 = vsel %vm3035, %v3005, %v2007
  %v3039 = vsel %vm3035, %v3006, %v2009
  %v3040 = vsel %vm3035, %v3007, %v2011
  %v3041 = vsel %vm3035, %v3008, %v2013
  %v3042 = vsel %vm3035, %v3009, %v2015
  %v3043 = vsel %vm3035, %v3010, %v2017
  %v3044 = vsel %vm3035, %v3011, %v2019
  %v3045 = vsel %vm3035, %v3012, %v2021
  %v3046 = vsel %vm3035, %v3013, %v2023
  %v3047 = vsel %vm3035, %v3014, %v2025
  %v3048 = vsel %vm3035, %v3015, %v2027
  %v3049 = vsel %vm3035, %v3016, %v2029
  %v3050 = vsel %vm3035, %v3017, %v2031
  %v3051 = vsel %vm3035, %v3018, %v2033
  %v3052 = vsel %vm3035, %v3019, %v2035
  %v3053 = vsel %vm3035, %v3020, %v2037
  %v3054 = vsel %vm3035, %v3021, %v2039
  %v3055 = vsel %vm3035, %v3022, %v2041
  %v3056 = vsel %vm3035, %v3023, %v2043
  %v3057 = vsel %vm3035, %v3024, %v2045
  %v3058 = vsel %vm3035, %v3025, %v2047
  %v3059 = vsel %vm3035, %v3026, %v2049
  %v3060 = vsel %vm3035, %v3027, %v2051
  %v3061 = vsel %vm3035, %v3028, %v2053
  %v3062 = vsel %vm3035, %v3029, %v2055
  %v3063 = vsel %vm3035, %v3030, %v2057
  %v3064 = vsel %vm3035, %v3031, %v2059
  %v3065 = vsel %vm3035, %v3032, %v2061
  %v3066 = vsel %vm3035, %v3033, %v2063
  %v3067 = vsel %vm3035, %v3034, %v2065
  %vm3068 = vcmask 359424
  %v3069 = vsel %vm3068, %v3036, %v2131
  %v3070 = vsel %vm3068, %v3037, %v2133
  %v3071 = vsel %vm3068, %v3038, %v2135
  %v3072 = vsel %vm3068, %v3039, %v2137
  %v3073 = vsel %vm3068, %v3040, %v2139
  %v3074 = vsel %vm3068, %v3041, %v2141
  %v3075 = vsel %vm3068, %v3042, %v2143
  %v3076 = vsel %vm3068, %v3043, %v2145
  %v3077 = vsel %vm3068, %v3044, %v2147
  %v3078 = vsel %vm3068, %v3045, %v2149
  %v3079 = vsel %vm3068, %v3046, %v2151
  %v3080 = vsel %vm3068, %v3047, %v2153
  %v3081 = vsel %vm3068, %v3048, %v2155
  %v3082 = vsel %vm3068, %v3049, %v2157
  %v3083 = vsel %vm3068, %v3050, %v2159
  %v3084 = vsel %vm3068, %v3051, %v2161
  %v3085 = vsel %vm3068, %v3052, %v2163
  %v3086 = vsel %vm3068, %v3053, %v2165
  %v3087 = vsel %vm3068, %v3054, %v2167
  %v3088 = vsel %vm3068, %v3055, %v2169
  %v3089 = vsel %vm3068, %v3056, %v2171
  %v3090 = vsel %vm3068, %v3057, %v2173
  %v3091 = vsel %vm3068, %v3058, %v2175
  %v3092 = vsel %vm3068, %v3059, %v2177
  %v3093 = vsel %vm3068, %v3060, %v2179
  %v3094 = vsel %vm3068, %v3061, %v2181
  %v3095 = vsel %vm3068, %v3062, %v2183
  %v3096 = vsel %vm3068, %v3063, %v2185
  %v3097 = vsel %vm3068, %v3064, %v2187
  %v3098 = vsel %vm3068, %v3065, %v2189
  %v3099 = vsel %vm3068, %v3066, %v2191
  %v3100 = vsel %vm3068, %v3067, %v2193
  %vm3101 = vcmask 392192
  %v3102 = vsel %vm3101, %v3069, %v2259
  %v3103 = vsel %vm3101, %v3070, %v2261
  %v3104 = vsel %vm3101, %v3071, %v2263
  %v3105 = vsel %vm3101, %v3072, %v2265
  %v3106 = vsel %vm3101, %v3073, %v2267
  %v3107 = vsel %vm3101, %v3074, %v2269
  %v3108 = vsel %vm3101, %v3075, %v2271
  %v3109 = vsel %vm3101, %v3076, %v2273
  %v3110 = vsel %vm3101, %v3077, %v2275
  %v3111 = vsel %vm3101, %v3078, %v2277
  %v3112 = vsel %vm3101, %v3079, %v2279
  %v3113 = vsel %vm3101, %v3080, %v2281
  %v3114 = vsel %vm3101, %v3081, %v2283
  %v3115 = vsel %vm3101, %v3082, %v2285
  %v3116 = vsel %vm3101, %v3083, %v2287
  %v3117 = vsel %vm3101, %v3084, %v2289
  %v3118 = vsel %vm3101, %v3085, %v2291
  %v3119 = vsel %vm3101, %v3086, %v2293
  %v3120 = vsel %vm3101, %v3087, %v2295
  %v3121 = vsel %vm3101, %v3088, %v2297
  %v3122 = vsel %vm3101, %v3089, %v2299
  %v3123 = vsel %vm3101, %v3090, %v2301
  %v3124 = vsel %vm3101, %v3091, %v2303
  %v3125 = vsel %vm3101, %v3092, %v2305
  %v3126 = vsel %vm3101, %v3093, %v2307
  %v3127 = vsel %vm3101, %v3094, %v2309
  %v3128 = vsel %vm3101, %v3095, %v2311
  %v3129 = vsel %vm3101, %v3096, %v2313
  %v3130 = vsel %vm3101, %v3097, %v2315
  %v3131 = vsel %vm3101, %v3098, %v2317
  %v3132 = vsel %vm3101, %v3099, %v2319
  %v3133 = vsel %vm3101, %v3100, %v2321
  %vm3134 = vcmask 424960
  %v3135 = vsel %vm3134, %v3102, %v2387
  %v3136 = vsel %vm3134, %v3103, %v2389
  %v3137 = vsel %vm3134, %v3104, %v2391
  %v3138 = vsel %vm3134, %v3105, %v2393
  %v3139 = vsel %vm3134, %v3106, %v2395
  %v3140 = vsel %vm3134, %v3107, %v2397
  %v3141 = vsel %vm3134, %v3108, %v2399
  %v3142 = vsel %vm3134, %v3109, %v2401
  %v3143 = vsel %vm3134, %v3110, %v2403
  %v3144 = vsel %vm3134, %v3111, %v2405
  %v3145 = vsel %vm3134, %v3112, %v2407
  %v3146 = vsel %vm3134, %v3113, %v2409
  %v3147 = vsel %vm3134, %v3114, %v2411
  %v3148 = vsel %vm3134, %v3115, %v2413
  %v3149 = vsel %vm3134, %v3116, %v2415
  %v3150 = vsel %vm3134, %v3117, %v2417
  %v3151 = vsel %vm3134, %v3118, %v2419
  %v3152 = vsel %vm3134, %v3119, %v2421
  %v3153 = vsel %vm3134, %v3120, %v2423
  %v3154 = vsel %vm3134, %v3121, %v2425
  %v3155 = vsel %vm3134, %v3122, %v2427
  %v3156 = vsel %vm3134, %v3123, %v2429
  %v3157 = vsel %vm3134, %v3124, %v2431
  %v3158 = vsel %vm3134, %v3125, %v2433
  %v3159 = vsel %vm3134, %v3126, %v2435
  %v3160 = vsel %vm3134, %v3127, %v2437
  %v3161 = vsel %vm3134, %v3128, %v2439
  %v3162 = vsel %vm3134, %v3129, %v2441
  %v3163 = vsel %vm3134, %v3130, %v2443
  %v3164 = vsel %vm3134, %v3131, %v2445
  %v3165 = vsel %vm3134, %v3132, %v2447
  %v3166 = vsel %vm3134, %v3133, %v2449
  %vm3167 = vcmask 457728
  %v3168 = vsel %vm3167, %v3135, %v2515
  %v3169 = vsel %vm3167, %v3136, %v2517
  %v3170 = vsel %vm3167, %v3137, %v2519
  %v3171 = vsel %vm3167, %v3138, %v2521
  %v3172 = vsel %vm3167, %v3139, %v2523
  %v3173 = vsel %vm3167, %v3140, %v2525
  %v3174 = vsel %vm3167, %v3141, %v2527
  %v3175 = vsel %vm3167, %v3142, %v2529
  %v3176 = vsel %vm3167, %v3143, %v2531
  %v3177 = vsel %vm3167, %v3144, %v2533
  %v3178 = vsel %vm3167, %v3145, %v2535
  %v3179 = vsel %vm3167, %v3146, %v2537
  %v3180 = vsel %vm3167, %v3147, %v2539
  %v3181 = vsel %vm3167, %v3148, %v2541
  %v3182 = vsel %vm3167, %v3149, %v2543
  %v3183 = vsel %vm3167, %v3150, %v2545
  %v3184 = vsel %vm3167, %v3151, %v2547
  %v3185 = vsel %vm3167, %v3152, %v2549
  %v3186 = vsel %vm3167, %v3153, %v2551
  %v3187 = vsel %vm3167, %v3154, %v2553
  %v3188 = vsel %vm3167, %v3155, %v2555
  %v3189 = vsel %vm3167, %v3156, %v2557
  %v3190 = vsel %vm3167, %v3157, %v2559
  %v3191 = vsel %vm3167, %v3158, %v2561
  %v3192 = vsel %vm3167, %v3159, %v2563
  %v3193 = vsel %vm3167, %v3160, %v2565
  %v3194 = vsel %vm3167, %v3161, %v2567
  %v3195 = vsel %vm3167, %v3162, %v2569
  %v3196 = vsel %vm3167, %v3163, %v2571
  %v3197 = vsel %vm3167, %v3164, %v2573
  %v3198 = vsel %vm3167, %v3165, %v2575
  %v3199 = vsel %vm3167, %v3166, %v2577
  %vm3200 = vcmask 490496
  %v3201 = vsel %vm3200, %v3168, %v2643
  %v3202 = vsel %vm3200, %v3169, %v2645
  %v3203 = vsel %vm3200, %v3170, %v2647
  %v3204 = vsel %vm3200, %v3171, %v2649
  %v3205 = vsel %vm3200, %v3172, %v2651
  %v3206 = vsel %vm3200, %v3173, %v2653
  %v3207 = vsel %vm3200, %v3174, %v2655
  %v3208 = vsel %vm3200, %v3175, %v2657
  %v3209 = vsel %vm3200, %v3176, %v2659
  %v3210 = vsel %vm3200, %v3177, %v2661
  %v3211 = vsel %vm3200, %v3178, %v2663
  %v3212 = vsel %vm3200, %v3179, %v2665
  %v3213 = vsel %vm3200, %v3180, %v2667
  %v3214 = vsel %vm3200, %v3181, %v2669
  %v3215 = vsel %vm3200, %v3182, %v2671
  %v3216 = vsel %vm3200, %v3183, %v2673
  %v3217 = vsel %vm3200, %v3184, %v2675
  %v3218 = vsel %vm3200, %v3185, %v2677
  %v3219 = vsel %vm3200, %v3186, %v2679
  %v3220 = vsel %vm3200, %v3187, %v2681
  %v3221 = vsel %vm3200, %v3188, %v2683
  %v3222 = vsel %vm3200, %v3189, %v2685
  %v3223 = vsel %vm3200, %v3190, %v2687
  %v3224 = vsel %vm3200, %v3191, %v2689
  %v3225 = vsel %vm3200, %v3192, %v2691
  %v3226 = vsel %vm3200, %v3193, %v2693
  %v3227 = vsel %vm3200, %v3194, %v2695
  %v3228 = vsel %vm3200, %v3195, %v2697
  %v3229 = vsel %vm3200, %v3196, %v2699
  %v3230 = vsel %vm3200, %v3197, %v2701
  %v3231 = vsel %vm3200, %v3198, %v2703
  %v3232 = vsel %vm3200, %v3199, %v2705
  %3265 = vrot.lane.b32.xlu0 %v561, 4
  %v3266 = vpop.permute.xlu0 %3265
  %3267 = vrot.lane.b32.xlu0 %v562, 4
  %v3268 = vpop.permute.xlu0 %3267
  %3269 = vrot.lane.b32.xlu0 %v563, 4
  %v3270 = vpop.permute.xlu0 %3269
  %3271 = vrot.lane.b32.xlu0 %v564, 4
  %v3272 = vpop.permute.xlu0 %3271
  %3273 = vrot.lane.b32.xlu0 %v565, 4
  %v3274 = vpop.permute.xlu0 %3273
  %3275 = vrot.lane.b32.xlu0 %v566, 4
  %v3276 = vpop.permute.xlu0 %3275
  %3277 = vrot.lane.b32.xlu0 %v567, 4
  %v3278 = vpop.permute.xlu0 %3277
  %3279 = vrot.lane.b32.xlu0 %v568, 4
  %v3280 = vpop.permute.xlu0 %3279
  %3281 = vrot.lane.b32.xlu0 %v569, 4
  %v3282 = vpop.permute.xlu0 %3281
  %3283 = vrot.lane.b32.xlu0 %v570, 4
  %v3284 = vpop.permute.xlu0 %3283
  %3285 = vrot.lane.b32.xlu0 %v571, 4
  %v3286 = vpop.permute.xlu0 %3285
  %3287 = vrot.lane.b32.xlu0 %v572, 4
  %v3288 = vpop.permute.xlu0 %3287
  %3289 = vrot.lane.b32.xlu0 %v573, 4
  %v3290 = vpop.permute.xlu0 %3289
  %3291 = vrot.lane.b32.xlu0 %v574, 4
  %v3292 = vpop.permute.xlu0 %3291
  %3293 = vrot.lane.b32.xlu0 %v575, 4
  %v3294 = vpop.permute.xlu0 %3293
  %3295 = vrot.lane.b32.xlu0 %v576, 4
  %v3296 = vpop.permute.xlu0 %3295
  %3297 = vrot.lane.b32.xlu0 %v577, 4
  %v3298 = vpop.permute.xlu0 %3297
  %3299 = vrot.lane.b32.xlu0 %v578, 4
  %v3300 = vpop.permute.xlu0 %3299
  %3301 = vrot.lane.b32.xlu0 %v579, 4
  %v3302 = vpop.permute.xlu0 %3301
  %3303 = vrot.lane.b32.xlu0 %v580, 4
  %v3304 = vpop.permute.xlu0 %3303
  %3305 = vrot.lane.b32.xlu0 %v581, 4
  %v3306 = vpop.permute.xlu0 %3305
  %3307 = vrot.lane.b32.xlu0 %v582, 4
  %v3308 = vpop.permute.xlu0 %3307
  %3309 = vrot.lane.b32.xlu0 %v583, 4
  %v3310 = vpop.permute.xlu0 %3309
  %3311 = vrot.lane.b32.xlu0 %v584, 4
  %v3312 = vpop.permute.xlu0 %3311
  %3313 = vrot.lane.b32.xlu0 %v585, 4
  %v3314 = vpop.permute.xlu0 %3313
  %3315 = vrot.lane.b32.xlu0 %v586, 4
  %v3316 = vpop.permute.xlu0 %3315
  %3317 = vrot.lane.b32.xlu0 %v587, 4
  %v3318 = vpop.permute.xlu0 %3317
  %3319 = vrot.lane.b32.xlu0 %v588, 4
  %v3320 = vpop.permute.xlu0 %3319
  %3321 = vrot.lane.b32.xlu0 %v589, 4
  %v3322 = vpop.permute.xlu0 %3321
  %3323 = vrot.lane.b32.xlu0 %v590, 4
  %v3324 = vpop.permute.xlu0 %3323
  %3325 = vrot.lane.b32.xlu0 %v591, 4
  %v3326 = vpop.permute.xlu0 %3325
  %3327 = vrot.lane.b32.xlu0 %v592, 4
  %v3328 = vpop.permute.xlu0 %3327
  %3393 = vrot.lane.b32.xlu0 %v593, 8
  %v3394 = vpop.permute.xlu0 %3393
  %3395 = vrot.lane.b32.xlu0 %v594, 8
  %v3396 = vpop.permute.xlu0 %3395
  %3397 = vrot.lane.b32.xlu0 %v595, 8
  %v3398 = vpop.permute.xlu0 %3397
  %3399 = vrot.lane.b32.xlu0 %v596, 8
  %v3400 = vpop.permute.xlu0 %3399
  %3401 = vrot.lane.b32.xlu0 %v597, 8
  %v3402 = vpop.permute.xlu0 %3401
  %3403 = vrot.lane.b32.xlu0 %v598, 8
  %v3404 = vpop.permute.xlu0 %3403
  %3405 = vrot.lane.b32.xlu0 %v599, 8
  %v3406 = vpop.permute.xlu0 %3405
  %3407 = vrot.lane.b32.xlu0 %v600, 8
  %v3408 = vpop.permute.xlu0 %3407
  %3409 = vrot.lane.b32.xlu0 %v601, 8
  %v3410 = vpop.permute.xlu0 %3409
  %3411 = vrot.lane.b32.xlu0 %v602, 8
  %v3412 = vpop.permute.xlu0 %3411
  %3413 = vrot.lane.b32.xlu0 %v603, 8
  %v3414 = vpop.permute.xlu0 %3413
  %3415 = vrot.lane.b32.xlu0 %v604, 8
  %v3416 = vpop.permute.xlu0 %3415
  %3417 = vrot.lane.b32.xlu0 %v605, 8
  %v3418 = vpop.permute.xlu0 %3417
  %3419 = vrot.lane.b32.xlu0 %v606, 8
  %v3420 = vpop.permute.xlu0 %3419
  %3421 = vrot.lane.b32.xlu0 %v607, 8
  %v3422 = vpop.permute.xlu0 %3421
  %3423 = vrot.lane.b32.xlu0 %v608, 8
  %v3424 = vpop.permute.xlu0 %3423
  %3425 = vrot.lane.b32.xlu0 %v609, 8
  %v3426 = vpop.permute.xlu0 %3425
  %3427 = vrot.lane.b32.xlu0 %v610, 8
  %v3428 = vpop.permute.xlu0 %3427
  %3429 = vrot.lane.b32.xlu0 %v611, 8
  %v3430 = vpop.permute.xlu0 %3429
  %3431 = vrot.lane.b32.xlu0 %v612, 8
  %v3432 = vpop.permute.xlu0 %3431
  %3433 = vrot.lane.b32.xlu0 %v613, 8
  %v3434 = vpop.permute.xlu0 %3433
  %3435 = vrot.lane.b32.xlu0 %v614, 8
  %v3436 = vpop.permute.xlu0 %3435
  %3437 = vrot.lane.b32.xlu0 %v615, 8
  %v3438 = vpop.permute.xlu0 %3437
  %3439 = vrot.lane.b32.xlu0 %v616, 8
  %v3440 = vpop.permute.xlu0 %3439
  %3441 = vrot.lane.b32.xlu0 %v617, 8
  %v3442 = vpop.permute.xlu0 %3441
  %3443 = vrot.lane.b32.xlu0 %v618, 8
  %v3444 = vpop.permute.xlu0 %3443
  %3445 = vrot.lane.b32.xlu0 %v619, 8
  %v3446 = vpop.permute.xlu0 %3445
  %3447 = vrot.lane.b32.xlu0 %v620, 8
  %v3448 = vpop.permute.xlu0 %3447
  %3449 = vrot.lane.b32.xlu0 %v621, 8
  %v3450 = vpop.permute.xlu0 %3449
  %3451 = vrot.lane.b32.xlu0 %v622, 8
  %v3452 = vpop.permute.xlu0 %3451
  %3453 = vrot.lane.b32.xlu0 %v623, 8
  %v3454 = vpop.permute.xlu0 %3453
  %3455 = vrot.lane.b32.xlu0 %v624, 8
  %v3456 = vpop.permute.xlu0 %3455
  %3521 = vrot.lane.b32.xlu0 %v625, 12
  %v3522 = vpop.permute.xlu0 %3521
  %3523 = vrot.lane.b32.xlu0 %v626, 12
  %v3524 = vpop.permute.xlu0 %3523
  %3525 = vrot.lane.b32.xlu0 %v627, 12
  %v3526 = vpop.permute.xlu0 %3525
  %3527 = vrot.lane.b32.xlu0 %v628, 12
  %v3528 = vpop.permute.xlu0 %3527
  %3529 = vrot.lane.b32.xlu0 %v629, 12
  %v3530 = vpop.permute.xlu0 %3529
  %3531 = vrot.lane.b32.xlu0 %v630, 12
  %v3532 = vpop.permute.xlu0 %3531
  %3533 = vrot.lane.b32.xlu0 %v631, 12
  %v3534 = vpop.permute.xlu0 %3533
  %3535 = vrot.lane.b32.xlu0 %v632, 12
  %v3536 = vpop.permute.xlu0 %3535
  %3537 = vrot.lane.b32.xlu0 %v633, 12
  %v3538 = vpop.permute.xlu0 %3537
  %3539 = vrot.lane.b32.xlu0 %v634, 12
  %v3540 = vpop.permute.xlu0 %3539
  %3541 = vrot.lane.b32.xlu0 %v635, 12
  %v3542 = vpop.permute.xlu0 %3541
  %3543 = vrot.lane.b32.xlu0 %v636, 12
  %v3544 = vpop.permute.xlu0 %3543
  %3545 = vrot.lane.b32.xlu0 %v637, 12
  %v3546 = vpop.permute.xlu0 %3545
  %3547 = vrot.lane.b32.xlu0 %v638, 12
  %v3548 = vpop.permute.xlu0 %3547
  %3549 = vrot.lane.b32.xlu0 %v639, 12
  %v3550 = vpop.permute.xlu0 %3549
  %3551 = vrot.lane.b32.xlu0 %v640, 12
  %v3552 = vpop.permute.xlu0 %3551
  %3553 = vrot.lane.b32.xlu0 %v641, 12
  %v3554 = vpop.permute.xlu0 %3553
  %3555 = vrot.lane.b32.xlu0 %v642, 12
  %v3556 = vpop.permute.xlu0 %3555
  %3557 = vrot.lane.b32.xlu0 %v643, 12
  %v3558 = vpop.permute.xlu0 %3557
  %3559 = vrot.lane.b32.xlu0 %v644, 12
  %v3560 = vpop.permute.xlu0 %3559
  %3561 = vrot.lane.b32.xlu0 %v645, 12
  %v3562 = vpop.permute.xlu0 %3561
  %3563 = vrot.lane.b32.xlu0 %v646, 12
  %v3564 = vpop.permute.xlu0 %3563
  %3565 = vrot.lane.b32.xlu0 %v647, 12
  %v3566 = vpop.permute.xlu0 %3565
  %3567 = vrot.lane.b32.xlu0 %v648, 12
  %v3568 = vpop.permute.xlu0 %3567
  %3569 = vrot.lane.b32.xlu0 %v649, 12
  %v3570 = vpop.permute.xlu0 %3569
  %3571 = vrot.lane.b32.xlu0 %v650, 12
  %v3572 = vpop.permute.xlu0 %3571
  %3573 = vrot.lane.b32.xlu0 %v651, 12
  %v3574 = vpop.permute.xlu0 %3573
  %3575 = vrot.lane.b32.xlu0 %v652, 12
  %v3576 = vpop.permute.xlu0 %3575
  %3577 = vrot.lane.b32.xlu0 %v653, 12
  %v3578 = vpop.permute.xlu0 %3577
  %3579 = vrot.lane.b32.xlu0 %v654, 12
  %v3580 = vpop.permute.xlu0 %3579
  %3581 = vrot.lane.b32.xlu0 %v655, 12
  %v3582 = vpop.permute.xlu0 %3581
  %3583 = vrot.lane.b32.xlu0 %v656, 12
  %v3584 = vpop.permute.xlu0 %3583
  %3649 = vrot.lane.b32.xlu0 %v658, 16
  %v3650 = vpop.permute.xlu0 %3649
  %3651 = vrot.lane.b32.xlu0 %v659, 16
  %v3652 = vpop.permute.xlu0 %3651
  %3653 = vrot.lane.b32.xlu0 %v660, 16
  %v3654 = vpop.permute.xlu0 %3653
  %3655 = vrot.lane.b32.xlu0 %v661, 16
  %v3656 = vpop.permute.xlu0 %3655
  %3657 = vrot.lane.b32.xlu0 %v662, 16
  %v3658 = vpop.permute.xlu0 %3657
  %3659 = vrot.lane.b32.xlu0 %v663, 16
  %v3660 = vpop.permute.xlu0 %3659
  %3661 = vrot.lane.b32.xlu0 %v664, 16
  %v3662 = vpop.permute.xlu0 %3661
  %3663 = vrot.lane.b32.xlu0 %v665, 16
  %v3664 = vpop.permute.xlu0 %3663
  %3665 = vrot.lane.b32.xlu0 %v666, 16
  %v3666 = vpop.permute.xlu0 %3665
  %3667 = vrot.lane.b32.xlu0 %v667, 16
  %v3668 = vpop.permute.xlu0 %3667
  %3669 = vrot.lane.b32.xlu0 %v668, 16
  %v3670 = vpop.permute.xlu0 %3669
  %3671 = vrot.lane.b32.xlu0 %v669, 16
  %v3672 = vpop.permute.xlu0 %3671
  %3673 = vrot.lane.b32.xlu0 %v670, 16
  %v3674 = vpop.permute.xlu0 %3673
  %3675 = vrot.lane.b32.xlu0 %v671, 16
  %v3676 = vpop.permute.xlu0 %3675
  %3677 = vrot.lane.b32.xlu0 %v672, 16
  %v3678 = vpop.permute.xlu0 %3677
  %3679 = vrot.lane.b32.xlu0 %v673, 16
  %v3680 = vpop.permute.xlu0 %3679
  %3681 = vrot.lane.b32.xlu0 %v674, 16
  %v3682 = vpop.permute.xlu0 %3681
  %3683 = vrot.lane.b32.xlu0 %v675, 16
  %v3684 = vpop.permute.xlu0 %3683
  %3685 = vrot.lane.b32.xlu0 %v676, 16
  %v3686 = vpop.permute.xlu0 %3685
  %3687 = vrot.lane.b32.xlu0 %v677, 16
  %v3688 = vpop.permute.xlu0 %3687
  %3689 = vrot.lane.b32.xlu0 %v678, 16
  %v3690 = vpop.permute.xlu0 %3689
  %3691 = vrot.lane.b32.xlu0 %v679, 16
  %v3692 = vpop.permute.xlu0 %3691
  %3693 = vrot.lane.b32.xlu0 %v680, 16
  %v3694 = vpop.permute.xlu0 %3693
  %3695 = vrot.lane.b32.xlu0 %v681, 16
  %v3696 = vpop.permute.xlu0 %3695
  %3697 = vrot.lane.b32.xlu0 %v682, 16
  %v3698 = vpop.permute.xlu0 %3697
  %3699 = vrot.lane.b32.xlu0 %v683, 16
  %v3700 = vpop.permute.xlu0 %3699
  %3701 = vrot.lane.b32.xlu0 %v684, 16
  %v3702 = vpop.permute.xlu0 %3701
  %3703 = vrot.lane.b32.xlu0 %v685, 16
  %v3704 = vpop.permute.xlu0 %3703
  %3705 = vrot.lane.b32.xlu0 %v686, 16
  %v3706 = vpop.permute.xlu0 %3705
  %3707 = vrot.lane.b32.xlu0 %v687, 16
  %v3708 = vpop.permute.xlu0 %3707
  %3709 = vrot.lane.b32.xlu0 %v688, 16
  %v3710 = vpop.permute.xlu0 %3709
  %3711 = vrot.lane.b32.xlu0 %v689, 16
  %v3712 = vpop.permute.xlu0 %3711
  %3777 = vrot.lane.b32.xlu0 %v690, 20
  %v3778 = vpop.permute.xlu0 %3777
  %3779 = vrot.lane.b32.xlu0 %v691, 20
  %v3780 = vpop.permute.xlu0 %3779
  %3781 = vrot.lane.b32.xlu0 %v692, 20
  %v3782 = vpop.permute.xlu0 %3781
  %3783 = vrot.lane.b32.xlu0 %v693, 20
  %v3784 = vpop.permute.xlu0 %3783
  %3785 = vrot.lane.b32.xlu0 %v694, 20
  %v3786 = vpop.permute.xlu0 %3785
  %3787 = vrot.lane.b32.xlu0 %v695, 20
  %v3788 = vpop.permute.xlu0 %3787
  %3789 = vrot.lane.b32.xlu0 %v696, 20
  %v3790 = vpop.permute.xlu0 %3789
  %3791 = vrot.lane.b32.xlu0 %v697, 20
  %v3792 = vpop.permute.xlu0 %3791
  %3793 = vrot.lane.b32.xlu0 %v698, 20
  %v3794 = vpop.permute.xlu0 %3793
  %3795 = vrot.lane.b32.xlu0 %v699, 20
  %v3796 = vpop.permute.xlu0 %3795
  %3797 = vrot.lane.b32.xlu0 %v700, 20
  %v3798 = vpop.permute.xlu0 %3797
  %3799 = vrot.lane.b32.xlu0 %v701, 20
  %v3800 = vpop.permute.xlu0 %3799
  %3801 = vrot.lane.b32.xlu0 %v702, 20
  %v3802 = vpop.permute.xlu0 %3801
  %3803 = vrot.lane.b32.xlu0 %v703, 20
  %v3804 = vpop.permute.xlu0 %3803
  %3805 = vrot.lane.b32.xlu0 %v704, 20
  %v3806 = vpop.permute.xlu0 %3805
  %3807 = vrot.lane.b32.xlu0 %v705, 20
  %v3808 = vpop.permute.xlu0 %3807
  %3809 = vrot.lane.b32.xlu0 %v706, 20
  %v3810 = vpop.permute.xlu0 %3809
  %3811 = vrot.lane.b32.xlu0 %v707, 20
  %v3812 = vpop.permute.xlu0 %3811
  %3813 = vrot.lane.b32.xlu0 %v708, 20
  %v3814 = vpop.permute.xlu0 %3813
  %3815 = vrot.lane.b32.xlu0 %v709, 20
  %v3816 = vpop.permute.xlu0 %3815
  %3817 = vrot.lane.b32.xlu0 %v710, 20
  %v3818 = vpop.permute.xlu0 %3817
  %3819 = vrot.lane.b32.xlu0 %v711, 20
  %v3820 = vpop.permute.xlu0 %3819
  %3821 = vrot.lane.b32.xlu0 %v712, 20
  %v3822 = vpop.permute.xlu0 %3821
  %3823 = vrot.lane.b32.xlu0 %v713, 20
  %v3824 = vpop.permute.xlu0 %3823
  %3825 = vrot.lane.b32.xlu0 %v714, 20
  %v3826 = vpop.permute.xlu0 %3825
  %3827 = vrot.lane.b32.xlu0 %v715, 20
  %v3828 = vpop.permute.xlu0 %3827
  %3829 = vrot.lane.b32.xlu0 %v716, 20
  %v3830 = vpop.permute.xlu0 %3829
  %3831 = vrot.lane.b32.xlu0 %v717, 20
  %v3832 = vpop.permute.xlu0 %3831
  %3833 = vrot.lane.b32.xlu0 %v718, 20
  %v3834 = vpop.permute.xlu0 %3833
  %3835 = vrot.lane.b32.xlu0 %v719, 20
  %v3836 = vpop.permute.xlu0 %3835
  %3837 = vrot.lane.b32.xlu0 %v720, 20
  %v3838 = vpop.permute.xlu0 %3837
  %3839 = vrot.lane.b32.xlu0 %v721, 20
  %v3840 = vpop.permute.xlu0 %3839
  %3905 = vrot.lane.b32.xlu0 %v722, 24
  %v3906 = vpop.permute.xlu0 %3905
  %3907 = vrot.lane.b32.xlu0 %v723, 24
  %v3908 = vpop.permute.xlu0 %3907
  %3909 = vrot.lane.b32.xlu0 %v724, 24
  %v3910 = vpop.permute.xlu0 %3909
  %3911 = vrot.lane.b32.xlu0 %v725, 24
  %v3912 = vpop.permute.xlu0 %3911
  %3913 = vrot.lane.b32.xlu0 %v726, 24
  %v3914 = vpop.permute.xlu0 %3913
  %3915 = vrot.lane.b32.xlu0 %v727, 24
  %v3916 = vpop.permute.xlu0 %3915
  %3917 = vrot.lane.b32.xlu0 %v728, 24
  %v3918 = vpop.permute.xlu0 %3917
  %3919 = vrot.lane.b32.xlu0 %v729, 24
  %v3920 = vpop.permute.xlu0 %3919
  %3921 = vrot.lane.b32.xlu0 %v730, 24
  %v3922 = vpop.permute.xlu0 %3921
  %3923 = vrot.lane.b32.xlu0 %v731, 24
  %v3924 = vpop.permute.xlu0 %3923
  %3925 = vrot.lane.b32.xlu0 %v732, 24
  %v3926 = vpop.permute.xlu0 %3925
  %3927 = vrot.lane.b32.xlu0 %v733, 24
  %v3928 = vpop.permute.xlu0 %3927
  %3929 = vrot.lane.b32.xlu0 %v734, 24
  %v3930 = vpop.permute.xlu0 %3929
  %3931 = vrot.lane.b32.xlu0 %v735, 24
  %v3932 = vpop.permute.xlu0 %3931
  %3933 = vrot.lane.b32.xlu0 %v736, 24
  %v3934 = vpop.permute.xlu0 %3933
  %3935 = vrot.lane.b32.xlu0 %v737, 24
  %v3936 = vpop.permute.xlu0 %3935
  %3937 = vrot.lane.b32.xlu0 %v738, 24
  %v3938 = vpop.permute.xlu0 %3937
  %3939 = vrot.lane.b32.xlu0 %v739, 24
  %v3940 = vpop.permute.xlu0 %3939
  %3941 = vrot.lane.b32.xlu0 %v740, 24
  %v3942 = vpop.permute.xlu0 %3941
  %3943 = vrot.lane.b32.xlu0 %v741, 24
  %v3944 = vpop.permute.xlu0 %3943
  %3945 = vrot.lane.b32.xlu0 %v742, 24
  %v3946 = vpop.permute.xlu0 %3945
  %3947 = vrot.lane.b32.xlu0 %v743, 24
  %v3948 = vpop.permute.xlu0 %3947
  %3949 = vrot.lane.b32.xlu0 %v744, 24
  %v3950 = vpop.permute.xlu0 %3949
  %3951 = vrot.lane.b32.xlu0 %v745, 24
  %v3952 = vpop.permute.xlu0 %3951
  %3953 = vrot.lane.b32.xlu0 %v746, 24
  %v3954 = vpop.permute.xlu0 %3953
  %3955 = vrot.lane.b32.xlu0 %v747, 24
  %v3956 = vpop.permute.xlu0 %3955
  %3957 = vrot.lane.b32.xlu0 %v748, 24
  %v3958 = vpop.permute.xlu0 %3957
  %3959 = vrot.lane.b32.xlu0 %v749, 24
  %v3960 = vpop.permute.xlu0 %3959
  %3961 = vrot.lane.b32.xlu0 %v750, 24
  %v3962 = vpop.permute.xlu0 %3961
  %3963 = vrot.lane.b32.xlu0 %v751, 24
  %v3964 = vpop.permute.xlu0 %3963
  %3965 = vrot.lane.b32.xlu0 %v752, 24
  %v3966 = vpop.permute.xlu0 %3965
  %3967 = vrot.lane.b32.xlu0 %v753, 24
  %v3968 = vpop.permute.xlu0 %3967
  %4033 = vrot.lane.b32.xlu0 %v754, 28
  %v4034 = vpop.permute.xlu0 %4033
  %4035 = vrot.lane.b32.xlu0 %v755, 28
  %v4036 = vpop.permute.xlu0 %4035
  %4037 = vrot.lane.b32.xlu0 %v756, 28
  %v4038 = vpop.permute.xlu0 %4037
  %4039 = vrot.lane.b32.xlu0 %v757, 28
  %v4040 = vpop.permute.xlu0 %4039
  %4041 = vrot.lane.b32.xlu0 %v758, 28
  %v4042 = vpop.permute.xlu0 %4041
  %4043 = vrot.lane.b32.xlu0 %v759, 28
  %v4044 = vpop.permute.xlu0 %4043
  %4045 = vrot.lane.b32.xlu0 %v760, 28
  %v4046 = vpop.permute.xlu0 %4045
  %4047 = vrot.lane.b32.xlu0 %v761, 28
  %v4048 = vpop.permute.xlu0 %4047
  %4049 = vrot.lane.b32.xlu0 %v762, 28
  %v4050 = vpop.permute.xlu0 %4049
  %4051 = vrot.lane.b32.xlu0 %v763, 28
  %v4052 = vpop.permute.xlu0 %4051
  %4053 = vrot.lane.b32.xlu0 %v764, 28
  %v4054 = vpop.permute.xlu0 %4053
  %4055 = vrot.lane.b32.xlu0 %v765, 28
  %v4056 = vpop.permute.xlu0 %4055
  %4057 = vrot.lane.b32.xlu0 %v766, 28
  %v4058 = vpop.permute.xlu0 %4057
  %4059 = vrot.lane.b32.xlu0 %v767, 28
  %v4060 = vpop.permute.xlu0 %4059
  %4061 = vrot.lane.b32.xlu0 %v768, 28
  %v4062 = vpop.permute.xlu0 %4061
  %4063 = vrot.lane.b32.xlu0 %v769, 28
  %v4064 = vpop.permute.xlu0 %4063
  %4065 = vrot.lane.b32.xlu0 %v770, 28
  %v4066 = vpop.permute.xlu0 %4065
  %4067 = vrot.lane.b32.xlu0 %v771, 28
  %v4068 = vpop.permute.xlu0 %4067
  %4069 = vrot.lane.b32.xlu0 %v772, 28
  %v4070 = vpop.permute.xlu0 %4069
  %4071 = vrot.lane.b32.xlu0 %v773, 28
  %v4072 = vpop.permute.xlu0 %4071
  %4073 = vrot.lane.b32.xlu0 %v774, 28
  %v4074 = vpop.permute.xlu0 %4073
  %4075 = vrot.lane.b32.xlu0 %v775, 28
  %v4076 = vpop.permute.xlu0 %4075
  %4077 = vrot.lane.b32.xlu0 %v776, 28
  %v4078 = vpop.permute.xlu0 %4077
  %4079 = vrot.lane.b32.xlu0 %v777, 28
  %v4080 = vpop.permute.xlu0 %4079
  %4081 = vrot.lane.b32.xlu0 %v778, 28
  %v4082 = vpop.permute.xlu0 %4081
  %4083 = vrot.lane.b32.xlu0 %v779, 28
  %v4084 = vpop.permute.xlu0 %4083
  %4085 = vrot.lane.b32.xlu0 %v780, 28
  %v4086 = vpop.permute.xlu0 %4085
  %4087 = vrot.lane.b32.xlu0 %v781, 28
  %v4088 = vpop.permute.xlu0 %4087
  %4089 = vrot.lane.b32.xlu0 %v782, 28
  %v4090 = vpop.permute.xlu0 %4089
  %4091 = vrot.lane.b32.xlu0 %v783, 28
  %v4092 = vpop.permute.xlu0 %4091
  %4093 = vrot.lane.b32.xlu0 %v784, 28
  %v4094 = vpop.permute.xlu0 %4093
  %4095 = vrot.lane.b32.xlu0 %v785, 28
  %v4096 = vpop.permute.xlu0 %4095
  %4161 = vrot.lane.b32.xlu0 %v786, 32
  %v4162 = vpop.permute.xlu0 %4161
  %4163 = vrot.lane.b32.xlu0 %v787, 32
  %v4164 = vpop.permute.xlu0 %4163
  %4165 = vrot.lane.b32.xlu0 %v788, 32
  %v4166 = vpop.permute.xlu0 %4165
  %4167 = vrot.lane.b32.xlu0 %v789, 32
  %v4168 = vpop.permute.xlu0 %4167
  %4169 = vrot.lane.b32.xlu0 %v790, 32
  %v4170 = vpop.permute.xlu0 %4169
  %4171 = vrot.lane.b32.xlu0 %v791, 32
  %v4172 = vpop.permute.xlu0 %4171
  %4173 = vrot.lane.b32.xlu0 %v792, 32
  %v4174 = vpop.permute.xlu0 %4173
  %4175 = vrot.lane.b32.xlu0 %v793, 32
  %v4176 = vpop.permute.xlu0 %4175
  %4177 = vrot.lane.b32.xlu0 %v794, 32
  %v4178 = vpop.permute.xlu0 %4177
  %4179 = vrot.lane.b32.xlu0 %v795, 32
  %v4180 = vpop.permute.xlu0 %4179
  %4181 = vrot.lane.b32.xlu0 %v796, 32
  %v4182 = vpop.permute.xlu0 %4181
  %4183 = vrot.lane.b32.xlu0 %v797, 32
  %v4184 = vpop.permute.xlu0 %4183
  %4185 = vrot.lane.b32.xlu0 %v798, 32
  %v4186 = vpop.permute.xlu0 %4185
  %4187 = vrot.lane.b32.xlu0 %v799, 32
  %v4188 = vpop.permute.xlu0 %4187
  %4189 = vrot.lane.b32.xlu0 %v800, 32
  %v4190 = vpop.permute.xlu0 %4189
  %4191 = vrot.lane.b32.xlu0 %v801, 32
  %v4192 = vpop.permute.xlu0 %4191
  %4193 = vrot.lane.b32.xlu0 %v802, 32
  %v4194 = vpop.permute.xlu0 %4193
  %4195 = vrot.lane.b32.xlu0 %v803, 32
  %v4196 = vpop.permute.xlu0 %4195
  %4197 = vrot.lane.b32.xlu0 %v804, 32
  %v4198 = vpop.permute.xlu0 %4197
  %4199 = vrot.lane.b32.xlu0 %v805, 32
  %v4200 = vpop.permute.xlu0 %4199
  %4201 = vrot.lane.b32.xlu0 %v806, 32
  %v4202 = vpop.permute.xlu0 %4201
  %4203 = vrot.lane.b32.xlu0 %v807, 32
  %v4204 = vpop.permute.xlu0 %4203
  %4205 = vrot.lane.b32.xlu0 %v808, 32
  %v4206 = vpop.permute.xlu0 %4205
  %4207 = vrot.lane.b32.xlu0 %v809, 32
  %v4208 = vpop.permute.xlu0 %4207
  %4209 = vrot.lane.b32.xlu0 %v810, 32
  %v4210 = vpop.permute.xlu0 %4209
  %4211 = vrot.lane.b32.xlu0 %v811, 32
  %v4212 = vpop.permute.xlu0 %4211
  %4213 = vrot.lane.b32.xlu0 %v812, 32
  %v4214 = vpop.permute.xlu0 %4213
  %4215 = vrot.lane.b32.xlu0 %v813, 32
  %v4216 = vpop.permute.xlu0 %4215
  %4217 = vrot.lane.b32.xlu0 %v814, 32
  %v4218 = vpop.permute.xlu0 %4217
  %4219 = vrot.lane.b32.xlu0 %v815, 32
  %v4220 = vpop.permute.xlu0 %4219
  %4221 = vrot.lane.b32.xlu0 %v816, 32
  %v4222 = vpop.permute.xlu0 %4221
  %4223 = vrot.lane.b32.xlu0 %v817, 32
  %v4224 = vpop.permute.xlu0 %4223
  %v4257 = vsel %vm2738, %v529, %v3266
  %v4258 = vsel %vm2738, %v530, %v3268
  %v4259 = vsel %vm2738, %v531, %v3270
  %v4260 = vsel %vm2738, %v532, %v3272
  %v4261 = vsel %vm2738, %v533, %v3274
  %v4262 = vsel %vm2738, %v534, %v3276
  %v4263 = vsel %vm2738, %v535, %v3278
  %v4264 = vsel %vm2738, %v536, %v3280
  %v4265 = vsel %vm2738, %v537, %v3282
  %v4266 = vsel %vm2738, %v538, %v3284
  %v4267 = vsel %vm2738, %v539, %v3286
  %v4268 = vsel %vm2738, %v540, %v3288
  %v4269 = vsel %vm2738, %v541, %v3290
  %v4270 = vsel %vm2738, %v542, %v3292
  %v4271 = vsel %vm2738, %v543, %v3294
  %v4272 = vsel %vm2738, %v544, %v3296
  %v4273 = vsel %vm2738, %v545, %v3298
  %v4274 = vsel %vm2738, %v546, %v3300
  %v4275 = vsel %vm2738, %v547, %v3302
  %v4276 = vsel %vm2738, %v548, %v3304
  %v4277 = vsel %vm2738, %v549, %v3306
  %v4278 = vsel %vm2738, %v550, %v3308
  %v4279 = vsel %vm2738, %v551, %v3310
  %v4280 = vsel %vm2738, %v552, %v3312
  %v4281 = vsel %vm2738, %v553, %v3314
  %v4282 = vsel %vm2738, %v554, %v3316
  %v4283 = vsel %vm2738, %v555, %v3318
  %v4284 = vsel %vm2738, %v556, %v3320
  %v4285 = vsel %vm2738, %v557, %v3322
  %v4286 = vsel %vm2738, %v558, %v3324
  %v4287 = vsel %vm2738, %v559, %v3326
  %v4288 = vsel %vm2738, %v560, %v3328
  %v4289 = vsel %vm2771, %v4257, %v3394
  %v4290 = vsel %vm2771, %v4258, %v3396
  %v4291 = vsel %vm2771, %v4259, %v3398
  %v4292 = vsel %vm2771, %v4260, %v3400
  %v4293 = vsel %vm2771, %v4261, %v3402
  %v4294 = vsel %vm2771, %v4262, %v3404
  %v4295 = vsel %vm2771, %v4263, %v3406
  %v4296 = vsel %vm2771, %v4264, %v3408
  %v4297 = vsel %vm2771, %v4265, %v3410
  %v4298 = vsel %vm2771, %v4266, %v3412
  %v4299 = vsel %vm2771, %v4267, %v3414
  %v4300 = vsel %vm2771, %v4268, %v3416
  %v4301 = vsel %vm2771, %v4269, %v3418
  %v4302 = vsel %vm2771, %v4270, %v3420
  %v4303 = vsel %vm2771, %v4271, %v3422
  %v4304 = vsel %vm2771, %v4272, %v3424
  %v4305 = vsel %vm2771, %v4273, %v3426
  %v4306 = vsel %vm2771, %v4274, %v3428
  %v4307 = vsel %vm2771, %v4275, %v3430
  %v4308 = vsel %vm2771, %v4276, %v3432
  %v4309 = vsel %vm2771, %v4277, %v3434
  %v4310 = vsel %vm2771, %v4278, %v3436
  %v4311 = vsel %vm2771, %v4279, %v3438
  %v4312 = vsel %vm2771, %v4280, %v3440
  %v4313 = vsel %vm2771, %v4281, %v3442
  %v4314 = vsel %vm2771, %v4282, %v3444
  %v4315 = vsel %vm2771, %v4283, %v3446
  %v4316 = vsel %vm2771, %v4284, %v3448
  %v4317 = vsel %vm2771, %v4285, %v3450
  %v4318 = vsel %vm2771, %v4286, %v3452
  %v4319 = vsel %vm2771, %v4287, %v3454
  %v4320 = vsel %vm2771, %v4288, %v3456
  %v4321 = vsel %vm2804, %v4289, %v3522
  %v4322 = vsel %vm2804, %v4290, %v3524
  %v4323 = vsel %vm2804, %v4291, %v3526
  %v4324 = vsel %vm2804, %v4292, %v3528
  %v4325 = vsel %vm2804, %v4293, %v3530
  %v4326 = vsel %vm2804, %v4294, %v3532
  %v4327 = vsel %vm2804, %v4295, %v3534
  %v4328 = vsel %vm2804, %v4296, %v3536
  %v4329 = vsel %vm2804, %v4297, %v3538
  %v4330 = vsel %vm2804, %v4298, %v3540
  %v4331 = vsel %vm2804, %v4299, %v3542
  %v4332 = vsel %vm2804, %v4300, %v3544
  %v4333 = vsel %vm2804, %v4301, %v3546
  %v4334 = vsel %vm2804, %v4302, %v3548
  %v4335 = vsel %vm2804, %v4303, %v3550
  %v4336 = vsel %vm2804, %v4304, %v3552
  %v4337 = vsel %vm2804, %v4305, %v3554
  %v4338 = vsel %vm2804, %v4306, %v3556
  %v4339 = vsel %vm2804, %v4307, %v3558
  %v4340 = vsel %vm2804, %v4308, %v3560
  %v4341 = vsel %vm2804, %v4309, %v3562
  %v4342 = vsel %vm2804, %v4310, %v3564
  %v4343 = vsel %vm2804, %v4311, %v3566
  %v4344 = vsel %vm2804, %v4312, %v3568
  %v4345 = vsel %vm2804, %v4313, %v3570
  %v4346 = vsel %vm2804, %v4314, %v3572
  %v4347 = vsel %vm2804, %v4315, %v3574
  %v4348 = vsel %vm2804, %v4316, %v3576
  %v4349 = vsel %vm2804, %v4317, %v3578
  %v4350 = vsel %vm2804, %v4318, %v3580
  %v4351 = vsel %vm2804, %v4319, %v3582
  %v4352 = vsel %vm2804, %v4320, %v3584
  %v4353 = vsel %vm2837, %v4321, %v3650
  %v4354 = vsel %vm2837, %v4322, %v3652
  %v4355 = vsel %vm2837, %v4323, %v3654
  %v4356 = vsel %vm2837, %v4324, %v3656
  %v4357 = vsel %vm2837, %v4325, %v3658
  %v4358 = vsel %vm2837, %v4326, %v3660
  %v4359 = vsel %vm2837, %v4327, %v3662
  %v4360 = vsel %vm2837, %v4328, %v3664
  %v4361 = vsel %vm2837, %v4329, %v3666
  %v4362 = vsel %vm2837, %v4330, %v3668
  %v4363 = vsel %vm2837, %v4331, %v3670
  %v4364 = vsel %vm2837, %v4332, %v3672
  %v4365 = vsel %vm2837, %v4333, %v3674
  %v4366 = vsel %vm2837, %v4334, %v3676
  %v4367 = vsel %vm2837, %v4335, %v3678
  %v4368 = vsel %vm2837, %v4336, %v3680
  %v4369 = vsel %vm2837, %v4337, %v3682
  %v4370 = vsel %vm2837, %v4338, %v3684
  %v4371 = vsel %vm2837, %v4339, %v3686
  %v4372 = vsel %vm2837, %v4340, %v3688
  %v4373 = vsel %vm2837, %v4341, %v3690
  %v4374 = vsel %vm2837, %v4342, %v3692
  %v4375 = vsel %vm2837, %v4343, %v3694
  %v4376 = vsel %vm2837, %v4344, %v3696
  %v4377 = vsel %vm2837, %v4345, %v3698
  %v4378 = vsel %vm2837, %v4346, %v3700
  %v4379 = vsel %vm2837, %v4347, %v3702
  %v4380 = vsel %vm2837, %v4348, %v3704
  %v4381 = vsel %vm2837, %v4349, %v3706
  %v4382 = vsel %vm2837, %v4350, %v3708
  %v4383 = vsel %vm2837, %v4351, %v3710
  %v4384 = vsel %vm2837, %v4352, %v3712
  %v4385 = vsel %vm2870, %v4353, %v3778
  %v4386 = vsel %vm2870, %v4354, %v3780
  %v4387 = vsel %vm2870, %v4355, %v3782
  %v4388 = vsel %vm2870, %v4356, %v3784
  %v4389 = vsel %vm2870, %v4357, %v3786
  %v4390 = vsel %vm2870, %v4358, %v3788
  %v4391 = vsel %vm2870, %v4359, %v3790
  %v4392 = vsel %vm2870, %v4360, %v3792
  %v4393 = vsel %vm2870, %v4361, %v3794
  %v4394 = vsel %vm2870, %v4362, %v3796
  %v4395 = vsel %vm2870, %v4363, %v3798
  %v4396 = vsel %vm2870, %v4364, %v3800
  %v4397 = vsel %vm2870, %v4365, %v3802
  %v4398 = vsel %vm2870, %v4366, %v3804
  %v4399 = vsel %vm2870, %v4367, %v3806
  %v4400 = vsel %vm2870, %v4368, %v3808
  %v4401 = vsel %vm2870, %v4369, %v3810
  %v4402 = vsel %vm2870, %v4370, %v3812
  %v4403 = vsel %vm2870, %v4371, %v3814
  %v4404 = vsel %vm2870, %v4372, %v3816
  %v4405 = vsel %vm2870, %v4373, %v3818
  %v4406 = vsel %vm2870, %v4374, %v3820
  %v4407 = vsel %vm2870, %v4375, %v3822
  %v4408 = vsel %vm2870, %v4376, %v3824
  %v4409 = vsel %vm2870, %v4377, %v3826
  %v4410 = vsel %vm2870, %v4378, %v3828
  %v4411 = vsel %vm2870, %v4379, %v3830
  %v4412 = vsel %vm2870, %v4380, %v3832
  %v4413 = vsel %vm2870, %v4381, %v3834
  %v4414 = vsel %vm2870, %v4382, %v3836
  %v4415 = vsel %vm2870, %v4383, %v3838
  %v4416 = vsel %vm2870, %v4384, %v3840
  %v4417 = vsel %vm2903, %v4385, %v3906
  %v4418 = vsel %vm2903, %v4386, %v3908
  %v4419 = vsel %vm2903, %v4387, %v3910
  %v4420 = vsel %vm2903, %v4388, %v3912
  %v4421 = vsel %vm2903, %v4389, %v3914
  %v4422 = vsel %vm2903, %v4390, %v3916
  %v4423 = vsel %vm2903, %v4391, %v3918
  %v4424 = vsel %vm2903, %v4392, %v3920
  %v4425 = vsel %vm2903, %v4393, %v3922
  %v4426 = vsel %vm2903, %v4394, %v3924
  %v4427 = vsel %vm2903, %v4395, %v3926
  %v4428 = vsel %vm2903, %v4396, %v3928
  %v4429 = vsel %vm2903, %v4397, %v3930
  %v4430 = vsel %vm2903, %v4398, %v3932
  %v4431 = vsel %vm2903, %v4399, %v3934
  %v4432 = vsel %vm2903, %v4400, %v3936
  %v4433 = vsel %vm2903, %v4401, %v3938
  %v4434 = vsel %vm2903, %v4402, %v3940
  %v4435 = vsel %vm2903, %v4403, %v3942
  %v4436 = vsel %vm2903, %v4404, %v3944
  %v4437 = vsel %vm2903, %v4405, %v3946
  %v4438 = vsel %vm2903, %v4406, %v3948
  %v4439 = vsel %vm2903, %v4407, %v3950
  %v4440 = vsel %vm2903, %v4408, %v3952
  %v4441 = vsel %vm2903, %v4409, %v3954
  %v4442 = vsel %vm2903, %v4410, %v3956
  %v4443 = vsel %vm2903, %v4411, %v3958
  %v4444 = vsel %vm2903, %v4412, %v3960
  %v4445 = vsel %vm2903, %v4413, %v3962
  %v4446 = vsel %vm2903, %v4414, %v3964
  %v4447 = vsel %vm2903, %v4415, %v3966
  %v4448 = vsel %vm2903, %v4416, %v3968
  %v4449 = vsel %vm2936, %v4417, %v4034
  %v4450 = vsel %vm2936, %v4418, %v4036
  %v4451 = vsel %vm2936, %v4419, %v4038
  %v4452 = vsel %vm2936, %v4420, %v4040
  %v4453 = vsel %vm2936, %v4421, %v4042
  %v4454 = vsel %vm2936, %v4422, %v4044
  %v4455 = vsel %vm2936, %v4423, %v4046
  %v4456 = vsel %vm2936, %v4424, %v4048
  %v4457 = vsel %vm2936, %v4425, %v4050
  %v4458 = vsel %vm2936, %v4426, %v4052
  %v4459 = vsel %vm2936, %v4427, %v4054
  %v4460 = vsel %vm2936, %v4428, %v4056
  %v4461 = vsel %vm2936, %v4429, %v4058
  %v4462 = vsel %vm2936, %v4430, %v4060
  %v4463 = vsel %vm2936, %v4431, %v4062
  %v4464 = vsel %vm2936, %v4432, %v4064
  %v4465 = vsel %vm2936, %v4433, %v4066
  %v4466 = vsel %vm2936, %v4434, %v4068
  %v4467 = vsel %vm2936, %v4435, %v4070
  %v4468 = vsel %vm2936, %v4436, %v4072
  %v4469 = vsel %vm2936, %v4437, %v4074
  %v4470 = vsel %vm2936, %v4438, %v4076
  %v4471 = vsel %vm2936, %v4439, %v4078
  %v4472 = vsel %vm2936, %v4440, %v4080
  %v4473 = vsel %vm2936, %v4441, %v4082
  %v4474 = vsel %vm2936, %v4442, %v4084
  %v4475 = vsel %vm2936, %v4443, %v4086
  %v4476 = vsel %vm2936, %v4444, %v4088
  %v4477 = vsel %vm2936, %v4445, %v4090
  %v4478 = vsel %vm2936, %v4446, %v4092
  %v4479 = vsel %vm2936, %v4447, %v4094
  %v4480 = vsel %vm2936, %v4448, %v4096
  %v4481 = vsel %vm2969, %v4449, %v4162
  %v4482 = vsel %vm2969, %v4450, %v4164
  %v4483 = vsel %vm2969, %v4451, %v4166
  %v4484 = vsel %vm2969, %v4452, %v4168
  %v4485 = vsel %vm2969, %v4453, %v4170
  %v4486 = vsel %vm2969, %v4454, %v4172
  %v4487 = vsel %vm2969, %v4455, %v4174
  %v4488 = vsel %vm2969, %v4456, %v4176
  %v4489 = vsel %vm2969, %v4457, %v4178
  %v4490 = vsel %vm2969, %v4458, %v4180
  %v4491 = vsel %vm2969, %v4459, %v4182
  %v4492 = vsel %vm2969, %v4460, %v4184
  %v4493 = vsel %vm2969, %v4461, %v4186
  %v4494 = vsel %vm2969, %v4462, %v4188
  %v4495 = vsel %vm2969, %v4463, %v4190
  %v4496 = vsel %vm2969, %v4464, %v4192
  %v4497 = vsel %vm2969, %v4465, %v4194
  %v4498 = vsel %vm2969, %v4466, %v4196
  %v4499 = vsel %vm2969, %v4467, %v4198
  %v4500 = vsel %vm2969, %v4468, %v4200
  %v4501 = vsel %vm2969, %v4469, %v4202
  %v4502 = vsel %vm2969, %v4470, %v4204
  %v4503 = vsel %vm2969, %v4471, %v4206
  %v4504 = vsel %vm2969, %v4472, %v4208
  %v4505 = vsel %vm2969, %v4473, %v4210
  %v4506 = vsel %vm2969, %v4474, %v4212
  %v4507 = vsel %vm2969, %v4475, %v4214
  %v4508 = vsel %vm2969, %v4476, %v4216
  %v4509 = vsel %vm2969, %v4477, %v4218
  %v4510 = vsel %vm2969, %v4478, %v4220
  %v4511 = vsel %vm2969, %v4479, %v4222
  %v4512 = vsel %vm2969, %v4480, %v4224
  %4545 = vrot.lane.b32.xlu0 %v4481, 64
  %v4546 = vpop.permute.xlu0 %4545
  %4547 = vrot.lane.b32.xlu0 %v4482, 64
  %v4548 = vpop.permute.xlu0 %4547
  %4549 = vrot.lane.b32.xlu0 %v4483, 64
  %v4550 = vpop.permute.xlu0 %4549
  %4551 = vrot.lane.b32.xlu0 %v4484, 64
  %v4552 = vpop.permute.xlu0 %4551
  %4553 = vrot.lane.b32.xlu0 %v4485, 64
  %v4554 = vpop.permute.xlu0 %4553
  %4555 = vrot.lane.b32.xlu0 %v4486, 64
  %v4556 = vpop.permute.xlu0 %4555
  %4557 = vrot.lane.b32.xlu0 %v4487, 64
  %v4558 = vpop.permute.xlu0 %4557
  %4559 = vrot.lane.b32.xlu0 %v4488, 64
  %v4560 = vpop.permute.xlu0 %4559
  %4561 = vrot.lane.b32.xlu0 %v4489, 64
  %v4562 = vpop.permute.xlu0 %4561
  %4563 = vrot.lane.b32.xlu0 %v4490, 64
  %v4564 = vpop.permute.xlu0 %4563
  %4565 = vrot.lane.b32.xlu0 %v4491, 64
  %v4566 = vpop.permute.xlu0 %4565
  %4567 = vrot.lane.b32.xlu0 %v4492, 64
  %v4568 = vpop.permute.xlu0 %4567
  %4569 = vrot.lane.b32.xlu0 %v4493, 64
  %v4570 = vpop.permute.xlu0 %4569
  %4571 = vrot.lane.b32.xlu0 %v4494, 64
  %v4572 = vpop.permute.xlu0 %4571
  %4573 = vrot.lane.b32.xlu0 %v4495, 64
  %v4574 = vpop.permute.xlu0 %4573
  %4575 = vrot.lane.b32.xlu0 %v4496, 64
  %v4576 = vpop.permute.xlu0 %4575
  %4577 = vrot.lane.b32.xlu0 %v4497, 64
  %v4578 = vpop.permute.xlu0 %4577
  %4579 = vrot.lane.b32.xlu0 %v4498, 64
  %v4580 = vpop.permute.xlu0 %4579
  %4581 = vrot.lane.b32.xlu0 %v4499, 64
  %v4582 = vpop.permute.xlu0 %4581
  %4583 = vrot.lane.b32.xlu0 %v4500, 64
  %v4584 = vpop.permute.xlu0 %4583
  %4585 = vrot.lane.b32.xlu0 %v4501, 64
  %v4586 = vpop.permute.xlu0 %4585
  %4587 = vrot.lane.b32.xlu0 %v4502, 64
  %v4588 = vpop.permute.xlu0 %4587
  %4589 = vrot.lane.b32.xlu0 %v4503, 64
  %v4590 = vpop.permute.xlu0 %4589
  %4591 = vrot.lane.b32.xlu0 %v4504, 64
  %v4592 = vpop.permute.xlu0 %4591
  %4593 = vrot.lane.b32.xlu0 %v4505, 64
  %v4594 = vpop.permute.xlu0 %4593
  %4595 = vrot.lane.b32.xlu0 %v4506, 64
  %v4596 = vpop.permute.xlu0 %4595
  %4597 = vrot.lane.b32.xlu0 %v4507, 64
  %v4598 = vpop.permute.xlu0 %4597
  %4599 = vrot.lane.b32.xlu0 %v4508, 64
  %v4600 = vpop.permute.xlu0 %4599
  %4601 = vrot.lane.b32.xlu0 %v4509, 64
  %v4602 = vpop.permute.xlu0 %4601
  %4603 = vrot.lane.b32.xlu0 %v4510, 64
  %v4604 = vpop.permute.xlu0 %4603
  %4605 = vrot.lane.b32.xlu0 %v4511, 64
  %v4606 = vpop.permute.xlu0 %4605
  %4607 = vrot.lane.b32.xlu0 %v4512, 64
  %v4608 = vpop.permute.xlu0 %4607
  %vm4641 = vcmask 523264
  %v4642 = vsel %vm4641, %v3201, %v4546
  %v4643 = vsel %vm4641, %v3202, %v4548
  %v4644 = vsel %vm4641, %v3203, %v4550
  %v4645 = vsel %vm4641, %v3204, %v4552
  %v4646 = vsel %vm4641, %v3205, %v4554
  %v4647 = vsel %vm4641, %v3206, %v4556
  %v4648 = vsel %vm4641, %v3207, %v4558
  %v4649 = vsel %vm4641, %v3208, %v4560
  %v4650 = vsel %vm4641, %v3209, %v4562
  %v4651 = vsel %vm4641, %v3210, %v4564
  %v4652 = vsel %vm4641, %v3211, %v4566
  %v4653 = vsel %vm4641, %v3212, %v4568
  %v4654 = vsel %vm4641, %v3213, %v4570
  %v4655 = vsel %vm4641, %v3214, %v4572
  %v4656 = vsel %vm4641, %v3215, %v4574
  %v4657 = vsel %vm4641, %v3216, %v4576
  %v4658 = vsel %vm4641, %v3217, %v4578
  %v4659 = vsel %vm4641, %v3218, %v4580
  %v4660 = vsel %vm4641, %v3219, %v4582
  %v4661 = vsel %vm4641, %v3220, %v4584
  %v4662 = vsel %vm4641, %v3221, %v4586
  %v4663 = vsel %vm4641, %v3222, %v4588
  %v4664 = vsel %vm4641, %v3223, %v4590
  %v4665 = vsel %vm4641, %v3224, %v4592
  %v4666 = vsel %vm4641, %v3225, %v4594
  %v4667 = vsel %vm4641, %v3226, %v4596
  %v4668 = vsel %vm4641, %v3227, %v4598
  %v4669 = vsel %vm4641, %v3228, %v4600
  %v4670 = vsel %vm4641, %v3229, %v4602
  %v4671 = vsel %vm4641, %v3230, %v4604
  %v4672 = vsel %vm4641, %v3231, %v4606
  %v4673 = vsel %vm4641, %v3232, %v4608
  %s4674 = scalar_lea.vmem %s0, 480
  %v4675 = vld [vmem:[%s4674] sm:$0xff]
  %v4676 = vld [vmem:[%s4674 + $0x8] sm:$0xff]
  %v4677 = vld [vmem:[%s4674 + $0x18] sm:$0xff]
  %v4678 = vld [vmem:[%s4674 + $0x20] sm:$0xff]
  %v4679 = vld [vmem:[%s4674 + $0x30] sm:$0xff]
  %v4680 = vld [vmem:[%s4674 + $0x38] sm:$0xff]
  %v4681 = vld [vmem:[%s4674 + $0x48] sm:$0xff]
  %v4682 = vld [vmem:[%s4674 + $0x50] sm:$0xff]
  %v4683 = vld [vmem:[%s4674 + $0x60] sm:$0xff]
  %v4684 = vld [vmem:[%s4674 + $0x68] sm:$0xff]
  %v4685 = vld [vmem:[%s4674 + $0x78] sm:$0xff]
  %v4686 = vld [vmem:[%s4674 + $0x80] sm:$0xff]
  %v4687 = vld [vmem:[%s4674 + $0x90] sm:$0xff]
  %v4688 = vld [vmem:[%s4674 + $0x98] sm:$0xff]
  %v4689 = vld [vmem:[%s4674 + $0xa8] sm:$0xff]
  %v4690 = vld [vmem:[%s4674 + $0xb0] sm:$0xff]
  %v4691 = vld [vmem:[%s4674 + $0xc0] sm:$0xff]
  %v4692 = vld [vmem:[%s4674 + $0xc8] sm:$0xff]
  %v4693 = vld [vmem:[%s4674 + $0xd8] sm:$0xff]
  %v4694 = vld [vmem:[%s4674 + $0xe0] sm:$0xff]
  %v4695 = vld [vmem:[%s4674 + $0xf0] sm:$0xff]
  %v4696 = vld [vmem:[%s4674 + $0xf8] sm:$0xff]
  %v4697 = vld [vmem:[%s4674 + $0x108] sm:$0xff]
  %v4698 = vld [vmem:[%s4674 + $0x110] sm:$0xff]
  %v4699 = vld [vmem:[%s4674 + $0x120] sm:$0xff]
  %v4700 = vld [vmem:[%s4674 + $0x128] sm:$0xff]
  %v4701 = vld [vmem:[%s4674 + $0x138] sm:$0xff]
  %v4702 = vld [vmem:[%s4674 + $0x140] sm:$0xff]
  %v4703 = vld [vmem:[%s4674 + $0x150] sm:$0xff]
  %v4704 = vld [vmem:[%s4674 + $0x158] sm:$0xff]
  %v4705 = vld [vmem:[%s4674 + $0x168] sm:$0xff]
  %v4706 = vld [vmem:[%s4674 + $0x170] sm:$0xff]
  %v4707 = vld [vmem:[%s4674 + $0x1] sm:$0xff]
  %v4708 = vld [vmem:[%s4674 + $0x9] sm:$0xff]
  %v4709 = vld [vmem:[%s4674 + $0x19] sm:$0xff]
  %v4710 = vld [vmem:[%s4674 + $0x21] sm:$0xff]
  %v4711 = vld [vmem:[%s4674 + $0x31] sm:$0xff]
  %v4712 = vld [vmem:[%s4674 + $0x39] sm:$0xff]
  %v4713 = vld [vmem:[%s4674 + $0x49] sm:$0xff]
  %v4714 = vld [vmem:[%s4674 + $0x51] sm:$0xff]
  %v4715 = vld [vmem:[%s4674 + $0x61] sm:$0xff]
  %v4716 = vld [vmem:[%s4674 + $0x69] sm:$0xff]
  %v4717 = vld [vmem:[%s4674 + $0x79] sm:$0xff]
  %v4718 = vld [vmem:[%s4674 + $0x81] sm:$0xff]
  %v4719 = vld [vmem:[%s4674 + $0x91] sm:$0xff]
  %v4720 = vld [vmem:[%s4674 + $0x99] sm:$0xff]
  %v4721 = vld [vmem:[%s4674 + $0xa9] sm:$0xff]
  %v4722 = vld [vmem:[%s4674 + $0xb1] sm:$0xff]
  %v4723 = vld [vmem:[%s4674 + $0xc1] sm:$0xff]
  %v4724 = vld [vmem:[%s4674 + $0xc9] sm:$0xff]
  %v4725 = vld [vmem:[%s4674 + $0xd9] sm:$0xff]
  %v4726 = vld [vmem:[%s4674 + $0xe1] sm:$0xff]
  %v4727 = vld [vmem:[%s4674 + $0xf1] sm:$0xff]
  %v4728 = vld [vmem:[%s4674 + $0xf9] sm:$0xff]
  %v4729 = vld [vmem:[%s4674 + $0x109] sm:$0xff]
  %v4730 = vld [vmem:[%s4674 + $0x111] sm:$0xff]
  %v4731 = vld [vmem:[%s4674 + $0x121] sm:$0xff]
  %v4732 = vld [vmem:[%s4674 + $0x129] sm:$0xff]
  %v4733 = vld [vmem:[%s4674 + $0x139] sm:$0xff]
  %v4734 = vld [vmem:[%s4674 + $0x141] sm:$0xff]
  %v4735 = vld [vmem:[%s4674 + $0x151] sm:$0xff]
  %v4736 = vld [vmem:[%s4674 + $0x159] sm:$0xff]
  %v4737 = vld [vmem:[%s4674 + $0x169] sm:$0xff]
  %v4738 = vld [vmem:[%s4674 + $0x171] sm:$0xff]
  %v4739 = vld [vmem:[%s4674 + $0x2] sm:$0xff]
  %v4740 = vld [vmem:[%s4674 + $0xa] sm:$0xff]
  %v4741 = vld [vmem:[%s4674 + $0x1a] sm:$0xff]
  %v4742 = vld [vmem:[%s4674 + $0x22] sm:$0xff]
  %v4743 = vld [vmem:[%s4674 + $0x32] sm:$0xff]
  %v4744 = vld [vmem:[%s4674 + $0x3a] sm:$0xff]
  %v4745 = vld [vmem:[%s4674 + $0x4a] sm:$0xff]
  %v4746 = vld [vmem:[%s4674 + $0x52] sm:$0xff]
  %v4747 = vld [vmem:[%s4674 + $0x62] sm:$0xff]
  %v4748 = vld [vmem:[%s4674 + $0x6a] sm:$0xff]
  %v4749 = vld [vmem:[%s4674 + $0x7a] sm:$0xff]
  %v4750 = vld [vmem:[%s4674 + $0x82] sm:$0xff]
  %v4751 = vld [vmem:[%s4674 + $0x92] sm:$0xff]
  %v4752 = vld [vmem:[%s4674 + $0x9a] sm:$0xff]
  %v4753 = vld [vmem:[%s4674 + $0xaa] sm:$0xff]
  %v4754 = vld [vmem:[%s4674 + $0xb2] sm:$0xff]
  %v4755 = vld [vmem:[%s4674 + $0xc2] sm:$0xff]
  %v4756 = vld [vmem:[%s4674 + $0xca] sm:$0xff]
  %v4757 = vld [vmem:[%s4674 + $0xda] sm:$0xff]
  %v4758 = vld [vmem:[%s4674 + $0xe2] sm:$0xff]
  %v4759 = vld [vmem:[%s4674 + $0xf2] sm:$0xff]
  %v4760 = vld [vmem:[%s4674 + $0xfa] sm:$0xff]
  %v4761 = vld [vmem:[%s4674 + $0x10a] sm:$0xff]
  %v4762 = vld [vmem:[%s4674 + $0x112] sm:$0xff]
  %v4763 = vld [vmem:[%s4674 + $0x122] sm:$0xff]
  %v4764 = vld [vmem:[%s4674 + $0x12a] sm:$0xff]
  %v4765 = vld [vmem:[%s4674 + $0x13a] sm:$0xff]
  %v4766 = vld [vmem:[%s4674 + $0x142] sm:$0xff]
  %v4767 = vld [vmem:[%s4674 + $0x152] sm:$0xff]
  %v4768 = vld [vmem:[%s4674 + $0x15a] sm:$0xff]
  %v4769 = vld [vmem:[%s4674 + $0x16a] sm:$0xff]
  %v4770 = vld [vmem:[%s4674 + $0x172] sm:$0xff]
  %v4771 = vld [vmem:[%s4674 + $0x3] sm:$0xff]
  %v4772 = vld [vmem:[%s4674 + $0xb] sm:$0xff]
  %v4773 = vld [vmem:[%s4674 + $0x1b] sm:$0xff]
  %v4774 = vld [vmem:[%s4674 + $0x23] sm:$0xff]
  %v4775 = vld [vmem:[%s4674 + $0x33] sm:$0xff]
  %v4776 = vld [vmem:[%s4674 + $0x3b] sm:$0xff]
  %v4777 = vld [vmem:[%s4674 + $0x4b] sm:$0xff]
  %v4778 = vld [vmem:[%s4674 + $0x53] sm:$0xff]
  %v4779 = vld [vmem:[%s4674 + $0x63] sm:$0xff]
  %v4780 = vld [vmem:[%s4674 + $0x6b] sm:$0xff]
  %v4781 = vld [vmem:[%s4674 + $0x7b] sm:$0xff]
  %v4782 = vld [vmem:[%s4674 + $0x83] sm:$0xff]
  %v4783 = vld [vmem:[%s4674 + $0x93] sm:$0xff]
  %v4784 = vld [vmem:[%s4674 + $0x9b] sm:$0xff]
  %v4785 = vld [vmem:[%s4674 + $0xab] sm:$0xff]
  %v4786 = vld [vmem:[%s4674 + $0xb3] sm:$0xff]
  %v4787 = vld [vmem:[%s4674 + $0xc3] sm:$0xff]
  %v4788 = vld [vmem:[%s4674 + $0xcb] sm:$0xff]
  %v4789 = vld [vmem:[%s4674 + $0xdb] sm:$0xff]
  %v4790 = vld [vmem:[%s4674 + $0xe3] sm:$0xff]
  %v4791 = vld [vmem:[%s4674 + $0xf3] sm:$0xff]
  %v4792 = vld [vmem:[%s4674 + $0xfb] sm:$0xff]
  %v4793 = vld [vmem:[%s4674 + $0x10b] sm:$0xff]
  %v4794 = vld [vmem:[%s4674 + $0x113] sm:$0xff]
  %v4795 = vld [vmem:[%s4674 + $0x123] sm:$0xff]
  %v4796 = vld [vmem:[%s4674 + $0x12b] sm:$0xff]
  %v4797 = vld [vmem:[%s4674 + $0x13b] sm:$0xff]
  %v4798 = vld [vmem:[%s4674 + $0x143] sm:$0xff]
  %v4799 = vld [vmem:[%s4674 + $0x153] sm:$0xff]
  %v4800 = vld [vmem:[%s4674 + $0x15b] sm:$0xff]
  %v4801 = vld [vmem:[%s4674 + $0x16b] sm:$0xff]
  %v4802 = vld [vmem:[%s4674 + $0x173] sm:$0xff]
  %v4803 = vld [vmem:[%s4674 + $0x4] sm:$0xff]
  %v4804 = vld [vmem:[%s4674 + $0xc] sm:$0xff]
  %v4805 = vld [vmem:[%s4674 + $0x1c] sm:$0xff]
  %v4806 = vld [vmem:[%s4674 + $0x24] sm:$0xff]
  %v4807 = vld [vmem:[%s4674 + $0x34] sm:$0xff]
  %v4808 = vld [vmem:[%s4674 + $0x3c] sm:$0xff]
  %v4809 = vld [vmem:[%s4674 + $0x4c] sm:$0xff]
  %v4810 = vld [vmem:[%s4674 + $0x54] sm:$0xff]
  %v4811 = vld [vmem:[%s4674 + $0x64] sm:$0xff]
  %v4812 = vld [vmem:[%s4674 + $0x6c] sm:$0xff]
  %v4813 = vld [vmem:[%s4674 + $0x7c] sm:$0xff]
  %v4814 = vld [vmem:[%s4674 + $0x84] sm:$0xff]
  %v4815 = vld [vmem:[%s4674 + $0x94] sm:$0xff]
  %v4816 = vld [vmem:[%s4674 + $0x9c] sm:$0xff]
  %v4817 = vld [vmem:[%s4674 + $0xac] sm:$0xff]
  %v4818 = vld [vmem:[%s4674 + $0xb4] sm:$0xff]
  %v4819 = vld [vmem:[%s4674 + $0xc4] sm:$0xff]
  %v4820 = vld [vmem:[%s4674 + $0xcc] sm:$0xff]
  %v4821 = vld [vmem:[%s4674 + $0xdc] sm:$0xff]
  %v4822 = vld [vmem:[%s4674 + $0xe4] sm:$0xff]
  %v4823 = vld [vmem:[%s4674 + $0xf4] sm:$0xff]
  %v4824 = vld [vmem:[%s4674 + $0xfc] sm:$0xff]
  %v4825 = vld [vmem:[%s4674 + $0x10c] sm:$0xff]
  %v4826 = vld [vmem:[%s4674 + $0x114] sm:$0xff]
  %v4827 = vld [vmem:[%s4674 + $0x124] sm:$0xff]
  %v4828 = vld [vmem:[%s4674 + $0x12c] sm:$0xff]
  %v4829 = vld [vmem:[%s4674 + $0x13c] sm:$0xff]
  %v4830 = vld [vmem:[%s4674 + $0x144] sm:$0xff]
  %v4831 = vld [vmem:[%s4674 + $0x154] sm:$0xff]
  %v4832 = vld [vmem:[%s4674 + $0x15c] sm:$0xff]
  %v4833 = vld [vmem:[%s4674 + $0x16c] sm:$0xff]
  %v4834 = vld [vmem:[%s4674 + $0x174] sm:$0xff]
  %s4835 = scalar_lea.vmem %s0, 504
  %v4836 = vld [vmem:[%s4835] sm:$0xff]
  %v4837 = vld [vmem:[%s4835 + $0x8] sm:$0xff]
  %v4838 = vld [vmem:[%s4835 + $0x18] sm:$0xff]
  %v4839 = vld [vmem:[%s4835 + $0x20] sm:$0xff]
  %v4840 = vld [vmem:[%s4835 + $0x30] sm:$0xff]
  %v4841 = vld [vmem:[%s4835 + $0x38] sm:$0xff]
  %v4842 = vld [vmem:[%s4835 + $0x48] sm:$0xff]
  %v4843 = vld [vmem:[%s4835 + $0x50] sm:$0xff]
  %v4844 = vld [vmem:[%s4835 + $0x60] sm:$0xff]
  %v4845 = vld [vmem:[%s4835 + $0x68] sm:$0xff]
  %v4846 = vld [vmem:[%s4835 + $0x78] sm:$0xff]
  %v4847 = vld [vmem:[%s4835 + $0x80] sm:$0xff]
  %v4848 = vld [vmem:[%s4835 + $0x90] sm:$0xff]
  %v4849 = vld [vmem:[%s4835 + $0x98] sm:$0xff]
  %v4850 = vld [vmem:[%s4835 + $0xa8] sm:$0xff]
  %v4851 = vld [vmem:[%s4835 + $0xb0] sm:$0xff]
  %v4852 = vld [vmem:[%s4835 + $0xc0] sm:$0xff]
  %v4853 = vld [vmem:[%s4835 + $0xc8] sm:$0xff]
  %v4854 = vld [vmem:[%s4835 + $0xd8] sm:$0xff]
  %v4855 = vld [vmem:[%s4835 + $0xe0] sm:$0xff]
  %v4856 = vld [vmem:[%s4835 + $0xf0] sm:$0xff]
  %v4857 = vld [vmem:[%s4835 + $0xf8] sm:$0xff]
  %v4858 = vld [vmem:[%s4835 + $0x108] sm:$0xff]
  %v4859 = vld [vmem:[%s4835 + $0x110] sm:$0xff]
  %v4860 = vld [vmem:[%s4835 + $0x120] sm:$0xff]
  %v4861 = vld [vmem:[%s4835 + $0x128] sm:$0xff]
  %v4862 = vld [vmem:[%s4835 + $0x138] sm:$0xff]
  %v4863 = vld [vmem:[%s4835 + $0x140] sm:$0xff]
  %v4864 = vld [vmem:[%s4835 + $0x150] sm:$0xff]
  %v4865 = vld [vmem:[%s4835 + $0x158] sm:$0xff]
  %v4866 = vld [vmem:[%s4835 + $0x168] sm:$0xff]
  %v4867 = vld [vmem:[%s4835 + $0x170] sm:$0xff]
  %v4868 = vld [vmem:[%s4835 + $0x1] sm:$0xff]
  %v4869 = vld [vmem:[%s4835 + $0x9] sm:$0xff]
  %v4870 = vld [vmem:[%s4835 + $0x19] sm:$0xff]
  %v4871 = vld [vmem:[%s4835 + $0x21] sm:$0xff]
  %v4872 = vld [vmem:[%s4835 + $0x31] sm:$0xff]
  %v4873 = vld [vmem:[%s4835 + $0x39] sm:$0xff]
  %v4874 = vld [vmem:[%s4835 + $0x49] sm:$0xff]
  %v4875 = vld [vmem:[%s4835 + $0x51] sm:$0xff]
  %v4876 = vld [vmem:[%s4835 + $0x61] sm:$0xff]
  %v4877 = vld [vmem:[%s4835 + $0x69] sm:$0xff]
  %v4878 = vld [vmem:[%s4835 + $0x79] sm:$0xff]
  %v4879 = vld [vmem:[%s4835 + $0x81] sm:$0xff]
  %v4880 = vld [vmem:[%s4835 + $0x91] sm:$0xff]
  %v4881 = vld [vmem:[%s4835 + $0x99] sm:$0xff]
  %v4882 = vld [vmem:[%s4835 + $0xa9] sm:$0xff]
  %v4883 = vld [vmem:[%s4835 + $0xb1] sm:$0xff]
  %v4884 = vld [vmem:[%s4835 + $0xc1] sm:$0xff]
  %v4885 = vld [vmem:[%s4835 + $0xc9] sm:$0xff]
  %v4886 = vld [vmem:[%s4835 + $0xd9] sm:$0xff]
  %v4887 = vld [vmem:[%s4835 + $0xe1] sm:$0xff]
  %v4888 = vld [vmem:[%s4835 + $0xf1] sm:$0xff]
  %v4889 = vld [vmem:[%s4835 + $0xf9] sm:$0xff]
  %v4890 = vld [vmem:[%s4835 + $0x109] sm:$0xff]
  %v4891 = vld [vmem:[%s4835 + $0x111] sm:$0xff]
  %v4892 = vld [vmem:[%s4835 + $0x121] sm:$0xff]
  %v4893 = vld [vmem:[%s4835 + $0x129] sm:$0xff]
  %v4894 = vld [vmem:[%s4835 + $0x139] sm:$0xff]
  %v4895 = vld [vmem:[%s4835 + $0x141] sm:$0xff]
  %v4896 = vld [vmem:[%s4835 + $0x151] sm:$0xff]
  %v4897 = vld [vmem:[%s4835 + $0x159] sm:$0xff]
  %v4898 = vld [vmem:[%s4835 + $0x169] sm:$0xff]
  %v4899 = vld [vmem:[%s4835 + $0x171] sm:$0xff]
  %v4900 = vld [vmem:[%s4835 + $0x2] sm:$0xff]
  %v4901 = vld [vmem:[%s4835 + $0xa] sm:$0xff]
  %v4902 = vld [vmem:[%s4835 + $0x1a] sm:$0xff]
  %v4903 = vld [vmem:[%s4835 + $0x22] sm:$0xff]
  %v4904 = vld [vmem:[%s4835 + $0x32] sm:$0xff]
  %v4905 = vld [vmem:[%s4835 + $0x3a] sm:$0xff]
  %v4906 = vld [vmem:[%s4835 + $0x4a] sm:$0xff]
  %v4907 = vld [vmem:[%s4835 + $0x52] sm:$0xff]
  %v4908 = vld [vmem:[%s4835 + $0x62] sm:$0xff]
  %v4909 = vld [vmem:[%s4835 + $0x6a] sm:$0xff]
  %v4910 = vld [vmem:[%s4835 + $0x7a] sm:$0xff]
  %v4911 = vld [vmem:[%s4835 + $0x82] sm:$0xff]
  %v4912 = vld [vmem:[%s4835 + $0x92] sm:$0xff]
  %v4913 = vld [vmem:[%s4835 + $0x9a] sm:$0xff]
  %v4914 = vld [vmem:[%s4835 + $0xaa] sm:$0xff]
  %v4915 = vld [vmem:[%s4835 + $0xb2] sm:$0xff]
  %v4916 = vld [vmem:[%s4835 + $0xc2] sm:$0xff]
  %v4917 = vld [vmem:[%s4835 + $0xca] sm:$0xff]
  %v4918 = vld [vmem:[%s4835 + $0xda] sm:$0xff]
  %v4919 = vld [vmem:[%s4835 + $0xe2] sm:$0xff]
  %v4920 = vld [vmem:[%s4835 + $0xf2] sm:$0xff]
  %v4921 = vld [vmem:[%s4835 + $0xfa] sm:$0xff]
  %v4922 = vld [vmem:[%s4835 + $0x10a] sm:$0xff]
  %v4923 = vld [vmem:[%s4835 + $0x112] sm:$0xff]
  %v4924 = vld [vmem:[%s4835 + $0x122] sm:$0xff]
  %v4925 = vld [vmem:[%s4835 + $0x12a] sm:$0xff]
  %v4926 = vld [vmem:[%s4835 + $0x13a] sm:$0xff]
  %v4927 = vld [vmem:[%s4835 + $0x142] sm:$0xff]
  %v4928 = vld [vmem:[%s4835 + $0x152] sm:$0xff]
  %v4929 = vld [vmem:[%s4835 + $0x15a] sm:$0xff]
  %v4930 = vld [vmem:[%s4835 + $0x16a] sm:$0xff]
  %v4931 = vld [vmem:[%s4835 + $0x172] sm:$0xff]
  %v4932 = vld [vmem:[%s4835 + $0x3] sm:$0xff]
  %v4933 = vld [vmem:[%s4835 + $0xb] sm:$0xff]
  %v4934 = vld [vmem:[%s4835 + $0x1b] sm:$0xff]
  %v4935 = vld [vmem:[%s4835 + $0x23] sm:$0xff]
  %v4936 = vld [vmem:[%s4835 + $0x33] sm:$0xff]
  %v4937 = vld [vmem:[%s4835 + $0x3b] sm:$0xff]
  %v4938 = vld [vmem:[%s4835 + $0x4b] sm:$0xff]
  %v4939 = vld [vmem:[%s4835 + $0x53] sm:$0xff]
  %v4940 = vld [vmem:[%s4835 + $0x63] sm:$0xff]
  %v4941 = vld [vmem:[%s4835 + $0x6b] sm:$0xff]
  %v4942 = vld [vmem:[%s4835 + $0x7b] sm:$0xff]
  %v4943 = vld [vmem:[%s4835 + $0x83] sm:$0xff]
  %v4944 = vld [vmem:[%s4835 + $0x93] sm:$0xff]
  %v4945 = vld [vmem:[%s4835 + $0x9b] sm:$0xff]
  %v4946 = vld [vmem:[%s4835 + $0xab] sm:$0xff]
  %v4947 = vld [vmem:[%s4835 + $0xb3] sm:$0xff]
  %v4948 = vld [vmem:[%s4835 + $0xc3] sm:$0xff]
  %v4949 = vld [vmem:[%s4835 + $0xcb] sm:$0xff]
  %v4950 = vld [vmem:[%s4835 + $0xdb] sm:$0xff]
  %v4951 = vld [vmem:[%s4835 + $0xe3] sm:$0xff]
  %v4952 = vld [vmem:[%s4835 + $0xf3] sm:$0xff]
  %v4953 = vld [vmem:[%s4835 + $0xfb] sm:$0xff]
  %v4954 = vld [vmem:[%s4835 + $0x10b] sm:$0xff]
  %v4955 = vld [vmem:[%s4835 + $0x113] sm:$0xff]
  %v4956 = vld [vmem:[%s4835 + $0x123] sm:$0xff]
  %v4957 = vld [vmem:[%s4835 + $0x12b] sm:$0xff]
  %v4958 = vld [vmem:[%s4835 + $0x13b] sm:$0xff]
  %v4959 = vld [vmem:[%s4835 + $0x143] sm:$0xff]
  %v4960 = vld [vmem:[%s4835 + $0x153] sm:$0xff]
  %v4961 = vld [vmem:[%s4835 + $0x15b] sm:$0xff]
  %v4962 = vld [vmem:[%s4835 + $0x16b] sm:$0xff]
  %v4963 = vld [vmem:[%s4835 + $0x173] sm:$0xff]
  %v4964 = vld [vmem:[%s4835 + $0x4] sm:$0xff]
  %v4965 = vld [vmem:[%s4835 + $0xc] sm:$0xff]
  %v4966 = vld [vmem:[%s4835 + $0x1c] sm:$0xff]
  %v4967 = vld [vmem:[%s4835 + $0x24] sm:$0xff]
  %v4968 = vld [vmem:[%s4835 + $0x34] sm:$0xff]
  %v4969 = vld [vmem:[%s4835 + $0x3c] sm:$0xff]
  %v4970 = vld [vmem:[%s4835 + $0x4c] sm:$0xff]
  %v4971 = vld [vmem:[%s4835 + $0x54] sm:$0xff]
  %v4972 = vld [vmem:[%s4835 + $0x64] sm:$0xff]
  %v4973 = vld [vmem:[%s4835 + $0x6c] sm:$0xff]
  %v4974 = vld [vmem:[%s4835 + $0x7c] sm:$0xff]
  %v4975 = vld [vmem:[%s4835 + $0x84] sm:$0xff]
  %v4976 = vld [vmem:[%s4835 + $0x94] sm:$0xff]
  %v4977 = vld [vmem:[%s4835 + $0x9c] sm:$0xff]
  %v4978 = vld [vmem:[%s4835 + $0xac] sm:$0xff]
  %v4979 = vld [vmem:[%s4835 + $0xb4] sm:$0xff]
  %v4980 = vld [vmem:[%s4835 + $0xc4] sm:$0xff]
  %v4981 = vld [vmem:[%s4835 + $0xcc] sm:$0xff]
  %v4982 = vld [vmem:[%s4835 + $0xdc] sm:$0xff]
  %v4983 = vld [vmem:[%s4835 + $0xe4] sm:$0xff]
  %v4984 = vld [vmem:[%s4835 + $0xf4] sm:$0xff]
  %v4985 = vld [vmem:[%s4835 + $0xfc] sm:$0xff]
  %v4986 = vld [vmem:[%s4835 + $0x10c] sm:$0xff]
  %v4987 = vld [vmem:[%s4835 + $0x114] sm:$0xff]
  %v4988 = vld [vmem:[%s4835 + $0x124] sm:$0xff]
  %v4989 = vld [vmem:[%s4835 + $0x12c] sm:$0xff]
  %v4990 = vld [vmem:[%s4835 + $0x13c] sm:$0xff]
  %v4991 = vld [vmem:[%s4835 + $0x144] sm:$0xff]
  %v4992 = vld [vmem:[%s4835 + $0x154] sm:$0xff]
  %v4993 = vld [vmem:[%s4835 + $0x15c] sm:$0xff]
  %v4994 = vld [vmem:[%s4835 + $0x16c] sm:$0xff]
  %v4995 = vld [vmem:[%s4835 + $0x174] sm:$0xff]
  %s4996 = scalar_lea.vmem %s0, 528
  %v4997 = vld [vmem:[%s4996] sm:$0xff]
  %v4998 = vld [vmem:[%s4996 + $0x8] sm:$0xff]
  %v4999 = vld [vmem:[%s4996 + $0x18] sm:$0xff]
  %v5000 = vld [vmem:[%s4996 + $0x20] sm:$0xff]
  %v5001 = vld [vmem:[%s4996 + $0x30] sm:$0xff]
  %v5002 = vld [vmem:[%s4996 + $0x38] sm:$0xff]
  %v5003 = vld [vmem:[%s4996 + $0x48] sm:$0xff]
  %v5004 = vld [vmem:[%s4996 + $0x50] sm:$0xff]
  %v5005 = vld [vmem:[%s4996 + $0x60] sm:$0xff]
  %v5006 = vld [vmem:[%s4996 + $0x68] sm:$0xff]
  %v5007 = vld [vmem:[%s4996 + $0x78] sm:$0xff]
  %v5008 = vld [vmem:[%s4996 + $0x80] sm:$0xff]
  %v5009 = vld [vmem:[%s4996 + $0x90] sm:$0xff]
  %v5010 = vld [vmem:[%s4996 + $0x98] sm:$0xff]
  %v5011 = vld [vmem:[%s4996 + $0xa8] sm:$0xff]
  %v5012 = vld [vmem:[%s4996 + $0xb0] sm:$0xff]
  %v5013 = vld [vmem:[%s4996 + $0xc0] sm:$0xff]
  %v5014 = vld [vmem:[%s4996 + $0xc8] sm:$0xff]
  %v5015 = vld [vmem:[%s4996 + $0xd8] sm:$0xff]
  %v5016 = vld [vmem:[%s4996 + $0xe0] sm:$0xff]
  %v5017 = vld [vmem:[%s4996 + $0xf0] sm:$0xff]
  %v5018 = vld [vmem:[%s4996 + $0xf8] sm:$0xff]
  %v5019 = vld [vmem:[%s4996 + $0x108] sm:$0xff]
  %v5020 = vld [vmem:[%s4996 + $0x110] sm:$0xff]
  %v5021 = vld [vmem:[%s4996 + $0x120] sm:$0xff]
  %v5022 = vld [vmem:[%s4996 + $0x128] sm:$0xff]
  %v5023 = vld [vmem:[%s4996 + $0x138] sm:$0xff]
  %v5024 = vld [vmem:[%s4996 + $0x140] sm:$0xff]
  %v5025 = vld [vmem:[%s4996 + $0x150] sm:$0xff]
  %v5026 = vld [vmem:[%s4996 + $0x158] sm:$0xff]
  %v5027 = vld [vmem:[%s4996 + $0x168] sm:$0xff]
  %v5028 = vld [vmem:[%s4996 + $0x170] sm:$0xff]
  %v5029 = vld [vmem:[%s4996 + $0x1] sm:$0xff]
  %v5030 = vld [vmem:[%s4996 + $0x9] sm:$0xff]
  %v5031 = vld [vmem:[%s4996 + $0x19] sm:$0xff]
  %v5032 = vld [vmem:[%s4996 + $0x21] sm:$0xff]
  %v5033 = vld [vmem:[%s4996 + $0x31] sm:$0xff]
  %v5034 = vld [vmem:[%s4996 + $0x39] sm:$0xff]
  %v5035 = vld [vmem:[%s4996 + $0x49] sm:$0xff]
  %v5036 = vld [vmem:[%s4996 + $0x51] sm:$0xff]
  %v5037 = vld [vmem:[%s4996 + $0x61] sm:$0xff]
  %v5038 = vld [vmem:[%s4996 + $0x69] sm:$0xff]
  %v5039 = vld [vmem:[%s4996 + $0x79] sm:$0xff]
  %v5040 = vld [vmem:[%s4996 + $0x81] sm:$0xff]
  %v5041 = vld [vmem:[%s4996 + $0x91] sm:$0xff]
  %v5042 = vld [vmem:[%s4996 + $0x99] sm:$0xff]
  %v5043 = vld [vmem:[%s4996 + $0xa9] sm:$0xff]
  %v5044 = vld [vmem:[%s4996 + $0xb1] sm:$0xff]
  %v5045 = vld [vmem:[%s4996 + $0xc1] sm:$0xff]
  %v5046 = vld [vmem:[%s4996 + $0xc9] sm:$0xff]
  %v5047 = vld [vmem:[%s4996 + $0xd9] sm:$0xff]
  %v5048 = vld [vmem:[%s4996 + $0xe1] sm:$0xff]
  %v5049 = vld [vmem:[%s4996 + $0xf1] sm:$0xff]
  %v5050 = vld [vmem:[%s4996 + $0xf9] sm:$0xff]
  %v5051 = vld [vmem:[%s4996 + $0x109] sm:$0xff]
  %v5052 = vld [vmem:[%s4996 + $0x111] sm:$0xff]
  %v5053 = vld [vmem:[%s4996 + $0x121] sm:$0xff]
  %v5054 = vld [vmem:[%s4996 + $0x129] sm:$0xff]
  %v5055 = vld [vmem:[%s4996 + $0x139] sm:$0xff]
  %v5056 = vld [vmem:[%s4996 + $0x141] sm:$0xff]
  %v5057 = vld [vmem:[%s4996 + $0x151] sm:$0xff]
  %v5058 = vld [vmem:[%s4996 + $0x159] sm:$0xff]
  %v5059 = vld [vmem:[%s4996 + $0x169] sm:$0xff]
  %v5060 = vld [vmem:[%s4996 + $0x171] sm:$0xff]
  %v5061 = vld [vmem:[%s4996 + $0x2] sm:$0xff]
  %v5062 = vld [vmem:[%s4996 + $0xa] sm:$0xff]
  %v5063 = vld [vmem:[%s4996 + $0x1a] sm:$0xff]
  %v5064 = vld [vmem:[%s4996 + $0x22] sm:$0xff]
  %v5065 = vld [vmem:[%s4996 + $0x32] sm:$0xff]
  %v5066 = vld [vmem:[%s4996 + $0x3a] sm:$0xff]
  %v5067 = vld [vmem:[%s4996 + $0x4a] sm:$0xff]
  %v5068 = vld [vmem:[%s4996 + $0x52] sm:$0xff]
  %v5069 = vld [vmem:[%s4996 + $0x62] sm:$0xff]
  %v5070 = vld [vmem:[%s4996 + $0x6a] sm:$0xff]
  %v5071 = vld [vmem:[%s4996 + $0x7a] sm:$0xff]
  %v5072 = vld [vmem:[%s4996 + $0x82] sm:$0xff]
  %v5073 = vld [vmem:[%s4996 + $0x92] sm:$0xff]
  %v5074 = vld [vmem:[%s4996 + $0x9a] sm:$0xff]
  %v5075 = vld [vmem:[%s4996 + $0xaa] sm:$0xff]
  %v5076 = vld [vmem:[%s4996 + $0xb2] sm:$0xff]
  %v5077 = vld [vmem:[%s4996 + $0xc2] sm:$0xff]
  %v5078 = vld [vmem:[%s4996 + $0xca] sm:$0xff]
  %v5079 = vld [vmem:[%s4996 + $0xda] sm:$0xff]
  %v5080 = vld [vmem:[%s4996 + $0xe2] sm:$0xff]
  %v5081 = vld [vmem:[%s4996 + $0xf2] sm:$0xff]
  %v5082 = vld [vmem:[%s4996 + $0xfa] sm:$0xff]
  %v5083 = vld [vmem:[%s4996 + $0x10a] sm:$0xff]
  %v5084 = vld [vmem:[%s4996 + $0x112] sm:$0xff]
  %v5085 = vld [vmem:[%s4996 + $0x122] sm:$0xff]
  %v5086 = vld [vmem:[%s4996 + $0x12a] sm:$0xff]
  %v5087 = vld [vmem:[%s4996 + $0x13a] sm:$0xff]
  %v5088 = vld [vmem:[%s4996 + $0x142] sm:$0xff]
  %v5089 = vld [vmem:[%s4996 + $0x152] sm:$0xff]
  %v5090 = vld [vmem:[%s4996 + $0x15a] sm:$0xff]
  %v5091 = vld [vmem:[%s4996 + $0x16a] sm:$0xff]
  %v5092 = vld [vmem:[%s4996 + $0x172] sm:$0xff]
  %v5093 = vld [vmem:[%s4996 + $0x3] sm:$0xff]
  %v5094 = vld [vmem:[%s4996 + $0xb] sm:$0xff]
  %v5095 = vld [vmem:[%s4996 + $0x1b] sm:$0xff]
  %v5096 = vld [vmem:[%s4996 + $0x23] sm:$0xff]
  %v5097 = vld [vmem:[%s4996 + $0x33] sm:$0xff]
  %v5098 = vld [vmem:[%s4996 + $0x3b] sm:$0xff]
  %v5099 = vld [vmem:[%s4996 + $0x4b] sm:$0xff]
  %v5100 = vld [vmem:[%s4996 + $0x53] sm:$0xff]
  %v5101 = vld [vmem:[%s4996 + $0x63] sm:$0xff]
  %v5102 = vld [vmem:[%s4996 + $0x6b] sm:$0xff]
  %v5103 = vld [vmem:[%s4996 + $0x7b] sm:$0xff]
  %v5104 = vld [vmem:[%s4996 + $0x83] sm:$0xff]
  %v5105 = vld [vmem:[%s4996 + $0x93] sm:$0xff]
  %v5106 = vld [vmem:[%s4996 + $0x9b] sm:$0xff]
  %v5107 = vld [vmem:[%s4996 + $0xab] sm:$0xff]
  %v5108 = vld [vmem:[%s4996 + $0xb3] sm:$0xff]
  %v5109 = vld [vmem:[%s4996 + $0xc3] sm:$0xff]
  %v5110 = vld [vmem:[%s4996 + $0xcb] sm:$0xff]
  %v5111 = vld [vmem:[%s4996 + $0xdb] sm:$0xff]
  %v5112 = vld [vmem:[%s4996 + $0xe3] sm:$0xff]
  %v5113 = vld [vmem:[%s4996 + $0xf3] sm:$0xff]
  %v5114 = vld [vmem:[%s4996 + $0xfb] sm:$0xff]
  %v5115 = vld [vmem:[%s4996 + $0x10b] sm:$0xff]
  %v5116 = vld [vmem:[%s4996 + $0x113] sm:$0xff]
  %v5117 = vld [vmem:[%s4996 + $0x123] sm:$0xff]
  %v5118 = vld [vmem:[%s4996 + $0x12b] sm:$0xff]
  %v5119 = vld [vmem:[%s4996 + $0x13b] sm:$0xff]
  %v5120 = vld [vmem:[%s4996 + $0x143] sm:$0xff]
  %v5121 = vld [vmem:[%s4996 + $0x153] sm:$0xff]
  %v5122 = vld [vmem:[%s4996 + $0x15b] sm:$0xff]
  %v5123 = vld [vmem:[%s4996 + $0x16b] sm:$0xff]
  %v5124 = vld [vmem:[%s4996 + $0x173] sm:$0xff]
  %v5125 = vld [vmem:[%s4996 + $0x4] sm:$0xff]
  %v5126 = vld [vmem:[%s4996 + $0xc] sm:$0xff]
  %v5127 = vld [vmem:[%s4996 + $0x1c] sm:$0xff]
  %v5128 = vld [vmem:[%s4996 + $0x24] sm:$0xff]
  %v5129 = vld [vmem:[%s4996 + $0x34] sm:$0xff]
  %v5130 = vld [vmem:[%s4996 + $0x3c] sm:$0xff]
  %v5131 = vld [vmem:[%s4996 + $0x4c] sm:$0xff]
  %v5132 = vld [vmem:[%s4996 + $0x54] sm:$0xff]
  %v5133 = vld [vmem:[%s4996 + $0x64] sm:$0xff]
  %v5134 = vld [vmem:[%s4996 + $0x6c] sm:$0xff]
  %v5135 = vld [vmem:[%s4996 + $0x7c] sm:$0xff]
  %v5136 = vld [vmem:[%s4996 + $0x84] sm:$0xff]
  %v5137 = vld [vmem:[%s4996 + $0x94] sm:$0xff]
  %v5138 = vld [vmem:[%s4996 + $0x9c] sm:$0xff]
  %v5139 = vld [vmem:[%s4996 + $0xac] sm:$0xff]
  %v5140 = vld [vmem:[%s4996 + $0xb4] sm:$0xff]
  %v5141 = vld [vmem:[%s4996 + $0xc4] sm:$0xff]
  %v5142 = vld [vmem:[%s4996 + $0xcc] sm:$0xff]
  %v5143 = vld [vmem:[%s4996 + $0xdc] sm:$0xff]
  %v5144 = vld [vmem:[%s4996 + $0xe4] sm:$0xff]
  %v5145 = vld [vmem:[%s4996 + $0xf4] sm:$0xff]
  %v5146 = vld [vmem:[%s4996 + $0xfc] sm:$0xff]
  %v5147 = vld [vmem:[%s4996 + $0x10c] sm:$0xff]
  %v5148 = vld [vmem:[%s4996 + $0x114] sm:$0xff]
  %v5149 = vld [vmem:[%s4996 + $0x124] sm:$0xff]
  %v5150 = vld [vmem:[%s4996 + $0x12c] sm:$0xff]
  %v5151 = vld [vmem:[%s4996 + $0x13c] sm:$0xff]
  %v5152 = vld [vmem:[%s4996 + $0x144] sm:$0xff]
  %v5153 = vld [vmem:[%s4996 + $0x154] sm:$0xff]
  %v5154 = vld [vmem:[%s4996 + $0x15c] sm:$0xff]
  %v5155 = vld [vmem:[%s4996 + $0x16c] sm:$0xff]
  %v5156 = vld [vmem:[%s4996 + $0x174] sm:$0xff]
  %s5157 = scalar_lea.vmem %s0, 552
  %v5158 = vld [vmem:[%s5157] sm:$0xff]
  %v5159 = vld [vmem:[%s5157 + $0x8] sm:$0xff]
  %v5160 = vld [vmem:[%s5157 + $0x18] sm:$0xff]
  %v5161 = vld [vmem:[%s5157 + $0x20] sm:$0xff]
  %v5162 = vld [vmem:[%s5157 + $0x30] sm:$0xff]
  %v5163 = vld [vmem:[%s5157 + $0x38] sm:$0xff]
  %v5164 = vld [vmem:[%s5157 + $0x48] sm:$0xff]
  %v5165 = vld [vmem:[%s5157 + $0x50] sm:$0xff]
  %v5166 = vld [vmem:[%s5157 + $0x60] sm:$0xff]
  %v5167 = vld [vmem:[%s5157 + $0x68] sm:$0xff]
  %v5168 = vld [vmem:[%s5157 + $0x78] sm:$0xff]
  %v5169 = vld [vmem:[%s5157 + $0x80] sm:$0xff]
  %v5170 = vld [vmem:[%s5157 + $0x90] sm:$0xff]
  %v5171 = vld [vmem:[%s5157 + $0x98] sm:$0xff]
  %v5172 = vld [vmem:[%s5157 + $0xa8] sm:$0xff]
  %v5173 = vld [vmem:[%s5157 + $0xb0] sm:$0xff]
  %v5174 = vld [vmem:[%s5157 + $0xc0] sm:$0xff]
  %v5175 = vld [vmem:[%s5157 + $0xc8] sm:$0xff]
  %v5176 = vld [vmem:[%s5157 + $0xd8] sm:$0xff]
  %v5177 = vld [vmem:[%s5157 + $0xe0] sm:$0xff]
  %v5178 = vld [vmem:[%s5157 + $0xf0] sm:$0xff]
  %v5179 = vld [vmem:[%s5157 + $0xf8] sm:$0xff]
  %v5180 = vld [vmem:[%s5157 + $0x108] sm:$0xff]
  %v5181 = vld [vmem:[%s5157 + $0x110] sm:$0xff]
  %v5182 = vld [vmem:[%s5157 + $0x120] sm:$0xff]
  %v5183 = vld [vmem:[%s5157 + $0x128] sm:$0xff]
  %v5184 = vld [vmem:[%s5157 + $0x138] sm:$0xff]
  %v5185 = vld [vmem:[%s5157 + $0x140] sm:$0xff]
  %v5186 = vld [vmem:[%s5157 + $0x150] sm:$0xff]
  %v5187 = vld [vmem:[%s5157 + $0x158] sm:$0xff]
  %v5188 = vld [vmem:[%s5157 + $0x168] sm:$0xff]
  %v5189 = vld [vmem:[%s5157 + $0x170] sm:$0xff]
  %v5190 = vld [vmem:[%s5157 + $0x1] sm:$0xff]
  %v5191 = vld [vmem:[%s5157 + $0x9] sm:$0xff]
  %v5192 = vld [vmem:[%s5157 + $0x19] sm:$0xff]
  %v5193 = vld [vmem:[%s5157 + $0x21] sm:$0xff]
  %v5194 = vld [vmem:[%s5157 + $0x31] sm:$0xff]
  %v5195 = vld [vmem:[%s5157 + $0x39] sm:$0xff]
  %v5196 = vld [vmem:[%s5157 + $0x49] sm:$0xff]
  %v5197 = vld [vmem:[%s5157 + $0x51] sm:$0xff]
  %v5198 = vld [vmem:[%s5157 + $0x61] sm:$0xff]
  %v5199 = vld [vmem:[%s5157 + $0x69] sm:$0xff]
  %v5200 = vld [vmem:[%s5157 + $0x79] sm:$0xff]
  %v5201 = vld [vmem:[%s5157 + $0x81] sm:$0xff]
  %v5202 = vld [vmem:[%s5157 + $0x91] sm:$0xff]
  %v5203 = vld [vmem:[%s5157 + $0x99] sm:$0xff]
  %v5204 = vld [vmem:[%s5157 + $0xa9] sm:$0xff]
  %v5205 = vld [vmem:[%s5157 + $0xb1] sm:$0xff]
  %v5206 = vld [vmem:[%s5157 + $0xc1] sm:$0xff]
  %v5207 = vld [vmem:[%s5157 + $0xc9] sm:$0xff]
  %v5208 = vld [vmem:[%s5157 + $0xd9] sm:$0xff]
  %v5209 = vld [vmem:[%s5157 + $0xe1] sm:$0xff]
  %v5210 = vld [vmem:[%s5157 + $0xf1] sm:$0xff]
  %v5211 = vld [vmem:[%s5157 + $0xf9] sm:$0xff]
  %v5212 = vld [vmem:[%s5157 + $0x109] sm:$0xff]
  %v5213 = vld [vmem:[%s5157 + $0x111] sm:$0xff]
  %v5214 = vld [vmem:[%s5157 + $0x121] sm:$0xff]
  %v5215 = vld [vmem:[%s5157 + $0x129] sm:$0xff]
  %v5216 = vld [vmem:[%s5157 + $0x139] sm:$0xff]
  %v5217 = vld [vmem:[%s5157 + $0x141] sm:$0xff]
  %v5218 = vld [vmem:[%s5157 + $0x151] sm:$0xff]
  %v5219 = vld [vmem:[%s5157 + $0x159] sm:$0xff]
  %v5220 = vld [vmem:[%s5157 + $0x169] sm:$0xff]
  %v5221 = vld [vmem:[%s5157 + $0x171] sm:$0xff]
  %v5222 = vld [vmem:[%s5157 + $0x2] sm:$0xff]
  %v5223 = vld [vmem:[%s5157 + $0xa] sm:$0xff]
  %v5224 = vld [vmem:[%s5157 + $0x1a] sm:$0xff]
  %v5225 = vld [vmem:[%s5157 + $0x22] sm:$0xff]
  %v5226 = vld [vmem:[%s5157 + $0x32] sm:$0xff]
  %v5227 = vld [vmem:[%s5157 + $0x3a] sm:$0xff]
  %v5228 = vld [vmem:[%s5157 + $0x4a] sm:$0xff]
  %v5229 = vld [vmem:[%s5157 + $0x52] sm:$0xff]
  %v5230 = vld [vmem:[%s5157 + $0x62] sm:$0xff]
  %v5231 = vld [vmem:[%s5157 + $0x6a] sm:$0xff]
  %v5232 = vld [vmem:[%s5157 + $0x7a] sm:$0xff]
  %v5233 = vld [vmem:[%s5157 + $0x82] sm:$0xff]
  %v5234 = vld [vmem:[%s5157 + $0x92] sm:$0xff]
  %v5235 = vld [vmem:[%s5157 + $0x9a] sm:$0xff]
  %v5236 = vld [vmem:[%s5157 + $0xaa] sm:$0xff]
  %v5237 = vld [vmem:[%s5157 + $0xb2] sm:$0xff]
  %v5238 = vld [vmem:[%s5157 + $0xc2] sm:$0xff]
  %v5239 = vld [vmem:[%s5157 + $0xca] sm:$0xff]
  %v5240 = vld [vmem:[%s5157 + $0xda] sm:$0xff]
  %v5241 = vld [vmem:[%s5157 + $0xe2] sm:$0xff]
  %v5242 = vld [vmem:[%s5157 + $0xf2] sm:$0xff]
  %v5243 = vld [vmem:[%s5157 + $0xfa] sm:$0xff]
  %v5244 = vld [vmem:[%s5157 + $0x10a] sm:$0xff]
  %v5245 = vld [vmem:[%s5157 + $0x112] sm:$0xff]
  %v5246 = vld [vmem:[%s5157 + $0x122] sm:$0xff]
  %v5247 = vld [vmem:[%s5157 + $0x12a] sm:$0xff]
  %v5248 = vld [vmem:[%s5157 + $0x13a] sm:$0xff]
  %v5249 = vld [vmem:[%s5157 + $0x142] sm:$0xff]
  %v5250 = vld [vmem:[%s5157 + $0x152] sm:$0xff]
  %v5251 = vld [vmem:[%s5157 + $0x15a] sm:$0xff]
  %v5252 = vld [vmem:[%s5157 + $0x16a] sm:$0xff]
  %v5253 = vld [vmem:[%s5157 + $0x172] sm:$0xff]
  %v5254 = vld [vmem:[%s5157 + $0x3] sm:$0xff]
  %v5255 = vld [vmem:[%s5157 + $0xb] sm:$0xff]
  %v5256 = vld [vmem:[%s5157 + $0x1b] sm:$0xff]
  %v5257 = vld [vmem:[%s5157 + $0x23] sm:$0xff]
  %v5258 = vld [vmem:[%s5157 + $0x33] sm:$0xff]
  %v5259 = vld [vmem:[%s5157 + $0x3b] sm:$0xff]
  %v5260 = vld [vmem:[%s5157 + $0x4b] sm:$0xff]
  %v5261 = vld [vmem:[%s5157 + $0x53] sm:$0xff]
  %v5262 = vld [vmem:[%s5157 + $0x63] sm:$0xff]
  %v5263 = vld [vmem:[%s5157 + $0x6b] sm:$0xff]
  %v5264 = vld [vmem:[%s5157 + $0x7b] sm:$0xff]
  %v5265 = vld [vmem:[%s5157 + $0x83] sm:$0xff]
  %v5266 = vld [vmem:[%s5157 + $0x93] sm:$0xff]
  %v5267 = vld [vmem:[%s5157 + $0x9b] sm:$0xff]
  %v5268 = vld [vmem:[%s5157 + $0xab] sm:$0xff]
  %v5269 = vld [vmem:[%s5157 + $0xb3] sm:$0xff]
  %v5270 = vld [vmem:[%s5157 + $0xc3] sm:$0xff]
  %v5271 = vld [vmem:[%s5157 + $0xcb] sm:$0xff]
  %v5272 = vld [vmem:[%s5157 + $0xdb] sm:$0xff]
  %v5273 = vld [vmem:[%s5157 + $0xe3] sm:$0xff]
  %v5274 = vld [vmem:[%s5157 + $0xf3] sm:$0xff]
  %v5275 = vld [vmem:[%s5157 + $0xfb] sm:$0xff]
  %v5276 = vld [vmem:[%s5157 + $0x10b] sm:$0xff]
  %v5277 = vld [vmem:[%s5157 + $0x113] sm:$0xff]
  %v5278 = vld [vmem:[%s5157 + $0x123] sm:$0xff]
  %v5279 = vld [vmem:[%s5157 + $0x12b] sm:$0xff]
  %v5280 = vld [vmem:[%s5157 + $0x13b] sm:$0xff]
  %v5281 = vld [vmem:[%s5157 + $0x143] sm:$0xff]
  %v5282 = vld [vmem:[%s5157 + $0x153] sm:$0xff]
  %v5283 = vld [vmem:[%s5157 + $0x15b] sm:$0xff]
  %v5284 = vld [vmem:[%s5157 + $0x16b] sm:$0xff]
  %v5285 = vld [vmem:[%s5157 + $0x173] sm:$0xff]
  %v5286 = vld [vmem:[%s5157 + $0x4] sm:$0xff]
  %v5287 = vld [vmem:[%s5157 + $0xc] sm:$0xff]
  %v5288 = vld [vmem:[%s5157 + $0x1c] sm:$0xff]
  %v5289 = vld [vmem:[%s5157 + $0x24] sm:$0xff]
  %v5290 = vld [vmem:[%s5157 + $0x34] sm:$0xff]
  %v5291 = vld [vmem:[%s5157 + $0x3c] sm:$0xff]
  %v5292 = vld [vmem:[%s5157 + $0x4c] sm:$0xff]
  %v5293 = vld [vmem:[%s5157 + $0x54] sm:$0xff]
  %v5294 = vld [vmem:[%s5157 + $0x64] sm:$0xff]
  %v5295 = vld [vmem:[%s5157 + $0x6c] sm:$0xff]
  %v5296 = vld [vmem:[%s5157 + $0x7c] sm:$0xff]
  %v5297 = vld [vmem:[%s5157 + $0x84] sm:$0xff]
  %v5298 = vld [vmem:[%s5157 + $0x94] sm:$0xff]
  %v5299 = vld [vmem:[%s5157 + $0x9c] sm:$0xff]
  %v5300 = vld [vmem:[%s5157 + $0xac] sm:$0xff]
  %v5301 = vld [vmem:[%s5157 + $0xb4] sm:$0xff]
  %v5302 = vld [vmem:[%s5157 + $0xc4] sm:$0xff]
  %v5303 = vld [vmem:[%s5157 + $0xcc] sm:$0xff]
  %v5304 = vld [vmem:[%s5157 + $0xdc] sm:$0xff]
  %v5305 = vld [vmem:[%s5157 + $0xe4] sm:$0xff]
  %v5306 = vld [vmem:[%s5157 + $0xf4] sm:$0xff]
  %v5307 = vld [vmem:[%s5157 + $0xfc] sm:$0xff]
  %v5308 = vld [vmem:[%s5157 + $0x10c] sm:$0xff]
  %v5309 = vld [vmem:[%s5157 + $0x114] sm:$0xff]
  %v5310 = vld [vmem:[%s5157 + $0x124] sm:$0xff]
  %v5311 = vld [vmem:[%s5157 + $0x12c] sm:$0xff]
  %v5312 = vld [vmem:[%s5157 + $0x13c] sm:$0xff]
  %v5313 = vld [vmem:[%s5157 + $0x144] sm:$0xff]
  %v5314 = vld [vmem:[%s5157 + $0x154] sm:$0xff]
  %v5315 = vld [vmem:[%s5157 + $0x15c] sm:$0xff]
  %v5316 = vld [vmem:[%s5157 + $0x16c] sm:$0xff]
  %v5317 = vld [vmem:[%s5157 + $0x174] sm:$0xff]
  %s5318 = scalar_lea.vmem %s0, 576
  %v5319 = vld [vmem:[%s5318] sm:$0xff]
  %v5320 = vld [vmem:[%s5318 + $0x8] sm:$0xff]
  %v5321 = vld [vmem:[%s5318 + $0x18] sm:$0xff]
  %v5322 = vld [vmem:[%s5318 + $0x20] sm:$0xff]
  %v5323 = vld [vmem:[%s5318 + $0x30] sm:$0xff]
  %v5324 = vld [vmem:[%s5318 + $0x38] sm:$0xff]
  %v5325 = vld [vmem:[%s5318 + $0x48] sm:$0xff]
  %v5326 = vld [vmem:[%s5318 + $0x50] sm:$0xff]
  %v5327 = vld [vmem:[%s5318 + $0x60] sm:$0xff]
  %v5328 = vld [vmem:[%s5318 + $0x68] sm:$0xff]
  %v5329 = vld [vmem:[%s5318 + $0x78] sm:$0xff]
  %v5330 = vld [vmem:[%s5318 + $0x80] sm:$0xff]
  %v5331 = vld [vmem:[%s5318 + $0x90] sm:$0xff]
  %v5332 = vld [vmem:[%s5318 + $0x98] sm:$0xff]
  %v5333 = vld [vmem:[%s5318 + $0xa8] sm:$0xff]
  %v5334 = vld [vmem:[%s5318 + $0xb0] sm:$0xff]
  %v5335 = vld [vmem:[%s5318 + $0xc0] sm:$0xff]
  %v5336 = vld [vmem:[%s5318 + $0xc8] sm:$0xff]
  %v5337 = vld [vmem:[%s5318 + $0xd8] sm:$0xff]
  %v5338 = vld [vmem:[%s5318 + $0xe0] sm:$0xff]
  %v5339 = vld [vmem:[%s5318 + $0xf0] sm:$0xff]
  %v5340 = vld [vmem:[%s5318 + $0xf8] sm:$0xff]
  %v5341 = vld [vmem:[%s5318 + $0x108] sm:$0xff]
  %v5342 = vld [vmem:[%s5318 + $0x110] sm:$0xff]
  %v5343 = vld [vmem:[%s5318 + $0x120] sm:$0xff]
  %v5344 = vld [vmem:[%s5318 + $0x128] sm:$0xff]
  %v5345 = vld [vmem:[%s5318 + $0x138] sm:$0xff]
  %v5346 = vld [vmem:[%s5318 + $0x140] sm:$0xff]
  %v5347 = vld [vmem:[%s5318 + $0x150] sm:$0xff]
  %v5348 = vld [vmem:[%s5318 + $0x158] sm:$0xff]
  %v5349 = vld [vmem:[%s5318 + $0x168] sm:$0xff]
  %v5350 = vld [vmem:[%s5318 + $0x170] sm:$0xff]
  %v5351 = vld [vmem:[%s5318 + $0x1] sm:$0xff]
  %v5352 = vld [vmem:[%s5318 + $0x9] sm:$0xff]
  %v5353 = vld [vmem:[%s5318 + $0x19] sm:$0xff]
  %v5354 = vld [vmem:[%s5318 + $0x21] sm:$0xff]
  %v5355 = vld [vmem:[%s5318 + $0x31] sm:$0xff]
  %v5356 = vld [vmem:[%s5318 + $0x39] sm:$0xff]
  %v5357 = vld [vmem:[%s5318 + $0x49] sm:$0xff]
  %v5358 = vld [vmem:[%s5318 + $0x51] sm:$0xff]
  %v5359 = vld [vmem:[%s5318 + $0x61] sm:$0xff]
  %v5360 = vld [vmem:[%s5318 + $0x69] sm:$0xff]
  %v5361 = vld [vmem:[%s5318 + $0x79] sm:$0xff]
  %v5362 = vld [vmem:[%s5318 + $0x81] sm:$0xff]
  %v5363 = vld [vmem:[%s5318 + $0x91] sm:$0xff]
  %v5364 = vld [vmem:[%s5318 + $0x99] sm:$0xff]
  %v5365 = vld [vmem:[%s5318 + $0xa9] sm:$0xff]
  %v5366 = vld [vmem:[%s5318 + $0xb1] sm:$0xff]
  %v5367 = vld [vmem:[%s5318 + $0xc1] sm:$0xff]
  %v5368 = vld [vmem:[%s5318 + $0xc9] sm:$0xff]
  %v5369 = vld [vmem:[%s5318 + $0xd9] sm:$0xff]
  %v5370 = vld [vmem:[%s5318 + $0xe1] sm:$0xff]
  %v5371 = vld [vmem:[%s5318 + $0xf1] sm:$0xff]
  %v5372 = vld [vmem:[%s5318 + $0xf9] sm:$0xff]
  %v5373 = vld [vmem:[%s5318 + $0x109] sm:$0xff]
  %v5374 = vld [vmem:[%s5318 + $0x111] sm:$0xff]
  %v5375 = vld [vmem:[%s5318 + $0x121] sm:$0xff]
  %v5376 = vld [vmem:[%s5318 + $0x129] sm:$0xff]
  %v5377 = vld [vmem:[%s5318 + $0x139] sm:$0xff]
  %v5378 = vld [vmem:[%s5318 + $0x141] sm:$0xff]
  %v5379 = vld [vmem:[%s5318 + $0x151] sm:$0xff]
  %v5380 = vld [vmem:[%s5318 + $0x159] sm:$0xff]
  %v5381 = vld [vmem:[%s5318 + $0x169] sm:$0xff]
  %v5382 = vld [vmem:[%s5318 + $0x171] sm:$0xff]
  %v5383 = vld [vmem:[%s5318 + $0x2] sm:$0xff]
  %v5384 = vld [vmem:[%s5318 + $0xa] sm:$0xff]
  %v5385 = vld [vmem:[%s5318 + $0x1a] sm:$0xff]
  %v5386 = vld [vmem:[%s5318 + $0x22] sm:$0xff]
  %v5387 = vld [vmem:[%s5318 + $0x32] sm:$0xff]
  %v5388 = vld [vmem:[%s5318 + $0x3a] sm:$0xff]
  %v5389 = vld [vmem:[%s5318 + $0x4a] sm:$0xff]
  %v5390 = vld [vmem:[%s5318 + $0x52] sm:$0xff]
  %v5391 = vld [vmem:[%s5318 + $0x62] sm:$0xff]
  %v5392 = vld [vmem:[%s5318 + $0x6a] sm:$0xff]
  %v5393 = vld [vmem:[%s5318 + $0x7a] sm:$0xff]
  %v5394 = vld [vmem:[%s5318 + $0x82] sm:$0xff]
  %v5395 = vld [vmem:[%s5318 + $0x92] sm:$0xff]
  %v5396 = vld [vmem:[%s5318 + $0x9a] sm:$0xff]
  %v5397 = vld [vmem:[%s5318 + $0xaa] sm:$0xff]
  %v5398 = vld [vmem:[%s5318 + $0xb2] sm:$0xff]
  %v5399 = vld [vmem:[%s5318 + $0xc2] sm:$0xff]
  %v5400 = vld [vmem:[%s5318 + $0xca] sm:$0xff]
  %v5401 = vld [vmem:[%s5318 + $0xda] sm:$0xff]
  %v5402 = vld [vmem:[%s5318 + $0xe2] sm:$0xff]
  %v5403 = vld [vmem:[%s5318 + $0xf2] sm:$0xff]
  %v5404 = vld [vmem:[%s5318 + $0xfa] sm:$0xff]
  %v5405 = vld [vmem:[%s5318 + $0x10a] sm:$0xff]
  %v5406 = vld [vmem:[%s5318 + $0x112] sm:$0xff]
  %v5407 = vld [vmem:[%s5318 + $0x122] sm:$0xff]
  %v5408 = vld [vmem:[%s5318 + $0x12a] sm:$0xff]
  %v5409 = vld [vmem:[%s5318 + $0x13a] sm:$0xff]
  %v5410 = vld [vmem:[%s5318 + $0x142] sm:$0xff]
  %v5411 = vld [vmem:[%s5318 + $0x152] sm:$0xff]
  %v5412 = vld [vmem:[%s5318 + $0x15a] sm:$0xff]
  %v5413 = vld [vmem:[%s5318 + $0x16a] sm:$0xff]
  %v5414 = vld [vmem:[%s5318 + $0x172] sm:$0xff]
  %v5415 = vld [vmem:[%s5318 + $0x3] sm:$0xff]
  %v5416 = vld [vmem:[%s5318 + $0xb] sm:$0xff]
  %v5417 = vld [vmem:[%s5318 + $0x1b] sm:$0xff]
  %v5418 = vld [vmem:[%s5318 + $0x23] sm:$0xff]
  %v5419 = vld [vmem:[%s5318 + $0x33] sm:$0xff]
  %v5420 = vld [vmem:[%s5318 + $0x3b] sm:$0xff]
  %v5421 = vld [vmem:[%s5318 + $0x4b] sm:$0xff]
  %v5422 = vld [vmem:[%s5318 + $0x53] sm:$0xff]
  %v5423 = vld [vmem:[%s5318 + $0x63] sm:$0xff]
  %v5424 = vld [vmem:[%s5318 + $0x6b] sm:$0xff]
  %v5425 = vld [vmem:[%s5318 + $0x7b] sm:$0xff]
  %v5426 = vld [vmem:[%s5318 + $0x83] sm:$0xff]
  %v5427 = vld [vmem:[%s5318 + $0x93] sm:$0xff]
  %v5428 = vld [vmem:[%s5318 + $0x9b] sm:$0xff]
  %v5429 = vld [vmem:[%s5318 + $0xab] sm:$0xff]
  %v5430 = vld [vmem:[%s5318 + $0xb3] sm:$0xff]
  %v5431 = vld [vmem:[%s5318 + $0xc3] sm:$0xff]
  %v5432 = vld [vmem:[%s5318 + $0xcb] sm:$0xff]
  %v5433 = vld [vmem:[%s5318 + $0xdb] sm:$0xff]
  %v5434 = vld [vmem:[%s5318 + $0xe3] sm:$0xff]
  %v5435 = vld [vmem:[%s5318 + $0xf3] sm:$0xff]
  %v5436 = vld [vmem:[%s5318 + $0xfb] sm:$0xff]
  %v5437 = vld [vmem:[%s5318 + $0x10b] sm:$0xff]
  %v5438 = vld [vmem:[%s5318 + $0x113] sm:$0xff]
  %v5439 = vld [vmem:[%s5318 + $0x123] sm:$0xff]
  %v5440 = vld [vmem:[%s5318 + $0x12b] sm:$0xff]
  %v5441 = vld [vmem:[%s5318 + $0x13b] sm:$0xff]
  %v5442 = vld [vmem:[%s5318 + $0x143] sm:$0xff]
  %v5443 = vld [vmem:[%s5318 + $0x153] sm:$0xff]
  %v5444 = vld [vmem:[%s5318 + $0x15b] sm:$0xff]
  %v5445 = vld [vmem:[%s5318 + $0x16b] sm:$0xff]
  %v5446 = vld [vmem:[%s5318 + $0x173] sm:$0xff]
  %v5447 = vld [vmem:[%s5318 + $0x4] sm:$0xff]
  %v5448 = vld [vmem:[%s5318 + $0xc] sm:$0xff]
  %v5449 = vld [vmem:[%s5318 + $0x1c] sm:$0xff]
  %v5450 = vld [vmem:[%s5318 + $0x24] sm:$0xff]
  %v5451 = vld [vmem:[%s5318 + $0x34] sm:$0xff]
  %v5452 = vld [vmem:[%s5318 + $0x3c] sm:$0xff]
  %v5453 = vld [vmem:[%s5318 + $0x4c] sm:$0xff]
  %v5454 = vld [vmem:[%s5318 + $0x54] sm:$0xff]
  %v5455 = vld [vmem:[%s5318 + $0x64] sm:$0xff]
  %v5456 = vld [vmem:[%s5318 + $0x6c] sm:$0xff]
  %v5457 = vld [vmem:[%s5318 + $0x7c] sm:$0xff]
  %v5458 = vld [vmem:[%s5318 + $0x84] sm:$0xff]
  %v5459 = vld [vmem:[%s5318 + $0x94] sm:$0xff]
  %v5460 = vld [vmem:[%s5318 + $0x9c] sm:$0xff]
  %v5461 = vld [vmem:[%s5318 + $0xac] sm:$0xff]
  %v5462 = vld [vmem:[%s5318 + $0xb4] sm:$0xff]
  %v5463 = vld [vmem:[%s5318 + $0xc4] sm:$0xff]
  %v5464 = vld [vmem:[%s5318 + $0xcc] sm:$0xff]
  %v5465 = vld [vmem:[%s5318 + $0xdc] sm:$0xff]
  %v5466 = vld [vmem:[%s5318 + $0xe4] sm:$0xff]
  %v5467 = vld [vmem:[%s5318 + $0xf4] sm:$0xff]
  %v5468 = vld [vmem:[%s5318 + $0xfc] sm:$0xff]
  %v5469 = vld [vmem:[%s5318 + $0x10c] sm:$0xff]
  %v5470 = vld [vmem:[%s5318 + $0x114] sm:$0xff]
  %v5471 = vld [vmem:[%s5318 + $0x124] sm:$0xff]
  %v5472 = vld [vmem:[%s5318 + $0x12c] sm:$0xff]
  %v5473 = vld [vmem:[%s5318 + $0x13c] sm:$0xff]
  %v5474 = vld [vmem:[%s5318 + $0x144] sm:$0xff]
  %v5475 = vld [vmem:[%s5318 + $0x154] sm:$0xff]
  %v5476 = vld [vmem:[%s5318 + $0x15c] sm:$0xff]
  %v5477 = vld [vmem:[%s5318 + $0x16c] sm:$0xff]
  %v5478 = vld [vmem:[%s5318 + $0x174] sm:$0xff]
  %5511 = vrot.lane.b32.xlu0 %v4707, 4
  %v5512 = vpop.permute.xlu0 %5511
  %5513 = vrot.lane.b32.xlu0 %v4708, 4
  %v5514 = vpop.permute.xlu0 %5513
  %5515 = vrot.lane.b32.xlu0 %v4709, 4
  %v5516 = vpop.permute.xlu0 %5515
  %5517 = vrot.lane.b32.xlu0 %v4710, 4
  %v5518 = vpop.permute.xlu0 %5517
  %5519 = vrot.lane.b32.xlu0 %v4711, 4
  %v5520 = vpop.permute.xlu0 %5519
  %5521 = vrot.lane.b32.xlu0 %v4712, 4
  %v5522 = vpop.permute.xlu0 %5521
  %5523 = vrot.lane.b32.xlu0 %v4713, 4
  %v5524 = vpop.permute.xlu0 %5523
  %5525 = vrot.lane.b32.xlu0 %v4714, 4
  %v5526 = vpop.permute.xlu0 %5525
  %5527 = vrot.lane.b32.xlu0 %v4715, 4
  %v5528 = vpop.permute.xlu0 %5527
  %5529 = vrot.lane.b32.xlu0 %v4716, 4
  %v5530 = vpop.permute.xlu0 %5529
  %5531 = vrot.lane.b32.xlu0 %v4717, 4
  %v5532 = vpop.permute.xlu0 %5531
  %5533 = vrot.lane.b32.xlu0 %v4718, 4
  %v5534 = vpop.permute.xlu0 %5533
  %5535 = vrot.lane.b32.xlu0 %v4719, 4
  %v5536 = vpop.permute.xlu0 %5535
  %5537 = vrot.lane.b32.xlu0 %v4720, 4
  %v5538 = vpop.permute.xlu0 %5537
  %5539 = vrot.lane.b32.xlu0 %v4721, 4
  %v5540 = vpop.permute.xlu0 %5539
  %5541 = vrot.lane.b32.xlu0 %v4722, 4
  %v5542 = vpop.permute.xlu0 %5541
  %5543 = vrot.lane.b32.xlu0 %v4723, 4
  %v5544 = vpop.permute.xlu0 %5543
  %5545 = vrot.lane.b32.xlu0 %v4724, 4
  %v5546 = vpop.permute.xlu0 %5545
  %5547 = vrot.lane.b32.xlu0 %v4725, 4
  %v5548 = vpop.permute.xlu0 %5547
  %5549 = vrot.lane.b32.xlu0 %v4726, 4
  %v5550 = vpop.permute.xlu0 %5549
  %5551 = vrot.lane.b32.xlu0 %v4727, 4
  %v5552 = vpop.permute.xlu0 %5551
  %5553 = vrot.lane.b32.xlu0 %v4728, 4
  %v5554 = vpop.permute.xlu0 %5553
  %5555 = vrot.lane.b32.xlu0 %v4729, 4
  %v5556 = vpop.permute.xlu0 %5555
  %5557 = vrot.lane.b32.xlu0 %v4730, 4
  %v5558 = vpop.permute.xlu0 %5557
  %5559 = vrot.lane.b32.xlu0 %v4731, 4
  %v5560 = vpop.permute.xlu0 %5559
  %5561 = vrot.lane.b32.xlu0 %v4732, 4
  %v5562 = vpop.permute.xlu0 %5561
  %5563 = vrot.lane.b32.xlu0 %v4733, 4
  %v5564 = vpop.permute.xlu0 %5563
  %5565 = vrot.lane.b32.xlu0 %v4734, 4
  %v5566 = vpop.permute.xlu0 %5565
  %5567 = vrot.lane.b32.xlu0 %v4735, 4
  %v5568 = vpop.permute.xlu0 %5567
  %5569 = vrot.lane.b32.xlu0 %v4736, 4
  %v5570 = vpop.permute.xlu0 %5569
  %5571 = vrot.lane.b32.xlu0 %v4737, 4
  %v5572 = vpop.permute.xlu0 %5571
  %5573 = vrot.lane.b32.xlu0 %v4738, 4
  %v5574 = vpop.permute.xlu0 %5573
  %5639 = vrot.lane.b32.xlu0 %v4739, 8
  %v5640 = vpop.permute.xlu0 %5639
  %5641 = vrot.lane.b32.xlu0 %v4740, 8
  %v5642 = vpop.permute.xlu0 %5641
  %5643 = vrot.lane.b32.xlu0 %v4741, 8
  %v5644 = vpop.permute.xlu0 %5643
  %5645 = vrot.lane.b32.xlu0 %v4742, 8
  %v5646 = vpop.permute.xlu0 %5645
  %5647 = vrot.lane.b32.xlu0 %v4743, 8
  %v5648 = vpop.permute.xlu0 %5647
  %5649 = vrot.lane.b32.xlu0 %v4744, 8
  %v5650 = vpop.permute.xlu0 %5649
  %5651 = vrot.lane.b32.xlu0 %v4745, 8
  %v5652 = vpop.permute.xlu0 %5651
  %5653 = vrot.lane.b32.xlu0 %v4746, 8
  %v5654 = vpop.permute.xlu0 %5653
  %5655 = vrot.lane.b32.xlu0 %v4747, 8
  %v5656 = vpop.permute.xlu0 %5655
  %5657 = vrot.lane.b32.xlu0 %v4748, 8
  %v5658 = vpop.permute.xlu0 %5657
  %5659 = vrot.lane.b32.xlu0 %v4749, 8
  %v5660 = vpop.permute.xlu0 %5659
  %5661 = vrot.lane.b32.xlu0 %v4750, 8
  %v5662 = vpop.permute.xlu0 %5661
  %5663 = vrot.lane.b32.xlu0 %v4751, 8
  %v5664 = vpop.permute.xlu0 %5663
  %5665 = vrot.lane.b32.xlu0 %v4752, 8
  %v5666 = vpop.permute.xlu0 %5665
  %5667 = vrot.lane.b32.xlu0 %v4753, 8
  %v5668 = vpop.permute.xlu0 %5667
  %5669 = vrot.lane.b32.xlu0 %v4754, 8
  %v5670 = vpop.permute.xlu0 %5669
  %5671 = vrot.lane.b32.xlu0 %v4755, 8
  %v5672 = vpop.permute.xlu0 %5671
  %5673 = vrot.lane.b32.xlu0 %v4756, 8
  %v5674 = vpop.permute.xlu0 %5673
  %5675 = vrot.lane.b32.xlu0 %v4757, 8
  %v5676 = vpop.permute.xlu0 %5675
  %5677 = vrot.lane.b32.xlu0 %v4758, 8
  %v5678 = vpop.permute.xlu0 %5677
  %5679 = vrot.lane.b32.xlu0 %v4759, 8
  %v5680 = vpop.permute.xlu0 %5679
  %5681 = vrot.lane.b32.xlu0 %v4760, 8
  %v5682 = vpop.permute.xlu0 %5681
  %5683 = vrot.lane.b32.xlu0 %v4761, 8
  %v5684 = vpop.permute.xlu0 %5683
  %5685 = vrot.lane.b32.xlu0 %v4762, 8
  %v5686 = vpop.permute.xlu0 %5685
  %5687 = vrot.lane.b32.xlu0 %v4763, 8
  %v5688 = vpop.permute.xlu0 %5687
  %5689 = vrot.lane.b32.xlu0 %v4764, 8
  %v5690 = vpop.permute.xlu0 %5689
  %5691 = vrot.lane.b32.xlu0 %v4765, 8
  %v5692 = vpop.permute.xlu0 %5691
  %5693 = vrot.lane.b32.xlu0 %v4766, 8
  %v5694 = vpop.permute.xlu0 %5693
  %5695 = vrot.lane.b32.xlu0 %v4767, 8
  %v5696 = vpop.permute.xlu0 %5695
  %5697 = vrot.lane.b32.xlu0 %v4768, 8
  %v5698 = vpop.permute.xlu0 %5697
  %5699 = vrot.lane.b32.xlu0 %v4769, 8
  %v5700 = vpop.permute.xlu0 %5699
  %5701 = vrot.lane.b32.xlu0 %v4770, 8
  %v5702 = vpop.permute.xlu0 %5701
  %5767 = vrot.lane.b32.xlu0 %v4771, 12
  %v5768 = vpop.permute.xlu0 %5767
  %5769 = vrot.lane.b32.xlu0 %v4772, 12
  %v5770 = vpop.permute.xlu0 %5769
  %5771 = vrot.lane.b32.xlu0 %v4773, 12
  %v5772 = vpop.permute.xlu0 %5771
  %5773 = vrot.lane.b32.xlu0 %v4774, 12
  %v5774 = vpop.permute.xlu0 %5773
  %5775 = vrot.lane.b32.xlu0 %v4775, 12
  %v5776 = vpop.permute.xlu0 %5775
  %5777 = vrot.lane.b32.xlu0 %v4776, 12
  %v5778 = vpop.permute.xlu0 %5777
  %5779 = vrot.lane.b32.xlu0 %v4777, 12
  %v5780 = vpop.permute.xlu0 %5779
  %5781 = vrot.lane.b32.xlu0 %v4778, 12
  %v5782 = vpop.permute.xlu0 %5781
  %5783 = vrot.lane.b32.xlu0 %v4779, 12
  %v5784 = vpop.permute.xlu0 %5783
  %5785 = vrot.lane.b32.xlu0 %v4780, 12
  %v5786 = vpop.permute.xlu0 %5785
  %5787 = vrot.lane.b32.xlu0 %v4781, 12
  %v5788 = vpop.permute.xlu0 %5787
  %5789 = vrot.lane.b32.xlu0 %v4782, 12
  %v5790 = vpop.permute.xlu0 %5789
  %5791 = vrot.lane.b32.xlu0 %v4783, 12
  %v5792 = vpop.permute.xlu0 %5791
  %5793 = vrot.lane.b32.xlu0 %v4784, 12
  %v5794 = vpop.permute.xlu0 %5793
  %5795 = vrot.lane.b32.xlu0 %v4785, 12
  %v5796 = vpop.permute.xlu0 %5795
  %5797 = vrot.lane.b32.xlu0 %v4786, 12
  %v5798 = vpop.permute.xlu0 %5797
  %5799 = vrot.lane.b32.xlu0 %v4787, 12
  %v5800 = vpop.permute.xlu0 %5799
  %5801 = vrot.lane.b32.xlu0 %v4788, 12
  %v5802 = vpop.permute.xlu0 %5801
  %5803 = vrot.lane.b32.xlu0 %v4789, 12
  %v5804 = vpop.permute.xlu0 %5803
  %5805 = vrot.lane.b32.xlu0 %v4790, 12
  %v5806 = vpop.permute.xlu0 %5805
  %5807 = vrot.lane.b32.xlu0 %v4791, 12
  %v5808 = vpop.permute.xlu0 %5807
  %5809 = vrot.lane.b32.xlu0 %v4792, 12
  %v5810 = vpop.permute.xlu0 %5809
  %5811 = vrot.lane.b32.xlu0 %v4793, 12
  %v5812 = vpop.permute.xlu0 %5811
  %5813 = vrot.lane.b32.xlu0 %v4794, 12
  %v5814 = vpop.permute.xlu0 %5813
  %5815 = vrot.lane.b32.xlu0 %v4795, 12
  %v5816 = vpop.permute.xlu0 %5815
  %5817 = vrot.lane.b32.xlu0 %v4796, 12
  %v5818 = vpop.permute.xlu0 %5817
  %5819 = vrot.lane.b32.xlu0 %v4797, 12
  %v5820 = vpop.permute.xlu0 %5819
  %5821 = vrot.lane.b32.xlu0 %v4798, 12
  %v5822 = vpop.permute.xlu0 %5821
  %5823 = vrot.lane.b32.xlu0 %v4799, 12
  %v5824 = vpop.permute.xlu0 %5823
  %5825 = vrot.lane.b32.xlu0 %v4800, 12
  %v5826 = vpop.permute.xlu0 %5825
  %5827 = vrot.lane.b32.xlu0 %v4801, 12
  %v5828 = vpop.permute.xlu0 %5827
  %5829 = vrot.lane.b32.xlu0 %v4802, 12
  %v5830 = vpop.permute.xlu0 %5829
  %5895 = vrot.lane.b32.xlu0 %v4803, 16
  %v5896 = vpop.permute.xlu0 %5895
  %5897 = vrot.lane.b32.xlu0 %v4804, 16
  %v5898 = vpop.permute.xlu0 %5897
  %5899 = vrot.lane.b32.xlu0 %v4805, 16
  %v5900 = vpop.permute.xlu0 %5899
  %5901 = vrot.lane.b32.xlu0 %v4806, 16
  %v5902 = vpop.permute.xlu0 %5901
  %5903 = vrot.lane.b32.xlu0 %v4807, 16
  %v5904 = vpop.permute.xlu0 %5903
  %5905 = vrot.lane.b32.xlu0 %v4808, 16
  %v5906 = vpop.permute.xlu0 %5905
  %5907 = vrot.lane.b32.xlu0 %v4809, 16
  %v5908 = vpop.permute.xlu0 %5907
  %5909 = vrot.lane.b32.xlu0 %v4810, 16
  %v5910 = vpop.permute.xlu0 %5909
  %5911 = vrot.lane.b32.xlu0 %v4811, 16
  %v5912 = vpop.permute.xlu0 %5911
  %5913 = vrot.lane.b32.xlu0 %v4812, 16
  %v5914 = vpop.permute.xlu0 %5913
  %5915 = vrot.lane.b32.xlu0 %v4813, 16
  %v5916 = vpop.permute.xlu0 %5915
  %5917 = vrot.lane.b32.xlu0 %v4814, 16
  %v5918 = vpop.permute.xlu0 %5917
  %5919 = vrot.lane.b32.xlu0 %v4815, 16
  %v5920 = vpop.permute.xlu0 %5919
  %5921 = vrot.lane.b32.xlu0 %v4816, 16
  %v5922 = vpop.permute.xlu0 %5921
  %5923 = vrot.lane.b32.xlu0 %v4817, 16
  %v5924 = vpop.permute.xlu0 %5923
  %5925 = vrot.lane.b32.xlu0 %v4818, 16
  %v5926 = vpop.permute.xlu0 %5925
  %5927 = vrot.lane.b32.xlu0 %v4819, 16
  %v5928 = vpop.permute.xlu0 %5927
  %5929 = vrot.lane.b32.xlu0 %v4820, 16
  %v5930 = vpop.permute.xlu0 %5929
  %5931 = vrot.lane.b32.xlu0 %v4821, 16
  %v5932 = vpop.permute.xlu0 %5931
  %5933 = vrot.lane.b32.xlu0 %v4822, 16
  %v5934 = vpop.permute.xlu0 %5933
  %5935 = vrot.lane.b32.xlu0 %v4823, 16
  %v5936 = vpop.permute.xlu0 %5935
  %5937 = vrot.lane.b32.xlu0 %v4824, 16
  %v5938 = vpop.permute.xlu0 %5937
  %5939 = vrot.lane.b32.xlu0 %v4825, 16
  %v5940 = vpop.permute.xlu0 %5939
  %5941 = vrot.lane.b32.xlu0 %v4826, 16
  %v5942 = vpop.permute.xlu0 %5941
  %5943 = vrot.lane.b32.xlu0 %v4827, 16
  %v5944 = vpop.permute.xlu0 %5943
  %5945 = vrot.lane.b32.xlu0 %v4828, 16
  %v5946 = vpop.permute.xlu0 %5945
  %5947 = vrot.lane.b32.xlu0 %v4829, 16
  %v5948 = vpop.permute.xlu0 %5947
  %5949 = vrot.lane.b32.xlu0 %v4830, 16
  %v5950 = vpop.permute.xlu0 %5949
  %5951 = vrot.lane.b32.xlu0 %v4831, 16
  %v5952 = vpop.permute.xlu0 %5951
  %5953 = vrot.lane.b32.xlu0 %v4832, 16
  %v5954 = vpop.permute.xlu0 %5953
  %5955 = vrot.lane.b32.xlu0 %v4833, 16
  %v5956 = vpop.permute.xlu0 %5955
  %5957 = vrot.lane.b32.xlu0 %v4834, 16
  %v5958 = vpop.permute.xlu0 %5957
  %6023 = vrot.lane.b32.xlu0 %v4836, 20
  %v6024 = vpop.permute.xlu0 %6023
  %6025 = vrot.lane.b32.xlu0 %v4837, 20
  %v6026 = vpop.permute.xlu0 %6025
  %6027 = vrot.lane.b32.xlu0 %v4838, 20
  %v6028 = vpop.permute.xlu0 %6027
  %6029 = vrot.lane.b32.xlu0 %v4839, 20
  %v6030 = vpop.permute.xlu0 %6029
  %6031 = vrot.lane.b32.xlu0 %v4840, 20
  %v6032 = vpop.permute.xlu0 %6031
  %6033 = vrot.lane.b32.xlu0 %v4841, 20
  %v6034 = vpop.permute.xlu0 %6033
  %6035 = vrot.lane.b32.xlu0 %v4842, 20
  %v6036 = vpop.permute.xlu0 %6035
  %6037 = vrot.lane.b32.xlu0 %v4843, 20
  %v6038 = vpop.permute.xlu0 %6037
  %6039 = vrot.lane.b32.xlu0 %v4844, 20
  %v6040 = vpop.permute.xlu0 %6039
  %6041 = vrot.lane.b32.xlu0 %v4845, 20
  %v6042 = vpop.permute.xlu0 %6041
  %6043 = vrot.lane.b32.xlu0 %v4846, 20
  %v6044 = vpop.permute.xlu0 %6043
  %6045 = vrot.lane.b32.xlu0 %v4847, 20
  %v6046 = vpop.permute.xlu0 %6045
  %6047 = vrot.lane.b32.xlu0 %v4848, 20
  %v6048 = vpop.permute.xlu0 %6047
  %6049 = vrot.lane.b32.xlu0 %v4849, 20
  %v6050 = vpop.permute.xlu0 %6049
  %6051 = vrot.lane.b32.xlu0 %v4850, 20
  %v6052 = vpop.permute.xlu0 %6051
  %6053 = vrot.lane.b32.xlu0 %v4851, 20
  %v6054 = vpop.permute.xlu0 %6053
  %6055 = vrot.lane.b32.xlu0 %v4852, 20
  %v6056 = vpop.permute.xlu0 %6055
  %6057 = vrot.lane.b32.xlu0 %v4853, 20
  %v6058 = vpop.permute.xlu0 %6057
  %6059 = vrot.lane.b32.xlu0 %v4854, 20
  %v6060 = vpop.permute.xlu0 %6059
  %6061 = vrot.lane.b32.xlu0 %v4855, 20
  %v6062 = vpop.permute.xlu0 %6061
  %6063 = vrot.lane.b32.xlu0 %v4856, 20
  %v6064 = vpop.permute.xlu0 %6063
  %6065 = vrot.lane.b32.xlu0 %v4857, 20
  %v6066 = vpop.permute.xlu0 %6065
  %6067 = vrot.lane.b32.xlu0 %v4858, 20
  %v6068 = vpop.permute.xlu0 %6067
  %6069 = vrot.lane.b32.xlu0 %v4859, 20
  %v6070 = vpop.permute.xlu0 %6069
  %6071 = vrot.lane.b32.xlu0 %v4860, 20
  %v6072 = vpop.permute.xlu0 %6071
  %6073 = vrot.lane.b32.xlu0 %v4861, 20
  %v6074 = vpop.permute.xlu0 %6073
  %6075 = vrot.lane.b32.xlu0 %v4862, 20
  %v6076 = vpop.permute.xlu0 %6075
  %6077 = vrot.lane.b32.xlu0 %v4863, 20
  %v6078 = vpop.permute.xlu0 %6077
  %6079 = vrot.lane.b32.xlu0 %v4864, 20
  %v6080 = vpop.permute.xlu0 %6079
  %6081 = vrot.lane.b32.xlu0 %v4865, 20
  %v6082 = vpop.permute.xlu0 %6081
  %6083 = vrot.lane.b32.xlu0 %v4866, 20
  %v6084 = vpop.permute.xlu0 %6083
  %6085 = vrot.lane.b32.xlu0 %v4867, 20
  %v6086 = vpop.permute.xlu0 %6085
  %6151 = vrot.lane.b32.xlu0 %v4868, 24
  %v6152 = vpop.permute.xlu0 %6151
  %6153 = vrot.lane.b32.xlu0 %v4869, 24
  %v6154 = vpop.permute.xlu0 %6153
  %6155 = vrot.lane.b32.xlu0 %v4870, 24
  %v6156 = vpop.permute.xlu0 %6155
  %6157 = vrot.lane.b32.xlu0 %v4871, 24
  %v6158 = vpop.permute.xlu0 %6157
  %6159 = vrot.lane.b32.xlu0 %v4872, 24
  %v6160 = vpop.permute.xlu0 %6159
  %6161 = vrot.lane.b32.xlu0 %v4873, 24
  %v6162 = vpop.permute.xlu0 %6161
  %6163 = vrot.lane.b32.xlu0 %v4874, 24
  %v6164 = vpop.permute.xlu0 %6163
  %6165 = vrot.lane.b32.xlu0 %v4875, 24
  %v6166 = vpop.permute.xlu0 %6165
  %6167 = vrot.lane.b32.xlu0 %v4876, 24
  %v6168 = vpop.permute.xlu0 %6167
  %6169 = vrot.lane.b32.xlu0 %v4877, 24
  %v6170 = vpop.permute.xlu0 %6169
  %6171 = vrot.lane.b32.xlu0 %v4878, 24
  %v6172 = vpop.permute.xlu0 %6171
  %6173 = vrot.lane.b32.xlu0 %v4879, 24
  %v6174 = vpop.permute.xlu0 %6173
  %6175 = vrot.lane.b32.xlu0 %v4880, 24
  %v6176 = vpop.permute.xlu0 %6175
  %6177 = vrot.lane.b32.xlu0 %v4881, 24
  %v6178 = vpop.permute.xlu0 %6177
  %6179 = vrot.lane.b32.xlu0 %v4882, 24
  %v6180 = vpop.permute.xlu0 %6179
  %6181 = vrot.lane.b32.xlu0 %v4883, 24
  %v6182 = vpop.permute.xlu0 %6181
  %6183 = vrot.lane.b32.xlu0 %v4884, 24
  %v6184 = vpop.permute.xlu0 %6183
  %6185 = vrot.lane.b32.xlu0 %v4885, 24
  %v6186 = vpop.permute.xlu0 %6185
  %6187 = vrot.lane.b32.xlu0 %v4886, 24
  %v6188 = vpop.permute.xlu0 %6187
  %6189 = vrot.lane.b32.xlu0 %v4887, 24
  %v6190 = vpop.permute.xlu0 %6189
  %6191 = vrot.lane.b32.xlu0 %v4888, 24
  %v6192 = vpop.permute.xlu0 %6191
  %6193 = vrot.lane.b32.xlu0 %v4889, 24
  %v6194 = vpop.permute.xlu0 %6193
  %6195 = vrot.lane.b32.xlu0 %v4890, 24
  %v6196 = vpop.permute.xlu0 %6195
  %6197 = vrot.lane.b32.xlu0 %v4891, 24
  %v6198 = vpop.permute.xlu0 %6197
  %6199 = vrot.lane.b32.xlu0 %v4892, 24
  %v6200 = vpop.permute.xlu0 %6199
  %6201 = vrot.lane.b32.xlu0 %v4893, 24
  %v6202 = vpop.permute.xlu0 %6201
  %6203 = vrot.lane.b32.xlu0 %v4894, 24
  %v6204 = vpop.permute.xlu0 %6203
  %6205 = vrot.lane.b32.xlu0 %v4895, 24
  %v6206 = vpop.permute.xlu0 %6205
  %6207 = vrot.lane.b32.xlu0 %v4896, 24
  %v6208 = vpop.permute.xlu0 %6207
  %6209 = vrot.lane.b32.xlu0 %v4897, 24
  %v6210 = vpop.permute.xlu0 %6209
  %6211 = vrot.lane.b32.xlu0 %v4898, 24
  %v6212 = vpop.permute.xlu0 %6211
  %6213 = vrot.lane.b32.xlu0 %v4899, 24
  %v6214 = vpop.permute.xlu0 %6213
  %6279 = vrot.lane.b32.xlu0 %v4900, 28
  %v6280 = vpop.permute.xlu0 %6279
  %6281 = vrot.lane.b32.xlu0 %v4901, 28
  %v6282 = vpop.permute.xlu0 %6281
  %6283 = vrot.lane.b32.xlu0 %v4902, 28
  %v6284 = vpop.permute.xlu0 %6283
  %6285 = vrot.lane.b32.xlu0 %v4903, 28
  %v6286 = vpop.permute.xlu0 %6285
  %6287 = vrot.lane.b32.xlu0 %v4904, 28
  %v6288 = vpop.permute.xlu0 %6287
  %6289 = vrot.lane.b32.xlu0 %v4905, 28
  %v6290 = vpop.permute.xlu0 %6289
  %6291 = vrot.lane.b32.xlu0 %v4906, 28
  %v6292 = vpop.permute.xlu0 %6291
  %6293 = vrot.lane.b32.xlu0 %v4907, 28
  %v6294 = vpop.permute.xlu0 %6293
  %6295 = vrot.lane.b32.xlu0 %v4908, 28
  %v6296 = vpop.permute.xlu0 %6295
  %6297 = vrot.lane.b32.xlu0 %v4909, 28
  %v6298 = vpop.permute.xlu0 %6297
  %6299 = vrot.lane.b32.xlu0 %v4910, 28
  %v6300 = vpop.permute.xlu0 %6299
  %6301 = vrot.lane.b32.xlu0 %v4911, 28
  %v6302 = vpop.permute.xlu0 %6301
  %6303 = vrot.lane.b32.xlu0 %v4912, 28
  %v6304 = vpop.permute.xlu0 %6303
  %6305 = vrot.lane.b32.xlu0 %v4913, 28
  %v6306 = vpop.permute.xlu0 %6305
  %6307 = vrot.lane.b32.xlu0 %v4914, 28
  %v6308 = vpop.permute.xlu0 %6307
  %6309 = vrot.lane.b32.xlu0 %v4915, 28
  %v6310 = vpop.permute.xlu0 %6309
  %6311 = vrot.lane.b32.xlu0 %v4916, 28
  %v6312 = vpop.permute.xlu0 %6311
  %6313 = vrot.lane.b32.xlu0 %v4917, 28
  %v6314 = vpop.permute.xlu0 %6313
  %6315 = vrot.lane.b32.xlu0 %v4918, 28
  %v6316 = vpop.permute.xlu0 %6315
  %6317 = vrot.lane.b32.xlu0 %v4919, 28
  %v6318 = vpop.permute.xlu0 %6317
  %6319 = vrot.lane.b32.xlu0 %v4920, 28
  %v6320 = vpop.permute.xlu0 %6319
  %6321 = vrot.lane.b32.xlu0 %v4921, 28
  %v6322 = vpop.permute.xlu0 %6321
  %6323 = vrot.lane.b32.xlu0 %v4922, 28
  %v6324 = vpop.permute.xlu0 %6323
  %6325 = vrot.lane.b32.xlu0 %v4923, 28
  %v6326 = vpop.permute.xlu0 %6325
  %6327 = vrot.lane.b32.xlu0 %v4924, 28
  %v6328 = vpop.permute.xlu0 %6327
  %6329 = vrot.lane.b32.xlu0 %v4925, 28
  %v6330 = vpop.permute.xlu0 %6329
  %6331 = vrot.lane.b32.xlu0 %v4926, 28
  %v6332 = vpop.permute.xlu0 %6331
  %6333 = vrot.lane.b32.xlu0 %v4927, 28
  %v6334 = vpop.permute.xlu0 %6333
  %6335 = vrot.lane.b32.xlu0 %v4928, 28
  %v6336 = vpop.permute.xlu0 %6335
  %6337 = vrot.lane.b32.xlu0 %v4929, 28
  %v6338 = vpop.permute.xlu0 %6337
  %6339 = vrot.lane.b32.xlu0 %v4930, 28
  %v6340 = vpop.permute.xlu0 %6339
  %6341 = vrot.lane.b32.xlu0 %v4931, 28
  %v6342 = vpop.permute.xlu0 %6341
  %6407 = vrot.lane.b32.xlu0 %v4932, 32
  %v6408 = vpop.permute.xlu0 %6407
  %6409 = vrot.lane.b32.xlu0 %v4933, 32
  %v6410 = vpop.permute.xlu0 %6409
  %6411 = vrot.lane.b32.xlu0 %v4934, 32
  %v6412 = vpop.permute.xlu0 %6411
  %6413 = vrot.lane.b32.xlu0 %v4935, 32
  %v6414 = vpop.permute.xlu0 %6413
  %6415 = vrot.lane.b32.xlu0 %v4936, 32
  %v6416 = vpop.permute.xlu0 %6415
  %6417 = vrot.lane.b32.xlu0 %v4937, 32
  %v6418 = vpop.permute.xlu0 %6417
  %6419 = vrot.lane.b32.xlu0 %v4938, 32
  %v6420 = vpop.permute.xlu0 %6419
  %6421 = vrot.lane.b32.xlu0 %v4939, 32
  %v6422 = vpop.permute.xlu0 %6421
  %6423 = vrot.lane.b32.xlu0 %v4940, 32
  %v6424 = vpop.permute.xlu0 %6423
  %6425 = vrot.lane.b32.xlu0 %v4941, 32
  %v6426 = vpop.permute.xlu0 %6425
  %6427 = vrot.lane.b32.xlu0 %v4942, 32
  %v6428 = vpop.permute.xlu0 %6427
  %6429 = vrot.lane.b32.xlu0 %v4943, 32
  %v6430 = vpop.permute.xlu0 %6429
  %6431 = vrot.lane.b32.xlu0 %v4944, 32
  %v6432 = vpop.permute.xlu0 %6431
  %6433 = vrot.lane.b32.xlu0 %v4945, 32
  %v6434 = vpop.permute.xlu0 %6433
  %6435 = vrot.lane.b32.xlu0 %v4946, 32
  %v6436 = vpop.permute.xlu0 %6435
  %6437 = vrot.lane.b32.xlu0 %v4947, 32
  %v6438 = vpop.permute.xlu0 %6437
  %6439 = vrot.lane.b32.xlu0 %v4948, 32
  %v6440 = vpop.permute.xlu0 %6439
  %6441 = vrot.lane.b32.xlu0 %v4949, 32
  %v6442 = vpop.permute.xlu0 %6441
  %6443 = vrot.lane.b32.xlu0 %v4950, 32
  %v6444 = vpop.permute.xlu0 %6443
  %6445 = vrot.lane.b32.xlu0 %v4951, 32
  %v6446 = vpop.permute.xlu0 %6445
  %6447 = vrot.lane.b32.xlu0 %v4952, 32
  %v6448 = vpop.permute.xlu0 %6447
  %6449 = vrot.lane.b32.xlu0 %v4953, 32
  %v6450 = vpop.permute.xlu0 %6449
  %6451 = vrot.lane.b32.xlu0 %v4954, 32
  %v6452 = vpop.permute.xlu0 %6451
  %6453 = vrot.lane.b32.xlu0 %v4955, 32
  %v6454 = vpop.permute.xlu0 %6453
  %6455 = vrot.lane.b32.xlu0 %v4956, 32
  %v6456 = vpop.permute.xlu0 %6455
  %6457 = vrot.lane.b32.xlu0 %v4957, 32
  %v6458 = vpop.permute.xlu0 %6457
  %6459 = vrot.lane.b32.xlu0 %v4958, 32
  %v6460 = vpop.permute.xlu0 %6459
  %6461 = vrot.lane.b32.xlu0 %v4959, 32
  %v6462 = vpop.permute.xlu0 %6461
  %6463 = vrot.lane.b32.xlu0 %v4960, 32
  %v6464 = vpop.permute.xlu0 %6463
  %6465 = vrot.lane.b32.xlu0 %v4961, 32
  %v6466 = vpop.permute.xlu0 %6465
  %6467 = vrot.lane.b32.xlu0 %v4962, 32
  %v6468 = vpop.permute.xlu0 %6467
  %6469 = vrot.lane.b32.xlu0 %v4963, 32
  %v6470 = vpop.permute.xlu0 %6469
  %6535 = vrot.lane.b32.xlu0 %v4964, 36
  %v6536 = vpop.permute.xlu0 %6535
  %6537 = vrot.lane.b32.xlu0 %v4965, 36
  %v6538 = vpop.permute.xlu0 %6537
  %6539 = vrot.lane.b32.xlu0 %v4966, 36
  %v6540 = vpop.permute.xlu0 %6539
  %6541 = vrot.lane.b32.xlu0 %v4967, 36
  %v6542 = vpop.permute.xlu0 %6541
  %6543 = vrot.lane.b32.xlu0 %v4968, 36
  %v6544 = vpop.permute.xlu0 %6543
  %6545 = vrot.lane.b32.xlu0 %v4969, 36
  %v6546 = vpop.permute.xlu0 %6545
  %6547 = vrot.lane.b32.xlu0 %v4970, 36
  %v6548 = vpop.permute.xlu0 %6547
  %6549 = vrot.lane.b32.xlu0 %v4971, 36
  %v6550 = vpop.permute.xlu0 %6549
  %6551 = vrot.lane.b32.xlu0 %v4972, 36
  %v6552 = vpop.permute.xlu0 %6551
  %6553 = vrot.lane.b32.xlu0 %v4973, 36
  %v6554 = vpop.permute.xlu0 %6553
  %6555 = vrot.lane.b32.xlu0 %v4974, 36
  %v6556 = vpop.permute.xlu0 %6555
  %6557 = vrot.lane.b32.xlu0 %v4975, 36
  %v6558 = vpop.permute.xlu0 %6557
  %6559 = vrot.lane.b32.xlu0 %v4976, 36
  %v6560 = vpop.permute.xlu0 %6559
  %6561 = vrot.lane.b32.xlu0 %v4977, 36
  %v6562 = vpop.permute.xlu0 %6561
  %6563 = vrot.lane.b32.xlu0 %v4978, 36
  %v6564 = vpop.permute.xlu0 %6563
  %6565 = vrot.lane.b32.xlu0 %v4979, 36
  %v6566 = vpop.permute.xlu0 %6565
  %6567 = vrot.lane.b32.xlu0 %v4980, 36
  %v6568 = vpop.permute.xlu0 %6567
  %6569 = vrot.lane.b32.xlu0 %v4981, 36
  %v6570 = vpop.permute.xlu0 %6569
  %6571 = vrot.lane.b32.xlu0 %v4982, 36
  %v6572 = vpop.permute.xlu0 %6571
  %6573 = vrot.lane.b32.xlu0 %v4983, 36
  %v6574 = vpop.permute.xlu0 %6573
  %6575 = vrot.lane.b32.xlu0 %v4984, 36
  %v6576 = vpop.permute.xlu0 %6575
  %6577 = vrot.lane.b32.xlu0 %v4985, 36
  %v6578 = vpop.permute.xlu0 %6577
  %6579 = vrot.lane.b32.xlu0 %v4986, 36
  %v6580 = vpop.permute.xlu0 %6579
  %6581 = vrot.lane.b32.xlu0 %v4987, 36
  %v6582 = vpop.permute.xlu0 %6581
  %6583 = vrot.lane.b32.xlu0 %v4988, 36
  %v6584 = vpop.permute.xlu0 %6583
  %6585 = vrot.lane.b32.xlu0 %v4989, 36
  %v6586 = vpop.permute.xlu0 %6585
  %6587 = vrot.lane.b32.xlu0 %v4990, 36
  %v6588 = vpop.permute.xlu0 %6587
  %6589 = vrot.lane.b32.xlu0 %v4991, 36
  %v6590 = vpop.permute.xlu0 %6589
  %6591 = vrot.lane.b32.xlu0 %v4992, 36
  %v6592 = vpop.permute.xlu0 %6591
  %6593 = vrot.lane.b32.xlu0 %v4993, 36
  %v6594 = vpop.permute.xlu0 %6593
  %6595 = vrot.lane.b32.xlu0 %v4994, 36
  %v6596 = vpop.permute.xlu0 %6595
  %6597 = vrot.lane.b32.xlu0 %v4995, 36
  %v6598 = vpop.permute.xlu0 %6597
  %6663 = vrot.lane.b32.xlu0 %v4997, 40
  %v6664 = vpop.permute.xlu0 %6663
  %6665 = vrot.lane.b32.xlu0 %v4998, 40
  %v6666 = vpop.permute.xlu0 %6665
  %6667 = vrot.lane.b32.xlu0 %v4999, 40
  %v6668 = vpop.permute.xlu0 %6667
  %6669 = vrot.lane.b32.xlu0 %v5000, 40
  %v6670 = vpop.permute.xlu0 %6669
  %6671 = vrot.lane.b32.xlu0 %v5001, 40
  %v6672 = vpop.permute.xlu0 %6671
  %6673 = vrot.lane.b32.xlu0 %v5002, 40
  %v6674 = vpop.permute.xlu0 %6673
  %6675 = vrot.lane.b32.xlu0 %v5003, 40
  %v6676 = vpop.permute.xlu0 %6675
  %6677 = vrot.lane.b32.xlu0 %v5004, 40
  %v6678 = vpop.permute.xlu0 %6677
  %6679 = vrot.lane.b32.xlu0 %v5005, 40
  %v6680 = vpop.permute.xlu0 %6679
  %6681 = vrot.lane.b32.xlu0 %v5006, 40
  %v6682 = vpop.permute.xlu0 %6681
  %6683 = vrot.lane.b32.xlu0 %v5007, 40
  %v6684 = vpop.permute.xlu0 %6683
  %6685 = vrot.lane.b32.xlu0 %v5008, 40
  %v6686 = vpop.permute.xlu0 %6685
  %6687 = vrot.lane.b32.xlu0 %v5009, 40
  %v6688 = vpop.permute.xlu0 %6687
  %6689 = vrot.lane.b32.xlu0 %v5010, 40
  %v6690 = vpop.permute.xlu0 %6689
  %6691 = vrot.lane.b32.xlu0 %v5011, 40
  %v6692 = vpop.permute.xlu0 %6691
  %6693 = vrot.lane.b32.xlu0 %v5012, 40
  %v6694 = vpop.permute.xlu0 %6693
  %6695 = vrot.lane.b32.xlu0 %v5013, 40
  %v6696 = vpop.permute.xlu0 %6695
  %6697 = vrot.lane.b32.xlu0 %v5014, 40
  %v6698 = vpop.permute.xlu0 %6697
  %6699 = vrot.lane.b32.xlu0 %v5015, 40
  %v6700 = vpop.permute.xlu0 %6699
  %6701 = vrot.lane.b32.xlu0 %v5016, 40
  %v6702 = vpop.permute.xlu0 %6701
  %6703 = vrot.lane.b32.xlu0 %v5017, 40
  %v6704 = vpop.permute.xlu0 %6703
  %6705 = vrot.lane.b32.xlu0 %v5018, 40
  %v6706 = vpop.permute.xlu0 %6705
  %6707 = vrot.lane.b32.xlu0 %v5019, 40
  %v6708 = vpop.permute.xlu0 %6707
  %6709 = vrot.lane.b32.xlu0 %v5020, 40
  %v6710 = vpop.permute.xlu0 %6709
  %6711 = vrot.lane.b32.xlu0 %v5021, 40
  %v6712 = vpop.permute.xlu0 %6711
  %6713 = vrot.lane.b32.xlu0 %v5022, 40
  %v6714 = vpop.permute.xlu0 %6713
  %6715 = vrot.lane.b32.xlu0 %v5023, 40
  %v6716 = vpop.permute.xlu0 %6715
  %6717 = vrot.lane.b32.xlu0 %v5024, 40
  %v6718 = vpop.permute.xlu0 %6717
  %6719 = vrot.lane.b32.xlu0 %v5025, 40
  %v6720 = vpop.permute.xlu0 %6719
  %6721 = vrot.lane.b32.xlu0 %v5026, 40
  %v6722 = vpop.permute.xlu0 %6721
  %6723 = vrot.lane.b32.xlu0 %v5027, 40
  %v6724 = vpop.permute.xlu0 %6723
  %6725 = vrot.lane.b32.xlu0 %v5028, 40
  %v6726 = vpop.permute.xlu0 %6725
  %6791 = vrot.lane.b32.xlu0 %v5029, 44
  %v6792 = vpop.permute.xlu0 %6791
  %6793 = vrot.lane.b32.xlu0 %v5030, 44
  %v6794 = vpop.permute.xlu0 %6793
  %6795 = vrot.lane.b32.xlu0 %v5031, 44
  %v6796 = vpop.permute.xlu0 %6795
  %6797 = vrot.lane.b32.xlu0 %v5032, 44
  %v6798 = vpop.permute.xlu0 %6797
  %6799 = vrot.lane.b32.xlu0 %v5033, 44
  %v6800 = vpop.permute.xlu0 %6799
  %6801 = vrot.lane.b32.xlu0 %v5034, 44
  %v6802 = vpop.permute.xlu0 %6801
  %6803 = vrot.lane.b32.xlu0 %v5035, 44
  %v6804 = vpop.permute.xlu0 %6803
  %6805 = vrot.lane.b32.xlu0 %v5036, 44
  %v6806 = vpop.permute.xlu0 %6805
  %6807 = vrot.lane.b32.xlu0 %v5037, 44
  %v6808 = vpop.permute.xlu0 %6807
  %6809 = vrot.lane.b32.xlu0 %v5038, 44
  %v6810 = vpop.permute.xlu0 %6809
  %6811 = vrot.lane.b32.xlu0 %v5039, 44
  %v6812 = vpop.permute.xlu0 %6811
  %6813 = vrot.lane.b32.xlu0 %v5040, 44
  %v6814 = vpop.permute.xlu0 %6813
  %6815 = vrot.lane.b32.xlu0 %v5041, 44
  %v6816 = vpop.permute.xlu0 %6815
  %6817 = vrot.lane.b32.xlu0 %v5042, 44
  %v6818 = vpop.permute.xlu0 %6817
  %6819 = vrot.lane.b32.xlu0 %v5043, 44
  %v6820 = vpop.permute.xlu0 %6819
  %6821 = vrot.lane.b32.xlu0 %v5044, 44
  %v6822 = vpop.permute.xlu0 %6821
  %6823 = vrot.lane.b32.xlu0 %v5045, 44
  %v6824 = vpop.permute.xlu0 %6823
  %6825 = vrot.lane.b32.xlu0 %v5046, 44
  %v6826 = vpop.permute.xlu0 %6825
  %6827 = vrot.lane.b32.xlu0 %v5047, 44
  %v6828 = vpop.permute.xlu0 %6827
  %6829 = vrot.lane.b32.xlu0 %v5048, 44
  %v6830 = vpop.permute.xlu0 %6829
  %6831 = vrot.lane.b32.xlu0 %v5049, 44
  %v6832 = vpop.permute.xlu0 %6831
  %6833 = vrot.lane.b32.xlu0 %v5050, 44
  %v6834 = vpop.permute.xlu0 %6833
  %6835 = vrot.lane.b32.xlu0 %v5051, 44
  %v6836 = vpop.permute.xlu0 %6835
  %6837 = vrot.lane.b32.xlu0 %v5052, 44
  %v6838 = vpop.permute.xlu0 %6837
  %6839 = vrot.lane.b32.xlu0 %v5053, 44
  %v6840 = vpop.permute.xlu0 %6839
  %6841 = vrot.lane.b32.xlu0 %v5054, 44
  %v6842 = vpop.permute.xlu0 %6841
  %6843 = vrot.lane.b32.xlu0 %v5055, 44
  %v6844 = vpop.permute.xlu0 %6843
  %6845 = vrot.lane.b32.xlu0 %v5056, 44
  %v6846 = vpop.permute.xlu0 %6845
  %6847 = vrot.lane.b32.xlu0 %v5057, 44
  %v6848 = vpop.permute.xlu0 %6847
  %6849 = vrot.lane.b32.xlu0 %v5058, 44
  %v6850 = vpop.permute.xlu0 %6849
  %6851 = vrot.lane.b32.xlu0 %v5059, 44
  %v6852 = vpop.permute.xlu0 %6851
  %6853 = vrot.lane.b32.xlu0 %v5060, 44
  %v6854 = vpop.permute.xlu0 %6853
  %6919 = vrot.lane.b32.xlu0 %v5061, 48
  %v6920 = vpop.permute.xlu0 %6919
  %6921 = vrot.lane.b32.xlu0 %v5062, 48
  %v6922 = vpop.permute.xlu0 %6921
  %6923 = vrot.lane.b32.xlu0 %v5063, 48
  %v6924 = vpop.permute.xlu0 %6923
  %6925 = vrot.lane.b32.xlu0 %v5064, 48
  %v6926 = vpop.permute.xlu0 %6925
  %6927 = vrot.lane.b32.xlu0 %v5065, 48
  %v6928 = vpop.permute.xlu0 %6927
  %6929 = vrot.lane.b32.xlu0 %v5066, 48
  %v6930 = vpop.permute.xlu0 %6929
  %6931 = vrot.lane.b32.xlu0 %v5067, 48
  %v6932 = vpop.permute.xlu0 %6931
  %6933 = vrot.lane.b32.xlu0 %v5068, 48
  %v6934 = vpop.permute.xlu0 %6933
  %6935 = vrot.lane.b32.xlu0 %v5069, 48
  %v6936 = vpop.permute.xlu0 %6935
  %6937 = vrot.lane.b32.xlu0 %v5070, 48
  %v6938 = vpop.permute.xlu0 %6937
  %6939 = vrot.lane.b32.xlu0 %v5071, 48
  %v6940 = vpop.permute.xlu0 %6939
  %6941 = vrot.lane.b32.xlu0 %v5072, 48
  %v6942 = vpop.permute.xlu0 %6941
  %6943 = vrot.lane.b32.xlu0 %v5073, 48
  %v6944 = vpop.permute.xlu0 %6943
  %6945 = vrot.lane.b32.xlu0 %v5074, 48
  %v6946 = vpop.permute.xlu0 %6945
  %6947 = vrot.lane.b32.xlu0 %v5075, 48
  %v6948 = vpop.permute.xlu0 %6947
  %6949 = vrot.lane.b32.xlu0 %v5076, 48
  %v6950 = vpop.permute.xlu0 %6949
  %6951 = vrot.lane.b32.xlu0 %v5077, 48
  %v6952 = vpop.permute.xlu0 %6951
  %6953 = vrot.lane.b32.xlu0 %v5078, 48
  %v6954 = vpop.permute.xlu0 %6953
  %6955 = vrot.lane.b32.xlu0 %v5079, 48
  %v6956 = vpop.permute.xlu0 %6955
  %6957 = vrot.lane.b32.xlu0 %v5080, 48
  %v6958 = vpop.permute.xlu0 %6957
  %6959 = vrot.lane.b32.xlu0 %v5081, 48
  %v6960 = vpop.permute.xlu0 %6959
  %6961 = vrot.lane.b32.xlu0 %v5082, 48
  %v6962 = vpop.permute.xlu0 %6961
  %6963 = vrot.lane.b32.xlu0 %v5083, 48
  %v6964 = vpop.permute.xlu0 %6963
  %6965 = vrot.lane.b32.xlu0 %v5084, 48
  %v6966 = vpop.permute.xlu0 %6965
  %6967 = vrot.lane.b32.xlu0 %v5085, 48
  %v6968 = vpop.permute.xlu0 %6967
  %6969 = vrot.lane.b32.xlu0 %v5086, 48
  %v6970 = vpop.permute.xlu0 %6969
  %6971 = vrot.lane.b32.xlu0 %v5087, 48
  %v6972 = vpop.permute.xlu0 %6971
  %6973 = vrot.lane.b32.xlu0 %v5088, 48
  %v6974 = vpop.permute.xlu0 %6973
  %6975 = vrot.lane.b32.xlu0 %v5089, 48
  %v6976 = vpop.permute.xlu0 %6975
  %6977 = vrot.lane.b32.xlu0 %v5090, 48
  %v6978 = vpop.permute.xlu0 %6977
  %6979 = vrot.lane.b32.xlu0 %v5091, 48
  %v6980 = vpop.permute.xlu0 %6979
  %6981 = vrot.lane.b32.xlu0 %v5092, 48
  %v6982 = vpop.permute.xlu0 %6981
  %7047 = vrot.lane.b32.xlu0 %v5093, 52
  %v7048 = vpop.permute.xlu0 %7047
  %7049 = vrot.lane.b32.xlu0 %v5094, 52
  %v7050 = vpop.permute.xlu0 %7049
  %7051 = vrot.lane.b32.xlu0 %v5095, 52
  %v7052 = vpop.permute.xlu0 %7051
  %7053 = vrot.lane.b32.xlu0 %v5096, 52
  %v7054 = vpop.permute.xlu0 %7053
  %7055 = vrot.lane.b32.xlu0 %v5097, 52
  %v7056 = vpop.permute.xlu0 %7055
  %7057 = vrot.lane.b32.xlu0 %v5098, 52
  %v7058 = vpop.permute.xlu0 %7057
  %7059 = vrot.lane.b32.xlu0 %v5099, 52
  %v7060 = vpop.permute.xlu0 %7059
  %7061 = vrot.lane.b32.xlu0 %v5100, 52
  %v7062 = vpop.permute.xlu0 %7061
  %7063 = vrot.lane.b32.xlu0 %v5101, 52
  %v7064 = vpop.permute.xlu0 %7063
  %7065 = vrot.lane.b32.xlu0 %v5102, 52
  %v7066 = vpop.permute.xlu0 %7065
  %7067 = vrot.lane.b32.xlu0 %v5103, 52
  %v7068 = vpop.permute.xlu0 %7067
  %7069 = vrot.lane.b32.xlu0 %v5104, 52
  %v7070 = vpop.permute.xlu0 %7069
  %7071 = vrot.lane.b32.xlu0 %v5105, 52
  %v7072 = vpop.permute.xlu0 %7071
  %7073 = vrot.lane.b32.xlu0 %v5106, 52
  %v7074 = vpop.permute.xlu0 %7073
  %7075 = vrot.lane.b32.xlu0 %v5107, 52
  %v7076 = vpop.permute.xlu0 %7075
  %7077 = vrot.lane.b32.xlu0 %v5108, 52
  %v7078 = vpop.permute.xlu0 %7077
  %7079 = vrot.lane.b32.xlu0 %v5109, 52
  %v7080 = vpop.permute.xlu0 %7079
  %7081 = vrot.lane.b32.xlu0 %v5110, 52
  %v7082 = vpop.permute.xlu0 %7081
  %7083 = vrot.lane.b32.xlu0 %v5111, 52
  %v7084 = vpop.permute.xlu0 %7083
  %7085 = vrot.lane.b32.xlu0 %v5112, 52
  %v7086 = vpop.permute.xlu0 %7085
  %7087 = vrot.lane.b32.xlu0 %v5113, 52
  %v7088 = vpop.permute.xlu0 %7087
  %7089 = vrot.lane.b32.xlu0 %v5114, 52
  %v7090 = vpop.permute.xlu0 %7089
  %7091 = vrot.lane.b32.xlu0 %v5115, 52
  %v7092 = vpop.permute.xlu0 %7091
  %7093 = vrot.lane.b32.xlu0 %v5116, 52
  %v7094 = vpop.permute.xlu0 %7093
  %7095 = vrot.lane.b32.xlu0 %v5117, 52
  %v7096 = vpop.permute.xlu0 %7095
  %7097 = vrot.lane.b32.xlu0 %v5118, 52
  %v7098 = vpop.permute.xlu0 %7097
  %7099 = vrot.lane.b32.xlu0 %v5119, 52
  %v7100 = vpop.permute.xlu0 %7099
  %7101 = vrot.lane.b32.xlu0 %v5120, 52
  %v7102 = vpop.permute.xlu0 %7101
  %7103 = vrot.lane.b32.xlu0 %v5121, 52
  %v7104 = vpop.permute.xlu0 %7103
  %7105 = vrot.lane.b32.xlu0 %v5122, 52
  %v7106 = vpop.permute.xlu0 %7105
  %7107 = vrot.lane.b32.xlu0 %v5123, 52
  %v7108 = vpop.permute.xlu0 %7107
  %7109 = vrot.lane.b32.xlu0 %v5124, 52
  %v7110 = vpop.permute.xlu0 %7109
  %7175 = vrot.lane.b32.xlu0 %v5125, 56
  %v7176 = vpop.permute.xlu0 %7175
  %7177 = vrot.lane.b32.xlu0 %v5126, 56
  %v7178 = vpop.permute.xlu0 %7177
  %7179 = vrot.lane.b32.xlu0 %v5127, 56
  %v7180 = vpop.permute.xlu0 %7179
  %7181 = vrot.lane.b32.xlu0 %v5128, 56
  %v7182 = vpop.permute.xlu0 %7181
  %7183 = vrot.lane.b32.xlu0 %v5129, 56
  %v7184 = vpop.permute.xlu0 %7183
  %7185 = vrot.lane.b32.xlu0 %v5130, 56
  %v7186 = vpop.permute.xlu0 %7185
  %7187 = vrot.lane.b32.xlu0 %v5131, 56
  %v7188 = vpop.permute.xlu0 %7187
  %7189 = vrot.lane.b32.xlu0 %v5132, 56
  %v7190 = vpop.permute.xlu0 %7189
  %7191 = vrot.lane.b32.xlu0 %v5133, 56
  %v7192 = vpop.permute.xlu0 %7191
  %7193 = vrot.lane.b32.xlu0 %v5134, 56
  %v7194 = vpop.permute.xlu0 %7193
  %7195 = vrot.lane.b32.xlu0 %v5135, 56
  %v7196 = vpop.permute.xlu0 %7195
  %7197 = vrot.lane.b32.xlu0 %v5136, 56
  %v7198 = vpop.permute.xlu0 %7197
  %7199 = vrot.lane.b32.xlu0 %v5137, 56
  %v7200 = vpop.permute.xlu0 %7199
  %7201 = vrot.lane.b32.xlu0 %v5138, 56
  %v7202 = vpop.permute.xlu0 %7201
  %7203 = vrot.lane.b32.xlu0 %v5139, 56
  %v7204 = vpop.permute.xlu0 %7203
  %7205 = vrot.lane.b32.xlu0 %v5140, 56
  %v7206 = vpop.permute.xlu0 %7205
  %7207 = vrot.lane.b32.xlu0 %v5141, 56
  %v7208 = vpop.permute.xlu0 %7207
  %7209 = vrot.lane.b32.xlu0 %v5142, 56
  %v7210 = vpop.permute.xlu0 %7209
  %7211 = vrot.lane.b32.xlu0 %v5143, 56
  %v7212 = vpop.permute.xlu0 %7211
  %7213 = vrot.lane.b32.xlu0 %v5144, 56
  %v7214 = vpop.permute.xlu0 %7213
  %7215 = vrot.lane.b32.xlu0 %v5145, 56
  %v7216 = vpop.permute.xlu0 %7215
  %7217 = vrot.lane.b32.xlu0 %v5146, 56
  %v7218 = vpop.permute.xlu0 %7217
  %7219 = vrot.lane.b32.xlu0 %v5147, 56
  %v7220 = vpop.permute.xlu0 %7219
  %7221 = vrot.lane.b32.xlu0 %v5148, 56
  %v7222 = vpop.permute.xlu0 %7221
  %7223 = vrot.lane.b32.xlu0 %v5149, 56
  %v7224 = vpop.permute.xlu0 %7223
  %7225 = vrot.lane.b32.xlu0 %v5150, 56
  %v7226 = vpop.permute.xlu0 %7225
  %7227 = vrot.lane.b32.xlu0 %v5151, 56
  %v7228 = vpop.permute.xlu0 %7227
  %7229 = vrot.lane.b32.xlu0 %v5152, 56
  %v7230 = vpop.permute.xlu0 %7229
  %7231 = vrot.lane.b32.xlu0 %v5153, 56
  %v7232 = vpop.permute.xlu0 %7231
  %7233 = vrot.lane.b32.xlu0 %v5154, 56
  %v7234 = vpop.permute.xlu0 %7233
  %7235 = vrot.lane.b32.xlu0 %v5155, 56
  %v7236 = vpop.permute.xlu0 %7235
  %7237 = vrot.lane.b32.xlu0 %v5156, 56
  %v7238 = vpop.permute.xlu0 %7237
  %7303 = vrot.lane.b32.xlu0 %v5158, 60
  %v7304 = vpop.permute.xlu0 %7303
  %7305 = vrot.lane.b32.xlu0 %v5159, 60
  %v7306 = vpop.permute.xlu0 %7305
  %7307 = vrot.lane.b32.xlu0 %v5160, 60
  %v7308 = vpop.permute.xlu0 %7307
  %7309 = vrot.lane.b32.xlu0 %v5161, 60
  %v7310 = vpop.permute.xlu0 %7309
  %7311 = vrot.lane.b32.xlu0 %v5162, 60
  %v7312 = vpop.permute.xlu0 %7311
  %7313 = vrot.lane.b32.xlu0 %v5163, 60
  %v7314 = vpop.permute.xlu0 %7313
  %7315 = vrot.lane.b32.xlu0 %v5164, 60
  %v7316 = vpop.permute.xlu0 %7315
  %7317 = vrot.lane.b32.xlu0 %v5165, 60
  %v7318 = vpop.permute.xlu0 %7317
  %7319 = vrot.lane.b32.xlu0 %v5166, 60
  %v7320 = vpop.permute.xlu0 %7319
  %7321 = vrot.lane.b32.xlu0 %v5167, 60
  %v7322 = vpop.permute.xlu0 %7321
  %7323 = vrot.lane.b32.xlu0 %v5168, 60
  %v7324 = vpop.permute.xlu0 %7323
  %7325 = vrot.lane.b32.xlu0 %v5169, 60
  %v7326 = vpop.permute.xlu0 %7325
  %7327 = vrot.lane.b32.xlu0 %v5170, 60
  %v7328 = vpop.permute.xlu0 %7327
  %7329 = vrot.lane.b32.xlu0 %v5171, 60
  %v7330 = vpop.permute.xlu0 %7329
  %7331 = vrot.lane.b32.xlu0 %v5172, 60
  %v7332 = vpop.permute.xlu0 %7331
  %7333 = vrot.lane.b32.xlu0 %v5173, 60
  %v7334 = vpop.permute.xlu0 %7333
  %7335 = vrot.lane.b32.xlu0 %v5174, 60
  %v7336 = vpop.permute.xlu0 %7335
  %7337 = vrot.lane.b32.xlu0 %v5175, 60
  %v7338 = vpop.permute.xlu0 %7337
  %7339 = vrot.lane.b32.xlu0 %v5176, 60
  %v7340 = vpop.permute.xlu0 %7339
  %7341 = vrot.lane.b32.xlu0 %v5177, 60
  %v7342 = vpop.permute.xlu0 %7341
  %7343 = vrot.lane.b32.xlu0 %v5178, 60
  %v7344 = vpop.permute.xlu0 %7343
  %7345 = vrot.lane.b32.xlu0 %v5179, 60
  %v7346 = vpop.permute.xlu0 %7345
  %7347 = vrot.lane.b32.xlu0 %v5180, 60
  %v7348 = vpop.permute.xlu0 %7347
  %7349 = vrot.lane.b32.xlu0 %v5181, 60
  %v7350 = vpop.permute.xlu0 %7349
  %7351 = vrot.lane.b32.xlu0 %v5182, 60
  %v7352 = vpop.permute.xlu0 %7351
  %7353 = vrot.lane.b32.xlu0 %v5183, 60
  %v7354 = vpop.permute.xlu0 %7353
  %7355 = vrot.lane.b32.xlu0 %v5184, 60
  %v7356 = vpop.permute.xlu0 %7355
  %7357 = vrot.lane.b32.xlu0 %v5185, 60
  %v7358 = vpop.permute.xlu0 %7357
  %7359 = vrot.lane.b32.xlu0 %v5186, 60
  %v7360 = vpop.permute.xlu0 %7359
  %7361 = vrot.lane.b32.xlu0 %v5187, 60
  %v7362 = vpop.permute.xlu0 %7361
  %7363 = vrot.lane.b32.xlu0 %v5188, 60
  %v7364 = vpop.permute.xlu0 %7363
  %7365 = vrot.lane.b32.xlu0 %v5189, 60
  %v7366 = vpop.permute.xlu0 %7365
  %v7399 = vsel %vm2738, %v4675, %v5512
  %v7400 = vsel %vm2738, %v4676, %v5514
  %v7401 = vsel %vm2738, %v4677, %v5516
  %v7402 = vsel %vm2738, %v4678, %v5518
  %v7403 = vsel %vm2738, %v4679, %v5520
  %v7404 = vsel %vm2738, %v4680, %v5522
  %v7405 = vsel %vm2738, %v4681, %v5524
  %v7406 = vsel %vm2738, %v4682, %v5526
  %v7407 = vsel %vm2738, %v4683, %v5528
  %v7408 = vsel %vm2738, %v4684, %v5530
  %v7409 = vsel %vm2738, %v4685, %v5532
  %v7410 = vsel %vm2738, %v4686, %v5534
  %v7411 = vsel %vm2738, %v4687, %v5536
  %v7412 = vsel %vm2738, %v4688, %v5538
  %v7413 = vsel %vm2738, %v4689, %v5540
  %v7414 = vsel %vm2738, %v4690, %v5542
  %v7415 = vsel %vm2738, %v4691, %v5544
  %v7416 = vsel %vm2738, %v4692, %v5546
  %v7417 = vsel %vm2738, %v4693, %v5548
  %v7418 = vsel %vm2738, %v4694, %v5550
  %v7419 = vsel %vm2738, %v4695, %v5552
  %v7420 = vsel %vm2738, %v4696, %v5554
  %v7421 = vsel %vm2738, %v4697, %v5556
  %v7422 = vsel %vm2738, %v4698, %v5558
  %v7423 = vsel %vm2738, %v4699, %v5560
  %v7424 = vsel %vm2738, %v4700, %v5562
  %v7425 = vsel %vm2738, %v4701, %v5564
  %v7426 = vsel %vm2738, %v4702, %v5566
  %v7427 = vsel %vm2738, %v4703, %v5568
  %v7428 = vsel %vm2738, %v4704, %v5570
  %v7429 = vsel %vm2738, %v4705, %v5572
  %v7430 = vsel %vm2738, %v4706, %v5574
  %v7431 = vsel %vm2771, %v7399, %v5640
  %v7432 = vsel %vm2771, %v7400, %v5642
  %v7433 = vsel %vm2771, %v7401, %v5644
  %v7434 = vsel %vm2771, %v7402, %v5646
  %v7435 = vsel %vm2771, %v7403, %v5648
  %v7436 = vsel %vm2771, %v7404, %v5650
  %v7437 = vsel %vm2771, %v7405, %v5652
  %v7438 = vsel %vm2771, %v7406, %v5654
  %v7439 = vsel %vm2771, %v7407, %v5656
  %v7440 = vsel %vm2771, %v7408, %v5658
  %v7441 = vsel %vm2771, %v7409, %v5660
  %v7442 = vsel %vm2771, %v7410, %v5662
  %v7443 = vsel %vm2771, %v7411, %v5664
  %v7444 = vsel %vm2771, %v7412, %v5666
  %v7445 = vsel %vm2771, %v7413, %v5668
  %v7446 = vsel %vm2771, %v7414, %v5670
  %v7447 = vsel %vm2771, %v7415, %v5672
  %v7448 = vsel %vm2771, %v7416, %v5674
  %v7449 = vsel %vm2771, %v7417, %v5676
  %v7450 = vsel %vm2771, %v7418, %v5678
  %v7451 = vsel %vm2771, %v7419, %v5680
  %v7452 = vsel %vm2771, %v7420, %v5682
  %v7453 = vsel %vm2771, %v7421, %v5684
  %v7454 = vsel %vm2771, %v7422, %v5686
  %v7455 = vsel %vm2771, %v7423, %v5688
  %v7456 = vsel %vm2771, %v7424, %v5690
  %v7457 = vsel %vm2771, %v7425, %v5692
  %v7458 = vsel %vm2771, %v7426, %v5694
  %v7459 = vsel %vm2771, %v7427, %v5696
  %v7460 = vsel %vm2771, %v7428, %v5698
  %v7461 = vsel %vm2771, %v7429, %v5700
  %v7462 = vsel %vm2771, %v7430, %v5702
  %v7463 = vsel %vm2804, %v7431, %v5768
  %v7464 = vsel %vm2804, %v7432, %v5770
  %v7465 = vsel %vm2804, %v7433, %v5772
  %v7466 = vsel %vm2804, %v7434, %v5774
  %v7467 = vsel %vm2804, %v7435, %v5776
  %v7468 = vsel %vm2804, %v7436, %v5778
  %v7469 = vsel %vm2804, %v7437, %v5780
  %v7470 = vsel %vm2804, %v7438, %v5782
  %v7471 = vsel %vm2804, %v7439, %v5784
  %v7472 = vsel %vm2804, %v7440, %v5786
  %v7473 = vsel %vm2804, %v7441, %v5788
  %v7474 = vsel %vm2804, %v7442, %v5790
  %v7475 = vsel %vm2804, %v7443, %v5792
  %v7476 = vsel %vm2804, %v7444, %v5794
  %v7477 = vsel %vm2804, %v7445, %v5796
  %v7478 = vsel %vm2804, %v7446, %v5798
  %v7479 = vsel %vm2804, %v7447, %v5800
  %v7480 = vsel %vm2804, %v7448, %v5802
  %v7481 = vsel %vm2804, %v7449, %v5804
  %v7482 = vsel %vm2804, %v7450, %v5806
  %v7483 = vsel %vm2804, %v7451, %v5808
  %v7484 = vsel %vm2804, %v7452, %v5810
  %v7485 = vsel %vm2804, %v7453, %v5812
  %v7486 = vsel %vm2804, %v7454, %v5814
  %v7487 = vsel %vm2804, %v7455, %v5816
  %v7488 = vsel %vm2804, %v7456, %v5818
  %v7489 = vsel %vm2804, %v7457, %v5820
  %v7490 = vsel %vm2804, %v7458, %v5822
  %v7491 = vsel %vm2804, %v7459, %v5824
  %v7492 = vsel %vm2804, %v7460, %v5826
  %v7493 = vsel %vm2804, %v7461, %v5828
  %v7494 = vsel %vm2804, %v7462, %v5830
  %v7495 = vsel %vm2837, %v7463, %v5896
  %v7496 = vsel %vm2837, %v7464, %v5898
  %v7497 = vsel %vm2837, %v7465, %v5900
  %v7498 = vsel %vm2837, %v7466, %v5902
  %v7499 = vsel %vm2837, %v7467, %v5904
  %v7500 = vsel %vm2837, %v7468, %v5906
  %v7501 = vsel %vm2837, %v7469, %v5908
  %v7502 = vsel %vm2837, %v7470, %v5910
  %v7503 = vsel %vm2837, %v7471, %v5912
  %v7504 = vsel %vm2837, %v7472, %v5914
  %v7505 = vsel %vm2837, %v7473, %v5916
  %v7506 = vsel %vm2837, %v7474, %v5918
  %v7507 = vsel %vm2837, %v7475, %v5920
  %v7508 = vsel %vm2837, %v7476, %v5922
  %v7509 = vsel %vm2837, %v7477, %v5924
  %v7510 = vsel %vm2837, %v7478, %v5926
  %v7511 = vsel %vm2837, %v7479, %v5928
  %v7512 = vsel %vm2837, %v7480, %v5930
  %v7513 = vsel %vm2837, %v7481, %v5932
  %v7514 = vsel %vm2837, %v7482, %v5934
  %v7515 = vsel %vm2837, %v7483, %v5936
  %v7516 = vsel %vm2837, %v7484, %v5938
  %v7517 = vsel %vm2837, %v7485, %v5940
  %v7518 = vsel %vm2837, %v7486, %v5942
  %v7519 = vsel %vm2837, %v7487, %v5944
  %v7520 = vsel %vm2837, %v7488, %v5946
  %v7521 = vsel %vm2837, %v7489, %v5948
  %v7522 = vsel %vm2837, %v7490, %v5950
  %v7523 = vsel %vm2837, %v7491, %v5952
  %v7524 = vsel %vm2837, %v7492, %v5954
  %v7525 = vsel %vm2837, %v7493, %v5956
  %v7526 = vsel %vm2837, %v7494, %v5958
  %v7527 = vsel %vm2870, %v7495, %v6024
  %v7528 = vsel %vm2870, %v7496, %v6026
  %v7529 = vsel %vm2870, %v7497, %v6028
  %v7530 = vsel %vm2870, %v7498, %v6030
  %v7531 = vsel %vm2870, %v7499, %v6032
  %v7532 = vsel %vm2870, %v7500, %v6034
  %v7533 = vsel %vm2870, %v7501, %v6036
  %v7534 = vsel %vm2870, %v7502, %v6038
  %v7535 = vsel %vm2870, %v7503, %v6040
  %v7536 = vsel %vm2870, %v7504, %v6042
  %v7537 = vsel %vm2870, %v7505, %v6044
  %v7538 = vsel %vm2870, %v7506, %v6046
  %v7539 = vsel %vm2870, %v7507, %v6048
  %v7540 = vsel %vm2870, %v7508, %v6050
  %v7541 = vsel %vm2870, %v7509, %v6052
  %v7542 = vsel %vm2870, %v7510, %v6054
  %v7543 = vsel %vm2870, %v7511, %v6056
  %v7544 = vsel %vm2870, %v7512, %v6058
  %v7545 = vsel %vm2870, %v7513, %v6060
  %v7546 = vsel %vm2870, %v7514, %v6062
  %v7547 = vsel %vm2870, %v7515, %v6064
  %v7548 = vsel %vm2870, %v7516, %v6066
  %v7549 = vsel %vm2870, %v7517, %v6068
  %v7550 = vsel %vm2870, %v7518, %v6070
  %v7551 = vsel %vm2870, %v7519, %v6072
  %v7552 = vsel %vm2870, %v7520, %v6074
  %v7553 = vsel %vm2870, %v7521, %v6076
  %v7554 = vsel %vm2870, %v7522, %v6078
  %v7555 = vsel %vm2870, %v7523, %v6080
  %v7556 = vsel %vm2870, %v7524, %v6082
  %v7557 = vsel %vm2870, %v7525, %v6084
  %v7558 = vsel %vm2870, %v7526, %v6086
  %v7559 = vsel %vm2903, %v7527, %v6152
  %v7560 = vsel %vm2903, %v7528, %v6154
  %v7561 = vsel %vm2903, %v7529, %v6156
  %v7562 = vsel %vm2903, %v7530, %v6158
  %v7563 = vsel %vm2903, %v7531, %v6160
  %v7564 = vsel %vm2903, %v7532, %v6162
  %v7565 = vsel %vm2903, %v7533, %v6164
  %v7566 = vsel %vm2903, %v7534, %v6166
  %v7567 = vsel %vm2903, %v7535, %v6168
  %v7568 = vsel %vm2903, %v7536, %v6170
  %v7569 = vsel %vm2903, %v7537, %v6172
  %v7570 = vsel %vm2903, %v7538, %v6174
  %v7571 = vsel %vm2903, %v7539, %v6176
  %v7572 = vsel %vm2903, %v7540, %v6178
  %v7573 = vsel %vm2903, %v7541, %v6180
  %v7574 = vsel %vm2903, %v7542, %v6182
  %v7575 = vsel %vm2903, %v7543, %v6184
  %v7576 = vsel %vm2903, %v7544, %v6186
  %v7577 = vsel %vm2903, %v7545, %v6188
  %v7578 = vsel %vm2903, %v7546, %v6190
  %v7579 = vsel %vm2903, %v7547, %v6192
  %v7580 = vsel %vm2903, %v7548, %v6194
  %v7581 = vsel %vm2903, %v7549, %v6196
  %v7582 = vsel %vm2903, %v7550, %v6198
  %v7583 = vsel %vm2903, %v7551, %v6200
  %v7584 = vsel %vm2903, %v7552, %v6202
  %v7585 = vsel %vm2903, %v7553, %v6204
  %v7586 = vsel %vm2903, %v7554, %v6206
  %v7587 = vsel %vm2903, %v7555, %v6208
  %v7588 = vsel %vm2903, %v7556, %v6210
  %v7589 = vsel %vm2903, %v7557, %v6212
  %v7590 = vsel %vm2903, %v7558, %v6214
  %v7591 = vsel %vm2936, %v7559, %v6280
  %v7592 = vsel %vm2936, %v7560, %v6282
  %v7593 = vsel %vm2936, %v7561, %v6284
  %v7594 = vsel %vm2936, %v7562, %v6286
  %v7595 = vsel %vm2936, %v7563, %v6288
  %v7596 = vsel %vm2936, %v7564, %v6290
  %v7597 = vsel %vm2936, %v7565, %v6292
  %v7598 = vsel %vm2936, %v7566, %v6294
  %v7599 = vsel %vm2936, %v7567, %v6296
  %v7600 = vsel %vm2936, %v7568, %v6298
  %v7601 = vsel %vm2936, %v7569, %v6300
  %v7602 = vsel %vm2936, %v7570, %v6302
  %v7603 = vsel %vm2936, %v7571, %v6304
  %v7604 = vsel %vm2936, %v7572, %v6306
  %v7605 = vsel %vm2936, %v7573, %v6308
  %v7606 = vsel %vm2936, %v7574, %v6310
  %v7607 = vsel %vm2936, %v7575, %v6312
  %v7608 = vsel %vm2936, %v7576, %v6314
  %v7609 = vsel %vm2936, %v7577, %v6316
  %v7610 = vsel %vm2936, %v7578, %v6318
  %v7611 = vsel %vm2936, %v7579, %v6320
  %v7612 = vsel %vm2936, %v7580, %v6322
  %v7613 = vsel %vm2936, %v7581, %v6324
  %v7614 = vsel %vm2936, %v7582, %v6326
  %v7615 = vsel %vm2936, %v7583, %v6328
  %v7616 = vsel %vm2936, %v7584, %v6330
  %v7617 = vsel %vm2936, %v7585, %v6332
  %v7618 = vsel %vm2936, %v7586, %v6334
  %v7619 = vsel %vm2936, %v7587, %v6336
  %v7620 = vsel %vm2936, %v7588, %v6338
  %v7621 = vsel %vm2936, %v7589, %v6340
  %v7622 = vsel %vm2936, %v7590, %v6342
  %v7623 = vsel %vm2969, %v7591, %v6408
  %v7624 = vsel %vm2969, %v7592, %v6410
  %v7625 = vsel %vm2969, %v7593, %v6412
  %v7626 = vsel %vm2969, %v7594, %v6414
  %v7627 = vsel %vm2969, %v7595, %v6416
  %v7628 = vsel %vm2969, %v7596, %v6418
  %v7629 = vsel %vm2969, %v7597, %v6420
  %v7630 = vsel %vm2969, %v7598, %v6422
  %v7631 = vsel %vm2969, %v7599, %v6424
  %v7632 = vsel %vm2969, %v7600, %v6426
  %v7633 = vsel %vm2969, %v7601, %v6428
  %v7634 = vsel %vm2969, %v7602, %v6430
  %v7635 = vsel %vm2969, %v7603, %v6432
  %v7636 = vsel %vm2969, %v7604, %v6434
  %v7637 = vsel %vm2969, %v7605, %v6436
  %v7638 = vsel %vm2969, %v7606, %v6438
  %v7639 = vsel %vm2969, %v7607, %v6440
  %v7640 = vsel %vm2969, %v7608, %v6442
  %v7641 = vsel %vm2969, %v7609, %v6444
  %v7642 = vsel %vm2969, %v7610, %v6446
  %v7643 = vsel %vm2969, %v7611, %v6448
  %v7644 = vsel %vm2969, %v7612, %v6450
  %v7645 = vsel %vm2969, %v7613, %v6452
  %v7646 = vsel %vm2969, %v7614, %v6454
  %v7647 = vsel %vm2969, %v7615, %v6456
  %v7648 = vsel %vm2969, %v7616, %v6458
  %v7649 = vsel %vm2969, %v7617, %v6460
  %v7650 = vsel %vm2969, %v7618, %v6462
  %v7651 = vsel %vm2969, %v7619, %v6464
  %v7652 = vsel %vm2969, %v7620, %v6466
  %v7653 = vsel %vm2969, %v7621, %v6468
  %v7654 = vsel %vm2969, %v7622, %v6470
  %v7655 = vsel %vm3002, %v7623, %v6536
  %v7656 = vsel %vm3002, %v7624, %v6538
  %v7657 = vsel %vm3002, %v7625, %v6540
  %v7658 = vsel %vm3002, %v7626, %v6542
  %v7659 = vsel %vm3002, %v7627, %v6544
  %v7660 = vsel %vm3002, %v7628, %v6546
  %v7661 = vsel %vm3002, %v7629, %v6548
  %v7662 = vsel %vm3002, %v7630, %v6550
  %v7663 = vsel %vm3002, %v7631, %v6552
  %v7664 = vsel %vm3002, %v7632, %v6554
  %v7665 = vsel %vm3002, %v7633, %v6556
  %v7666 = vsel %vm3002, %v7634, %v6558
  %v7667 = vsel %vm3002, %v7635, %v6560
  %v7668 = vsel %vm3002, %v7636, %v6562
  %v7669 = vsel %vm3002, %v7637, %v6564
  %v7670 = vsel %vm3002, %v7638, %v6566
  %v7671 = vsel %vm3002, %v7639, %v6568
  %v7672 = vsel %vm3002, %v7640, %v6570
  %v7673 = vsel %vm3002, %v7641, %v6572
  %v7674 = vsel %vm3002, %v7642, %v6574
  %v7675 = vsel %vm3002, %v7643, %v6576
  %v7676 = vsel %vm3002, %v7644, %v6578
  %v7677 = vsel %vm3002, %v7645, %v6580
  %v7678 = vsel %vm3002, %v7646, %v6582
  %v7679 = vsel %vm3002, %v7647, %v6584
  %v7680 = vsel %vm3002, %v7648, %v6586
  %v7681 = vsel %vm3002, %v7649, %v6588
  %v7682 = vsel %vm3002, %v7650, %v6590
  %v7683 = vsel %vm3002, %v7651, %v6592
  %v7684 = vsel %vm3002, %v7652, %v6594
  %v7685 = vsel %vm3002, %v7653, %v6596
  %v7686 = vsel %vm3002, %v7654, %v6598
  %v7687 = vsel %vm3035, %v7655, %v6664
  %v7688 = vsel %vm3035, %v7656, %v6666
  %v7689 = vsel %vm3035, %v7657, %v6668
  %v7690 = vsel %vm3035, %v7658, %v6670
  %v7691 = vsel %vm3035, %v7659, %v6672
  %v7692 = vsel %vm3035, %v7660, %v6674
  %v7693 = vsel %vm3035, %v7661, %v6676
  %v7694 = vsel %vm3035, %v7662, %v6678
  %v7695 = vsel %vm3035, %v7663, %v6680
  %v7696 = vsel %vm3035, %v7664, %v6682
  %v7697 = vsel %vm3035, %v7665, %v6684
  %v7698 = vsel %vm3035, %v7666, %v6686
  %v7699 = vsel %vm3035, %v7667, %v6688
  %v7700 = vsel %vm3035, %v7668, %v6690
  %v7701 = vsel %vm3035, %v7669, %v6692
  %v7702 = vsel %vm3035, %v7670, %v6694
  %v7703 = vsel %vm3035, %v7671, %v6696
  %v7704 = vsel %vm3035, %v7672, %v6698
  %v7705 = vsel %vm3035, %v7673, %v6700
  %v7706 = vsel %vm3035, %v7674, %v6702
  %v7707 = vsel %vm3035, %v7675, %v6704
  %v7708 = vsel %vm3035, %v7676, %v6706
  %v7709 = vsel %vm3035, %v7677, %v6708
  %v7710 = vsel %vm3035, %v7678, %v6710
  %v7711 = vsel %vm3035, %v7679, %v6712
  %v7712 = vsel %vm3035, %v7680, %v6714
  %v7713 = vsel %vm3035, %v7681, %v6716
  %v7714 = vsel %vm3035, %v7682, %v6718
  %v7715 = vsel %vm3035, %v7683, %v6720
  %v7716 = vsel %vm3035, %v7684, %v6722
  %v7717 = vsel %vm3035, %v7685, %v6724
  %v7718 = vsel %vm3035, %v7686, %v6726
  %v7719 = vsel %vm3068, %v7687, %v6792
  %v7720 = vsel %vm3068, %v7688, %v6794
  %v7721 = vsel %vm3068, %v7689, %v6796
  %v7722 = vsel %vm3068, %v7690, %v6798
  %v7723 = vsel %vm3068, %v7691, %v6800
  %v7724 = vsel %vm3068, %v7692, %v6802
  %v7725 = vsel %vm3068, %v7693, %v6804
  %v7726 = vsel %vm3068, %v7694, %v6806
  %v7727 = vsel %vm3068, %v7695, %v6808
  %v7728 = vsel %vm3068, %v7696, %v6810
  %v7729 = vsel %vm3068, %v7697, %v6812
  %v7730 = vsel %vm3068, %v7698, %v6814
  %v7731 = vsel %vm3068, %v7699, %v6816
  %v7732 = vsel %vm3068, %v7700, %v6818
  %v7733 = vsel %vm3068, %v7701, %v6820
  %v7734 = vsel %vm3068, %v7702, %v6822
  %v7735 = vsel %vm3068, %v7703, %v6824
  %v7736 = vsel %vm3068, %v7704, %v6826
  %v7737 = vsel %vm3068, %v7705, %v6828
  %v7738 = vsel %vm3068, %v7706, %v6830
  %v7739 = vsel %vm3068, %v7707, %v6832
  %v7740 = vsel %vm3068, %v7708, %v6834
  %v7741 = vsel %vm3068, %v7709, %v6836
  %v7742 = vsel %vm3068, %v7710, %v6838
  %v7743 = vsel %vm3068, %v7711, %v6840
  %v7744 = vsel %vm3068, %v7712, %v6842
  %v7745 = vsel %vm3068, %v7713, %v6844
  %v7746 = vsel %vm3068, %v7714, %v6846
  %v7747 = vsel %vm3068, %v7715, %v6848
  %v7748 = vsel %vm3068, %v7716, %v6850
  %v7749 = vsel %vm3068, %v7717, %v6852
  %v7750 = vsel %vm3068, %v7718, %v6854
  %v7751 = vsel %vm3101, %v7719, %v6920
  %v7752 = vsel %vm3101, %v7720, %v6922
  %v7753 = vsel %vm3101, %v7721, %v6924
  %v7754 = vsel %vm3101, %v7722, %v6926
  %v7755 = vsel %vm3101, %v7723, %v6928
  %v7756 = vsel %vm3101, %v7724, %v6930
  %v7757 = vsel %vm3101, %v7725, %v6932
  %v7758 = vsel %vm3101, %v7726, %v6934
  %v7759 = vsel %vm3101, %v7727, %v6936
  %v7760 = vsel %vm3101, %v7728, %v6938
  %v7761 = vsel %vm3101, %v7729, %v6940
  %v7762 = vsel %vm3101, %v7730, %v6942
  %v7763 = vsel %vm3101, %v7731, %v6944
  %v7764 = vsel %vm3101, %v7732, %v6946
  %v7765 = vsel %vm3101, %v7733, %v6948
  %v7766 = vsel %vm3101, %v7734, %v6950
  %v7767 = vsel %vm3101, %v7735, %v6952
  %v7768 = vsel %vm3101, %v7736, %v6954
  %v7769 = vsel %vm3101, %v7737, %v6956
  %v7770 = vsel %vm3101, %v7738, %v6958
  %v7771 = vsel %vm3101, %v7739, %v6960
  %v7772 = vsel %vm3101, %v7740, %v6962
  %v7773 = vsel %vm3101, %v7741, %v6964
  %v7774 = vsel %vm3101, %v7742, %v6966
  %v7775 = vsel %vm3101, %v7743, %v6968
  %v7776 = vsel %vm3101, %v7744, %v6970
  %v7777 = vsel %vm3101, %v7745, %v6972
  %v7778 = vsel %vm3101, %v7746, %v6974
  %v7779 = vsel %vm3101, %v7747, %v6976
  %v7780 = vsel %vm3101, %v7748, %v6978
  %v7781 = vsel %vm3101, %v7749, %v6980
  %v7782 = vsel %vm3101, %v7750, %v6982
  %v7783 = vsel %vm3134, %v7751, %v7048
  %v7784 = vsel %vm3134, %v7752, %v7050
  %v7785 = vsel %vm3134, %v7753, %v7052
  %v7786 = vsel %vm3134, %v7754, %v7054
  %v7787 = vsel %vm3134, %v7755, %v7056
  %v7788 = vsel %vm3134, %v7756, %v7058
  %v7789 = vsel %vm3134, %v7757, %v7060
  %v7790 = vsel %vm3134, %v7758, %v7062
  %v7791 = vsel %vm3134, %v7759, %v7064
  %v7792 = vsel %vm3134, %v7760, %v7066
  %v7793 = vsel %vm3134, %v7761, %v7068
  %v7794 = vsel %vm3134, %v7762, %v7070
  %v7795 = vsel %vm3134, %v7763, %v7072
  %v7796 = vsel %vm3134, %v7764, %v7074
  %v7797 = vsel %vm3134, %v7765, %v7076
  %v7798 = vsel %vm3134, %v7766, %v7078
  %v7799 = vsel %vm3134, %v7767, %v7080
  %v7800 = vsel %vm3134, %v7768, %v7082
  %v7801 = vsel %vm3134, %v7769, %v7084
  %v7802 = vsel %vm3134, %v7770, %v7086
  %v7803 = vsel %vm3134, %v7771, %v7088
  %v7804 = vsel %vm3134, %v7772, %v7090
  %v7805 = vsel %vm3134, %v7773, %v7092
  %v7806 = vsel %vm3134, %v7774, %v7094
  %v7807 = vsel %vm3134, %v7775, %v7096
  %v7808 = vsel %vm3134, %v7776, %v7098
  %v7809 = vsel %vm3134, %v7777, %v7100
  %v7810 = vsel %vm3134, %v7778, %v7102
  %v7811 = vsel %vm3134, %v7779, %v7104
  %v7812 = vsel %vm3134, %v7780, %v7106
  %v7813 = vsel %vm3134, %v7781, %v7108
  %v7814 = vsel %vm3134, %v7782, %v7110
  %v7815 = vsel %vm3167, %v7783, %v7176
  %v7816 = vsel %vm3167, %v7784, %v7178
  %v7817 = vsel %vm3167, %v7785, %v7180
  %v7818 = vsel %vm3167, %v7786, %v7182
  %v7819 = vsel %vm3167, %v7787, %v7184
  %v7820 = vsel %vm3167, %v7788, %v7186
  %v7821 = vsel %vm3167, %v7789, %v7188
  %v7822 = vsel %vm3167, %v7790, %v7190
  %v7823 = vsel %vm3167, %v7791, %v7192
  %v7824 = vsel %vm3167, %v7792, %v7194
  %v7825 = vsel %vm3167, %v7793, %v7196
  %v7826 = vsel %vm3167, %v7794, %v7198
  %v7827 = vsel %vm3167, %v7795, %v7200
  %v7828 = vsel %vm3167, %v7796, %v7202
  %v7829 = vsel %vm3167, %v7797, %v7204
  %v7830 = vsel %vm3167, %v7798, %v7206
  %v7831 = vsel %vm3167, %v7799, %v7208
  %v7832 = vsel %vm3167, %v7800, %v7210
  %v7833 = vsel %vm3167, %v7801, %v7212
  %v7834 = vsel %vm3167, %v7802, %v7214
  %v7835 = vsel %vm3167, %v7803, %v7216
  %v7836 = vsel %vm3167, %v7804, %v7218
  %v7837 = vsel %vm3167, %v7805, %v7220
  %v7838 = vsel %vm3167, %v7806, %v7222
  %v7839 = vsel %vm3167, %v7807, %v7224
  %v7840 = vsel %vm3167, %v7808, %v7226
  %v7841 = vsel %vm3167, %v7809, %v7228
  %v7842 = vsel %vm3167, %v7810, %v7230
  %v7843 = vsel %vm3167, %v7811, %v7232
  %v7844 = vsel %vm3167, %v7812, %v7234
  %v7845 = vsel %vm3167, %v7813, %v7236
  %v7846 = vsel %vm3167, %v7814, %v7238
  %v7847 = vsel %vm3200, %v7815, %v7304
  %v7848 = vsel %vm3200, %v7816, %v7306
  %v7849 = vsel %vm3200, %v7817, %v7308
  %v7850 = vsel %vm3200, %v7818, %v7310
  %v7851 = vsel %vm3200, %v7819, %v7312
  %v7852 = vsel %vm3200, %v7820, %v7314
  %v7853 = vsel %vm3200, %v7821, %v7316
  %v7854 = vsel %vm3200, %v7822, %v7318
  %v7855 = vsel %vm3200, %v7823, %v7320
  %v7856 = vsel %vm3200, %v7824, %v7322
  %v7857 = vsel %vm3200, %v7825, %v7324
  %v7858 = vsel %vm3200, %v7826, %v7326
  %v7859 = vsel %vm3200, %v7827, %v7328
  %v7860 = vsel %vm3200, %v7828, %v7330
  %v7861 = vsel %vm3200, %v7829, %v7332
  %v7862 = vsel %vm3200, %v7830, %v7334
  %v7863 = vsel %vm3200, %v7831, %v7336
  %v7864 = vsel %vm3200, %v7832, %v7338
  %v7865 = vsel %vm3200, %v7833, %v7340
  %v7866 = vsel %vm3200, %v7834, %v7342
  %v7867 = vsel %vm3200, %v7835, %v7344
  %v7868 = vsel %vm3200, %v7836, %v7346
  %v7869 = vsel %vm3200, %v7837, %v7348
  %v7870 = vsel %vm3200, %v7838, %v7350
  %v7871 = vsel %vm3200, %v7839, %v7352
  %v7872 = vsel %vm3200, %v7840, %v7354
  %v7873 = vsel %vm3200, %v7841, %v7356
  %v7874 = vsel %vm3200, %v7842, %v7358
  %v7875 = vsel %vm3200, %v7843, %v7360
  %v7876 = vsel %vm3200, %v7844, %v7362
  %v7877 = vsel %vm3200, %v7845, %v7364
  %v7878 = vsel %vm3200, %v7846, %v7366
  %7911 = vrot.lane.b32.xlu0 %v5222, 4
  %v7912 = vpop.permute.xlu0 %7911
  %7913 = vrot.lane.b32.xlu0 %v5223, 4
  %v7914 = vpop.permute.xlu0 %7913
  %7915 = vrot.lane.b32.xlu0 %v5224, 4
  %v7916 = vpop.permute.xlu0 %7915
  %7917 = vrot.lane.b32.xlu0 %v5225, 4
  %v7918 = vpop.permute.xlu0 %7917
  %7919 = vrot.lane.b32.xlu0 %v5226, 4
  %v7920 = vpop.permute.xlu0 %7919
  %7921 = vrot.lane.b32.xlu0 %v5227, 4
  %v7922 = vpop.permute.xlu0 %7921
  %7923 = vrot.lane.b32.xlu0 %v5228, 4
  %v7924 = vpop.permute.xlu0 %7923
  %7925 = vrot.lane.b32.xlu0 %v5229, 4
  %v7926 = vpop.permute.xlu0 %7925
  %7927 = vrot.lane.b32.xlu0 %v5230, 4
  %v7928 = vpop.permute.xlu0 %7927
  %7929 = vrot.lane.b32.xlu0 %v5231, 4
  %v7930 = vpop.permute.xlu0 %7929
  %7931 = vrot.lane.b32.xlu0 %v5232, 4
  %v7932 = vpop.permute.xlu0 %7931
  %7933 = vrot.lane.b32.xlu0 %v5233, 4
  %v7934 = vpop.permute.xlu0 %7933
  %7935 = vrot.lane.b32.xlu0 %v5234, 4
  %v7936 = vpop.permute.xlu0 %7935
  %7937 = vrot.lane.b32.xlu0 %v5235, 4
  %v7938 = vpop.permute.xlu0 %7937
  %7939 = vrot.lane.b32.xlu0 %v5236, 4
  %v7940 = vpop.permute.xlu0 %7939
  %7941 = vrot.lane.b32.xlu0 %v5237, 4
  %v7942 = vpop.permute.xlu0 %7941
  %7943 = vrot.lane.b32.xlu0 %v5238, 4
  %v7944 = vpop.permute.xlu0 %7943
  %7945 = vrot.lane.b32.xlu0 %v5239, 4
  %v7946 = vpop.permute.xlu0 %7945
  %7947 = vrot.lane.b32.xlu0 %v5240, 4
  %v7948 = vpop.permute.xlu0 %7947
  %7949 = vrot.lane.b32.xlu0 %v5241, 4
  %v7950 = vpop.permute.xlu0 %7949
  %7951 = vrot.lane.b32.xlu0 %v5242, 4
  %v7952 = vpop.permute.xlu0 %7951
  %7953 = vrot.lane.b32.xlu0 %v5243, 4
  %v7954 = vpop.permute.xlu0 %7953
  %7955 = vrot.lane.b32.xlu0 %v5244, 4
  %v7956 = vpop.permute.xlu0 %7955
  %7957 = vrot.lane.b32.xlu0 %v5245, 4
  %v7958 = vpop.permute.xlu0 %7957
  %7959 = vrot.lane.b32.xlu0 %v5246, 4
  %v7960 = vpop.permute.xlu0 %7959
  %7961 = vrot.lane.b32.xlu0 %v5247, 4
  %v7962 = vpop.permute.xlu0 %7961
  %7963 = vrot.lane.b32.xlu0 %v5248, 4
  %v7964 = vpop.permute.xlu0 %7963
  %7965 = vrot.lane.b32.xlu0 %v5249, 4
  %v7966 = vpop.permute.xlu0 %7965
  %7967 = vrot.lane.b32.xlu0 %v5250, 4
  %v7968 = vpop.permute.xlu0 %7967
  %7969 = vrot.lane.b32.xlu0 %v5251, 4
  %v7970 = vpop.permute.xlu0 %7969
  %7971 = vrot.lane.b32.xlu0 %v5252, 4
  %v7972 = vpop.permute.xlu0 %7971
  %7973 = vrot.lane.b32.xlu0 %v5253, 4
  %v7974 = vpop.permute.xlu0 %7973
  %8039 = vrot.lane.b32.xlu0 %v5254, 8
  %v8040 = vpop.permute.xlu0 %8039
  %8041 = vrot.lane.b32.xlu0 %v5255, 8
  %v8042 = vpop.permute.xlu0 %8041
  %8043 = vrot.lane.b32.xlu0 %v5256, 8
  %v8044 = vpop.permute.xlu0 %8043
  %8045 = vrot.lane.b32.xlu0 %v5257, 8
  %v8046 = vpop.permute.xlu0 %8045
  %8047 = vrot.lane.b32.xlu0 %v5258, 8
  %v8048 = vpop.permute.xlu0 %8047
  %8049 = vrot.lane.b32.xlu0 %v5259, 8
  %v8050 = vpop.permute.xlu0 %8049
  %8051 = vrot.lane.b32.xlu0 %v5260, 8
  %v8052 = vpop.permute.xlu0 %8051
  %8053 = vrot.lane.b32.xlu0 %v5261, 8
  %v8054 = vpop.permute.xlu0 %8053
  %8055 = vrot.lane.b32.xlu0 %v5262, 8
  %v8056 = vpop.permute.xlu0 %8055
  %8057 = vrot.lane.b32.xlu0 %v5263, 8
  %v8058 = vpop.permute.xlu0 %8057
  %8059 = vrot.lane.b32.xlu0 %v5264, 8
  %v8060 = vpop.permute.xlu0 %8059
  %8061 = vrot.lane.b32.xlu0 %v5265, 8
  %v8062 = vpop.permute.xlu0 %8061
  %8063 = vrot.lane.b32.xlu0 %v5266, 8
  %v8064 = vpop.permute.xlu0 %8063
  %8065 = vrot.lane.b32.xlu0 %v5267, 8
  %v8066 = vpop.permute.xlu0 %8065
  %8067 = vrot.lane.b32.xlu0 %v5268, 8
  %v8068 = vpop.permute.xlu0 %8067
  %8069 = vrot.lane.b32.xlu0 %v5269, 8
  %v8070 = vpop.permute.xlu0 %8069
  %8071 = vrot.lane.b32.xlu0 %v5270, 8
  %v8072 = vpop.permute.xlu0 %8071
  %8073 = vrot.lane.b32.xlu0 %v5271, 8
  %v8074 = vpop.permute.xlu0 %8073
  %8075 = vrot.lane.b32.xlu0 %v5272, 8
  %v8076 = vpop.permute.xlu0 %8075
  %8077 = vrot.lane.b32.xlu0 %v5273, 8
  %v8078 = vpop.permute.xlu0 %8077
  %8079 = vrot.lane.b32.xlu0 %v5274, 8
  %v8080 = vpop.permute.xlu0 %8079
  %8081 = vrot.lane.b32.xlu0 %v5275, 8
  %v8082 = vpop.permute.xlu0 %8081
  %8083 = vrot.lane.b32.xlu0 %v5276, 8
  %v8084 = vpop.permute.xlu0 %8083
  %8085 = vrot.lane.b32.xlu0 %v5277, 8
  %v8086 = vpop.permute.xlu0 %8085
  %8087 = vrot.lane.b32.xlu0 %v5278, 8
  %v8088 = vpop.permute.xlu0 %8087
  %8089 = vrot.lane.b32.xlu0 %v5279, 8
  %v8090 = vpop.permute.xlu0 %8089
  %8091 = vrot.lane.b32.xlu0 %v5280, 8
  %v8092 = vpop.permute.xlu0 %8091
  %8093 = vrot.lane.b32.xlu0 %v5281, 8
  %v8094 = vpop.permute.xlu0 %8093
  %8095 = vrot.lane.b32.xlu0 %v5282, 8
  %v8096 = vpop.permute.xlu0 %8095
  %8097 = vrot.lane.b32.xlu0 %v5283, 8
  %v8098 = vpop.permute.xlu0 %8097
  %8099 = vrot.lane.b32.xlu0 %v5284, 8
  %v8100 = vpop.permute.xlu0 %8099
  %8101 = vrot.lane.b32.xlu0 %v5285, 8
  %v8102 = vpop.permute.xlu0 %8101
  %8167 = vrot.lane.b32.xlu0 %v5286, 12
  %v8168 = vpop.permute.xlu0 %8167
  %8169 = vrot.lane.b32.xlu0 %v5287, 12
  %v8170 = vpop.permute.xlu0 %8169
  %8171 = vrot.lane.b32.xlu0 %v5288, 12
  %v8172 = vpop.permute.xlu0 %8171
  %8173 = vrot.lane.b32.xlu0 %v5289, 12
  %v8174 = vpop.permute.xlu0 %8173
  %8175 = vrot.lane.b32.xlu0 %v5290, 12
  %v8176 = vpop.permute.xlu0 %8175
  %8177 = vrot.lane.b32.xlu0 %v5291, 12
  %v8178 = vpop.permute.xlu0 %8177
  %8179 = vrot.lane.b32.xlu0 %v5292, 12
  %v8180 = vpop.permute.xlu0 %8179
  %8181 = vrot.lane.b32.xlu0 %v5293, 12
  %v8182 = vpop.permute.xlu0 %8181
  %8183 = vrot.lane.b32.xlu0 %v5294, 12
  %v8184 = vpop.permute.xlu0 %8183
  %8185 = vrot.lane.b32.xlu0 %v5295, 12
  %v8186 = vpop.permute.xlu0 %8185
  %8187 = vrot.lane.b32.xlu0 %v5296, 12
  %v8188 = vpop.permute.xlu0 %8187
  %8189 = vrot.lane.b32.xlu0 %v5297, 12
  %v8190 = vpop.permute.xlu0 %8189
  %8191 = vrot.lane.b32.xlu0 %v5298, 12
  %v8192 = vpop.permute.xlu0 %8191
  %8193 = vrot.lane.b32.xlu0 %v5299, 12
  %v8194 = vpop.permute.xlu0 %8193
  %8195 = vrot.lane.b32.xlu0 %v5300, 12
  %v8196 = vpop.permute.xlu0 %8195
  %8197 = vrot.lane.b32.xlu0 %v5301, 12
  %v8198 = vpop.permute.xlu0 %8197
  %8199 = vrot.lane.b32.xlu0 %v5302, 12
  %v8200 = vpop.permute.xlu0 %8199
  %8201 = vrot.lane.b32.xlu0 %v5303, 12
  %v8202 = vpop.permute.xlu0 %8201
  %8203 = vrot.lane.b32.xlu0 %v5304, 12
  %v8204 = vpop.permute.xlu0 %8203
  %8205 = vrot.lane.b32.xlu0 %v5305, 12
  %v8206 = vpop.permute.xlu0 %8205
  %8207 = vrot.lane.b32.xlu0 %v5306, 12
  %v8208 = vpop.permute.xlu0 %8207
  %8209 = vrot.lane.b32.xlu0 %v5307, 12
  %v8210 = vpop.permute.xlu0 %8209
  %8211 = vrot.lane.b32.xlu0 %v5308, 12
  %v8212 = vpop.permute.xlu0 %8211
  %8213 = vrot.lane.b32.xlu0 %v5309, 12
  %v8214 = vpop.permute.xlu0 %8213
  %8215 = vrot.lane.b32.xlu0 %v5310, 12
  %v8216 = vpop.permute.xlu0 %8215
  %8217 = vrot.lane.b32.xlu0 %v5311, 12
  %v8218 = vpop.permute.xlu0 %8217
  %8219 = vrot.lane.b32.xlu0 %v5312, 12
  %v8220 = vpop.permute.xlu0 %8219
  %8221 = vrot.lane.b32.xlu0 %v5313, 12
  %v8222 = vpop.permute.xlu0 %8221
  %8223 = vrot.lane.b32.xlu0 %v5314, 12
  %v8224 = vpop.permute.xlu0 %8223
  %8225 = vrot.lane.b32.xlu0 %v5315, 12
  %v8226 = vpop.permute.xlu0 %8225
  %8227 = vrot.lane.b32.xlu0 %v5316, 12
  %v8228 = vpop.permute.xlu0 %8227
  %8229 = vrot.lane.b32.xlu0 %v5317, 12
  %v8230 = vpop.permute.xlu0 %8229
  %8295 = vrot.lane.b32.xlu0 %v5319, 16
  %v8296 = vpop.permute.xlu0 %8295
  %8297 = vrot.lane.b32.xlu0 %v5320, 16
  %v8298 = vpop.permute.xlu0 %8297
  %8299 = vrot.lane.b32.xlu0 %v5321, 16
  %v8300 = vpop.permute.xlu0 %8299
  %8301 = vrot.lane.b32.xlu0 %v5322, 16
  %v8302 = vpop.permute.xlu0 %8301
  %8303 = vrot.lane.b32.xlu0 %v5323, 16
  %v8304 = vpop.permute.xlu0 %8303
  %8305 = vrot.lane.b32.xlu0 %v5324, 16
  %v8306 = vpop.permute.xlu0 %8305
  %8307 = vrot.lane.b32.xlu0 %v5325, 16
  %v8308 = vpop.permute.xlu0 %8307
  %8309 = vrot.lane.b32.xlu0 %v5326, 16
  %v8310 = vpop.permute.xlu0 %8309
  %8311 = vrot.lane.b32.xlu0 %v5327, 16
  %v8312 = vpop.permute.xlu0 %8311
  %8313 = vrot.lane.b32.xlu0 %v5328, 16
  %v8314 = vpop.permute.xlu0 %8313
  %8315 = vrot.lane.b32.xlu0 %v5329, 16
  %v8316 = vpop.permute.xlu0 %8315
  %8317 = vrot.lane.b32.xlu0 %v5330, 16
  %v8318 = vpop.permute.xlu0 %8317
  %8319 = vrot.lane.b32.xlu0 %v5331, 16
  %v8320 = vpop.permute.xlu0 %8319
  %8321 = vrot.lane.b32.xlu0 %v5332, 16
  %v8322 = vpop.permute.xlu0 %8321
  %8323 = vrot.lane.b32.xlu0 %v5333, 16
  %v8324 = vpop.permute.xlu0 %8323
  %8325 = vrot.lane.b32.xlu0 %v5334, 16
  %v8326 = vpop.permute.xlu0 %8325
  %8327 = vrot.lane.b32.xlu0 %v5335, 16
  %v8328 = vpop.permute.xlu0 %8327
  %8329 = vrot.lane.b32.xlu0 %v5336, 16
  %v8330 = vpop.permute.xlu0 %8329
  %8331 = vrot.lane.b32.xlu0 %v5337, 16
  %v8332 = vpop.permute.xlu0 %8331
  %8333 = vrot.lane.b32.xlu0 %v5338, 16
  %v8334 = vpop.permute.xlu0 %8333
  %8335 = vrot.lane.b32.xlu0 %v5339, 16
  %v8336 = vpop.permute.xlu0 %8335
  %8337 = vrot.lane.b32.xlu0 %v5340, 16
  %v8338 = vpop.permute.xlu0 %8337
  %8339 = vrot.lane.b32.xlu0 %v5341, 16
  %v8340 = vpop.permute.xlu0 %8339
  %8341 = vrot.lane.b32.xlu0 %v5342, 16
  %v8342 = vpop.permute.xlu0 %8341
  %8343 = vrot.lane.b32.xlu0 %v5343, 16
  %v8344 = vpop.permute.xlu0 %8343
  %8345 = vrot.lane.b32.xlu0 %v5344, 16
  %v8346 = vpop.permute.xlu0 %8345
  %8347 = vrot.lane.b32.xlu0 %v5345, 16
  %v8348 = vpop.permute.xlu0 %8347
  %8349 = vrot.lane.b32.xlu0 %v5346, 16
  %v8350 = vpop.permute.xlu0 %8349
  %8351 = vrot.lane.b32.xlu0 %v5347, 16
  %v8352 = vpop.permute.xlu0 %8351
  %8353 = vrot.lane.b32.xlu0 %v5348, 16
  %v8354 = vpop.permute.xlu0 %8353
  %8355 = vrot.lane.b32.xlu0 %v5349, 16
  %v8356 = vpop.permute.xlu0 %8355
  %8357 = vrot.lane.b32.xlu0 %v5350, 16
  %v8358 = vpop.permute.xlu0 %8357
  %8423 = vrot.lane.b32.xlu0 %v5351, 20
  %v8424 = vpop.permute.xlu0 %8423
  %8425 = vrot.lane.b32.xlu0 %v5352, 20
  %v8426 = vpop.permute.xlu0 %8425
  %8427 = vrot.lane.b32.xlu0 %v5353, 20
  %v8428 = vpop.permute.xlu0 %8427
  %8429 = vrot.lane.b32.xlu0 %v5354, 20
  %v8430 = vpop.permute.xlu0 %8429
  %8431 = vrot.lane.b32.xlu0 %v5355, 20
  %v8432 = vpop.permute.xlu0 %8431
  %8433 = vrot.lane.b32.xlu0 %v5356, 20
  %v8434 = vpop.permute.xlu0 %8433
  %8435 = vrot.lane.b32.xlu0 %v5357, 20
  %v8436 = vpop.permute.xlu0 %8435
  %8437 = vrot.lane.b32.xlu0 %v5358, 20
  %v8438 = vpop.permute.xlu0 %8437
  %8439 = vrot.lane.b32.xlu0 %v5359, 20
  %v8440 = vpop.permute.xlu0 %8439
  %8441 = vrot.lane.b32.xlu0 %v5360, 20
  %v8442 = vpop.permute.xlu0 %8441
  %8443 = vrot.lane.b32.xlu0 %v5361, 20
  %v8444 = vpop.permute.xlu0 %8443
  %8445 = vrot.lane.b32.xlu0 %v5362, 20
  %v8446 = vpop.permute.xlu0 %8445
  %8447 = vrot.lane.b32.xlu0 %v5363, 20
  %v8448 = vpop.permute.xlu0 %8447
  %8449 = vrot.lane.b32.xlu0 %v5364, 20
  %v8450 = vpop.permute.xlu0 %8449
  %8451 = vrot.lane.b32.xlu0 %v5365, 20
  %v8452 = vpop.permute.xlu0 %8451
  %8453 = vrot.lane.b32.xlu0 %v5366, 20
  %v8454 = vpop.permute.xlu0 %8453
  %8455 = vrot.lane.b32.xlu0 %v5367, 20
  %v8456 = vpop.permute.xlu0 %8455
  %8457 = vrot.lane.b32.xlu0 %v5368, 20
  %v8458 = vpop.permute.xlu0 %8457
  %8459 = vrot.lane.b32.xlu0 %v5369, 20
  %v8460 = vpop.permute.xlu0 %8459
  %8461 = vrot.lane.b32.xlu0 %v5370, 20
  %v8462 = vpop.permute.xlu0 %8461
  %8463 = vrot.lane.b32.xlu0 %v5371, 20
  %v8464 = vpop.permute.xlu0 %8463
  %8465 = vrot.lane.b32.xlu0 %v5372, 20
  %v8466 = vpop.permute.xlu0 %8465
  %8467 = vrot.lane.b32.xlu0 %v5373, 20
  %v8468 = vpop.permute.xlu0 %8467
  %8469 = vrot.lane.b32.xlu0 %v5374, 20
  %v8470 = vpop.permute.xlu0 %8469
  %8471 = vrot.lane.b32.xlu0 %v5375, 20
  %v8472 = vpop.permute.xlu0 %8471
  %8473 = vrot.lane.b32.xlu0 %v5376, 20
  %v8474 = vpop.permute.xlu0 %8473
  %8475 = vrot.lane.b32.xlu0 %v5377, 20
  %v8476 = vpop.permute.xlu0 %8475
  %8477 = vrot.lane.b32.xlu0 %v5378, 20
  %v8478 = vpop.permute.xlu0 %8477
  %8479 = vrot.lane.b32.xlu0 %v5379, 20
  %v8480 = vpop.permute.xlu0 %8479
  %8481 = vrot.lane.b32.xlu0 %v5380, 20
  %v8482 = vpop.permute.xlu0 %8481
  %8483 = vrot.lane.b32.xlu0 %v5381, 20
  %v8484 = vpop.permute.xlu0 %8483
  %8485 = vrot.lane.b32.xlu0 %v5382, 20
  %v8486 = vpop.permute.xlu0 %8485
  %8551 = vrot.lane.b32.xlu0 %v5383, 24
  %v8552 = vpop.permute.xlu0 %8551
  %8553 = vrot.lane.b32.xlu0 %v5384, 24
  %v8554 = vpop.permute.xlu0 %8553
  %8555 = vrot.lane.b32.xlu0 %v5385, 24
  %v8556 = vpop.permute.xlu0 %8555
  %8557 = vrot.lane.b32.xlu0 %v5386, 24
  %v8558 = vpop.permute.xlu0 %8557
  %8559 = vrot.lane.b32.xlu0 %v5387, 24
  %v8560 = vpop.permute.xlu0 %8559
  %8561 = vrot.lane.b32.xlu0 %v5388, 24
  %v8562 = vpop.permute.xlu0 %8561
  %8563 = vrot.lane.b32.xlu0 %v5389, 24
  %v8564 = vpop.permute.xlu0 %8563
  %8565 = vrot.lane.b32.xlu0 %v5390, 24
  %v8566 = vpop.permute.xlu0 %8565
  %8567 = vrot.lane.b32.xlu0 %v5391, 24
  %v8568 = vpop.permute.xlu0 %8567
  %8569 = vrot.lane.b32.xlu0 %v5392, 24
  %v8570 = vpop.permute.xlu0 %8569
  %8571 = vrot.lane.b32.xlu0 %v5393, 24
  %v8572 = vpop.permute.xlu0 %8571
  %8573 = vrot.lane.b32.xlu0 %v5394, 24
  %v8574 = vpop.permute.xlu0 %8573
  %8575 = vrot.lane.b32.xlu0 %v5395, 24
  %v8576 = vpop.permute.xlu0 %8575
  %8577 = vrot.lane.b32.xlu0 %v5396, 24
  %v8578 = vpop.permute.xlu0 %8577
  %8579 = vrot.lane.b32.xlu0 %v5397, 24
  %v8580 = vpop.permute.xlu0 %8579
  %8581 = vrot.lane.b32.xlu0 %v5398, 24
  %v8582 = vpop.permute.xlu0 %8581
  %8583 = vrot.lane.b32.xlu0 %v5399, 24
  %v8584 = vpop.permute.xlu0 %8583
  %8585 = vrot.lane.b32.xlu0 %v5400, 24
  %v8586 = vpop.permute.xlu0 %8585
  %8587 = vrot.lane.b32.xlu0 %v5401, 24
  %v8588 = vpop.permute.xlu0 %8587
  %8589 = vrot.lane.b32.xlu0 %v5402, 24
  %v8590 = vpop.permute.xlu0 %8589
  %8591 = vrot.lane.b32.xlu0 %v5403, 24
  %v8592 = vpop.permute.xlu0 %8591
  %8593 = vrot.lane.b32.xlu0 %v5404, 24
  %v8594 = vpop.permute.xlu0 %8593
  %8595 = vrot.lane.b32.xlu0 %v5405, 24
  %v8596 = vpop.permute.xlu0 %8595
  %8597 = vrot.lane.b32.xlu0 %v5406, 24
  %v8598 = vpop.permute.xlu0 %8597
  %8599 = vrot.lane.b32.xlu0 %v5407, 24
  %v8600 = vpop.permute.xlu0 %8599
  %8601 = vrot.lane.b32.xlu0 %v5408, 24
  %v8602 = vpop.permute.xlu0 %8601
  %8603 = vrot.lane.b32.xlu0 %v5409, 24
  %v8604 = vpop.permute.xlu0 %8603
  %8605 = vrot.lane.b32.xlu0 %v5410, 24
  %v8606 = vpop.permute.xlu0 %8605
  %8607 = vrot.lane.b32.xlu0 %v5411, 24
  %v8608 = vpop.permute.xlu0 %8607
  %8609 = vrot.lane.b32.xlu0 %v5412, 24
  %v8610 = vpop.permute.xlu0 %8609
  %8611 = vrot.lane.b32.xlu0 %v5413, 24
  %v8612 = vpop.permute.xlu0 %8611
  %8613 = vrot.lane.b32.xlu0 %v5414, 24
  %v8614 = vpop.permute.xlu0 %8613
  %8679 = vrot.lane.b32.xlu0 %v5415, 28
  %v8680 = vpop.permute.xlu0 %8679
  %8681 = vrot.lane.b32.xlu0 %v5416, 28
  %v8682 = vpop.permute.xlu0 %8681
  %8683 = vrot.lane.b32.xlu0 %v5417, 28
  %v8684 = vpop.permute.xlu0 %8683
  %8685 = vrot.lane.b32.xlu0 %v5418, 28
  %v8686 = vpop.permute.xlu0 %8685
  %8687 = vrot.lane.b32.xlu0 %v5419, 28
  %v8688 = vpop.permute.xlu0 %8687
  %8689 = vrot.lane.b32.xlu0 %v5420, 28
  %v8690 = vpop.permute.xlu0 %8689
  %8691 = vrot.lane.b32.xlu0 %v5421, 28
  %v8692 = vpop.permute.xlu0 %8691
  %8693 = vrot.lane.b32.xlu0 %v5422, 28
  %v8694 = vpop.permute.xlu0 %8693
  %8695 = vrot.lane.b32.xlu0 %v5423, 28
  %v8696 = vpop.permute.xlu0 %8695
  %8697 = vrot.lane.b32.xlu0 %v5424, 28
  %v8698 = vpop.permute.xlu0 %8697
  %8699 = vrot.lane.b32.xlu0 %v5425, 28
  %v8700 = vpop.permute.xlu0 %8699
  %8701 = vrot.lane.b32.xlu0 %v5426, 28
  %v8702 = vpop.permute.xlu0 %8701
  %8703 = vrot.lane.b32.xlu0 %v5427, 28
  %v8704 = vpop.permute.xlu0 %8703
  %8705 = vrot.lane.b32.xlu0 %v5428, 28
  %v8706 = vpop.permute.xlu0 %8705
  %8707 = vrot.lane.b32.xlu0 %v5429, 28
  %v8708 = vpop.permute.xlu0 %8707
  %8709 = vrot.lane.b32.xlu0 %v5430, 28
  %v8710 = vpop.permute.xlu0 %8709
  %8711 = vrot.lane.b32.xlu0 %v5431, 28
  %v8712 = vpop.permute.xlu0 %8711
  %8713 = vrot.lane.b32.xlu0 %v5432, 28
  %v8714 = vpop.permute.xlu0 %8713
  %8715 = vrot.lane.b32.xlu0 %v5433, 28
  %v8716 = vpop.permute.xlu0 %8715
  %8717 = vrot.lane.b32.xlu0 %v5434, 28
  %v8718 = vpop.permute.xlu0 %8717
  %8719 = vrot.lane.b32.xlu0 %v5435, 28
  %v8720 = vpop.permute.xlu0 %8719
  %8721 = vrot.lane.b32.xlu0 %v5436, 28
  %v8722 = vpop.permute.xlu0 %8721
  %8723 = vrot.lane.b32.xlu0 %v5437, 28
  %v8724 = vpop.permute.xlu0 %8723
  %8725 = vrot.lane.b32.xlu0 %v5438, 28
  %v8726 = vpop.permute.xlu0 %8725
  %8727 = vrot.lane.b32.xlu0 %v5439, 28
  %v8728 = vpop.permute.xlu0 %8727
  %8729 = vrot.lane.b32.xlu0 %v5440, 28
  %v8730 = vpop.permute.xlu0 %8729
  %8731 = vrot.lane.b32.xlu0 %v5441, 28
  %v8732 = vpop.permute.xlu0 %8731
  %8733 = vrot.lane.b32.xlu0 %v5442, 28
  %v8734 = vpop.permute.xlu0 %8733
  %8735 = vrot.lane.b32.xlu0 %v5443, 28
  %v8736 = vpop.permute.xlu0 %8735
  %8737 = vrot.lane.b32.xlu0 %v5444, 28
  %v8738 = vpop.permute.xlu0 %8737
  %8739 = vrot.lane.b32.xlu0 %v5445, 28
  %v8740 = vpop.permute.xlu0 %8739
  %8741 = vrot.lane.b32.xlu0 %v5446, 28
  %v8742 = vpop.permute.xlu0 %8741
  %8807 = vrot.lane.b32.xlu0 %v5447, 32
  %v8808 = vpop.permute.xlu0 %8807
  %8809 = vrot.lane.b32.xlu0 %v5448, 32
  %v8810 = vpop.permute.xlu0 %8809
  %8811 = vrot.lane.b32.xlu0 %v5449, 32
  %v8812 = vpop.permute.xlu0 %8811
  %8813 = vrot.lane.b32.xlu0 %v5450, 32
  %v8814 = vpop.permute.xlu0 %8813
  %8815 = vrot.lane.b32.xlu0 %v5451, 32
  %v8816 = vpop.permute.xlu0 %8815
  %8817 = vrot.lane.b32.xlu0 %v5452, 32
  %v8818 = vpop.permute.xlu0 %8817
  %8819 = vrot.lane.b32.xlu0 %v5453, 32
  %v8820 = vpop.permute.xlu0 %8819
  %8821 = vrot.lane.b32.xlu0 %v5454, 32
  %v8822 = vpop.permute.xlu0 %8821
  %8823 = vrot.lane.b32.xlu0 %v5455, 32
  %v8824 = vpop.permute.xlu0 %8823
  %8825 = vrot.lane.b32.xlu0 %v5456, 32
  %v8826 = vpop.permute.xlu0 %8825
  %8827 = vrot.lane.b32.xlu0 %v5457, 32
  %v8828 = vpop.permute.xlu0 %8827
  %8829 = vrot.lane.b32.xlu0 %v5458, 32
  %v8830 = vpop.permute.xlu0 %8829
  %8831 = vrot.lane.b32.xlu0 %v5459, 32
  %v8832 = vpop.permute.xlu0 %8831
  %8833 = vrot.lane.b32.xlu0 %v5460, 32
  %v8834 = vpop.permute.xlu0 %8833
  %8835 = vrot.lane.b32.xlu0 %v5461, 32
  %v8836 = vpop.permute.xlu0 %8835
  %8837 = vrot.lane.b32.xlu0 %v5462, 32
  %v8838 = vpop.permute.xlu0 %8837
  %8839 = vrot.lane.b32.xlu0 %v5463, 32
  %v8840 = vpop.permute.xlu0 %8839
  %8841 = vrot.lane.b32.xlu0 %v5464, 32
  %v8842 = vpop.permute.xlu0 %8841
  %8843 = vrot.lane.b32.xlu0 %v5465, 32
  %v8844 = vpop.permute.xlu0 %8843
  %8845 = vrot.lane.b32.xlu0 %v5466, 32
  %v8846 = vpop.permute.xlu0 %8845
  %8847 = vrot.lane.b32.xlu0 %v5467, 32
  %v8848 = vpop.permute.xlu0 %8847
  %8849 = vrot.lane.b32.xlu0 %v5468, 32
  %v8850 = vpop.permute.xlu0 %8849
  %8851 = vrot.lane.b32.xlu0 %v5469, 32
  %v8852 = vpop.permute.xlu0 %8851
  %8853 = vrot.lane.b32.xlu0 %v5470, 32
  %v8854 = vpop.permute.xlu0 %8853
  %8855 = vrot.lane.b32.xlu0 %v5471, 32
  %v8856 = vpop.permute.xlu0 %8855
  %8857 = vrot.lane.b32.xlu0 %v5472, 32
  %v8858 = vpop.permute.xlu0 %8857
  %8859 = vrot.lane.b32.xlu0 %v5473, 32
  %v8860 = vpop.permute.xlu0 %8859
  %8861 = vrot.lane.b32.xlu0 %v5474, 32
  %v8862 = vpop.permute.xlu0 %8861
  %8863 = vrot.lane.b32.xlu0 %v5475, 32
  %v8864 = vpop.permute.xlu0 %8863
  %8865 = vrot.lane.b32.xlu0 %v5476, 32
  %v8866 = vpop.permute.xlu0 %8865
  %8867 = vrot.lane.b32.xlu0 %v5477, 32
  %v8868 = vpop.permute.xlu0 %8867
  %8869 = vrot.lane.b32.xlu0 %v5478, 32
  %v8870 = vpop.permute.xlu0 %8869
  %v8903 = vsel %vm2738, %v5190, %v7912
  %v8904 = vsel %vm2738, %v5191, %v7914
  %v8905 = vsel %vm2738, %v5192, %v7916
  %v8906 = vsel %vm2738, %v5193, %v7918
  %v8907 = vsel %vm2738, %v5194, %v7920
  %v8908 = vsel %vm2738, %v5195, %v7922
  %v8909 = vsel %vm2738, %v5196, %v7924
  %v8910 = vsel %vm2738, %v5197, %v7926
  %v8911 = vsel %vm2738, %v5198, %v7928
  %v8912 = vsel %vm2738, %v5199, %v7930
  %v8913 = vsel %vm2738, %v5200, %v7932
  %v8914 = vsel %vm2738, %v5201, %v7934
  %v8915 = vsel %vm2738, %v5202, %v7936
  %v8916 = vsel %vm2738, %v5203, %v7938
  %v8917 = vsel %vm2738, %v5204, %v7940
  %v8918 = vsel %vm2738, %v5205, %v7942
  %v8919 = vsel %vm2738, %v5206, %v7944
  %v8920 = vsel %vm2738, %v5207, %v7946
  %v8921 = vsel %vm2738, %v5208, %v7948
  %v8922 = vsel %vm2738, %v5209, %v7950
  %v8923 = vsel %vm2738, %v5210, %v7952
  %v8924 = vsel %vm2738, %v5211, %v7954
  %v8925 = vsel %vm2738, %v5212, %v7956
  %v8926 = vsel %vm2738, %v5213, %v7958
  %v8927 = vsel %vm2738, %v5214, %v7960
  %v8928 = vsel %vm2738, %v5215, %v7962
  %v8929 = vsel %vm2738, %v5216, %v7964
  %v8930 = vsel %vm2738, %v5217, %v7966
  %v8931 = vsel %vm2738, %v5218, %v7968
  %v8932 = vsel %vm2738, %v5219, %v7970
  %v8933 = vsel %vm2738, %v5220, %v7972
  %v8934 = vsel %vm2738, %v5221, %v7974
  %v8935 = vsel %vm2771, %v8903, %v8040
  %v8936 = vsel %vm2771, %v8904, %v8042
  %v8937 = vsel %vm2771, %v8905, %v8044
  %v8938 = vsel %vm2771, %v8906, %v8046
  %v8939 = vsel %vm2771, %v8907, %v8048
  %v8940 = vsel %vm2771, %v8908, %v8050
  %v8941 = vsel %vm2771, %v8909, %v8052
  %v8942 = vsel %vm2771, %v8910, %v8054
  %v8943 = vsel %vm2771, %v8911, %v8056
  %v8944 = vsel %vm2771, %v8912, %v8058
  %v8945 = vsel %vm2771, %v8913, %v8060
  %v8946 = vsel %vm2771, %v8914, %v8062
  %v8947 = vsel %vm2771, %v8915, %v8064
  %v8948 = vsel %vm2771, %v8916, %v8066
  %v8949 = vsel %vm2771, %v8917, %v8068
  %v8950 = vsel %vm2771, %v8918, %v8070
  %v8951 = vsel %vm2771, %v8919, %v8072
  %v8952 = vsel %vm2771, %v8920, %v8074
  %v8953 = vsel %vm2771, %v8921, %v8076
  %v8954 = vsel %vm2771, %v8922, %v8078
  %v8955 = vsel %vm2771, %v8923, %v8080
  %v8956 = vsel %vm2771, %v8924, %v8082
  %v8957 = vsel %vm2771, %v8925, %v8084
  %v8958 = vsel %vm2771, %v8926, %v8086
  %v8959 = vsel %vm2771, %v8927, %v8088
  %v8960 = vsel %vm2771, %v8928, %v8090
  %v8961 = vsel %vm2771, %v8929, %v8092
  %v8962 = vsel %vm2771, %v8930, %v8094
  %v8963 = vsel %vm2771, %v8931, %v8096
  %v8964 = vsel %vm2771, %v8932, %v8098
  %v8965 = vsel %vm2771, %v8933, %v8100
  %v8966 = vsel %vm2771, %v8934, %v8102
  %v8967 = vsel %vm2804, %v8935, %v8168
  %v8968 = vsel %vm2804, %v8936, %v8170
  %v8969 = vsel %vm2804, %v8937, %v8172
  %v8970 = vsel %vm2804, %v8938, %v8174
  %v8971 = vsel %vm2804, %v8939, %v8176
  %v8972 = vsel %vm2804, %v8940, %v8178
  %v8973 = vsel %vm2804, %v8941, %v8180
  %v8974 = vsel %vm2804, %v8942, %v8182
  %v8975 = vsel %vm2804, %v8943, %v8184
  %v8976 = vsel %vm2804, %v8944, %v8186
  %v8977 = vsel %vm2804, %v8945, %v8188
  %v8978 = vsel %vm2804, %v8946, %v8190
  %v8979 = vsel %vm2804, %v8947, %v8192
  %v8980 = vsel %vm2804, %v8948, %v8194
  %v8981 = vsel %vm2804, %v8949, %v8196
  %v8982 = vsel %vm2804, %v8950, %v8198
  %v8983 = vsel %vm2804, %v8951, %v8200
  %v8984 = vsel %vm2804, %v8952, %v8202
  %v8985 = vsel %vm2804, %v8953, %v8204
  %v8986 = vsel %vm2804, %v8954, %v8206
  %v8987 = vsel %vm2804, %v8955, %v8208
  %v8988 = vsel %vm2804, %v8956, %v8210
  %v8989 = vsel %vm2804, %v8957, %v8212
  %v8990 = vsel %vm2804, %v8958, %v8214
  %v8991 = vsel %vm2804, %v8959, %v8216
  %v8992 = vsel %vm2804, %v8960, %v8218
  %v8993 = vsel %vm2804, %v8961, %v8220
  %v8994 = vsel %vm2804, %v8962, %v8222
  %v8995 = vsel %vm2804, %v8963, %v8224
  %v8996 = vsel %vm2804, %v8964, %v8226
  %v8997 = vsel %vm2804, %v8965, %v8228
  %v8998 = vsel %vm2804, %v8966, %v8230
  %v8999 = vsel %vm2837, %v8967, %v8296
  %v9000 = vsel %vm2837, %v8968, %v8298
  %v9001 = vsel %vm2837, %v8969, %v8300
  %v9002 = vsel %vm2837, %v8970, %v8302
  %v9003 = vsel %vm2837, %v8971, %v8304
  %v9004 = vsel %vm2837, %v8972, %v8306
  %v9005 = vsel %vm2837, %v8973, %v8308
  %v9006 = vsel %vm2837, %v8974, %v8310
  %v9007 = vsel %vm2837, %v8975, %v8312
  %v9008 = vsel %vm2837, %v8976, %v8314
  %v9009 = vsel %vm2837, %v8977, %v8316
  %v9010 = vsel %vm2837, %v8978, %v8318
  %v9011 = vsel %vm2837, %v8979, %v8320
  %v9012 = vsel %vm2837, %v8980, %v8322
  %v9013 = vsel %vm2837, %v8981, %v8324
  %v9014 = vsel %vm2837, %v8982, %v8326
  %v9015 = vsel %vm2837, %v8983, %v8328
  %v9016 = vsel %vm2837, %v8984, %v8330
  %v9017 = vsel %vm2837, %v8985, %v8332
  %v9018 = vsel %vm2837, %v8986, %v8334
  %v9019 = vsel %vm2837, %v8987, %v8336
  %v9020 = vsel %vm2837, %v8988, %v8338
  %v9021 = vsel %vm2837, %v8989, %v8340
  %v9022 = vsel %vm2837, %v8990, %v8342
  %v9023 = vsel %vm2837, %v8991, %v8344
  %v9024 = vsel %vm2837, %v8992, %v8346
  %v9025 = vsel %vm2837, %v8993, %v8348
  %v9026 = vsel %vm2837, %v8994, %v8350
  %v9027 = vsel %vm2837, %v8995, %v8352
  %v9028 = vsel %vm2837, %v8996, %v8354
  %v9029 = vsel %vm2837, %v8997, %v8356
  %v9030 = vsel %vm2837, %v8998, %v8358
  %v9031 = vsel %vm2870, %v8999, %v8424
  %v9032 = vsel %vm2870, %v9000, %v8426
  %v9033 = vsel %vm2870, %v9001, %v8428
  %v9034 = vsel %vm2870, %v9002, %v8430
  %v9035 = vsel %vm2870, %v9003, %v8432
  %v9036 = vsel %vm2870, %v9004, %v8434
  %v9037 = vsel %vm2870, %v9005, %v8436
  %v9038 = vsel %vm2870, %v9006, %v8438
  %v9039 = vsel %vm2870, %v9007, %v8440
  %v9040 = vsel %vm2870, %v9008, %v8442
  %v9041 = vsel %vm2870, %v9009, %v8444
  %v9042 = vsel %vm2870, %v9010, %v8446
  %v9043 = vsel %vm2870, %v9011, %v8448
  %v9044 = vsel %vm2870, %v9012, %v8450
  %v9045 = vsel %vm2870, %v9013, %v8452
  %v9046 = vsel %vm2870, %v9014, %v8454
  %v9047 = vsel %vm2870, %v9015, %v8456
  %v9048 = vsel %vm2870, %v9016, %v8458
  %v9049 = vsel %vm2870, %v9017, %v8460
  %v9050 = vsel %vm2870, %v9018, %v8462
  %v9051 = vsel %vm2870, %v9019, %v8464
  %v9052 = vsel %vm2870, %v9020, %v8466
  %v9053 = vsel %vm2870, %v9021, %v8468
  %v9054 = vsel %vm2870, %v9022, %v8470
  %v9055 = vsel %vm2870, %v9023, %v8472
  %v9056 = vsel %vm2870, %v9024, %v8474
  %v9057 = vsel %vm2870, %v9025, %v8476
  %v9058 = vsel %vm2870, %v9026, %v8478
  %v9059 = vsel %vm2870, %v9027, %v8480
  %v9060 = vsel %vm2870, %v9028, %v8482
  %v9061 = vsel %vm2870, %v9029, %v8484
  %v9062 = vsel %vm2870, %v9030, %v8486
  %v9063 = vsel %vm2903, %v9031, %v8552
  %v9064 = vsel %vm2903, %v9032, %v8554
  %v9065 = vsel %vm2903, %v9033, %v8556
  %v9066 = vsel %vm2903, %v9034, %v8558
  %v9067 = vsel %vm2903, %v9035, %v8560
  %v9068 = vsel %vm2903, %v9036, %v8562
  %v9069 = vsel %vm2903, %v9037, %v8564
  %v9070 = vsel %vm2903, %v9038, %v8566
  %v9071 = vsel %vm2903, %v9039, %v8568
  %v9072 = vsel %vm2903, %v9040, %v8570
  %v9073 = vsel %vm2903, %v9041, %v8572
  %v9074 = vsel %vm2903, %v9042, %v8574
  %v9075 = vsel %vm2903, %v9043, %v8576
  %v9076 = vsel %vm2903, %v9044, %v8578
  %v9077 = vsel %vm2903, %v9045, %v8580
  %v9078 = vsel %vm2903, %v9046, %v8582
  %v9079 = vsel %vm2903, %v9047, %v8584
  %v9080 = vsel %vm2903, %v9048, %v8586
  %v9081 = vsel %vm2903, %v9049, %v8588
  %v9082 = vsel %vm2903, %v9050, %v8590
  %v9083 = vsel %vm2903, %v9051, %v8592
  %v9084 = vsel %vm2903, %v9052, %v8594
  %v9085 = vsel %vm2903, %v9053, %v8596
  %v9086 = vsel %vm2903, %v9054, %v8598
  %v9087 = vsel %vm2903, %v9055, %v8600
  %v9088 = vsel %vm2903, %v9056, %v8602
  %v9089 = vsel %vm2903, %v9057, %v8604
  %v9090 = vsel %vm2903, %v9058, %v8606
  %v9091 = vsel %vm2903, %v9059, %v8608
  %v9092 = vsel %vm2903, %v9060, %v8610
  %v9093 = vsel %vm2903, %v9061, %v8612
  %v9094 = vsel %vm2903, %v9062, %v8614
  %v9095 = vsel %vm2936, %v9063, %v8680
  %v9096 = vsel %vm2936, %v9064, %v8682
  %v9097 = vsel %vm2936, %v9065, %v8684
  %v9098 = vsel %vm2936, %v9066, %v8686
  %v9099 = vsel %vm2936, %v9067, %v8688
  %v9100 = vsel %vm2936, %v9068, %v8690
  %v9101 = vsel %vm2936, %v9069, %v8692
  %v9102 = vsel %vm2936, %v9070, %v8694
  %v9103 = vsel %vm2936, %v9071, %v8696
  %v9104 = vsel %vm2936, %v9072, %v8698
  %v9105 = vsel %vm2936, %v9073, %v8700
  %v9106 = vsel %vm2936, %v9074, %v8702
  %v9107 = vsel %vm2936, %v9075, %v8704
  %v9108 = vsel %vm2936, %v9076, %v8706
  %v9109 = vsel %vm2936, %v9077, %v8708
  %v9110 = vsel %vm2936, %v9078, %v8710
  %v9111 = vsel %vm2936, %v9079, %v8712
  %v9112 = vsel %vm2936, %v9080, %v8714
  %v9113 = vsel %vm2936, %v9081, %v8716
  %v9114 = vsel %vm2936, %v9082, %v8718
  %v9115 = vsel %vm2936, %v9083, %v8720
  %v9116 = vsel %vm2936, %v9084, %v8722
  %v9117 = vsel %vm2936, %v9085, %v8724
  %v9118 = vsel %vm2936, %v9086, %v8726
  %v9119 = vsel %vm2936, %v9087, %v8728
  %v9120 = vsel %vm2936, %v9088, %v8730
  %v9121 = vsel %vm2936, %v9089, %v8732
  %v9122 = vsel %vm2936, %v9090, %v8734
  %v9123 = vsel %vm2936, %v9091, %v8736
  %v9124 = vsel %vm2936, %v9092, %v8738
  %v9125 = vsel %vm2936, %v9093, %v8740
  %v9126 = vsel %vm2936, %v9094, %v8742
  %v9127 = vsel %vm2969, %v9095, %v8808
  %v9128 = vsel %vm2969, %v9096, %v8810
  %v9129 = vsel %vm2969, %v9097, %v8812
  %v9130 = vsel %vm2969, %v9098, %v8814
  %v9131 = vsel %vm2969, %v9099, %v8816
  %v9132 = vsel %vm2969, %v9100, %v8818
  %v9133 = vsel %vm2969, %v9101, %v8820
  %v9134 = vsel %vm2969, %v9102, %v8822
  %v9135 = vsel %vm2969, %v9103, %v8824
  %v9136 = vsel %vm2969, %v9104, %v8826
  %v9137 = vsel %vm2969, %v9105, %v8828
  %v9138 = vsel %vm2969, %v9106, %v8830
  %v9139 = vsel %vm2969, %v9107, %v8832
  %v9140 = vsel %vm2969, %v9108, %v8834
  %v9141 = vsel %vm2969, %v9109, %v8836
  %v9142 = vsel %vm2969, %v9110, %v8838
  %v9143 = vsel %vm2969, %v9111, %v8840
  %v9144 = vsel %vm2969, %v9112, %v8842
  %v9145 = vsel %vm2969, %v9113, %v8844
  %v9146 = vsel %vm2969, %v9114, %v8846
  %v9147 = vsel %vm2969, %v9115, %v8848
  %v9148 = vsel %vm2969, %v9116, %v8850
  %v9149 = vsel %vm2969, %v9117, %v8852
  %v9150 = vsel %vm2969, %v9118, %v8854
  %v9151 = vsel %vm2969, %v9119, %v8856
  %v9152 = vsel %vm2969, %v9120, %v8858
  %v9153 = vsel %vm2969, %v9121, %v8860
  %v9154 = vsel %vm2969, %v9122, %v8862
  %v9155 = vsel %vm2969, %v9123, %v8864
  %v9156 = vsel %vm2969, %v9124, %v8866
  %v9157 = vsel %vm2969, %v9125, %v8868
  %v9158 = vsel %vm2969, %v9126, %v8870
  %9191 = vrot.lane.b32.xlu0 %v9127, 64
  %v9192 = vpop.permute.xlu0 %9191
  %9193 = vrot.lane.b32.xlu0 %v9128, 64
  %v9194 = vpop.permute.xlu0 %9193
  %9195 = vrot.lane.b32.xlu0 %v9129, 64
  %v9196 = vpop.permute.xlu0 %9195
  %9197 = vrot.lane.b32.xlu0 %v9130, 64
  %v9198 = vpop.permute.xlu0 %9197
  %9199 = vrot.lane.b32.xlu0 %v9131, 64
  %v9200 = vpop.permute.xlu0 %9199
  %9201 = vrot.lane.b32.xlu0 %v9132, 64
  %v9202 = vpop.permute.xlu0 %9201
  %9203 = vrot.lane.b32.xlu0 %v9133, 64
  %v9204 = vpop.permute.xlu0 %9203
  %9205 = vrot.lane.b32.xlu0 %v9134, 64
  %v9206 = vpop.permute.xlu0 %9205
  %9207 = vrot.lane.b32.xlu0 %v9135, 64
  %v9208 = vpop.permute.xlu0 %9207
  %9209 = vrot.lane.b32.xlu0 %v9136, 64
  %v9210 = vpop.permute.xlu0 %9209
  %9211 = vrot.lane.b32.xlu0 %v9137, 64
  %v9212 = vpop.permute.xlu0 %9211
  %9213 = vrot.lane.b32.xlu0 %v9138, 64
  %v9214 = vpop.permute.xlu0 %9213
  %9215 = vrot.lane.b32.xlu0 %v9139, 64
  %v9216 = vpop.permute.xlu0 %9215
  %9217 = vrot.lane.b32.xlu0 %v9140, 64
  %v9218 = vpop.permute.xlu0 %9217
  %9219 = vrot.lane.b32.xlu0 %v9141, 64
  %v9220 = vpop.permute.xlu0 %9219
  %9221 = vrot.lane.b32.xlu0 %v9142, 64
  %v9222 = vpop.permute.xlu0 %9221
  %9223 = vrot.lane.b32.xlu0 %v9143, 64
  %v9224 = vpop.permute.xlu0 %9223
  %9225 = vrot.lane.b32.xlu0 %v9144, 64
  %v9226 = vpop.permute.xlu0 %9225
  %9227 = vrot.lane.b32.xlu0 %v9145, 64
  %v9228 = vpop.permute.xlu0 %9227
  %9229 = vrot.lane.b32.xlu0 %v9146, 64
  %v9230 = vpop.permute.xlu0 %9229
  %9231 = vrot.lane.b32.xlu0 %v9147, 64
  %v9232 = vpop.permute.xlu0 %9231
  %9233 = vrot.lane.b32.xlu0 %v9148, 64
  %v9234 = vpop.permute.xlu0 %9233
  %9235 = vrot.lane.b32.xlu0 %v9149, 64
  %v9236 = vpop.permute.xlu0 %9235
  %9237 = vrot.lane.b32.xlu0 %v9150, 64
  %v9238 = vpop.permute.xlu0 %9237
  %9239 = vrot.lane.b32.xlu0 %v9151, 64
  %v9240 = vpop.permute.xlu0 %9239
  %9241 = vrot.lane.b32.xlu0 %v9152, 64
  %v9242 = vpop.permute.xlu0 %9241
  %9243 = vrot.lane.b32.xlu0 %v9153, 64
  %v9244 = vpop.permute.xlu0 %9243
  %9245 = vrot.lane.b32.xlu0 %v9154, 64
  %v9246 = vpop.permute.xlu0 %9245
  %9247 = vrot.lane.b32.xlu0 %v9155, 64
  %v9248 = vpop.permute.xlu0 %9247
  %9249 = vrot.lane.b32.xlu0 %v9156, 64
  %v9250 = vpop.permute.xlu0 %9249
  %9251 = vrot.lane.b32.xlu0 %v9157, 64
  %v9252 = vpop.permute.xlu0 %9251
  %9253 = vrot.lane.b32.xlu0 %v9158, 64
  %v9254 = vpop.permute.xlu0 %9253
  %v9287 = vsel %vm4641, %v7847, %v9192
  %v9288 = vsel %vm4641, %v7848, %v9194
  %v9289 = vsel %vm4641, %v7849, %v9196
  %v9290 = vsel %vm4641, %v7850, %v9198
  %v9291 = vsel %vm4641, %v7851, %v9200
  %v9292 = vsel %vm4641, %v7852, %v9202
  %v9293 = vsel %vm4641, %v7853, %v9204
  %v9294 = vsel %vm4641, %v7854, %v9206
  %v9295 = vsel %vm4641, %v7855, %v9208
  %v9296 = vsel %vm4641, %v7856, %v9210
  %v9297 = vsel %vm4641, %v7857, %v9212
  %v9298 = vsel %vm4641, %v7858, %v9214
  %v9299 = vsel %vm4641, %v7859, %v9216
  %v9300 = vsel %vm4641, %v7860, %v9218
  %v9301 = vsel %vm4641, %v7861, %v9220
  %v9302 = vsel %vm4641, %v7862, %v9222
  %v9303 = vsel %vm4641, %v7863, %v9224
  %v9304 = vsel %vm4641, %v7864, %v9226
  %v9305 = vsel %vm4641, %v7865, %v9228
  %v9306 = vsel %vm4641, %v7866, %v9230
  %v9307 = vsel %vm4641, %v7867, %v9232
  %v9308 = vsel %vm4641, %v7868, %v9234
  %v9309 = vsel %vm4641, %v7869, %v9236
  %v9310 = vsel %vm4641, %v7870, %v9238
  %v9311 = vsel %vm4641, %v7871, %v9240
  %v9312 = vsel %vm4641, %v7872, %v9242
  %v9313 = vsel %vm4641, %v7873, %v9244
  %v9314 = vsel %vm4641, %v7874, %v9246
  %v9315 = vsel %vm4641, %v7875, %v9248
  %v9316 = vsel %vm4641, %v7876, %v9250
  %v9317 = vsel %vm4641, %v7877, %v9252
  %v9318 = vsel %vm4641, %v7878, %v9254
  %v9319 = vld [vmem:[%s1] sm:$0xff]
  %v9320 = vld [vmem:[%s1 + $0x8] sm:$0xff]
  %v9321 = vld [vmem:[%s1 + $0x10] sm:$0xff]
  %v9322 = vld [vmem:[%s2] sm:$0xff]
  %v9323 = vld [vmem:[%s2 + $0x8] sm:$0xff]
  %v9324 = vld [vmem:[%s2 + $0x10] sm:$0xff]
  %9326 = vset.pattern.permute.xlu0 0
  %9327 = vperm.xlu0 %9326, %v9322
  %v9328 = vpop.permute.xlu0 %9327
  %9331 = vset.pattern.permute.xlu0 0
  %9332 = vperm.xlu0 %9331, %v9323
  %v9333 = vpop.permute.xlu0 %9332
  %9336 = vset.pattern.permute.xlu0 0
  %9337 = vperm.xlu0 %9336, %v9324
  %v9338 = vpop.permute.xlu0 %9337
  %vm9340 = vcmask 818176
  %v9342 = vsel %vm9340, %v9319, 0
  %v9345 = vsel %vm9340, %v9320, 0
  %v9348 = vsel %vm9340, %v9321, 0
  %v9351 = vsel %vm9340, %v4642, 0
  %v9354 = vsel %vm9340, %v4643, 0
  %v9357 = vsel %vm9340, %v4644, 0
  %v9360 = vsel %vm9340, %v4645, 0
  %v9363 = vsel %vm9340, %v4646, 0
  %v9366 = vsel %vm9340, %v4647, 0
  %v9369 = vsel %vm9340, %v4648, 0
  %v9372 = vsel %vm9340, %v4649, 0
  %v9375 = vsel %vm9340, %v4650, 0
  %v9378 = vsel %vm9340, %v4651, 0
  %v9381 = vsel %vm9340, %v4652, 0
  %v9384 = vsel %vm9340, %v4653, 0
  %v9387 = vsel %vm9340, %v4654, 0
  %v9390 = vsel %vm9340, %v4655, 0
  %v9393 = vsel %vm9340, %v4656, 0
  %v9396 = vsel %vm9340, %v4657, 0
  %v9399 = vsel %vm9340, %v4658, 0
  %v9402 = vsel %vm9340, %v4659, 0
  %v9405 = vsel %vm9340, %v4660, 0
  %v9408 = vsel %vm9340, %v4661, 0
  %v9411 = vsel %vm9340, %v4662, 0
  %v9414 = vsel %vm9340, %v4663, 0
  %v9417 = vsel %vm9340, %v4664, 0
  %v9420 = vsel %vm9340, %v4665, 0
  %v9423 = vsel %vm9340, %v4666, 0
  %v9426 = vsel %vm9340, %v4667, 0
  %v9429 = vsel %vm9340, %v4668, 0
  %v9432 = vsel %vm9340, %v4669, 0
  %v9435 = vsel %vm9340, %v4670, 0
  %v9438 = vsel %vm9340, %v4671, 0
  %v9441 = vsel %vm9340, %v4672, 0
  %v9444 = vsel %vm9340, %v4673, 0
  %v9447 = vsel %vm9340, %v9287, 0
  %v9450 = vsel %vm9340, %v9288, 0
  %v9453 = vsel %vm9340, %v9289, 0
  %v9456 = vsel %vm9340, %v9290, 0
  %v9459 = vsel %vm9340, %v9291, 0
  %v9462 = vsel %vm9340, %v9292, 0
  %v9465 = vsel %vm9340, %v9293, 0
  %v9468 = vsel %vm9340, %v9294, 0
  %v9471 = vsel %vm9340, %v9295, 0
  %v9474 = vsel %vm9340, %v9296, 0
  %v9477 = vsel %vm9340, %v9297, 0
  %v9480 = vsel %vm9340, %v9298, 0
  %v9483 = vsel %vm9340, %v9299, 0
  %v9486 = vsel %vm9340, %v9300, 0
  %v9489 = vsel %vm9340, %v9301, 0
  %v9492 = vsel %vm9340, %v9302, 0
  %v9495 = vsel %vm9340, %v9303, 0
  %v9498 = vsel %vm9340, %v9304, 0
  %v9501 = vsel %vm9340, %v9305, 0
  %v9504 = vsel %vm9340, %v9306, 0
  %v9507 = vsel %vm9340, %v9307, 0
  %v9510 = vsel %vm9340, %v9308, 0
  %v9513 = vsel %vm9340, %v9309, 0
  %v9516 = vsel %vm9340, %v9310, 0
  %v9519 = vsel %vm9340, %v9311, 0
  %v9522 = vsel %vm9340, %v9312, 0
  %v9525 = vsel %vm9340, %v9313, 0
  %v9528 = vsel %vm9340, %v9314, 0
  %v9531 = vsel %vm9340, %v9315, 0
  %v9534 = vsel %vm9340, %v9316, 0
  %v9537 = vsel %vm9340, %v9317, 0
  %v9540 = vsel %vm9340, %v9318, 0
  %9542 = vmatprep.subr.mxu0 0.0
  %9543 = vmatpush1.xpose.msra.mxu0 %v9396
  %9544 = vmatprep.subr.mxu0 0.0
  %9545 = vmatpush1.xpose.msra.mxu0 %v9393
  %9546 = vmatprep.subr.mxu0 0.0
  %9547 = vmatpush1.xpose.msra.mxu0 %v9390
  %9548 = vmatprep.subr.mxu0 0.0
  %9549 = vmatpush1.xpose.msra.mxu0 %v9387
  %9550 = vmatprep.subr.mxu0 0.0
  %9551 = vmatpush1.xpose.msra.mxu0 %v9384
  %9552 = vmatprep.subr.mxu0 0.0
  %9553 = vmatpush1.xpose.msra.mxu0 %v9381
  %9554 = vmatprep.subr.mxu0 0.0
  %9555 = vmatpush1.xpose.msra.mxu0 %v9378
  %9556 = vmatprep.subr.mxu0 0.0
  %9557 = vmatpush1.xpose.msra.mxu0 %v9375
  %9558 = vmatprep.subr.mxu0 0.0
  %9559 = vmatpush1.xpose.msra.mxu0 %v9372
  %9560 = vmatprep.subr.mxu0 0.0
  %9561 = vmatpush1.xpose.msra.mxu0 %v9369
  %9562 = vmatprep.subr.mxu0 0.0
  %9563 = vmatpush1.xpose.msra.mxu0 %v9366
  %9564 = vmatprep.subr.mxu0 0.0
  %9565 = vmatpush1.xpose.msra.mxu0 %v9363
  %9566 = vmatprep.subr.mxu0 0.0
  %9567 = vmatpush1.xpose.msra.mxu0 %v9360
  %9568 = vmatprep.subr.mxu0 0.0
  %9569 = vmatpush1.xpose.msra.mxu0 %v9357
  %9570 = vmatprep.subr.mxu0 0.0
  %9571 = vmatpush1.xpose.msra.mxu0 %v9354
  %9572 = vmatprep.subr.mxu0 0.0
  %9573 = vmatpush1.xpose.msra.mxu0 %v9351
  %9574 = vmatprep.subr.mxu0 0.0
  %9575 = vmatpush2.xpose.msra.mxu0 %v9444
  %9576 = vmatprep.subr.mxu0 0.0
  %9577 = vmatpush2.xpose.msra.mxu0 %v9441
  %9578 = vmatprep.subr.mxu0 0.0
  %9579 = vmatpush2.xpose.msra.mxu0 %v9438
  %9580 = vmatprep.subr.mxu0 0.0
  %9581 = vmatpush2.xpose.msra.mxu0 %v9435
  %9582 = vmatprep.subr.mxu0 0.0
  %9583 = vmatpush2.xpose.msra.mxu0 %v9432
  %9584 = vmatprep.subr.mxu0 0.0
  %9585 = vmatpush2.xpose.msra.mxu0 %v9429
  %9586 = vmatprep.subr.mxu0 0.0
  %9587 = vmatpush2.xpose.msra.mxu0 %v9426
  %9588 = vmatprep.subr.mxu0 0.0
  %9589 = vmatpush2.xpose.msra.mxu0 %v9423
  %9590 = vmatprep.subr.mxu0 0.0
  %9591 = vmatpush2.xpose.msra.mxu0 %v9420
  %9592 = vmatprep.subr.mxu0 0.0
  %9593 = vmatpush2.xpose.msra.mxu0 %v9417
  %9594 = vmatprep.subr.mxu0 0.0
  %9595 = vmatpush2.xpose.msra.mxu0 %v9414
  %9596 = vmatprep.subr.mxu0 0.0
  %9597 = vmatpush2.xpose.msra.mxu0 %v9411
  %9598 = vmatprep.subr.mxu0 0.0
  %9599 = vmatpush2.xpose.msra.mxu0 %v9408
  %9600 = vmatprep.subr.mxu0 0.0
  %9601 = vmatpush2.xpose.msra.mxu0 %v9405
  %9602 = vmatprep.subr.mxu0 0.0
  %9603 = vmatpush2.xpose.msra.mxu0 %v9402
  %9604 = vmatprep.subr.mxu0 0.0
  %9605 = vmatpush2.xpose.msra.mxu0 %v9399
  %9606 = vmatprep.mubr.f32.mxu0 0.0
  %9607 = vmatmul.mubr.f32.gmra.mxu0 %v9342
  %v9608 = vpop.f32.mrf.mxu0
  %v9609 = vadd.f32 %v9328, %v9608
  %v9610 = vpop.f32.mrf.mxu0
  %v9611 = vadd.f32 %v9328, %v9610
  %9612 = vmatprep.mubr.f32.mxu0 0.0
  %9613 = vmatmul.mubr.f32.gmra.mxu0 %v9345
  %v9614 = vpop.f32.mrf.mxu0
  %v9615 = vadd.f32 %v9333, %v9614
  %v9616 = vpop.f32.mrf.mxu0
  %v9617 = vadd.f32 %v9333, %v9616
  %9618 = vmatprep.mubr.f32.mxu0 0.0
  %9619 = vmatmul.mubr.f32.gmra.mxu0 %v9348
  %v9620 = vpop.f32.mrf.mxu0
  %v9621 = vadd.f32 %v9338, %v9620
  %v9622 = vpop.f32.mrf.mxu0
  %v9623 = vadd.f32 %v9338, %v9622
  %9624 = vdwg.mxu0
  %9625 = vmatprep.subr.mxu0 0.0
  %9626 = vmatpush1.xpose.msra.mxu0 %v9492
  %9627 = vmatprep.subr.mxu0 0.0
  %9628 = vmatpush1.xpose.msra.mxu0 %v9489
  %9629 = vmatprep.subr.mxu0 0.0
  %9630 = vmatpush1.xpose.msra.mxu0 %v9486
  %9631 = vmatprep.subr.mxu0 0.0
  %9632 = vmatpush1.xpose.msra.mxu0 %v9483
  %9633 = vmatprep.subr.mxu0 0.0
  %9634 = vmatpush1.xpose.msra.mxu0 %v9480
  %9635 = vmatprep.subr.mxu0 0.0
  %9636 = vmatpush1.xpose.msra.mxu0 %v9477
  %9637 = vmatprep.subr.mxu0 0.0
  %9638 = vmatpush1.xpose.msra.mxu0 %v9474
  %9639 = vmatprep.subr.mxu0 0.0
  %9640 = vmatpush1.xpose.msra.mxu0 %v9471
  %9641 = vmatprep.subr.mxu0 0.0
  %9642 = vmatpush1.xpose.msra.mxu0 %v9468
  %9643 = vmatprep.subr.mxu0 0.0
  %9644 = vmatpush1.xpose.msra.mxu0 %v9465
  %9645 = vmatprep.subr.mxu0 0.0
  %9646 = vmatpush1.xpose.msra.mxu0 %v9462
  %9647 = vmatprep.subr.mxu0 0.0
  %9648 = vmatpush1.xpose.msra.mxu0 %v9459
  %9649 = vmatprep.subr.mxu0 0.0
  %9650 = vmatpush1.xpose.msra.mxu0 %v9456
  %9651 = vmatprep.subr.mxu0 0.0
  %9652 = vmatpush1.xpose.msra.mxu0 %v9453
  %9653 = vmatprep.subr.mxu0 0.0
  %9654 = vmatpush1.xpose.msra.mxu0 %v9450
  %9655 = vmatprep.subr.mxu0 0.0
  %9656 = vmatpush1.xpose.msra.mxu0 %v9447
  %9657 = vmatprep.subr.mxu0 0.0
  %9658 = vmatpush2.xpose.msra.mxu0 %v9540
  %9659 = vmatprep.subr.mxu0 0.0
  %9660 = vmatpush2.xpose.msra.mxu0 %v9537
  %9661 = vmatprep.subr.mxu0 0.0
  %9662 = vmatpush2.xpose.msra.mxu0 %v9534
  %9663 = vmatprep.subr.mxu0 0.0
  %9664 = vmatpush2.xpose.msra.mxu0 %v9531
  %9665 = vmatprep.subr.mxu0 0.0
  %9666 = vmatpush2.xpose.msra.mxu0 %v9528
  %9667 = vmatprep.subr.mxu0 0.0
  %9668 = vmatpush2.xpose.msra.mxu0 %v9525
  %9669 = vmatprep.subr.mxu0 0.0
  %9670 = vmatpush2.xpose.msra.mxu0 %v9522
  %9671 = vmatprep.subr.mxu0 0.0
  %9672 = vmatpush2.xpose.msra.mxu0 %v9519
  %9673 = vmatprep.subr.mxu0 0.0
  %9674 = vmatpush2.xpose.msra.mxu0 %v9516
  %9675 = vmatprep.subr.mxu0 0.0
  %9676 = vmatpush2.xpose.msra.mxu0 %v9513
  %9677 = vmatprep.subr.mxu0 0.0
  %9678 = vmatpush2.xpose.msra.mxu0 %v9510
  %9679 = vmatprep.subr.mxu0 0.0
  %9680 = vmatpush2.xpose.msra.mxu0 %v9507
  %9681 = vmatprep.subr.mxu0 0.0
  %9682 = vmatpush2.xpose.msra.mxu0 %v9504
  %9683 = vmatprep.subr.mxu0 0.0
  %9684 = vmatpush2.xpose.msra.mxu0 %v9501
  %9685 = vmatprep.subr.mxu0 0.0
  %9686 = vmatpush2.xpose.msra.mxu0 %v9498
  %9687 = vmatprep.subr.mxu0 0.0
  %9688 = vmatpush2.xpose.msra.mxu0 %v9495
  %9689 = vmatprep.mubr.f32.mxu0 0.0
  %9690 = vmatmul.mubr.f32.gmra.mxu0 %v9342
  %v9691 = vpop.f32.mrf.mxu0
  %v9692 = vadd.f32 %v9328, %v9691
  %v9693 = vpop.f32.mrf.mxu0
  %v9694 = vadd.f32 %v9328, %v9693
  %9695 = vmatprep.mubr.f32.mxu0 0.0
  %9696 = vmatmul.mubr.f32.gmra.mxu0 %v9345
  %v9697 = vpop.f32.mrf.mxu0
  %v9698 = vadd.f32 %v9333, %v9697
  %v9699 = vpop.f32.mrf.mxu0
  %v9700 = vadd.f32 %v9333, %v9699
  %9701 = vmatprep.mubr.f32.mxu0 0.0
  %9702 = vmatmul.mubr.f32.gmra.mxu0 %v9348
  %v9703 = vpop.f32.mrf.mxu0
  %v9704 = vadd.f32 %v9338, %v9703
  %v9705 = vpop.f32.mrf.mxu0
  %v9706 = vadd.f32 %v9338, %v9705
  %9707 = vdwg.mxu0
  %v9708 = vmax.f32 %v9609, 0.0
  %v9709 = vmax.f32 %v9611, 0.0
  %v9710 = vmax.f32 %v9692, 0.0
  %v9711 = vmax.f32 %v9694, 0.0
  %v9712 = vmax.f32 %v9615, 0.0
  %v9713 = vmax.f32 %v9617, 0.0
  %v9714 = vmax.f32 %v9698, 0.0
  %v9715 = vmax.f32 %v9700, 0.0
  %v9716 = vmax.f32 %v9621, 0.0
  %v9717 = vmax.f32 %v9623, 0.0
  %v9718 = vmax.f32 %v9704, 0.0
  %v9719 = vmax.f32 %v9706, 0.0
  %9720 = vst [vmem:[%s3] sm:$0xff] %v9708
  %9721 = vst [vmem:[%s3 + $0x8] sm:$0xff] %v9709
  %9722 = vst [vmem:[%s3 + $0x10] sm:$0xff] %v9712
  %9723 = vst [vmem:[%s3 + $0x18] sm:$0xff] %v9713
  %9724 = vst [vmem:[%s3 + $0x20] sm:$0xff] %v9716
  %9725 = vst [vmem:[%s3 + $0x28] sm:$0xff] %v9717
  %s9726 = scalar_lea.vmem %s3, 48
  %9727 = vst [vmem:[%s9726] sm:$0xff] %v9710
  %9728 = vst [vmem:[%s9726 + $0x8] sm:$0xff] %v9711
  %9729 = vst [vmem:[%s9726 + $0x10] sm:$0xff] %v9714
  %9730 = vst [vmem:[%s9726 + $0x18] sm:$0xff] %v9715
  %9731 = vst [vmem:[%s9726 + $0x20] sm:$0xff] %v9718
  %9732 = vst [vmem:[%s9726 + $0x28] sm:$0xff] %v9719
  // Predicated region
  $region14: #{inception_forward.1} parent=0 // pred_check
    _
  $region15: #{inception_forward.1} parent=0 // pred_check_branch
    %9734 = sbr.rel (0) target = $region17
  $region16: #{inception_forward.1} parent=0 // pred_region
    _
  $region17: #{inception_forward.1} parent=0 // pred_fallthru
    _
  // Predicated region
  $region18: #{inception_forward.1} parent=0 // pred_check
    _
  $region19: #{inception_forward.1} parent=0 // pred_check_branch
    %9736 = sbr.rel (0) target = $region21
  $region20: #{inception_forward.1} parent=0 // pred_region
    _
  $region21: #{inception_forward.1} parent=0 // pred_fallthru
    _

</llo_original>
